<compile_context>
chip_gen: v7x
topology: tpu7x:2x2x1
jax: 0.10.0
libtpu: 0.0.40
codegen_flags: <defaults>
</compile_context>

<pallas_src>
import jax
import jax.numpy as jnp
from jax.experimental import pallas as pl
from jax.experimental.pallas import tpu as pltpu

# ---- dims implied by the module (Linear(17920, 6) => input length 561) -----
L_IN = 561
K1, C1, PAD1 = 9, 64, 4
K1P = 16                        # stride-4 im2col window: 4 positions x 9 taps -> 12, padded to 16
L_M = L_IN // 2                 # 280 (MaxPool1d(2,2), floor -> drops position 560)
K2, C2, PAD2 = 5, 128, 2
L_A = L_M // 2                  # 140 (AvgPool1d(2,2))
T1 = 144                        # per-sample matmul rows, padded 140 -> 144 (multiple of 8)
P1_ROWS = T1 + 2                # pooled scratch rows: 1 left pad + 140 real + 5 right pad/garbage
LXP = 4 * T1 + K1P              # 592: zero-extended conv1 input length
FEAT = C2 * L_A                 # 17920
NUM_CLASSES = 6
BN_EPS = 1e-5
TB_MAX = 32                     # max samples per grid step (sweep 16/32)


def fused_kernel(xc_ref, w1_ref, b1_ref, w2_ref, b2_ref, wm_ref, bl_ref,
                 o_ref, p1_ref):
    """conv1+BN+ReLU+maxpool -> conv2+BN+ReLU -> avgpool+linear for TB samples."""
    tb = xc_ref.shape[0]

    # conv1 + BN + ReLU + MaxPool1d(2,2): one bf16 (tb*144,16)@(16,256) MXU matmul.
    # Output lanes: [0:64)=pos 4t, [64:128)=4t+2, [128:192)=4t+1, [192:256)=4t+3,
    # so the pool is a vreg-aligned 128-lane-half max and the result row t holds
    # pool positions (2t | 2t+1) packed on 128 lanes.
    xc = xc_ref[...].reshape(tb * T1, K1P)                       # bf16
    c1 = jnp.dot(xc, w1_ref[...], preferred_element_type=jnp.float32) + b1_ref[...]
    c1 = jnp.maximum(c1, 0.0)
    m = jnp.maximum(c1[:, :2 * C1], c1[:, 2 * C1:]).reshape(tb, T1, 2 * C1)
    # NOTE: F.dropout(p=0.3) is the identity at inference time.

    # Zero the 1 left / 5 right pad+garbage rows (cheap, every step: megacore-safe),
    # then place the 140 real pooled rows (f32 scratch, proven unaligned-store path).
    p1_ref[:, 0:1, :] = jnp.zeros((tb, 1, 2 * C1), jnp.float32)
    p1_ref[:, 1 + L_A:, :] = jnp.zeros((tb, P1_ROWS - 1 - L_A, 2 * C1), jnp.float32)
    p1_ref[:, 1:1 + L_A, :] = m[:, :L_A, :]

    # conv2 + BN + ReLU: 3 accumulated bf16 (tb*144,128)@(128,256) matmuls.
    # Output lanes [0:128) = conv2 position 2l', [128:256) = position 2l'+1.
    acc = None
    for d in range(3):
        lhs = p1_ref[:, d:d + T1, :].reshape(tb * T1, 2 * C1).astype(jnp.bfloat16)
        part = jnp.dot(lhs, w2_ref[d * 2 * C1:(d + 1) * 2 * C1, :],
                       preferred_element_type=jnp.float32)
        acc = part if acc is None else acc + part
    c2 = jnp.maximum(acc + b2_ref[...], 0.0)                     # (tb*144, 256)

    # AvgPool1d(2,2) = vreg-aligned lane-half add (0.5 folded into wm), then
    # channel-major flatten + Linear(17920,6) as 6 VPU multiply-reduces over the
    # (tb,144,128) pooled features (wm rows >= 140 are zero -> garbage masked).
    c2p = (c2[:, :C2] + c2[:, C2:]).reshape(tb, T1, C2)
    cols = []
    for o in range(NUM_CLASSES):
        s = jnp.sum(c2p * wm_ref[o], axis=1)                     # (tb, 128)
        cols.append(jnp.sum(s, axis=1, keepdims=True))           # (tb, 1)
    o_ref[...] = jnp.concatenate(cols, axis=1) + bl_ref[...]     # (tb, 6)


def ucihar_pallas(xcol, w1p, b1p, w2p, b2p, wm, blin, tb):
    bp = xcol.shape[0]
    return pl.pallas_call(
        fused_kernel,
        out_shape=jax.ShapeDtypeStruct((bp, NUM_CLASSES), jnp.float32),
        grid_spec=pltpu.PrefetchScalarGridSpec(
            num_scalar_prefetch=0,
            grid=(bp // tb,),
            in_specs=[
                pl.BlockSpec((tb, T1, K1P), lambda i: (i, 0, 0)),          # bf16 im2col
                pl.BlockSpec((K1P, 4 * C1), lambda i: (0, 0)),             # bf16 conv1 w
                pl.BlockSpec((1, 4 * C1), lambda i: (0, 0)),               # f32 conv1 bias
                pl.BlockSpec((6 * C1, 2 * C2), lambda i: (0, 0)),          # bf16 conv2 w
                pl.BlockSpec((1, 2 * C2), lambda i: (0, 0)),               # f32 conv2 bias
                pl.BlockSpec((NUM_CLASSES, T1, C2), lambda i: (0, 0, 0)),  # f32 classifier w
                pl.BlockSpec((1, NUM_CLASSES), lambda i: (0, 0)),          # f32 classifier b
            ],
            out_specs=pl.BlockSpec((tb, NUM_CLASSES), lambda i: (i, 0)),
            scratch_shapes=[
                pltpu.VMEM((tb, P1_ROWS, 2 * C1), jnp.float32),  # paired pooled acts (+pad)
            ],
        ),
        compiler_params=pltpu.CompilerParams(
            dimension_semantics=("parallel",),        # batch axis -> megacore on v7x
            vmem_limit_bytes=48 * 1024 * 1024),
    )(xcol, w1p, b1p, w2p, b2p, wm, blin)


def _pick_tb(batch):
    """Pad batch to a multiple of 8 and pick TB, preferring >=2 grid steps."""
    bp = ((batch + 7) // 8) * 8
    tb = 8
    for cand in (16, 32):
        if cand <= TB_MAX and bp % cand == 0 and bp // cand >= 2:
            tb = cand
    return bp, tb


@jax.jit
def net_ucihar_forward(x, p):
    """JAX/Pallas equivalent of NetUCIHAR.forward (eval mode, der=False)."""
    B = x.shape[0]
    bp, tb = _pick_tb(B)

    # Fold eval-mode BatchNorm into conv weights / biases (plain-JAX glue).
    s1 = p["bn1_g"] / jnp.sqrt(p["bn1_v"] + BN_EPS)
    w1k = p["conv1_w"][:, 0, :].T * s1[None, :]                       # (9, 64)
    b1f = (p["conv1_b"] - p["bn1_m"]) * s1 + p["bn1_b"]               # (64,)
    s2 = p["bn2_g"] / jnp.sqrt(p["bn2_v"] + BN_EPS)
    w2k = jnp.transpose(p["conv2_w"], (2, 1, 0)) * s2[None, None, :]  # (5, 64, 128)
    b2f = (p["conv2_b"] - p["bn2_m"]) * s2 + p["bn2_b"]               # (128,)

    # conv1 weight: one stride-4 im2col row produces 4 conv positions on 256 lanes.
    # lane blocks: [0:64)=shift 0 (pos 4t), [64:128)=shift 2 (4t+2),
    #              [128:192)=shift 1 (4t+1), [192:256)=shift 3 (4t+3).
    w1p = jnp.zeros((K1P, 4 * C1), jnp.float32)
    for blk, sh in enumerate((0, 2, 1, 3)):
        w1p = w1p.at[sh:sh + K1, blk * C1:(blk + 1) * C1].set(w1k)
    w1p = w1p.astype(jnp.bfloat16)
    b1p = jnp.tile(b1f, 4).reshape(1, 4 * C1)

    # conv2 weight: 3 paired-row taps (K=384), even/odd output positions packed
    # on 256 lanes; w2p[d*64+ci, 0:128] -> even (pos 2l'), shifted by 64 rows for odd.
    w2p = jnp.zeros((6 * C1, 2 * C2), jnp.float32)
    for d in range(K2):
        w2p = w2p.at[d * C1:(d + 1) * C1, 0:C2].set(w2k[d])
        w2p = w2p.at[(d + 1) * C1:(d + 2) * C1, C2:2 * C2].set(w2k[d])
    w2p = w2p.astype(jnp.bfloat16)
    b2p = jnp.tile(b2f, 2).reshape(1, 2 * C2)

    # AvgPool(0.5) + channel-major torch.flatten + Linear folded into (6,144,128):
    # wm[o, l', c] = 0.5 * lin_w[o, c*140 + l'] for l' < 140, zero for pad rows.
    wm = jnp.zeros((NUM_CLASSES, T1, C2), jnp.float32)
    wm = wm.at[:, :L_A, :].set(
        0.5 * p["lin_w"].reshape(NUM_CLASSES, C2, L_A).transpose(0, 2, 1))
    blin = p["lin_b"].reshape(1, NUM_CLASSES)

    # Stride-4 im2col of the zero-padded input: xcol[b, t, u] = xpad[b, 4t + u].
    xp = jnp.zeros((bp, LXP), jnp.float32)
    xp = xp.at[:B, PAD1:PAD1 + L_IN].set(x.astype(jnp.float32))
    xcol = jnp.stack([xp[:, u:u + 4 * T1:4] for u in range(K1P)], axis=-1)
    xcol = xcol.astype(jnp.bfloat16)                                  # (bp, 144, 16)

    return ucihar_pallas(xcol, w1p, b1p, w2p, b2p, wm, blin, tb)[:B]


# ------------------------- pure-JAX reference ------------------------------
def _conv1d_ref(x, w, b, pad):
    # x: (B, Cin, L), w: (Cout, Cin, K)
    Bn, Cin, L = x.shape
    K = w.shape[-1]
    xp = jnp.pad(x, ((0, 0), (0, 0), (pad, pad)))
    out = jnp.zeros((Bn, w.shape[0], L), jnp.float32)
    for k in range(K):
        out = out + jnp.einsum("bcl,oc->bol", xp[:, :, k:k + L], w[:, :, k],
                               precision=jax.lax.Precision.HIGHEST)
    return out + b[None, :, None]


def _bn_ref(x, g, b, m, v):
    return (x - m[None, :, None]) / jnp.sqrt(v + BN_EPS)[None, :, None] \
        * g[None, :, None] + b[None, :, None]


def reference_forward(x, p):
    h = x[:, None, :].astype(jnp.float32)                                # (B, 1, 561)
    h = _conv1d_ref(h, p["conv1_w"], p["conv1_b"], PAD1)
    h = jnp.maximum(_bn_ref(h, p["bn1_g"], p["bn1_b"], p["bn1_m"], p["bn1_v"]), 0.0)
    h = h[:, :, :2 * L_M].reshape(h.shape[0], C1, L_M, 2).max(axis=-1)
    h = _conv1d_ref(h, p["conv2_w"], p["conv2_b"], PAD2)
    h = jnp.maximum(_bn_ref(h, p["bn2_g"], p["bn2_b"], p["bn2_m"], p["bn2_v"]), 0.0)
    h = h.reshape(h.shape[0], C2, L_A, 2).mean(axis=-1)
    h = h.reshape(h.shape[0], FEAT)                                      # torch.flatten
    return jnp.dot(h, p["lin_w"].T, precision=jax.lax.Precision.HIGHEST) \
        + p["lin_b"][None, :]


# ------------------------- deterministic params -----------------------------
def init_params(key):
    ks = jax.random.split(key, 16)

    def unif(k, shape, fan_in):
        bound = 1.0 / (fan_in ** 0.5)
        return jax.random.uniform(k, shape, jnp.float32, -bound, bound)

    return {
        "conv1_w": unif(ks[0], (C1, 1, K1), 1 * K1),
        "conv1_b": unif(ks[1], (C1,), 1 * K1),
        "bn1_g": 1.0 + 0.1 * jax.random.normal(ks[2], (C1,), jnp.float32),
        "bn1_b": 0.1 * jax.random.normal(ks[3], (C1,), jnp.float32),
        "bn1_m": 0.05 * jax.random.normal(ks[4], (C1,), jnp.float32),
        "bn1_v": 1.0 + 0.1 * jax.random.uniform(ks[5], (C1,), jnp.float32),
        "conv2_w": unif(ks[6], (C2, C1, K2), C1 * K2),
        "conv2_b": unif(ks[7], (C2,), C1 * K2),
        "bn2_g": 1.0 + 0.1 * jax.random.normal(ks[8], (C2,), jnp.float32),
        "bn2_b": 0.1 * jax.random.normal(ks[9], (C2,), jnp.float32),
        "bn2_m": 0.05 * jax.random.normal(ks[10], (C2,), jnp.float32),
        "bn2_v": 1.0 + 0.1 * jax.random.uniform(ks[11], (C2,), jnp.float32),
        "lin_w": unif(ks[12], (NUM_CLASSES, FEAT), FEAT),
        "lin_b": unif(ks[13], (NUM_CLASSES,), FEAT),
    }


if __name__ == "__main__":
    key = jax.random.PRNGKey(0)
    k_param, k_x = jax.random.split(key)
    params = init_params(k_param)
    # batch=2 rows of a 561-feature UCI-HAR sample (length implied by Linear(17920, 6))
    x = jax.random.normal(k_x, (2, L_IN), dtype=jnp.float32)

    out = net_ucihar_forward(x, params)
    out = jax.block_until_ready(out)
    assert out.shape == (2, NUM_CLASSES) and out.dtype == jnp.float32

    ref = reference_forward(x, params)
    if not bool(jnp.allclose(out, ref, rtol=2e-2, atol=2e-2)):
        raise RuntimeError(
            f"mismatch vs reference: max |diff| = {float(jnp.max(jnp.abs(out - ref)))}")
    print("KERNEL_OK")
</pallas_src>

<mosaic_0001>
module attributes {stable_mosaic.version = 11 : i64} {
  func.func @fused_kernel(%arg0: i32, %arg1: memref<8x144x16xbf16, #tpu.memory_space<vmem>>, %arg2: memref<16x256xbf16, #tpu.memory_space<vmem>>, %arg3: memref<1x256xf32, #tpu.memory_space<vmem>>, %arg4: memref<384x256xbf16, #tpu.memory_space<vmem>>, %arg5: memref<1x256xf32, #tpu.memory_space<vmem>>, %arg6: memref<6x144x128xf32, #tpu.memory_space<vmem>>, %arg7: memref<1x6xf32, #tpu.memory_space<vmem>>, %arg8: memref<8x6xf32, #tpu.memory_space<vmem>>, %arg9: memref<8x146x128xf32, #tpu.memory_space<vmem>>) attributes {dimension_semantics = [#tpu.dimension_semantics<parallel>], iteration_bounds = array<i64: 1>, scalar_prefetch = 0 : i64, scratch_operands = 1 : i64, tpu.core_type = #tpu.core_type<tc>, window_params = [{transform_indices = @transform_0, window_bounds = array<i64: 8, 144, 16>}, {pipeline_mode = #tpu.pipeline_mode<synchronous>, transform_indices = @transform_1, window_bounds = array<i64: 16, 256>}, {pipeline_mode = #tpu.pipeline_mode<synchronous>, transform_indices = @transform_2, window_bounds = array<i64: 1, 256>}, {pipeline_mode = #tpu.pipeline_mode<synchronous>, transform_indices = @transform_3, window_bounds = array<i64: 384, 256>}, {pipeline_mode = #tpu.pipeline_mode<synchronous>, transform_indices = @transform_4, window_bounds = array<i64: 1, 256>}, {pipeline_mode = #tpu.pipeline_mode<synchronous>, transform_indices = @transform_5, window_bounds = array<i64: 6, 144, 128>}, {pipeline_mode = #tpu.pipeline_mode<synchronous>, transform_indices = @transform_6, window_bounds = array<i64: 1, 6>}, {transform_indices = @transform_7, window_bounds = array<i64: 8, 6>}]} {
    %c0 = arith.constant 0 : index
    %c0_0 = arith.constant 0 : index
    %c0_1 = arith.constant 0 : index
    %0 = vector.load %arg1[%c0, %c0_0, %c0_1] : memref<8x144x16xbf16, #tpu.memory_space<vmem>>, vector<8x144x16xbf16>
    %1 = vector.shape_cast %0 : vector<8x144x16xbf16> to vector<1152x16xbf16>
    %c0_2 = arith.constant 0 : index
    %c0_3 = arith.constant 0 : index
    %2 = vector.load %arg2[%c0_2, %c0_3] : memref<16x256xbf16, #tpu.memory_space<vmem>>, vector<16x256xbf16>
    %cst = arith.constant dense<0.000000e+00> : vector<1152x256xf32>
    %3 = tpu.matmul %1, %2, %cst {dimension_numbers = #tpu.dot_dimension_numbers<[1], [0], [0], [1], [0, 0, 1, 1], [], []>} : vector<1152x16xbf16>, vector<16x256xbf16>, vector<1152x256xf32> -> vector<1152x256xf32>
    %c0_4 = arith.constant 0 : index
    %c0_5 = arith.constant 0 : index
    %4 = vector.load %arg3[%c0_4, %c0_5] : memref<1x256xf32, #tpu.memory_space<vmem>>, vector<1x256xf32>
    %5 = vector.broadcast %4 : vector<1x256xf32> to vector<1152x256xf32>
    %6 = arith.addf %3, %5 : vector<1152x256xf32>
    %cst_6 = arith.constant 0.000000e+00 : f32
    %7 = vector.broadcast %cst_6 : f32 to vector<1152x256xf32>
    %8 = arith.maximumf %6, %7 : vector<1152x256xf32>
    %9 = vector.extract_strided_slice %8 {offsets = [0, 0], sizes = [1152, 128], strides = [1, 1]} : vector<1152x256xf32> to vector<1152x128xf32>
    %10 = vector.extract_strided_slice %8 {offsets = [0, 128], sizes = [1152, 128], strides = [1, 1]} : vector<1152x256xf32> to vector<1152x128xf32>
    %11 = arith.maximumf %9, %10 : vector<1152x128xf32>
    %12 = vector.shape_cast %11 : vector<1152x128xf32> to vector<8x144x128xf32>
    %cst_7 = arith.constant 0.000000e+00 : f32
    %13 = vector.broadcast %cst_7 : f32 to vector<8x1x128xf32>
    %c0_8 = arith.constant 0 : index
    %c0_9 = arith.constant 0 : index
    %c0_10 = arith.constant 0 : index
    %14 = vector.load %arg9[%c0_8, %c0_9, %c0_10] : memref<8x146x128xf32, #tpu.memory_space<vmem>>, vector<8x1x128xf32>
    tpu.vector_store %arg9[%c0_8, %c0_9, %c0_10], %13 {strides = array<i32>} : memref<8x146x128xf32, #tpu.memory_space<vmem>>, vector<8x1x128xf32>,
    %cst_11 = arith.constant 0.000000e+00 : f32
    %15 = vector.broadcast %cst_11 : f32 to vector<8x5x128xf32>
    %c0_12 = arith.constant 0 : index
    %c141 = arith.constant 141 : index
    %c0_13 = arith.constant 0 : index
    %16 = vector.load %arg9[%c0_12, %c141, %c0_13] : memref<8x146x128xf32, #tpu.memory_space<vmem>>, vector<8x5x128xf32>
    tpu.vector_store %arg9[%c0_12, %c141, %c0_13], %15 {strides = array<i32>} : memref<8x146x128xf32, #tpu.memory_space<vmem>>, vector<8x5x128xf32>,
    %17 = vector.extract_strided_slice %12 {offsets = [0, 0, 0], sizes = [8, 140, 128], strides = [1, 1, 1]} : vector<8x144x128xf32> to vector<8x140x128xf32>
    %c0_14 = arith.constant 0 : index
    %c1 = arith.constant 1 : index
    %c0_15 = arith.constant 0 : index
    %18 = vector.load %arg9[%c0_14, %c1, %c0_15] : memref<8x146x128xf32, #tpu.memory_space<vmem>>, vector<8x140x128xf32>
    tpu.vector_store %arg9[%c0_14, %c1, %c0_15], %17 {strides = array<i32>} : memref<8x146x128xf32, #tpu.memory_space<vmem>>, vector<8x140x128xf32>,
    %c0_16 = arith.constant 0 : index
    %c0_17 = arith.constant 0 : index
    %c0_18 = arith.constant 0 : index
    %19 = vector.load %arg9[%c0_16, %c0_17, %c0_18] : memref<8x146x128xf32, #tpu.memory_space<vmem>>, vector<8x144x128xf32>
    %20 = vector.shape_cast %19 : vector<8x144x128xf32> to vector<1152x128xf32>
    %21 = arith.truncf %20 : vector<1152x128xf32> to vector<1152x128xbf16>
    %c0_19 = arith.constant 0 : index
    %c0_20 = arith.constant 0 : index
    %22 = vector.load %arg4[%c0_19, %c0_20] : memref<384x256xbf16, #tpu.memory_space<vmem>>, vector<128x256xbf16>
    %cst_21 = arith.constant dense<0.000000e+00> : vector<1152x256xf32>
    %23 = tpu.matmul %21, %22, %cst_21 {dimension_numbers = #tpu.dot_dimension_numbers<[1], [0], [0], [1], [0, 0, 1, 1], [], []>} : vector<1152x128xbf16>, vector<128x256xbf16>, vector<1152x256xf32> -> vector<1152x256xf32>
    %c0_22 = arith.constant 0 : index
    %c1_23 = arith.constant 1 : index
    %c0_24 = arith.constant 0 : index
    %24 = vector.load %arg9[%c0_22, %c1_23, %c0_24] : memref<8x146x128xf32, #tpu.memory_space<vmem>>, vector<8x144x128xf32>
    %25 = vector.shape_cast %24 : vector<8x144x128xf32> to vector<1152x128xf32>
    %26 = arith.truncf %25 : vector<1152x128xf32> to vector<1152x128xbf16>
    %c128 = arith.constant 128 : index
    %c0_25 = arith.constant 0 : index
    %27 = vector.load %arg4[%c128, %c0_25] : memref<384x256xbf16, #tpu.memory_space<vmem>>, vector<128x256xbf16>
    %cst_26 = arith.constant dense<0.000000e+00> : vector<1152x256xf32>
    %28 = tpu.matmul %26, %27, %cst_26 {dimension_numbers = #tpu.dot_dimension_numbers<[1], [0], [0], [1], [0, 0, 1, 1], [], []>} : vector<1152x128xbf16>, vector<128x256xbf16>, vector<1152x256xf32> -> vector<1152x256xf32>
    %29 = arith.addf %23, %28 : vector<1152x256xf32>
    %c0_27 = arith.constant 0 : index
    %c2 = arith.constant 2 : index
    %c0_28 = arith.constant 0 : index
    %30 = vector.load %arg9[%c0_27, %c2, %c0_28] : memref<8x146x128xf32, #tpu.memory_space<vmem>>, vector<8x144x128xf32>
    %31 = vector.shape_cast %30 : vector<8x144x128xf32> to vector<1152x128xf32>
    %32 = arith.truncf %31 : vector<1152x128xf32> to vector<1152x128xbf16>
    %c256 = arith.constant 256 : index
    %c0_29 = arith.constant 0 : index
    %33 = vector.load %arg4[%c256, %c0_29] : memref<384x256xbf16, #tpu.memory_space<vmem>>, vector<128x256xbf16>
    %cst_30 = arith.constant dense<0.000000e+00> : vector<1152x256xf32>
    %34 = tpu.matmul %32, %33, %cst_30 {dimension_numbers = #tpu.dot_dimension_numbers<[1], [0], [0], [1], [0, 0, 1, 1], [], []>} : vector<1152x128xbf16>, vector<128x256xbf16>, vector<1152x256xf32> -> vector<1152x256xf32>
    %35 = arith.addf %29, %34 : vector<1152x256xf32>
    %c0_31 = arith.constant 0 : index
    %c0_32 = arith.constant 0 : index
    %36 = vector.load %arg5[%c0_31, %c0_32] : memref<1x256xf32, #tpu.memory_space<vmem>>, vector<1x256xf32>
    %37 = vector.broadcast %36 : vector<1x256xf32> to vector<1152x256xf32>
    %38 = arith.addf %35, %37 : vector<1152x256xf32>
    %cst_33 = arith.constant 0.000000e+00 : f32
    %39 = vector.broadcast %cst_33 : f32 to vector<1152x256xf32>
    %40 = arith.maximumf %38, %39 : vector<1152x256xf32>
    %41 = vector.extract_strided_slice %40 {offsets = [0, 0], sizes = [1152, 128], strides = [1, 1]} : vector<1152x256xf32> to vector<1152x128xf32>
    %42 = vector.extract_strided_slice %40 {offsets = [0, 128], sizes = [1152, 128], strides = [1, 1]} : vector<1152x256xf32> to vector<1152x128xf32>
    %43 = arith.addf %41, %42 : vector<1152x128xf32>
    %44 = vector.shape_cast %43 : vector<1152x128xf32> to vector<8x144x128xf32>
    %c0_34 = arith.constant 0 : index
    %c0_35 = arith.constant 0 : index
    %c0_36 = arith.constant 0 : index
    %45 = vector.load %arg6[%c0_34, %c0_35, %c0_36] : memref<6x144x128xf32, #tpu.memory_space<vmem>>, vector<1x144x128xf32>
    %46 = vector.shape_cast %45 : vector<1x144x128xf32> to vector<144x128xf32>
    %47 = vector.shape_cast %46 : vector<144x128xf32> to vector<1x144x128xf32>
    %48 = vector.broadcast %47 : vector<1x144x128xf32> to vector<8x144x128xf32>
    %49 = arith.mulf %44, %48 : vector<8x144x128xf32>
    %cst_37 = arith.constant dense<0.000000e+00> : vector<8x128xf32>
    %50 = vector.multi_reduction <add>, %49, %cst_37 [1] : vector<8x144x128xf32> to vector<8x128xf32>
    %cst_38 = arith.constant dense<0.000000e+00> : vector<8xf32>
    %51 = vector.multi_reduction <add>, %50, %cst_38 [1] : vector<8x128xf32> to vector<8xf32>
    %52 = vector.shape_cast %51 : vector<8xf32> to vector<8x1xf32>
    %c1_39 = arith.constant 1 : index
    %c0_40 = arith.constant 0 : index
    %c0_41 = arith.constant 0 : index
    %53 = vector.load %arg6[%c1_39, %c0_40, %c0_41] : memref<6x144x128xf32, #tpu.memory_space<vmem>>, vector<1x144x128xf32>
    %54 = vector.shape_cast %53 : vector<1x144x128xf32> to vector<144x128xf32>
    %55 = vector.shape_cast %54 : vector<144x128xf32> to vector<1x144x128xf32>
    %56 = vector.broadcast %55 : vector<1x144x128xf32> to vector<8x144x128xf32>
    %57 = arith.mulf %44, %56 : vector<8x144x128xf32>
    %cst_42 = arith.constant dense<0.000000e+00> : vector<8x128xf32>
    %58 = vector.multi_reduction <add>, %57, %cst_42 [1] : vector<8x144x128xf32> to vector<8x128xf32>
    %cst_43 = arith.constant dense<0.000000e+00> : vector<8xf32>
    %59 = vector.multi_reduction <add>, %58, %cst_43 [1] : vector<8x128xf32> to vector<8xf32>
    %60 = vector.shape_cast %59 : vector<8xf32> to vector<8x1xf32>
    %c2_44 = arith.constant 2 : index
    %c0_45 = arith.constant 0 : index
    %c0_46 = arith.constant 0 : index
    %61 = vector.load %arg6[%c2_44, %c0_45, %c0_46] : memref<6x144x128xf32, #tpu.memory_space<vmem>>, vector<1x144x128xf32>
    %62 = vector.shape_cast %61 : vector<1x144x128xf32> to vector<144x128xf32>
    %63 = vector.shape_cast %62 : vector<144x128xf32> to vector<1x144x128xf32>
    %64 = vector.broadcast %63 : vector<1x144x128xf32> to vector<8x144x128xf32>
    %65 = arith.mulf %44, %64 : vector<8x144x128xf32>
    %cst_47 = arith.constant dense<0.000000e+00> : vector<8x128xf32>
    %66 = vector.multi_reduction <add>, %65, %cst_47 [1] : vector<8x144x128xf32> to vector<8x128xf32>
    %cst_48 = arith.constant dense<0.000000e+00> : vector<8xf32>
    %67 = vector.multi_reduction <add>, %66, %cst_48 [1] : vector<8x128xf32> to vector<8xf32>
    %68 = vector.shape_cast %67 : vector<8xf32> to vector<8x1xf32>
    %c3 = arith.constant 3 : index
    %c0_49 = arith.constant 0 : index
    %c0_50 = arith.constant 0 : index
    %69 = vector.load %arg6[%c3, %c0_49, %c0_50] : memref<6x144x128xf32, #tpu.memory_space<vmem>>, vector<1x144x128xf32>
    %70 = vector.shape_cast %69 : vector<1x144x128xf32> to vector<144x128xf32>
    %71 = vector.shape_cast %70 : vector<144x128xf32> to vector<1x144x128xf32>
    %72 = vector.broadcast %71 : vector<1x144x128xf32> to vector<8x144x128xf32>
    %73 = arith.mulf %44, %72 : vector<8x144x128xf32>
    %cst_51 = arith.constant dense<0.000000e+00> : vector<8x128xf32>
    %74 = vector.multi_reduction <add>, %73, %cst_51 [1] : vector<8x144x128xf32> to vector<8x128xf32>
    %cst_52 = arith.constant dense<0.000000e+00> : vector<8xf32>
    %75 = vector.multi_reduction <add>, %74, %cst_52 [1] : vector<8x128xf32> to vector<8xf32>
    %76 = vector.shape_cast %75 : vector<8xf32> to vector<8x1xf32>
    %c4 = arith.constant 4 : index
    %c0_53 = arith.constant 0 : index
    %c0_54 = arith.constant 0 : index
    %77 = vector.load %arg6[%c4, %c0_53, %c0_54] : memref<6x144x128xf32, #tpu.memory_space<vmem>>, vector<1x144x128xf32>
    %78 = vector.shape_cast %77 : vector<1x144x128xf32> to vector<144x128xf32>
    %79 = vector.shape_cast %78 : vector<144x128xf32> to vector<1x144x128xf32>
    %80 = vector.broadcast %79 : vector<1x144x128xf32> to vector<8x144x128xf32>
    %81 = arith.mulf %44, %80 : vector<8x144x128xf32>
    %cst_55 = arith.constant dense<0.000000e+00> : vector<8x128xf32>
    %82 = vector.multi_reduction <add>, %81, %cst_55 [1] : vector<8x144x128xf32> to vector<8x128xf32>
    %cst_56 = arith.constant dense<0.000000e+00> : vector<8xf32>
    %83 = vector.multi_reduction <add>, %82, %cst_56 [1] : vector<8x128xf32> to vector<8xf32>
    %84 = vector.shape_cast %83 : vector<8xf32> to vector<8x1xf32>
    %c5 = arith.constant 5 : index
    %c0_57 = arith.constant 0 : index
    %c0_58 = arith.constant 0 : index
    %85 = vector.load %arg6[%c5, %c0_57, %c0_58] : memref<6x144x128xf32, #tpu.memory_space<vmem>>, vector<1x144x128xf32>
    %86 = vector.shape_cast %85 : vector<1x144x128xf32> to vector<144x128xf32>
    %87 = vector.shape_cast %86 : vector<144x128xf32> to vector<1x144x128xf32>
    %88 = vector.broadcast %87 : vector<1x144x128xf32> to vector<8x144x128xf32>
    %89 = arith.mulf %44, %88 : vector<8x144x128xf32>
    %cst_59 = arith.constant dense<0.000000e+00> : vector<8x128xf32>
    %90 = vector.multi_reduction <add>, %89, %cst_59 [1] : vector<8x144x128xf32> to vector<8x128xf32>
    %cst_60 = arith.constant dense<0.000000e+00> : vector<8xf32>
    %91 = vector.multi_reduction <add>, %90, %cst_60 [1] : vector<8x128xf32> to vector<8xf32>
    %92 = vector.shape_cast %91 : vector<8xf32> to vector<8x1xf32>
    %93 = tpu.concatenate %52, %60, %68, %76, %84, %92 in 1 : vector<8x1xf32>, vector<8x1xf32>, vector<8x1xf32>, vector<8x1xf32>, vector<8x1xf32>, vector<8x1xf32> -> vector<8x6xf32>
    %c0_61 = arith.constant 0 : index
    %c0_62 = arith.constant 0 : index
    %94 = vector.load %arg7[%c0_61, %c0_62] : memref<1x6xf32, #tpu.memory_space<vmem>>, vector<1x6xf32>
    %95 = vector.broadcast %94 : vector<1x6xf32> to vector<8x6xf32>
    %96 = arith.addf %93, %95 : vector<8x6xf32>
    %c0_63 = arith.constant 0 : index
    %c0_64 = arith.constant 0 : index
    %97 = vector.load %arg8[%c0_63, %c0_64] : memref<8x6xf32, #tpu.memory_space<vmem>>, vector<8x6xf32>
    tpu.vector_store %arg8[%c0_63, %c0_64], %96 {strides = array<i32>} : memref<8x6xf32, #tpu.memory_space<vmem>>, vector<8x6xf32>,
    return
  }
  func.func @transform_0(%arg0: i32) -> (i32, i32, i32) {
    %c0_i32 = arith.constant 0 : i32
    %c0_i32_0 = arith.constant 0 : i32
    %c0_i32_1 = arith.constant 0 : i32
    return %arg0, %c0_i32, %c0_i32_0 : i32, i32, i32
  }
  func.func @transform_1(%arg0: i32) -> (i32, i32) {
    %c0_i32 = arith.constant 0 : i32
    %c0_i32_0 = arith.constant 0 : i32
    %c0_i32_1 = arith.constant 0 : i32
    return %c0_i32, %c0_i32_0 : i32, i32
  }
  func.func @transform_2(%arg0: i32) -> (i32, i32) {
    %c0_i32 = arith.constant 0 : i32
    %c0_i32_0 = arith.constant 0 : i32
    %c0_i32_1 = arith.constant 0 : i32
    return %c0_i32, %c0_i32_0 : i32, i32
  }
  func.func @transform_3(%arg0: i32) -> (i32, i32) {
    %c0_i32 = arith.constant 0 : i32
    %c0_i32_0 = arith.constant 0 : i32
    %c0_i32_1 = arith.constant 0 : i32
    return %c0_i32, %c0_i32_0 : i32, i32
  }
  func.func @transform_4(%arg0: i32) -> (i32, i32) {
    %c0_i32 = arith.constant 0 : i32
    %c0_i32_0 = arith.constant 0 : i32
    %c0_i32_1 = arith.constant 0 : i32
    return %c0_i32, %c0_i32_0 : i32, i32
  }
  func.func @transform_5(%arg0: i32) -> (i32, i32, i32) {
    %c0_i32 = arith.constant 0 : i32
    %c0_i32_0 = arith.constant 0 : i32
    %c0_i32_1 = arith.constant 0 : i32
    %c0_i32_2 = arith.constant 0 : i32
    return %c0_i32, %c0_i32_0, %c0_i32_1 : i32, i32, i32
  }
  func.func @transform_6(%arg0: i32) -> (i32, i32) {
    %c0_i32 = arith.constant 0 : i32
    %c0_i32_0 = arith.constant 0 : i32
    %c0_i32_1 = arith.constant 0 : i32
    return %c0_i32, %c0_i32_0 : i32, i32
  }
  func.func @transform_7(%arg0: i32) -> (i32, i32) {
    %c0_i32 = arith.constant 0 : i32
    %c0_i32_0 = arith.constant 0 : i32
    return %arg0, %c0_i32 : i32, i32
  }
}

</mosaic_0001>

<llo_original>
// kernel: tile.13
$region0: #{tile.13}
  #allocation0 [shape = 's32[1]{0}', space=sflag, size = 0x4, scoped, tag = 'scoped memory for tile.13']
  %s0 = inlined_call_operand.vmem [shape: f32[64], index: 0, kind: input, shape index: {}]
  %s1 = inlined_call_operand.vmem [shape: f32[4,64], index: 1, kind: output, shape index: {}]
  // Predicated region
  $region2: #{tile.13} parent=0 // pred_check
    _
  $region3: #{tile.13} parent=0 // pred_check_branch
    %3 = sbr.rel (0) target = $region5
  $region4: #{tile.13} parent=0 // pred_region
    _
  $region5: #{tile.13} parent=0 // pred_fallthru
    _
  %v4 = vld [vmem:[%s0] ss:$0 sm:$0xff]
  %5 = vst [vmem:[%s1] sm:$0xf] %v4

// kernel: tile.14
$region0: #{tile.14}
  %s0 = inlined_call_operand.vmem [shape: f32[4,64], index: 0, kind: input, shape index: {}]
  %s1 = inlined_call_operand.vmem [shape: f32[1,256], index: 1, kind: output, shape index: {}]
  $region1: #{tile.14} parent=0
    #allocation0 [shape = 'u8[8192]{0}', space=vmem, size = 0x2000, scoped, tag = 'scoped mem for output reshape']
    #allocation1 [shape = 'u8[4096]{0}', space=vmem, size = 0x1000, scoped, tag = 'scoped mem for input reshape']
    %s3 = sshllo.u32 0, 4
    %v4 = vld [vmem:[%s0] sm:%s3]
    %5 = vst [vmem:[#allocation1] sm:%s3] %v4
    %s6 = smov 3
    %v7 = vld [vmem:[#allocation1] ss:$2 sm:%s6]
    %vm8 = vcmask 523264
    %9 = vst.msk [vmem:[#allocation0] ss:$8 sm:$0x3] %vm8, %v7
    %s10 = scalar_lea.vmem [#allocation1], 1
    %s11 = smov 3
    %v12 = vld [vmem:[%s10] ss:$2 sm:%s11]
    %13 = vrot.lane.b32.xlu0 %v12, 64
    %v14 = vpop.permute.xlu0 %13
    %vm15 = vcmask 1048064
    %16 = vst.msk [vmem:[#allocation0] ss:$8 sm:$0x3] %vm15, %v14
    %s18 = sshllo.u32 0, 1
    %v20 = vld [vmem:[#allocation0] sm:%s18]
    %s21 = sshllo.u32 0, 1
    %22 = vst [vmem:[%s1] sm:%s21] %v20
    %s23 = scalar_lea.vmem [#allocation0], 8
    %v24 = vld [vmem:[%s23] sm:%s18]
    %s25 = sshllo.u32 0, 1
    %s26 = scalar_lea.vmem %s1, 1
    %27 = vst [vmem:[%s26] sm:%s25] %v24

// kernel: tile.18
$region0: #{tile.18}
  #allocation0 [shape = 's32[1]{0}', space=sflag, size = 0x4, scoped, tag = 'scoped memory for tile.18']
  %s0 = inlined_call_operand.vmem [shape: f32[128], index: 0, kind: input, shape index: {}]
  %s1 = inlined_call_operand.vmem [shape: f32[2,128], index: 1, kind: output, shape index: {}]
  // Predicated region
  $region2: #{tile.18} parent=0 // pred_check
    _
  $region3: #{tile.18} parent=0 // pred_check_branch
    %3 = sbr.rel (0) target = $region5
  $region4: #{tile.18} parent=0 // pred_region
    _
  $region5: #{tile.18} parent=0 // pred_fallthru
    _
  %v4 = vld [vmem:[%s0] ss:$0 sm:$0xff]
  %5 = vst [vmem:[%s1] sm:$0x3] %v4

// kernel: net_ucihar_forward.1
$region0: #{net_ucihar_forward.1}
  #allocation0 [shape = 'u32[]', space=smem, size = 0x4, offset = 0x4, fixed_abs, tag = 'smem constant byte address 0x4 - core index']
  #allocation1 [shape = 'u32[144,128]{1,0:T(1,128)}', space=vmem, size = 0x12000, scoped, tag = 'internal scratch']
  #allocation2 [shape = 'f32[8,146,128]{2,1,0:T(8,128)}', space=vmem, size = 0x98000, scoped, tag = 'scratch operand']
  %s0 = inlined_call_operand.vmem [shape: bf16[8,144,16], index: 0, kind: input, shape index: {}]
  %s1 = inlined_call_operand.vmem [shape: bf16[16,256], index: 1, kind: input, shape index: {}]
  %s2 = inlined_call_operand.vmem [shape: f32[1,256], index: 2, kind: input, shape index: {}]
  %s3 = inlined_call_operand.vmem [shape: bf16[384,256], index: 3, kind: input, shape index: {}]
  %s4 = inlined_call_operand.vmem [shape: f32[1,256], index: 4, kind: input, shape index: {}]
  %s5 = inlined_call_operand.vmem [shape: f32[6,144,128], index: 5, kind: input, shape index: {}]
  %s6 = inlined_call_operand.vmem [shape: f32[1,6], index: 6, kind: input, shape index: {}]
  %s7 = inlined_call_operand.vmem [shape: f32[8,6], index: 7, kind: output, shape index: {}]
  %s8 = sld [smem:[#allocation0]]
  $region38: #{net_ucihar_forward.1} parent=0
    _
  %s10 = ssub.s32 1, %s8
  %s11 = scalar_select 0, %s10, %s8
  // Predicated region
  $region2: #{net_ucihar_forward.1} parent=0 // pred_check
    _
  $region3: #{net_ucihar_forward.1} parent=0 // pred_check_branch
    %13 = sbr.rel (0) target = $region5
  $region4: #{net_ucihar_forward.1} parent=0 // pred_region
    _
  $region5: #{net_ucihar_forward.1} parent=0 // pred_fallthru
    _
  // Predicated region
  $region6: #{net_ucihar_forward.1} parent=0 // pred_check
    _
  $region7: #{net_ucihar_forward.1} parent=0 // pred_check_branch
    %15 = sbr.rel (0) target = $region9
  $region8: #{net_ucihar_forward.1} parent=0 // pred_region
    _
  $region9: #{net_ucihar_forward.1} parent=0 // pred_fallthru
    _
  // Predicated region
  $region10: #{net_ucihar_forward.1} parent=0 // pred_check
    _
  $region11: #{net_ucihar_forward.1} parent=0 // pred_check_branch
    %17 = sbr.rel (0) target = $region13
  $region12: #{net_ucihar_forward.1} parent=0 // pred_region
    _
  $region13: #{net_ucihar_forward.1} parent=0 // pred_fallthru
    _
  // Predicated region
  $region14: #{net_ucihar_forward.1} parent=0 // pred_check
    _
  $region15: #{net_ucihar_forward.1} parent=0 // pred_check_branch
    %19 = sbr.rel (0) target = $region17
  $region16: #{net_ucihar_forward.1} parent=0 // pred_region
    _
  $region17: #{net_ucihar_forward.1} parent=0 // pred_fallthru
    _
  // Predicated region
  $region18: #{net_ucihar_forward.1} parent=0 // pred_check
    _
  $region19: #{net_ucihar_forward.1} parent=0 // pred_check_branch
    %21 = sbr.rel (0) target = $region21
  $region20: #{net_ucihar_forward.1} parent=0 // pred_region
    _
  $region21: #{net_ucihar_forward.1} parent=0 // pred_fallthru
    _
  // Predicated region
  $region22: #{net_ucihar_forward.1} parent=0 // pred_check
    _
  $region23: #{net_ucihar_forward.1} parent=0 // pred_check_branch
    %23 = sbr.rel (0) target = $region25
  $region24: #{net_ucihar_forward.1} parent=0 // pred_region
    _
  $region25: #{net_ucihar_forward.1} parent=0 // pred_fallthru
    _
  // Predicated region
  $region26: #{net_ucihar_forward.1} parent=0 // pred_check
    _
  $region27: #{net_ucihar_forward.1} parent=0 // pred_check_branch
    %25 = sbr.rel (0) target = $region29
  $region28: #{net_ucihar_forward.1} parent=0 // pred_region
    _
  $region29: #{net_ucihar_forward.1} parent=0 // pred_fallthru
    _
  %v27 = vld [vmem:[%s0] sm:$0xf]
  %v28 = vld [vmem:[%s0 + $0x4] sm:$0xf]
  %v29 = vld [vmem:[%s0 + $0x8] sm:$0xf]
  %v30 = vld [vmem:[%s0 + $0xc] sm:$0xf]
  %v31 = vld [vmem:[%s0 + $0x10] sm:$0xf]
  %v32 = vld [vmem:[%s0 + $0x14] sm:$0xf]
  %v33 = vld [vmem:[%s0 + $0x18] sm:$0xf]
  %v34 = vld [vmem:[%s0 + $0x1c] sm:$0xf]
  %v35 = vld [vmem:[%s0 + $0x20] sm:$0xf]
  %v36 = vld [vmem:[%s0 + $0x24] sm:$0xf]
  %v37 = vld [vmem:[%s0 + $0x28] sm:$0xf]
  %v38 = vld [vmem:[%s0 + $0x2c] sm:$0xf]
  %v39 = vld [vmem:[%s0 + $0x30] sm:$0xf]
  %v40 = vld [vmem:[%s0 + $0x34] sm:$0xf]
  %v41 = vld [vmem:[%s0 + $0x38] sm:$0xf]
  %v42 = vld [vmem:[%s0 + $0x3c] sm:$0xf]
  %v43 = vld [vmem:[%s0 + $0x40] sm:$0xf]
  %v44 = vld [vmem:[%s0 + $0x44] sm:$0xf]
  %v45 = vld [vmem:[%s0 + $0x48] sm:$0xf]
  %v46 = vld [vmem:[%s0 + $0x4c] sm:$0xf]
  %v47 = vld [vmem:[%s0 + $0x50] sm:$0xf]
  %v48 = vld [vmem:[%s0 + $0x54] sm:$0xf]
  %v49 = vld [vmem:[%s0 + $0x58] sm:$0xf]
  %v50 = vld [vmem:[%s0 + $0x5c] sm:$0xf]
  %v51 = vld [vmem:[%s0 + $0x60] sm:$0xf]
  %v52 = vld [vmem:[%s0 + $0x64] sm:$0xf]
  %v53 = vld [vmem:[%s0 + $0x68] sm:$0xf]
  %v54 = vld [vmem:[%s0 + $0x6c] sm:$0xf]
  %v55 = vld [vmem:[%s0 + $0x70] sm:$0xf]
  %v56 = vld [vmem:[%s0 + $0x74] sm:$0xf]
  %v57 = vld [vmem:[%s0 + $0x78] sm:$0xf]
  %v58 = vld [vmem:[%s0 + $0x7c] sm:$0xf]
  %v59 = vld [vmem:[%s0 + $0x80] sm:$0xf]
  %v60 = vld [vmem:[%s0 + $0x84] sm:$0xf]
  %v61 = vld [vmem:[%s0 + $0x88] sm:$0xf]
  %v62 = vld [vmem:[%s0 + $0x8c] sm:$0xf]
  %v63 = vld [vmem:[%s0 + $0x90] sm:$0xf]
  %v64 = vld [vmem:[%s0 + $0x94] sm:$0xf]
  %v65 = vld [vmem:[%s0 + $0x98] sm:$0xf]
  %v66 = vld [vmem:[%s0 + $0x9c] sm:$0xf]
  %v67 = vld [vmem:[%s0 + $0xa0] sm:$0xf]
  %v68 = vld [vmem:[%s0 + $0xa4] sm:$0xf]
  %v69 = vld [vmem:[%s0 + $0xa8] sm:$0xf]
  %v70 = vld [vmem:[%s0 + $0xac] sm:$0xf]
  %v71 = vld [vmem:[%s0 + $0xb0] sm:$0xf]
  %v72 = vld [vmem:[%s0 + $0xb4] sm:$0xf]
  %v73 = vld [vmem:[%s0 + $0xb8] sm:$0xf]
  %v74 = vld [vmem:[%s0 + $0xbc] sm:$0xf]
  %v75 = vld [vmem:[%s0 + $0xc0] sm:$0xf]
  %v76 = vld [vmem:[%s0 + $0xc4] sm:$0xf]
  %v77 = vld [vmem:[%s0 + $0xc8] sm:$0xf]
  %v78 = vld [vmem:[%s0 + $0xcc] sm:$0xf]
  %v79 = vld [vmem:[%s0 + $0xd0] sm:$0xf]
  %v80 = vld [vmem:[%s0 + $0xd4] sm:$0xf]
  %v81 = vld [vmem:[%s0 + $0xd8] sm:$0xf]
  %v82 = vld [vmem:[%s0 + $0xdc] sm:$0xf]
  %v83 = vld [vmem:[%s0 + $0xe0] sm:$0xf]
  %v84 = vld [vmem:[%s0 + $0xe4] sm:$0xf]
  %v85 = vld [vmem:[%s0 + $0xe8] sm:$0xf]
  %v86 = vld [vmem:[%s0 + $0xec] sm:$0xf]
  %v87 = vld [vmem:[%s0 + $0xf0] sm:$0xf]
  %v88 = vld [vmem:[%s0 + $0xf4] sm:$0xf]
  %v89 = vld [vmem:[%s0 + $0xf8] sm:$0xf]
  %v90 = vld [vmem:[%s0 + $0xfc] sm:$0xf]
  %v91 = vld [vmem:[%s0 + $0x100] sm:$0xf]
  %v92 = vld [vmem:[%s0 + $0x104] sm:$0xf]
  %v93 = vld [vmem:[%s0 + $0x108] sm:$0xf]
  %v94 = vld [vmem:[%s0 + $0x10c] sm:$0xf]
  %v95 = vld [vmem:[%s0 + $0x110] sm:$0xf]
  %v96 = vld [vmem:[%s0 + $0x114] sm:$0xf]
  %v97 = vld [vmem:[%s0 + $0x118] sm:$0xf]
  %v98 = vld [vmem:[%s0 + $0x11c] sm:$0xf]
  %v99 = vld [vmem:[%s0 + $0x120] sm:$0xf]
  %v100 = vld [vmem:[%s0 + $0x124] sm:$0xf]
  %v101 = vld [vmem:[%s0 + $0x128] sm:$0xf]
  %v102 = vld [vmem:[%s0 + $0x12c] sm:$0xf]
  %v103 = vld [vmem:[%s0 + $0x130] sm:$0xf]
  %v104 = vld [vmem:[%s0 + $0x134] sm:$0xf]
  %v105 = vld [vmem:[%s0 + $0x138] sm:$0xf]
  %v106 = vld [vmem:[%s0 + $0x13c] sm:$0xf]
  %v107 = vld [vmem:[%s0 + $0x140] sm:$0xf]
  %v108 = vld [vmem:[%s0 + $0x144] sm:$0xf]
  %v109 = vld [vmem:[%s0 + $0x148] sm:$0xf]
  %v110 = vld [vmem:[%s0 + $0x14c] sm:$0xf]
  %v111 = vld [vmem:[%s0 + $0x150] sm:$0xf]
  %v112 = vld [vmem:[%s0 + $0x154] sm:$0xf]
  %v113 = vld [vmem:[%s0 + $0x158] sm:$0xf]
  %v114 = vld [vmem:[%s0 + $0x15c] sm:$0xf]
  %v115 = vld [vmem:[%s0 + $0x160] sm:$0xf]
  %v116 = vld [vmem:[%s0 + $0x164] sm:$0xf]
  %v117 = vld [vmem:[%s0 + $0x168] sm:$0xf]
  %v118 = vld [vmem:[%s0 + $0x16c] sm:$0xf]
  %v119 = vld [vmem:[%s0 + $0x170] sm:$0xf]
  %v120 = vld [vmem:[%s0 + $0x174] sm:$0xf]
  %v121 = vld [vmem:[%s0 + $0x178] sm:$0xf]
  %v122 = vld [vmem:[%s0 + $0x17c] sm:$0xf]
  %v123 = vld [vmem:[%s0 + $0x180] sm:$0xf]
  %v124 = vld [vmem:[%s0 + $0x184] sm:$0xf]
  %v125 = vld [vmem:[%s0 + $0x188] sm:$0xf]
  %v126 = vld [vmem:[%s0 + $0x18c] sm:$0xf]
  %v127 = vld [vmem:[%s0 + $0x190] sm:$0xf]
  %v128 = vld [vmem:[%s0 + $0x194] sm:$0xf]
  %v129 = vld [vmem:[%s0 + $0x198] sm:$0xf]
  %v130 = vld [vmem:[%s0 + $0x19c] sm:$0xf]
  %v131 = vld [vmem:[%s0 + $0x1a0] sm:$0xf]
  %v132 = vld [vmem:[%s0 + $0x1a4] sm:$0xf]
  %v133 = vld [vmem:[%s0 + $0x1a8] sm:$0xf]
  %v134 = vld [vmem:[%s0 + $0x1ac] sm:$0xf]
  %v135 = vld [vmem:[%s0 + $0x1b0] sm:$0xf]
  %v136 = vld [vmem:[%s0 + $0x1b4] sm:$0xf]
  %v137 = vld [vmem:[%s0 + $0x1b8] sm:$0xf]
  %v138 = vld [vmem:[%s0 + $0x1bc] sm:$0xf]
  %v139 = vld [vmem:[%s0 + $0x1c0] sm:$0xf]
  %v140 = vld [vmem:[%s0 + $0x1c4] sm:$0xf]
  %v141 = vld [vmem:[%s0 + $0x1c8] sm:$0xf]
  %v142 = vld [vmem:[%s0 + $0x1cc] sm:$0xf]
  %v143 = vld [vmem:[%s0 + $0x1d0] sm:$0xf]
  %v144 = vld [vmem:[%s0 + $0x1d4] sm:$0xf]
  %v145 = vld [vmem:[%s0 + $0x1d8] sm:$0xf]
  %v146 = vld [vmem:[%s0 + $0x1dc] sm:$0xf]
  %v147 = vld [vmem:[%s0 + $0x1e0] sm:$0xf]
  %v148 = vld [vmem:[%s0 + $0x1e4] sm:$0xf]
  %v149 = vld [vmem:[%s0 + $0x1e8] sm:$0xf]
  %v150 = vld [vmem:[%s0 + $0x1ec] sm:$0xf]
  %v151 = vld [vmem:[%s0 + $0x1f0] sm:$0xf]
  %v152 = vld [vmem:[%s0 + $0x1f4] sm:$0xf]
  %v153 = vld [vmem:[%s0 + $0x1f8] sm:$0xf]
  %v154 = vld [vmem:[%s0 + $0x1fc] sm:$0xf]
  %v155 = vld [vmem:[%s0 + $0x200] sm:$0xf]
  %v156 = vld [vmem:[%s0 + $0x204] sm:$0xf]
  %v157 = vld [vmem:[%s0 + $0x208] sm:$0xf]
  %v158 = vld [vmem:[%s0 + $0x20c] sm:$0xf]
  %v159 = vld [vmem:[%s0 + $0x210] sm:$0xf]
  %v160 = vld [vmem:[%s0 + $0x214] sm:$0xf]
  %v161 = vld [vmem:[%s0 + $0x218] sm:$0xf]
  %v162 = vld [vmem:[%s0 + $0x21c] sm:$0xf]
  %v163 = vld [vmem:[%s0 + $0x220] sm:$0xf]
  %v164 = vld [vmem:[%s0 + $0x224] sm:$0xf]
  %v165 = vld [vmem:[%s0 + $0x228] sm:$0xf]
  %v166 = vld [vmem:[%s0 + $0x22c] sm:$0xf]
  %v167 = vld [vmem:[%s0 + $0x230] sm:$0xf]
  %v168 = vld [vmem:[%s0 + $0x234] sm:$0xf]
  %v169 = vld [vmem:[%s0 + $0x238] sm:$0xf]
  %v170 = vld [vmem:[%s0 + $0x23c] sm:$0xf]
  %v171 = vld [vmem:[%s1] sm:$0xff]
  %v172 = vld [vmem:[%s1 + $0x8] sm:$0xff]
  %v173 = vld [vmem:[%s2] sm:$0x3]
  %v175 = vlaneseq
  %v176 = vshrl.u32 %v175, 7
  %v177 = vsub.s32 0, %v176
  %v178 = vrot.slane %v173, %v177
  %v179 = vlaneseq
  %v180 = vshrl.u32 %v179, 7
  %v181 = vsub.s32 1, %v180
  %v182 = vrot.slane %v173, %v181
  %v329 = vunpack.c.l.b16 %v27
  %v330 = vunpack.c.l.b16 %v28
  %v331 = vunpack.c.l.b16 %v29
  %v332 = vunpack.c.l.b16 %v30
  %v333 = vunpack.c.l.b16 %v31
  %v334 = vunpack.c.l.b16 %v32
  %v335 = vunpack.c.l.b16 %v33
  %v336 = vunpack.c.l.b16 %v34
  %v337 = vunpack.c.l.b16 %v35
  %v338 = vunpack.c.l.b16 %v36
  %v339 = vunpack.c.l.b16 %v37
  %v340 = vunpack.c.l.b16 %v38
  %v341 = vunpack.c.l.b16 %v39
  %v342 = vunpack.c.l.b16 %v40
  %v343 = vunpack.c.l.b16 %v41
  %v344 = vunpack.c.l.b16 %v42
  %v345 = vunpack.c.l.b16 %v43
  %v346 = vunpack.c.l.b16 %v44
  %v347 = vunpack.c.l.b16 %v45
  %v348 = vunpack.c.l.b16 %v46
  %v349 = vunpack.c.l.b16 %v47
  %v350 = vunpack.c.l.b16 %v48
  %v351 = vunpack.c.l.b16 %v49
  %v352 = vunpack.c.l.b16 %v50
  %v353 = vunpack.c.l.b16 %v51
  %v354 = vunpack.c.l.b16 %v52
  %v355 = vunpack.c.l.b16 %v53
  %v356 = vunpack.c.l.b16 %v54
  %v357 = vunpack.c.l.b16 %v55
  %v358 = vunpack.c.l.b16 %v56
  %v359 = vunpack.c.l.b16 %v57
  %v360 = vunpack.c.l.b16 %v58
  %v361 = vunpack.c.l.b16 %v59
  %v362 = vunpack.c.l.b16 %v60
  %v363 = vunpack.c.l.b16 %v61
  %v364 = vunpack.c.l.b16 %v62
  %v365 = vunpack.c.l.b16 %v63
  %v366 = vunpack.c.l.b16 %v64
  %v367 = vunpack.c.l.b16 %v65
  %v368 = vunpack.c.l.b16 %v66
  %v369 = vunpack.c.l.b16 %v67
  %v370 = vunpack.c.l.b16 %v68
  %v371 = vunpack.c.l.b16 %v69
  %v372 = vunpack.c.l.b16 %v70
  %v373 = vunpack.c.l.b16 %v71
  %v374 = vunpack.c.l.b16 %v72
  %v375 = vunpack.c.l.b16 %v73
  %v376 = vunpack.c.l.b16 %v74
  %v377 = vunpack.c.l.b16 %v75
  %v378 = vunpack.c.l.b16 %v76
  %v379 = vunpack.c.l.b16 %v77
  %v380 = vunpack.c.l.b16 %v78
  %v381 = vunpack.c.l.b16 %v79
  %v382 = vunpack.c.l.b16 %v80
  %v383 = vunpack.c.l.b16 %v81
  %v384 = vunpack.c.l.b16 %v82
  %v385 = vunpack.c.l.b16 %v83
  %v386 = vunpack.c.l.b16 %v84
  %v387 = vunpack.c.l.b16 %v85
  %v388 = vunpack.c.l.b16 %v86
  %v389 = vunpack.c.l.b16 %v87
  %v390 = vunpack.c.l.b16 %v88
  %v391 = vunpack.c.l.b16 %v89
  %v392 = vunpack.c.l.b16 %v90
  %v393 = vunpack.c.l.b16 %v91
  %v394 = vunpack.c.l.b16 %v92
  %v395 = vunpack.c.l.b16 %v93
  %v396 = vunpack.c.l.b16 %v94
  %v397 = vunpack.c.l.b16 %v95
  %v398 = vunpack.c.l.b16 %v96
  %v399 = vunpack.c.l.b16 %v97
  %v400 = vunpack.c.l.b16 %v98
  %v401 = vunpack.c.l.b16 %v99
  %v402 = vunpack.c.l.b16 %v100
  %v403 = vunpack.c.l.b16 %v101
  %v404 = vunpack.c.l.b16 %v102
  %v405 = vunpack.c.l.b16 %v103
  %v406 = vunpack.c.l.b16 %v104
  %v407 = vunpack.c.l.b16 %v105
  %v408 = vunpack.c.l.b16 %v106
  %v409 = vunpack.c.l.b16 %v107
  %v410 = vunpack.c.l.b16 %v108
  %v411 = vunpack.c.l.b16 %v109
  %v412 = vunpack.c.l.b16 %v110
  %v413 = vunpack.c.l.b16 %v111
  %v414 = vunpack.c.l.b16 %v112
  %v415 = vunpack.c.l.b16 %v113
  %v416 = vunpack.c.l.b16 %v114
  %v417 = vunpack.c.l.b16 %v115
  %v418 = vunpack.c.l.b16 %v116
  %v419 = vunpack.c.l.b16 %v117
  %v420 = vunpack.c.l.b16 %v118
  %v421 = vunpack.c.l.b16 %v119
  %v422 = vunpack.c.l.b16 %v120
  %v423 = vunpack.c.l.b16 %v121
  %v424 = vunpack.c.l.b16 %v122
  %v425 = vunpack.c.l.b16 %v123
  %v426 = vunpack.c.l.b16 %v124
  %v427 = vunpack.c.l.b16 %v125
  %v428 = vunpack.c.l.b16 %v126
  %v429 = vunpack.c.l.b16 %v127
  %v430 = vunpack.c.l.b16 %v128
  %v431 = vunpack.c.l.b16 %v129
  %v432 = vunpack.c.l.b16 %v130
  %v433 = vunpack.c.l.b16 %v131
  %v434 = vunpack.c.l.b16 %v132
  %v435 = vunpack.c.l.b16 %v133
  %v436 = vunpack.c.l.b16 %v134
  %v437 = vunpack.c.l.b16 %v135
  %v438 = vunpack.c.l.b16 %v136
  %v439 = vunpack.c.l.b16 %v137
  %v440 = vunpack.c.l.b16 %v138
  %v441 = vunpack.c.l.b16 %v139
  %v442 = vunpack.c.l.b16 %v140
  %v443 = vunpack.c.l.b16 %v141
  %v444 = vunpack.c.l.b16 %v142
  %v445 = vunpack.c.l.b16 %v143
  %v446 = vunpack.c.l.b16 %v144
  %v447 = vunpack.c.l.b16 %v145
  %v448 = vunpack.c.l.b16 %v146
  %v449 = vunpack.c.l.b16 %v147
  %v450 = vunpack.c.l.b16 %v148
  %v451 = vunpack.c.l.b16 %v149
  %v452 = vunpack.c.l.b16 %v150
  %v453 = vunpack.c.l.b16 %v151
  %v454 = vunpack.c.l.b16 %v152
  %v455 = vunpack.c.l.b16 %v153
  %v456 = vunpack.c.l.b16 %v154
  %v457 = vunpack.c.l.b16 %v155
  %v458 = vunpack.c.l.b16 %v156
  %v459 = vunpack.c.l.b16 %v157
  %v460 = vunpack.c.l.b16 %v158
  %v461 = vunpack.c.l.b16 %v159
  %v462 = vunpack.c.l.b16 %v160
  %v463 = vunpack.c.l.b16 %v161
  %v464 = vunpack.c.l.b16 %v162
  %v465 = vunpack.c.l.b16 %v163
  %v466 = vunpack.c.l.b16 %v164
  %v467 = vunpack.c.l.b16 %v165
  %v468 = vunpack.c.l.b16 %v166
  %v469 = vunpack.c.l.b16 %v167
  %v470 = vunpack.c.l.b16 %v168
  %v471 = vunpack.c.l.b16 %v169
  %v472 = vunpack.c.l.b16 %v170
  %v473 = vpack.c.b16 %v330, %v329
  %v474 = vpack.c.b16 %v332, %v331
  %v475 = vpack.c.b16 %v334, %v333
  %v476 = vpack.c.b16 %v336, %v335
  %v477 = vpack.c.b16 %v338, %v337
  %v478 = vpack.c.b16 %v340, %v339
  %v479 = vpack.c.b16 %v342, %v341
  %v480 = vpack.c.b16 %v344, %v343
  %v481 = vpack.c.b16 %v346, %v345
  %v482 = vpack.c.b16 %v348, %v347
  %v483 = vpack.c.b16 %v350, %v349
  %v484 = vpack.c.b16 %v352, %v351
  %v485 = vpack.c.b16 %v354, %v353
  %v486 = vpack.c.b16 %v356, %v355
  %v487 = vpack.c.b16 %v358, %v357
  %v488 = vpack.c.b16 %v360, %v359
  %v489 = vpack.c.b16 %v362, %v361
  %v490 = vpack.c.b16 %v364, %v363
  %v491 = vpack.c.b16 %v366, %v365
  %v492 = vpack.c.b16 %v368, %v367
  %v493 = vpack.c.b16 %v370, %v369
  %v494 = vpack.c.b16 %v372, %v371
  %v495 = vpack.c.b16 %v374, %v373
  %v496 = vpack.c.b16 %v376, %v375
  %v497 = vpack.c.b16 %v378, %v377
  %v498 = vpack.c.b16 %v380, %v379
  %v499 = vpack.c.b16 %v382, %v381
  %v500 = vpack.c.b16 %v384, %v383
  %v501 = vpack.c.b16 %v386, %v385
  %v502 = vpack.c.b16 %v388, %v387
  %v503 = vpack.c.b16 %v390, %v389
  %v504 = vpack.c.b16 %v392, %v391
  %v505 = vpack.c.b16 %v394, %v393
  %v506 = vpack.c.b16 %v396, %v395
  %v507 = vpack.c.b16 %v398, %v397
  %v508 = vpack.c.b16 %v400, %v399
  %v509 = vpack.c.b16 %v402, %v401
  %v510 = vpack.c.b16 %v404, %v403
  %v511 = vpack.c.b16 %v406, %v405
  %v512 = vpack.c.b16 %v408, %v407
  %v513 = vpack.c.b16 %v410, %v409
  %v514 = vpack.c.b16 %v412, %v411
  %v515 = vpack.c.b16 %v414, %v413
  %v516 = vpack.c.b16 %v416, %v415
  %v517 = vpack.c.b16 %v418, %v417
  %v518 = vpack.c.b16 %v420, %v419
  %v519 = vpack.c.b16 %v422, %v421
  %v520 = vpack.c.b16 %v424, %v423
  %v521 = vpack.c.b16 %v426, %v425
  %v522 = vpack.c.b16 %v428, %v427
  %v523 = vpack.c.b16 %v430, %v429
  %v524 = vpack.c.b16 %v432, %v431
  %v525 = vpack.c.b16 %v434, %v433
  %v526 = vpack.c.b16 %v436, %v435
  %v527 = vpack.c.b16 %v438, %v437
  %v528 = vpack.c.b16 %v440, %v439
  %v529 = vpack.c.b16 %v442, %v441
  %v530 = vpack.c.b16 %v444, %v443
  %v531 = vpack.c.b16 %v446, %v445
  %v532 = vpack.c.b16 %v448, %v447
  %v533 = vpack.c.b16 %v450, %v449
  %v534 = vpack.c.b16 %v452, %v451
  %v535 = vpack.c.b16 %v454, %v453
  %v536 = vpack.c.b16 %v456, %v455
  %v537 = vpack.c.b16 %v458, %v457
  %v538 = vpack.c.b16 %v460, %v459
  %v539 = vpack.c.b16 %v462, %v461
  %v540 = vpack.c.b16 %v464, %v463
  %v541 = vpack.c.b16 %v466, %v465
  %v542 = vpack.c.b16 %v468, %v467
  %v543 = vpack.c.b16 %v470, %v469
  %v544 = vpack.c.b16 %v472, %v471
  %v547 = vunpack.c.l.b16 %v171
  %v548 = vunpack.c.h.b16 %v171
  %v549 = vunpack.c.l.b16 %v172
  %v550 = vunpack.c.h.b16 %v172
  %v551 = vpack.c.b16 %v549, %v547
  %v552 = vpack.c.b16 %v550, %v548
  %vm555 = vcmask 130048
  %v557 = vsel %vm555, %v473, 0
  %v560 = vsel %vm555, %v474, 0
  %v563 = vsel %vm555, %v475, 0
  %v566 = vsel %vm555, %v476, 0
  %v569 = vsel %vm555, %v477, 0
  %v572 = vsel %vm555, %v478, 0
  %v575 = vsel %vm555, %v479, 0
  %v578 = vsel %vm555, %v480, 0
  %v581 = vsel %vm555, %v481, 0
  %v584 = vsel %vm555, %v482, 0
  %v587 = vsel %vm555, %v483, 0
  %v590 = vsel %vm555, %v484, 0
  %v593 = vsel %vm555, %v485, 0
  %v596 = vsel %vm555, %v486, 0
  %v599 = vsel %vm555, %v487, 0
  %v602 = vsel %vm555, %v488, 0
  %v605 = vsel %vm555, %v489, 0
  %v608 = vsel %vm555, %v490, 0
  %v611 = vsel %vm555, %v491, 0
  %v614 = vsel %vm555, %v492, 0
  %v617 = vsel %vm555, %v493, 0
  %v620 = vsel %vm555, %v494, 0
  %v623 = vsel %vm555, %v495, 0
  %v626 = vsel %vm555, %v496, 0
  %v629 = vsel %vm555, %v497, 0
  %v632 = vsel %vm555, %v498, 0
  %v635 = vsel %vm555, %v499, 0
  %v638 = vsel %vm555, %v500, 0
  %v641 = vsel %vm555, %v501, 0
  %v644 = vsel %vm555, %v502, 0
  %v647 = vsel %vm555, %v503, 0
  %v650 = vsel %vm555, %v504, 0
  %v653 = vsel %vm555, %v505, 0
  %v656 = vsel %vm555, %v506, 0
  %v659 = vsel %vm555, %v507, 0
  %v662 = vsel %vm555, %v508, 0
  %v665 = vsel %vm555, %v509, 0
  %v668 = vsel %vm555, %v510, 0
  %v671 = vsel %vm555, %v511, 0
  %v674 = vsel %vm555, %v512, 0
  %v677 = vsel %vm555, %v513, 0
  %v680 = vsel %vm555, %v514, 0
  %v683 = vsel %vm555, %v515, 0
  %v686 = vsel %vm555, %v516, 0
  %v689 = vsel %vm555, %v517, 0
  %v692 = vsel %vm555, %v518, 0
  %v695 = vsel %vm555, %v519, 0
  %v698 = vsel %vm555, %v520, 0
  %v701 = vsel %vm555, %v521, 0
  %v704 = vsel %vm555, %v522, 0
  %v707 = vsel %vm555, %v523, 0
  %v710 = vsel %vm555, %v524, 0
  %v713 = vsel %vm555, %v525, 0
  %v716 = vsel %vm555, %v526, 0
  %v719 = vsel %vm555, %v527, 0
  %v722 = vsel %vm555, %v528, 0
  %v725 = vsel %vm555, %v529, 0
  %v728 = vsel %vm555, %v530, 0
  %v731 = vsel %vm555, %v531, 0
  %v734 = vsel %vm555, %v532, 0
  %v737 = vsel %vm555, %v533, 0
  %v740 = vsel %vm555, %v534, 0
  %v743 = vsel %vm555, %v535, 0
  %v746 = vsel %vm555, %v536, 0
  %v749 = vsel %vm555, %v537, 0
  %v752 = vsel %vm555, %v538, 0
  %v755 = vsel %vm555, %v539, 0
  %v758 = vsel %vm555, %v540, 0
  %v761 = vsel %vm555, %v541, 0
  %v764 = vsel %vm555, %v542, 0
  %v767 = vsel %vm555, %v543, 0
  %v770 = vsel %vm555, %v544, 0
  %772 = vmatprep.subr.bf16.mxu0 %v552
  %773 = vmatpush1.bf16.msra.mxu0 %v551
  %774 = vmatprep.subr.bf16.mxu0 0
  %775 = vmatpush1.bf16.msra.mxu0 0
  %776 = vmatprep.subr.bf16.mxu0 0
  %777 = vmatpush1.bf16.msra.mxu0 0
  %778 = vmatprep.subr.bf16.mxu0 0
  %779 = vmatpush1.bf16.msra.mxu0 0
  %780 = vmatprep.subr.bf16.mxu0 0
  %781 = vmatpush1.bf16.msra.mxu0 0
  %782 = vmatprep.subr.bf16.mxu0 0
  %783 = vmatpush1.bf16.msra.mxu0 0
  %784 = vmatprep.subr.bf16.mxu0 0
  %785 = vmatpush1.bf16.msra.mxu0 0
  %786 = vmatprep.subr.bf16.mxu0 0
  %787 = vmatpush1.bf16.msra.mxu0 0
  %788 = vmatprep.subr.bf16.mxu0 0
  %789 = vmatpush1.bf16.msra.mxu0 0
  %790 = vmatprep.subr.bf16.mxu0 0
  %791 = vmatpush1.bf16.msra.mxu0 0
  %792 = vmatprep.subr.bf16.mxu0 0
  %793 = vmatpush1.bf16.msra.mxu0 0
  %794 = vmatprep.subr.bf16.mxu0 0
  %795 = vmatpush1.bf16.msra.mxu0 0
  %796 = vmatprep.subr.bf16.mxu0 0
  %797 = vmatpush1.bf16.msra.mxu0 0
  %798 = vmatprep.subr.bf16.mxu0 0
  %799 = vmatpush1.bf16.msra.mxu0 0
  %800 = vmatprep.subr.bf16.mxu0 0
  %801 = vmatpush1.bf16.msra.mxu0 0
  %802 = vmatprep.subr.bf16.mxu0 0
  %803 = vmatpush1.bf16.msra.mxu0 0
  %804 = vmatprep.mubr.bf16.mxu0 0
  %805 = vmatmul.mubr.bf16.gmra.mrb[0].mxu0 %v557
  %v806 = vpop.f32.mrb[0].mxu0
  %v807 = vadd.f32 %v178, %v806
  %v808 = vpop.f32.mrb[0].mxu0
  %v809 = vadd.f32 %v182, %v808
  %v810 = vpop.f32.mrb[0].mxu0
  %v811 = vadd.f32 %v178, %v810
  %v812 = vpop.f32.mrb[0].mxu0
  %v813 = vadd.f32 %v182, %v812
  %814 = vmatprep.mubr.bf16.mxu0 0
  %815 = vmatmul.mubr.bf16.gmra.mrb[0].mxu0 %v560
  %v816 = vpop.f32.mrb[0].mxu0
  %v817 = vadd.f32 %v178, %v816
  %v818 = vpop.f32.mrb[0].mxu0
  %v819 = vadd.f32 %v182, %v818
  %v820 = vpop.f32.mrb[0].mxu0
  %v821 = vadd.f32 %v178, %v820
  %v822 = vpop.f32.mrb[0].mxu0
  %v823 = vadd.f32 %v182, %v822
  %824 = vmatprep.mubr.bf16.mxu0 0
  %825 = vmatmul.mubr.bf16.gmra.mrb[0].mxu0 %v563
  %v826 = vpop.f32.mrb[0].mxu0
  %v827 = vadd.f32 %v178, %v826
  %v828 = vpop.f32.mrb[0].mxu0
  %v829 = vadd.f32 %v182, %v828
  %v830 = vpop.f32.mrb[0].mxu0
  %v831 = vadd.f32 %v178, %v830
  %v832 = vpop.f32.mrb[0].mxu0
  %v833 = vadd.f32 %v182, %v832
  %834 = vmatprep.mubr.bf16.mxu0 0
  %835 = vmatmul.mubr.bf16.gmra.mrb[0].mxu0 %v566
  %v836 = vpop.f32.mrb[0].mxu0
  %v837 = vadd.f32 %v178, %v836
  %v838 = vpop.f32.mrb[0].mxu0
  %v839 = vadd.f32 %v182, %v838
  %v840 = vpop.f32.mrb[0].mxu0
  %v841 = vadd.f32 %v178, %v840
  %v842 = vpop.f32.mrb[0].mxu0
  %v843 = vadd.f32 %v182, %v842
  %844 = vmatprep.mubr.bf16.mxu0 0
  %845 = vmatmul.mubr.bf16.gmra.mrb[0].mxu0 %v569
  %v846 = vpop.f32.mrb[0].mxu0
  %v847 = vadd.f32 %v178, %v846
  %v848 = vpop.f32.mrb[0].mxu0
  %v849 = vadd.f32 %v182, %v848
  %v850 = vpop.f32.mrb[0].mxu0
  %v851 = vadd.f32 %v178, %v850
  %v852 = vpop.f32.mrb[0].mxu0
  %v853 = vadd.f32 %v182, %v852
  %854 = vmatprep.mubr.bf16.mxu0 0
  %855 = vmatmul.mubr.bf16.gmra.mrb[0].mxu0 %v572
  %v856 = vpop.f32.mrb[0].mxu0
  %v857 = vadd.f32 %v178, %v856
  %v858 = vpop.f32.mrb[0].mxu0
  %v859 = vadd.f32 %v182, %v858
  %v860 = vpop.f32.mrb[0].mxu0
  %v861 = vadd.f32 %v178, %v860
  %v862 = vpop.f32.mrb[0].mxu0
  %v863 = vadd.f32 %v182, %v862
  %864 = vmatprep.mubr.bf16.mxu0 0
  %865 = vmatmul.mubr.bf16.gmra.mrb[0].mxu0 %v575
  %v866 = vpop.f32.mrb[0].mxu0
  %v867 = vadd.f32 %v178, %v866
  %v868 = vpop.f32.mrb[0].mxu0
  %v869 = vadd.f32 %v182, %v868
  %v870 = vpop.f32.mrb[0].mxu0
  %v871 = vadd.f32 %v178, %v870
  %v872 = vpop.f32.mrb[0].mxu0
  %v873 = vadd.f32 %v182, %v872
  %874 = vmatprep.mubr.bf16.mxu0 0
  %875 = vmatmul.mubr.bf16.gmra.mrb[0].mxu0 %v578
  %v876 = vpop.f32.mrb[0].mxu0
  %v877 = vadd.f32 %v178, %v876
  %v878 = vpop.f32.mrb[0].mxu0
  %v879 = vadd.f32 %v182, %v878
  %v880 = vpop.f32.mrb[0].mxu0
  %v881 = vadd.f32 %v178, %v880
  %v882 = vpop.f32.mrb[0].mxu0
  %v883 = vadd.f32 %v182, %v882
  %884 = vmatprep.mubr.bf16.mxu0 0
  %885 = vmatmul.mubr.bf16.gmra.mrb[0].mxu0 %v581
  %v886 = vpop.f32.mrb[0].mxu0
  %v887 = vadd.f32 %v178, %v886
  %v888 = vpop.f32.mrb[0].mxu0
  %v889 = vadd.f32 %v182, %v888
  %v890 = vpop.f32.mrb[0].mxu0
  %v891 = vadd.f32 %v178, %v890
  %v892 = vpop.f32.mrb[0].mxu0
  %v893 = vadd.f32 %v182, %v892
  %894 = vmatprep.mubr.bf16.mxu0 0
  %895 = vmatmul.mubr.bf16.gmra.mrb[0].mxu0 %v584
  %v896 = vpop.f32.mrb[0].mxu0
  %v897 = vadd.f32 %v178, %v896
  %v898 = vpop.f32.mrb[0].mxu0
  %v899 = vadd.f32 %v182, %v898
  %v900 = vpop.f32.mrb[0].mxu0
  %v901 = vadd.f32 %v178, %v900
  %v902 = vpop.f32.mrb[0].mxu0
  %v903 = vadd.f32 %v182, %v902
  %904 = vmatprep.mubr.bf16.mxu0 0
  %905 = vmatmul.mubr.bf16.gmra.mrb[0].mxu0 %v587
  %v906 = vpop.f32.mrb[0].mxu0
  %v907 = vadd.f32 %v178, %v906
  %v908 = vpop.f32.mrb[0].mxu0
  %v909 = vadd.f32 %v182, %v908
  %v910 = vpop.f32.mrb[0].mxu0
  %v911 = vadd.f32 %v178, %v910
  %v912 = vpop.f32.mrb[0].mxu0
  %v913 = vadd.f32 %v182, %v912
  %914 = vmatprep.mubr.bf16.mxu0 0
  %915 = vmatmul.mubr.bf16.gmra.mrb[0].mxu0 %v590
  %v916 = vpop.f32.mrb[0].mxu0
  %v917 = vadd.f32 %v178, %v916
  %v918 = vpop.f32.mrb[0].mxu0
  %v919 = vadd.f32 %v182, %v918
  %v920 = vpop.f32.mrb[0].mxu0
  %v921 = vadd.f32 %v178, %v920
  %v922 = vpop.f32.mrb[0].mxu0
  %v923 = vadd.f32 %v182, %v922
  %924 = vmatprep.mubr.bf16.mxu0 0
  %925 = vmatmul.mubr.bf16.gmra.mrb[0].mxu0 %v593
  %v926 = vpop.f32.mrb[0].mxu0
  %v927 = vadd.f32 %v178, %v926
  %v928 = vpop.f32.mrb[0].mxu0
  %v929 = vadd.f32 %v182, %v928
  %v930 = vpop.f32.mrb[0].mxu0
  %v931 = vadd.f32 %v178, %v930
  %v932 = vpop.f32.mrb[0].mxu0
  %v933 = vadd.f32 %v182, %v932
  %934 = vmatprep.mubr.bf16.mxu0 0
  %935 = vmatmul.mubr.bf16.gmra.mrb[0].mxu0 %v596
  %v936 = vpop.f32.mrb[0].mxu0
  %v937 = vadd.f32 %v178, %v936
  %v938 = vpop.f32.mrb[0].mxu0
  %v939 = vadd.f32 %v182, %v938
  %v940 = vpop.f32.mrb[0].mxu0
  %v941 = vadd.f32 %v178, %v940
  %v942 = vpop.f32.mrb[0].mxu0
  %v943 = vadd.f32 %v182, %v942
  %944 = vmatprep.mubr.bf16.mxu0 0
  %945 = vmatmul.mubr.bf16.gmra.mrb[0].mxu0 %v599
  %v946 = vpop.f32.mrb[0].mxu0
  %v947 = vadd.f32 %v178, %v946
  %v948 = vpop.f32.mrb[0].mxu0
  %v949 = vadd.f32 %v182, %v948
  %v950 = vpop.f32.mrb[0].mxu0
  %v951 = vadd.f32 %v178, %v950
  %v952 = vpop.f32.mrb[0].mxu0
  %v953 = vadd.f32 %v182, %v952
  %954 = vmatprep.mubr.bf16.mxu0 0
  %955 = vmatmul.mubr.bf16.gmra.mrb[0].mxu0 %v602
  %v956 = vpop.f32.mrb[0].mxu0
  %v957 = vadd.f32 %v178, %v956
  %v958 = vpop.f32.mrb[0].mxu0
  %v959 = vadd.f32 %v182, %v958
  %v960 = vpop.f32.mrb[0].mxu0
  %v961 = vadd.f32 %v178, %v960
  %v962 = vpop.f32.mrb[0].mxu0
  %v963 = vadd.f32 %v182, %v962
  %964 = vmatprep.mubr.bf16.mxu0 0
  %965 = vmatmul.mubr.bf16.gmra.mrb[0].mxu0 %v605
  %v966 = vpop.f32.mrb[0].mxu0
  %v967 = vadd.f32 %v178, %v966
  %v968 = vpop.f32.mrb[0].mxu0
  %v969 = vadd.f32 %v182, %v968
  %v970 = vpop.f32.mrb[0].mxu0
  %v971 = vadd.f32 %v178, %v970
  %v972 = vpop.f32.mrb[0].mxu0
  %v973 = vadd.f32 %v182, %v972
  %974 = vmatprep.mubr.bf16.mxu0 0
  %975 = vmatmul.mubr.bf16.gmra.mrb[0].mxu0 %v608
  %v976 = vpop.f32.mrb[0].mxu0
  %v977 = vadd.f32 %v178, %v976
  %v978 = vpop.f32.mrb[0].mxu0
  %v979 = vadd.f32 %v182, %v978
  %v980 = vpop.f32.mrb[0].mxu0
  %v981 = vadd.f32 %v178, %v980
  %v982 = vpop.f32.mrb[0].mxu0
  %v983 = vadd.f32 %v182, %v982
  %984 = vmatprep.mubr.bf16.mxu0 0
  %985 = vmatmul.mubr.bf16.gmra.mrb[0].mxu0 %v611
  %v986 = vpop.f32.mrb[0].mxu0
  %v987 = vadd.f32 %v178, %v986
  %v988 = vpop.f32.mrb[0].mxu0
  %v989 = vadd.f32 %v182, %v988
  %v990 = vpop.f32.mrb[0].mxu0
  %v991 = vadd.f32 %v178, %v990
  %v992 = vpop.f32.mrb[0].mxu0
  %v993 = vadd.f32 %v182, %v992
  %994 = vmatprep.mubr.bf16.mxu0 0
  %995 = vmatmul.mubr.bf16.gmra.mrb[0].mxu0 %v614
  %v996 = vpop.f32.mrb[0].mxu0
  %v997 = vadd.f32 %v178, %v996
  %v998 = vpop.f32.mrb[0].mxu0
  %v999 = vadd.f32 %v182, %v998
  %v1000 = vpop.f32.mrb[0].mxu0
  %v1001 = vadd.f32 %v178, %v1000
  %v1002 = vpop.f32.mrb[0].mxu0
  %v1003 = vadd.f32 %v182, %v1002
  %1004 = vmatprep.mubr.bf16.mxu0 0
  %1005 = vmatmul.mubr.bf16.gmra.mrb[0].mxu0 %v617
  %v1006 = vpop.f32.mrb[0].mxu0
  %v1007 = vadd.f32 %v178, %v1006
  %v1008 = vpop.f32.mrb[0].mxu0
  %v1009 = vadd.f32 %v182, %v1008
  %v1010 = vpop.f32.mrb[0].mxu0
  %v1011 = vadd.f32 %v178, %v1010
  %v1012 = vpop.f32.mrb[0].mxu0
  %v1013 = vadd.f32 %v182, %v1012
  %1014 = vmatprep.mubr.bf16.mxu0 0
  %1015 = vmatmul.mubr.bf16.gmra.mrb[0].mxu0 %v620
  %v1016 = vpop.f32.mrb[0].mxu0
  %v1017 = vadd.f32 %v178, %v1016
  %v1018 = vpop.f32.mrb[0].mxu0
  %v1019 = vadd.f32 %v182, %v1018
  %v1020 = vpop.f32.mrb[0].mxu0
  %v1021 = vadd.f32 %v178, %v1020
  %v1022 = vpop.f32.mrb[0].mxu0
  %v1023 = vadd.f32 %v182, %v1022
  %1024 = vmatprep.mubr.bf16.mxu0 0
  %1025 = vmatmul.mubr.bf16.gmra.mrb[0].mxu0 %v623
  %v1026 = vpop.f32.mrb[0].mxu0
  %v1027 = vadd.f32 %v178, %v1026
  %v1028 = vpop.f32.mrb[0].mxu0
  %v1029 = vadd.f32 %v182, %v1028
  %v1030 = vpop.f32.mrb[0].mxu0
  %v1031 = vadd.f32 %v178, %v1030
  %v1032 = vpop.f32.mrb[0].mxu0
  %v1033 = vadd.f32 %v182, %v1032
  %1034 = vmatprep.mubr.bf16.mxu0 0
  %1035 = vmatmul.mubr.bf16.gmra.mrb[0].mxu0 %v626
  %v1036 = vpop.f32.mrb[0].mxu0
  %v1037 = vadd.f32 %v178, %v1036
  %v1038 = vpop.f32.mrb[0].mxu0
  %v1039 = vadd.f32 %v182, %v1038
  %v1040 = vpop.f32.mrb[0].mxu0
  %v1041 = vadd.f32 %v178, %v1040
  %v1042 = vpop.f32.mrb[0].mxu0
  %v1043 = vadd.f32 %v182, %v1042
  %1044 = vmatprep.mubr.bf16.mxu0 0
  %1045 = vmatmul.mubr.bf16.gmra.mrb[0].mxu0 %v629
  %v1046 = vpop.f32.mrb[0].mxu0
  %v1047 = vadd.f32 %v178, %v1046
  %v1048 = vpop.f32.mrb[0].mxu0
  %v1049 = vadd.f32 %v182, %v1048
  %v1050 = vpop.f32.mrb[0].mxu0
  %v1051 = vadd.f32 %v178, %v1050
  %v1052 = vpop.f32.mrb[0].mxu0
  %v1053 = vadd.f32 %v182, %v1052
  %1054 = vmatprep.mubr.bf16.mxu0 0
  %1055 = vmatmul.mubr.bf16.gmra.mrb[0].mxu0 %v632
  %v1056 = vpop.f32.mrb[0].mxu0
  %v1057 = vadd.f32 %v178, %v1056
  %v1058 = vpop.f32.mrb[0].mxu0
  %v1059 = vadd.f32 %v182, %v1058
  %v1060 = vpop.f32.mrb[0].mxu0
  %v1061 = vadd.f32 %v178, %v1060
  %v1062 = vpop.f32.mrb[0].mxu0
  %v1063 = vadd.f32 %v182, %v1062
  %1064 = vmatprep.mubr.bf16.mxu0 0
  %1065 = vmatmul.mubr.bf16.gmra.mrb[0].mxu0 %v635
  %v1066 = vpop.f32.mrb[0].mxu0
  %v1067 = vadd.f32 %v178, %v1066
  %v1068 = vpop.f32.mrb[0].mxu0
  %v1069 = vadd.f32 %v182, %v1068
  %v1070 = vpop.f32.mrb[0].mxu0
  %v1071 = vadd.f32 %v178, %v1070
  %v1072 = vpop.f32.mrb[0].mxu0
  %v1073 = vadd.f32 %v182, %v1072
  %1074 = vmatprep.mubr.bf16.mxu0 0
  %1075 = vmatmul.mubr.bf16.gmra.mrb[0].mxu0 %v638
  %v1076 = vpop.f32.mrb[0].mxu0
  %v1077 = vadd.f32 %v178, %v1076
  %v1078 = vpop.f32.mrb[0].mxu0
  %v1079 = vadd.f32 %v182, %v1078
  %v1080 = vpop.f32.mrb[0].mxu0
  %v1081 = vadd.f32 %v178, %v1080
  %v1082 = vpop.f32.mrb[0].mxu0
  %v1083 = vadd.f32 %v182, %v1082
  %1084 = vmatprep.mubr.bf16.mxu0 0
  %1085 = vmatmul.mubr.bf16.gmra.mrb[0].mxu0 %v641
  %v1086 = vpop.f32.mrb[0].mxu0
  %v1087 = vadd.f32 %v178, %v1086
  %v1088 = vpop.f32.mrb[0].mxu0
  %v1089 = vadd.f32 %v182, %v1088
  %v1090 = vpop.f32.mrb[0].mxu0
  %v1091 = vadd.f32 %v178, %v1090
  %v1092 = vpop.f32.mrb[0].mxu0
  %v1093 = vadd.f32 %v182, %v1092
  %1094 = vmatprep.mubr.bf16.mxu0 0
  %1095 = vmatmul.mubr.bf16.gmra.mrb[0].mxu0 %v644
  %v1096 = vpop.f32.mrb[0].mxu0
  %v1097 = vadd.f32 %v178, %v1096
  %v1098 = vpop.f32.mrb[0].mxu0
  %v1099 = vadd.f32 %v182, %v1098
  %v1100 = vpop.f32.mrb[0].mxu0
  %v1101 = vadd.f32 %v178, %v1100
  %v1102 = vpop.f32.mrb[0].mxu0
  %v1103 = vadd.f32 %v182, %v1102
  %1104 = vmatprep.mubr.bf16.mxu0 0
  %1105 = vmatmul.mubr.bf16.gmra.mrb[0].mxu0 %v647
  %v1106 = vpop.f32.mrb[0].mxu0
  %v1107 = vadd.f32 %v178, %v1106
  %v1108 = vpop.f32.mrb[0].mxu0
  %v1109 = vadd.f32 %v182, %v1108
  %v1110 = vpop.f32.mrb[0].mxu0
  %v1111 = vadd.f32 %v178, %v1110
  %v1112 = vpop.f32.mrb[0].mxu0
  %v1113 = vadd.f32 %v182, %v1112
  %1114 = vmatprep.mubr.bf16.mxu0 0
  %1115 = vmatmul.mubr.bf16.gmra.mrb[0].mxu0 %v650
  %v1116 = vpop.f32.mrb[0].mxu0
  %v1117 = vadd.f32 %v178, %v1116
  %v1118 = vpop.f32.mrb[0].mxu0
  %v1119 = vadd.f32 %v182, %v1118
  %v1120 = vpop.f32.mrb[0].mxu0
  %v1121 = vadd.f32 %v178, %v1120
  %v1122 = vpop.f32.mrb[0].mxu0
  %v1123 = vadd.f32 %v182, %v1122
  %1124 = vmatprep.mubr.bf16.mxu0 0
  %1125 = vmatmul.mubr.bf16.gmra.mrb[0].mxu0 %v653
  %v1126 = vpop.f32.mrb[0].mxu0
  %v1127 = vadd.f32 %v178, %v1126
  %v1128 = vpop.f32.mrb[0].mxu0
  %v1129 = vadd.f32 %v182, %v1128
  %v1130 = vpop.f32.mrb[0].mxu0
  %v1131 = vadd.f32 %v178, %v1130
  %v1132 = vpop.f32.mrb[0].mxu0
  %v1133 = vadd.f32 %v182, %v1132
  %1134 = vmatprep.mubr.bf16.mxu0 0
  %1135 = vmatmul.mubr.bf16.gmra.mrb[0].mxu0 %v656
  %v1136 = vpop.f32.mrb[0].mxu0
  %v1137 = vadd.f32 %v178, %v1136
  %v1138 = vpop.f32.mrb[0].mxu0
  %v1139 = vadd.f32 %v182, %v1138
  %v1140 = vpop.f32.mrb[0].mxu0
  %v1141 = vadd.f32 %v178, %v1140
  %v1142 = vpop.f32.mrb[0].mxu0
  %v1143 = vadd.f32 %v182, %v1142
  %1144 = vmatprep.mubr.bf16.mxu0 0
  %1145 = vmatmul.mubr.bf16.gmra.mrb[0].mxu0 %v659
  %v1146 = vpop.f32.mrb[0].mxu0
  %v1147 = vadd.f32 %v178, %v1146
  %v1148 = vpop.f32.mrb[0].mxu0
  %v1149 = vadd.f32 %v182, %v1148
  %v1150 = vpop.f32.mrb[0].mxu0
  %v1151 = vadd.f32 %v178, %v1150
  %v1152 = vpop.f32.mrb[0].mxu0
  %v1153 = vadd.f32 %v182, %v1152
  %1154 = vmatprep.mubr.bf16.mxu0 0
  %1155 = vmatmul.mubr.bf16.gmra.mrb[0].mxu0 %v662
  %v1156 = vpop.f32.mrb[0].mxu0
  %v1157 = vadd.f32 %v178, %v1156
  %v1158 = vpop.f32.mrb[0].mxu0
  %v1159 = vadd.f32 %v182, %v1158
  %v1160 = vpop.f32.mrb[0].mxu0
  %v1161 = vadd.f32 %v178, %v1160
  %v1162 = vpop.f32.mrb[0].mxu0
  %v1163 = vadd.f32 %v182, %v1162
  %1164 = vmatprep.mubr.bf16.mxu0 0
  %1165 = vmatmul.mubr.bf16.gmra.mrb[0].mxu0 %v665
  %v1166 = vpop.f32.mrb[0].mxu0
  %v1167 = vadd.f32 %v178, %v1166
  %v1168 = vpop.f32.mrb[0].mxu0
  %v1169 = vadd.f32 %v182, %v1168
  %v1170 = vpop.f32.mrb[0].mxu0
  %v1171 = vadd.f32 %v178, %v1170
  %v1172 = vpop.f32.mrb[0].mxu0
  %v1173 = vadd.f32 %v182, %v1172
  %1174 = vmatprep.mubr.bf16.mxu0 0
  %1175 = vmatmul.mubr.bf16.gmra.mrb[0].mxu0 %v668
  %v1176 = vpop.f32.mrb[0].mxu0
  %v1177 = vadd.f32 %v178, %v1176
  %v1178 = vpop.f32.mrb[0].mxu0
  %v1179 = vadd.f32 %v182, %v1178
  %v1180 = vpop.f32.mrb[0].mxu0
  %v1181 = vadd.f32 %v178, %v1180
  %v1182 = vpop.f32.mrb[0].mxu0
  %v1183 = vadd.f32 %v182, %v1182
  %1184 = vmatprep.mubr.bf16.mxu0 0
  %1185 = vmatmul.mubr.bf16.gmra.mrb[0].mxu0 %v671
  %v1186 = vpop.f32.mrb[0].mxu0
  %v1187 = vadd.f32 %v178, %v1186
  %v1188 = vpop.f32.mrb[0].mxu0
  %v1189 = vadd.f32 %v182, %v1188
  %v1190 = vpop.f32.mrb[0].mxu0
  %v1191 = vadd.f32 %v178, %v1190
  %v1192 = vpop.f32.mrb[0].mxu0
  %v1193 = vadd.f32 %v182, %v1192
  %1194 = vmatprep.mubr.bf16.mxu0 0
  %1195 = vmatmul.mubr.bf16.gmra.mrb[0].mxu0 %v674
  %v1196 = vpop.f32.mrb[0].mxu0
  %v1197 = vadd.f32 %v178, %v1196
  %v1198 = vpop.f32.mrb[0].mxu0
  %v1199 = vadd.f32 %v182, %v1198
  %v1200 = vpop.f32.mrb[0].mxu0
  %v1201 = vadd.f32 %v178, %v1200
  %v1202 = vpop.f32.mrb[0].mxu0
  %v1203 = vadd.f32 %v182, %v1202
  %1204 = vmatprep.mubr.bf16.mxu0 0
  %1205 = vmatmul.mubr.bf16.gmra.mrb[0].mxu0 %v677
  %v1206 = vpop.f32.mrb[0].mxu0
  %v1207 = vadd.f32 %v178, %v1206
  %v1208 = vpop.f32.mrb[0].mxu0
  %v1209 = vadd.f32 %v182, %v1208
  %v1210 = vpop.f32.mrb[0].mxu0
  %v1211 = vadd.f32 %v178, %v1210
  %v1212 = vpop.f32.mrb[0].mxu0
  %v1213 = vadd.f32 %v182, %v1212
  %1214 = vmatprep.mubr.bf16.mxu0 0
  %1215 = vmatmul.mubr.bf16.gmra.mrb[0].mxu0 %v680
  %v1216 = vpop.f32.mrb[0].mxu0
  %v1217 = vadd.f32 %v178, %v1216
  %v1218 = vpop.f32.mrb[0].mxu0
  %v1219 = vadd.f32 %v182, %v1218
  %v1220 = vpop.f32.mrb[0].mxu0
  %v1221 = vadd.f32 %v178, %v1220
  %v1222 = vpop.f32.mrb[0].mxu0
  %v1223 = vadd.f32 %v182, %v1222
  %1224 = vmatprep.mubr.bf16.mxu0 0
  %1225 = vmatmul.mubr.bf16.gmra.mrb[0].mxu0 %v683
  %v1226 = vpop.f32.mrb[0].mxu0
  %v1227 = vadd.f32 %v178, %v1226
  %v1228 = vpop.f32.mrb[0].mxu0
  %v1229 = vadd.f32 %v182, %v1228
  %v1230 = vpop.f32.mrb[0].mxu0
  %v1231 = vadd.f32 %v178, %v1230
  %v1232 = vpop.f32.mrb[0].mxu0
  %v1233 = vadd.f32 %v182, %v1232
  %1234 = vmatprep.mubr.bf16.mxu0 0
  %1235 = vmatmul.mubr.bf16.gmra.mrb[0].mxu0 %v686
  %v1236 = vpop.f32.mrb[0].mxu0
  %v1237 = vadd.f32 %v178, %v1236
  %v1238 = vpop.f32.mrb[0].mxu0
  %v1239 = vadd.f32 %v182, %v1238
  %v1240 = vpop.f32.mrb[0].mxu0
  %v1241 = vadd.f32 %v178, %v1240
  %v1242 = vpop.f32.mrb[0].mxu0
  %v1243 = vadd.f32 %v182, %v1242
  %1244 = vmatprep.mubr.bf16.mxu0 0
  %1245 = vmatmul.mubr.bf16.gmra.mrb[0].mxu0 %v689
  %v1246 = vpop.f32.mrb[0].mxu0
  %v1247 = vadd.f32 %v178, %v1246
  %v1248 = vpop.f32.mrb[0].mxu0
  %v1249 = vadd.f32 %v182, %v1248
  %v1250 = vpop.f32.mrb[0].mxu0
  %v1251 = vadd.f32 %v178, %v1250
  %v1252 = vpop.f32.mrb[0].mxu0
  %v1253 = vadd.f32 %v182, %v1252
  %1254 = vmatprep.mubr.bf16.mxu0 0
  %1255 = vmatmul.mubr.bf16.gmra.mrb[0].mxu0 %v692
  %v1256 = vpop.f32.mrb[0].mxu0
  %v1257 = vadd.f32 %v178, %v1256
  %v1258 = vpop.f32.mrb[0].mxu0
  %v1259 = vadd.f32 %v182, %v1258
  %v1260 = vpop.f32.mrb[0].mxu0
  %v1261 = vadd.f32 %v178, %v1260
  %v1262 = vpop.f32.mrb[0].mxu0
  %v1263 = vadd.f32 %v182, %v1262
  %1264 = vmatprep.mubr.bf16.mxu0 0
  %1265 = vmatmul.mubr.bf16.gmra.mrb[0].mxu0 %v695
  %v1266 = vpop.f32.mrb[0].mxu0
  %v1267 = vadd.f32 %v178, %v1266
  %v1268 = vpop.f32.mrb[0].mxu0
  %v1269 = vadd.f32 %v182, %v1268
  %v1270 = vpop.f32.mrb[0].mxu0
  %v1271 = vadd.f32 %v178, %v1270
  %v1272 = vpop.f32.mrb[0].mxu0
  %v1273 = vadd.f32 %v182, %v1272
  %1274 = vmatprep.mubr.bf16.mxu0 0
  %1275 = vmatmul.mubr.bf16.gmra.mrb[0].mxu0 %v698
  %v1276 = vpop.f32.mrb[0].mxu0
  %v1277 = vadd.f32 %v178, %v1276
  %v1278 = vpop.f32.mrb[0].mxu0
  %v1279 = vadd.f32 %v182, %v1278
  %v1280 = vpop.f32.mrb[0].mxu0
  %v1281 = vadd.f32 %v178, %v1280
  %v1282 = vpop.f32.mrb[0].mxu0
  %v1283 = vadd.f32 %v182, %v1282
  %1284 = vmatprep.mubr.bf16.mxu0 0
  %1285 = vmatmul.mubr.bf16.gmra.mrb[0].mxu0 %v701
  %v1286 = vpop.f32.mrb[0].mxu0
  %v1287 = vadd.f32 %v178, %v1286
  %v1288 = vpop.f32.mrb[0].mxu0
  %v1289 = vadd.f32 %v182, %v1288
  %v1290 = vpop.f32.mrb[0].mxu0
  %v1291 = vadd.f32 %v178, %v1290
  %v1292 = vpop.f32.mrb[0].mxu0
  %v1293 = vadd.f32 %v182, %v1292
  %1294 = vmatprep.mubr.bf16.mxu0 0
  %1295 = vmatmul.mubr.bf16.gmra.mrb[0].mxu0 %v704
  %v1296 = vpop.f32.mrb[0].mxu0
  %v1297 = vadd.f32 %v178, %v1296
  %v1298 = vpop.f32.mrb[0].mxu0
  %v1299 = vadd.f32 %v182, %v1298
  %v1300 = vpop.f32.mrb[0].mxu0
  %v1301 = vadd.f32 %v178, %v1300
  %v1302 = vpop.f32.mrb[0].mxu0
  %v1303 = vadd.f32 %v182, %v1302
  %1304 = vmatprep.mubr.bf16.mxu0 0
  %1305 = vmatmul.mubr.bf16.gmra.mrb[0].mxu0 %v707
  %v1306 = vpop.f32.mrb[0].mxu0
  %v1307 = vadd.f32 %v178, %v1306
  %v1308 = vpop.f32.mrb[0].mxu0
  %v1309 = vadd.f32 %v182, %v1308
  %v1310 = vpop.f32.mrb[0].mxu0
  %v1311 = vadd.f32 %v178, %v1310
  %v1312 = vpop.f32.mrb[0].mxu0
  %v1313 = vadd.f32 %v182, %v1312
  %1314 = vmatprep.mubr.bf16.mxu0 0
  %1315 = vmatmul.mubr.bf16.gmra.mrb[0].mxu0 %v710
  %v1316 = vpop.f32.mrb[0].mxu0
  %v1317 = vadd.f32 %v178, %v1316
  %v1318 = vpop.f32.mrb[0].mxu0
  %v1319 = vadd.f32 %v182, %v1318
  %v1320 = vpop.f32.mrb[0].mxu0
  %v1321 = vadd.f32 %v178, %v1320
  %v1322 = vpop.f32.mrb[0].mxu0
  %v1323 = vadd.f32 %v182, %v1322
  %1324 = vmatprep.mubr.bf16.mxu0 0
  %1325 = vmatmul.mubr.bf16.gmra.mrb[0].mxu0 %v713
  %v1326 = vpop.f32.mrb[0].mxu0
  %v1327 = vadd.f32 %v178, %v1326
  %v1328 = vpop.f32.mrb[0].mxu0
  %v1329 = vadd.f32 %v182, %v1328
  %v1330 = vpop.f32.mrb[0].mxu0
  %v1331 = vadd.f32 %v178, %v1330
  %v1332 = vpop.f32.mrb[0].mxu0
  %v1333 = vadd.f32 %v182, %v1332
  %1334 = vmatprep.mubr.bf16.mxu0 0
  %1335 = vmatmul.mubr.bf16.gmra.mrb[0].mxu0 %v716
  %v1336 = vpop.f32.mrb[0].mxu0
  %v1337 = vadd.f32 %v178, %v1336
  %v1338 = vpop.f32.mrb[0].mxu0
  %v1339 = vadd.f32 %v182, %v1338
  %v1340 = vpop.f32.mrb[0].mxu0
  %v1341 = vadd.f32 %v178, %v1340
  %v1342 = vpop.f32.mrb[0].mxu0
  %v1343 = vadd.f32 %v182, %v1342
  %1344 = vmatprep.mubr.bf16.mxu0 0
  %1345 = vmatmul.mubr.bf16.gmra.mrb[0].mxu0 %v719
  %v1346 = vpop.f32.mrb[0].mxu0
  %v1347 = vadd.f32 %v178, %v1346
  %v1348 = vpop.f32.mrb[0].mxu0
  %v1349 = vadd.f32 %v182, %v1348
  %v1350 = vpop.f32.mrb[0].mxu0
  %v1351 = vadd.f32 %v178, %v1350
  %v1352 = vpop.f32.mrb[0].mxu0
  %v1353 = vadd.f32 %v182, %v1352
  %1354 = vmatprep.mubr.bf16.mxu0 0
  %1355 = vmatmul.mubr.bf16.gmra.mrb[0].mxu0 %v722
  %v1356 = vpop.f32.mrb[0].mxu0
  %v1357 = vadd.f32 %v178, %v1356
  %v1358 = vpop.f32.mrb[0].mxu0
  %v1359 = vadd.f32 %v182, %v1358
  %v1360 = vpop.f32.mrb[0].mxu0
  %v1361 = vadd.f32 %v178, %v1360
  %v1362 = vpop.f32.mrb[0].mxu0
  %v1363 = vadd.f32 %v182, %v1362
  %1364 = vmatprep.mubr.bf16.mxu0 0
  %1365 = vmatmul.mubr.bf16.gmra.mrb[0].mxu0 %v725
  %v1366 = vpop.f32.mrb[0].mxu0
  %v1367 = vadd.f32 %v178, %v1366
  %v1368 = vpop.f32.mrb[0].mxu0
  %v1369 = vadd.f32 %v182, %v1368
  %v1370 = vpop.f32.mrb[0].mxu0
  %v1371 = vadd.f32 %v178, %v1370
  %v1372 = vpop.f32.mrb[0].mxu0
  %v1373 = vadd.f32 %v182, %v1372
  %1374 = vmatprep.mubr.bf16.mxu0 0
  %1375 = vmatmul.mubr.bf16.gmra.mrb[0].mxu0 %v728
  %v1376 = vpop.f32.mrb[0].mxu0
  %v1377 = vadd.f32 %v178, %v1376
  %v1378 = vpop.f32.mrb[0].mxu0
  %v1379 = vadd.f32 %v182, %v1378
  %v1380 = vpop.f32.mrb[0].mxu0
  %v1381 = vadd.f32 %v178, %v1380
  %v1382 = vpop.f32.mrb[0].mxu0
  %v1383 = vadd.f32 %v182, %v1382
  %1384 = vmatprep.mubr.bf16.mxu0 0
  %1385 = vmatmul.mubr.bf16.gmra.mrb[0].mxu0 %v731
  %v1386 = vpop.f32.mrb[0].mxu0
  %v1387 = vadd.f32 %v178, %v1386
  %v1388 = vpop.f32.mrb[0].mxu0
  %v1389 = vadd.f32 %v182, %v1388
  %v1390 = vpop.f32.mrb[0].mxu0
  %v1391 = vadd.f32 %v178, %v1390
  %v1392 = vpop.f32.mrb[0].mxu0
  %v1393 = vadd.f32 %v182, %v1392
  %1394 = vmatprep.mubr.bf16.mxu0 0
  %1395 = vmatmul.mubr.bf16.gmra.mrb[0].mxu0 %v734
  %v1396 = vpop.f32.mrb[0].mxu0
  %v1397 = vadd.f32 %v178, %v1396
  %v1398 = vpop.f32.mrb[0].mxu0
  %v1399 = vadd.f32 %v182, %v1398
  %v1400 = vpop.f32.mrb[0].mxu0
  %v1401 = vadd.f32 %v178, %v1400
  %v1402 = vpop.f32.mrb[0].mxu0
  %v1403 = vadd.f32 %v182, %v1402
  %1404 = vmatprep.mubr.bf16.mxu0 0
  %1405 = vmatmul.mubr.bf16.gmra.mrb[0].mxu0 %v737
  %v1406 = vpop.f32.mrb[0].mxu0
  %v1407 = vadd.f32 %v178, %v1406
  %v1408 = vpop.f32.mrb[0].mxu0
  %v1409 = vadd.f32 %v182, %v1408
  %v1410 = vpop.f32.mrb[0].mxu0
  %v1411 = vadd.f32 %v178, %v1410
  %v1412 = vpop.f32.mrb[0].mxu0
  %v1413 = vadd.f32 %v182, %v1412
  %1414 = vmatprep.mubr.bf16.mxu0 0
  %1415 = vmatmul.mubr.bf16.gmra.mrb[0].mxu0 %v740
  %v1416 = vpop.f32.mrb[0].mxu0
  %v1417 = vadd.f32 %v178, %v1416
  %v1418 = vpop.f32.mrb[0].mxu0
  %v1419 = vadd.f32 %v182, %v1418
  %v1420 = vpop.f32.mrb[0].mxu0
  %v1421 = vadd.f32 %v178, %v1420
  %v1422 = vpop.f32.mrb[0].mxu0
  %v1423 = vadd.f32 %v182, %v1422
  %1424 = vmatprep.mubr.bf16.mxu0 0
  %1425 = vmatmul.mubr.bf16.gmra.mrb[0].mxu0 %v743
  %v1426 = vpop.f32.mrb[0].mxu0
  %v1427 = vadd.f32 %v178, %v1426
  %v1428 = vpop.f32.mrb[0].mxu0
  %v1429 = vadd.f32 %v182, %v1428
  %v1430 = vpop.f32.mrb[0].mxu0
  %v1431 = vadd.f32 %v178, %v1430
  %v1432 = vpop.f32.mrb[0].mxu0
  %v1433 = vadd.f32 %v182, %v1432
  %1434 = vmatprep.mubr.bf16.mxu0 0
  %1435 = vmatmul.mubr.bf16.gmra.mrb[0].mxu0 %v746
  %v1436 = vpop.f32.mrb[0].mxu0
  %v1437 = vadd.f32 %v178, %v1436
  %v1438 = vpop.f32.mrb[0].mxu0
  %v1439 = vadd.f32 %v182, %v1438
  %v1440 = vpop.f32.mrb[0].mxu0
  %v1441 = vadd.f32 %v178, %v1440
  %v1442 = vpop.f32.mrb[0].mxu0
  %v1443 = vadd.f32 %v182, %v1442
  %1444 = vmatprep.mubr.bf16.mxu0 0
  %1445 = vmatmul.mubr.bf16.gmra.mrb[0].mxu0 %v749
  %v1446 = vpop.f32.mrb[0].mxu0
  %v1447 = vadd.f32 %v178, %v1446
  %v1448 = vpop.f32.mrb[0].mxu0
  %v1449 = vadd.f32 %v182, %v1448
  %v1450 = vpop.f32.mrb[0].mxu0
  %v1451 = vadd.f32 %v178, %v1450
  %v1452 = vpop.f32.mrb[0].mxu0
  %v1453 = vadd.f32 %v182, %v1452
  %1454 = vmatprep.mubr.bf16.mxu0 0
  %1455 = vmatmul.mubr.bf16.gmra.mrb[0].mxu0 %v752
  %v1456 = vpop.f32.mrb[0].mxu0
  %v1457 = vadd.f32 %v178, %v1456
  %v1458 = vpop.f32.mrb[0].mxu0
  %v1459 = vadd.f32 %v182, %v1458
  %v1460 = vpop.f32.mrb[0].mxu0
  %v1461 = vadd.f32 %v178, %v1460
  %v1462 = vpop.f32.mrb[0].mxu0
  %v1463 = vadd.f32 %v182, %v1462
  %1464 = vmatprep.mubr.bf16.mxu0 0
  %1465 = vmatmul.mubr.bf16.gmra.mrb[0].mxu0 %v755
  %v1466 = vpop.f32.mrb[0].mxu0
  %v1467 = vadd.f32 %v178, %v1466
  %v1468 = vpop.f32.mrb[0].mxu0
  %v1469 = vadd.f32 %v182, %v1468
  %v1470 = vpop.f32.mrb[0].mxu0
  %v1471 = vadd.f32 %v178, %v1470
  %v1472 = vpop.f32.mrb[0].mxu0
  %v1473 = vadd.f32 %v182, %v1472
  %1474 = vmatprep.mubr.bf16.mxu0 0
  %1475 = vmatmul.mubr.bf16.gmra.mrb[0].mxu0 %v758
  %v1476 = vpop.f32.mrb[0].mxu0
  %v1477 = vadd.f32 %v178, %v1476
  %v1478 = vpop.f32.mrb[0].mxu0
  %v1479 = vadd.f32 %v182, %v1478
  %v1480 = vpop.f32.mrb[0].mxu0
  %v1481 = vadd.f32 %v178, %v1480
  %v1482 = vpop.f32.mrb[0].mxu0
  %v1483 = vadd.f32 %v182, %v1482
  %1484 = vmatprep.mubr.bf16.mxu0 0
  %1485 = vmatmul.mubr.bf16.gmra.mrb[0].mxu0 %v761
  %v1486 = vpop.f32.mrb[0].mxu0
  %v1487 = vadd.f32 %v178, %v1486
  %v1488 = vpop.f32.mrb[0].mxu0
  %v1489 = vadd.f32 %v182, %v1488
  %v1490 = vpop.f32.mrb[0].mxu0
  %v1491 = vadd.f32 %v178, %v1490
  %v1492 = vpop.f32.mrb[0].mxu0
  %v1493 = vadd.f32 %v182, %v1492
  %1494 = vmatprep.mubr.bf16.mxu0 0
  %1495 = vmatmul.mubr.bf16.gmra.mrb[0].mxu0 %v764
  %v1496 = vpop.f32.mrb[0].mxu0
  %v1497 = vadd.f32 %v178, %v1496
  %v1498 = vpop.f32.mrb[0].mxu0
  %v1499 = vadd.f32 %v182, %v1498
  %v1500 = vpop.f32.mrb[0].mxu0
  %v1501 = vadd.f32 %v178, %v1500
  %v1502 = vpop.f32.mrb[0].mxu0
  %v1503 = vadd.f32 %v182, %v1502
  %1504 = vmatprep.mubr.bf16.mxu0 0
  %1505 = vmatmul.mubr.bf16.gmra.mrb[0].mxu0 %v767
  %v1506 = vpop.f32.mrb[0].mxu0
  %v1507 = vadd.f32 %v178, %v1506
  %v1508 = vpop.f32.mrb[0].mxu0
  %v1509 = vadd.f32 %v182, %v1508
  %v1510 = vpop.f32.mrb[0].mxu0
  %v1511 = vadd.f32 %v178, %v1510
  %v1512 = vpop.f32.mrb[0].mxu0
  %v1513 = vadd.f32 %v182, %v1512
  %1514 = vmatprep.mubr.bf16.mxu0 0
  %1515 = vmatmul.mubr.bf16.gmra.mrb[0].mxu0 %v770
  %v1516 = vpop.f32.mrb[0].mxu0
  %v1517 = vadd.f32 %v178, %v1516
  %v1518 = vpop.f32.mrb[0].mxu0
  %v1519 = vadd.f32 %v182, %v1518
  %v1520 = vpop.f32.mrb[0].mxu0
  %v1521 = vadd.f32 %v178, %v1520
  %v1522 = vpop.f32.mrb[0].mxu0
  %v1523 = vadd.f32 %v182, %v1522
  %1524 = vdwg.mxu0
  %v1525 = vmax.f32 %v807, 0.0
  %v1526 = vmax.f32 %v809, 0.0
  %v1527 = vmax.f32 %v811, 0.0
  %v1528 = vmax.f32 %v813, 0.0
  %v1529 = vmax.f32 %v817, 0.0
  %v1530 = vmax.f32 %v819, 0.0
  %v1531 = vmax.f32 %v821, 0.0
  %v1532 = vmax.f32 %v823, 0.0
  %v1533 = vmax.f32 %v827, 0.0
  %v1534 = vmax.f32 %v829, 0.0
  %v1535 = vmax.f32 %v831, 0.0
  %v1536 = vmax.f32 %v833, 0.0
  %v1537 = vmax.f32 %v837, 0.0
  %v1538 = vmax.f32 %v839, 0.0
  %v1539 = vmax.f32 %v841, 0.0
  %v1540 = vmax.f32 %v843, 0.0
  %v1541 = vmax.f32 %v847, 0.0
  %v1542 = vmax.f32 %v849, 0.0
  %v1543 = vmax.f32 %v851, 0.0
  %v1544 = vmax.f32 %v853, 0.0
  %v1545 = vmax.f32 %v857, 0.0
  %v1546 = vmax.f32 %v859, 0.0
  %v1547 = vmax.f32 %v861, 0.0
  %v1548 = vmax.f32 %v863, 0.0
  %v1549 = vmax.f32 %v867, 0.0
  %v1550 = vmax.f32 %v869, 0.0
  %v1551 = vmax.f32 %v871, 0.0
  %v1552 = vmax.f32 %v873, 0.0
  %v1553 = vmax.f32 %v877, 0.0
  %v1554 = vmax.f32 %v879, 0.0
  %v1555 = vmax.f32 %v881, 0.0
  %v1556 = vmax.f32 %v883, 0.0
  %v1557 = vmax.f32 %v887, 0.0
  %v1558 = vmax.f32 %v889, 0.0
  %v1559 = vmax.f32 %v891, 0.0
  %v1560 = vmax.f32 %v893, 0.0
  %v1561 = vmax.f32 %v897, 0.0
  %v1562 = vmax.f32 %v899, 0.0
  %v1563 = vmax.f32 %v901, 0.0
  %v1564 = vmax.f32 %v903, 0.0
  %v1565 = vmax.f32 %v907, 0.0
  %v1566 = vmax.f32 %v909, 0.0
  %v1567 = vmax.f32 %v911, 0.0
  %v1568 = vmax.f32 %v913, 0.0
  %v1569 = vmax.f32 %v917, 0.0
  %v1570 = vmax.f32 %v919, 0.0
  %v1571 = vmax.f32 %v921, 0.0
  %v1572 = vmax.f32 %v923, 0.0
  %v1573 = vmax.f32 %v927, 0.0
  %v1574 = vmax.f32 %v929, 0.0
  %v1575 = vmax.f32 %v931, 0.0
  %v1576 = vmax.f32 %v933, 0.0
  %v1577 = vmax.f32 %v937, 0.0
  %v1578 = vmax.f32 %v939, 0.0
  %v1579 = vmax.f32 %v941, 0.0
  %v1580 = vmax.f32 %v943, 0.0
  %v1581 = vmax.f32 %v947, 0.0
  %v1582 = vmax.f32 %v949, 0.0
  %v1583 = vmax.f32 %v951, 0.0
  %v1584 = vmax.f32 %v953, 0.0
  %v1585 = vmax.f32 %v957, 0.0
  %v1586 = vmax.f32 %v959, 0.0
  %v1587 = vmax.f32 %v961, 0.0
  %v1588 = vmax.f32 %v963, 0.0
  %v1589 = vmax.f32 %v967, 0.0
  %v1590 = vmax.f32 %v969, 0.0
  %v1591 = vmax.f32 %v971, 0.0
  %v1592 = vmax.f32 %v973, 0.0
  %v1593 = vmax.f32 %v977, 0.0
  %v1594 = vmax.f32 %v979, 0.0
  %v1595 = vmax.f32 %v981, 0.0
  %v1596 = vmax.f32 %v983, 0.0
  %v1597 = vmax.f32 %v987, 0.0
  %v1598 = vmax.f32 %v989, 0.0
  %v1599 = vmax.f32 %v991, 0.0
  %v1600 = vmax.f32 %v993, 0.0
  %v1601 = vmax.f32 %v997, 0.0
  %v1602 = vmax.f32 %v999, 0.0
  %v1603 = vmax.f32 %v1001, 0.0
  %v1604 = vmax.f32 %v1003, 0.0
  %v1605 = vmax.f32 %v1007, 0.0
  %v1606 = vmax.f32 %v1009, 0.0
  %v1607 = vmax.f32 %v1011, 0.0
  %v1608 = vmax.f32 %v1013, 0.0
  %v1609 = vmax.f32 %v1017, 0.0
  %v1610 = vmax.f32 %v1019, 0.0
  %v1611 = vmax.f32 %v1021, 0.0
  %v1612 = vmax.f32 %v1023, 0.0
  %v1613 = vmax.f32 %v1027, 0.0
  %v1614 = vmax.f32 %v1029, 0.0
  %v1615 = vmax.f32 %v1031, 0.0
  %v1616 = vmax.f32 %v1033, 0.0
  %v1617 = vmax.f32 %v1037, 0.0
  %v1618 = vmax.f32 %v1039, 0.0
  %v1619 = vmax.f32 %v1041, 0.0
  %v1620 = vmax.f32 %v1043, 0.0
  %v1621 = vmax.f32 %v1047, 0.0
  %v1622 = vmax.f32 %v1049, 0.0
  %v1623 = vmax.f32 %v1051, 0.0
  %v1624 = vmax.f32 %v1053, 0.0
  %v1625 = vmax.f32 %v1057, 0.0
  %v1626 = vmax.f32 %v1059, 0.0
  %v1627 = vmax.f32 %v1061, 0.0
  %v1628 = vmax.f32 %v1063, 0.0
  %v1629 = vmax.f32 %v1067, 0.0
  %v1630 = vmax.f32 %v1069, 0.0
  %v1631 = vmax.f32 %v1071, 0.0
  %v1632 = vmax.f32 %v1073, 0.0
  %v1633 = vmax.f32 %v1077, 0.0
  %v1634 = vmax.f32 %v1079, 0.0
  %v1635 = vmax.f32 %v1081, 0.0
  %v1636 = vmax.f32 %v1083, 0.0
  %v1637 = vmax.f32 %v1087, 0.0
  %v1638 = vmax.f32 %v1089, 0.0
  %v1639 = vmax.f32 %v1091, 0.0
  %v1640 = vmax.f32 %v1093, 0.0
  %v1641 = vmax.f32 %v1097, 0.0
  %v1642 = vmax.f32 %v1099, 0.0
  %v1643 = vmax.f32 %v1101, 0.0
  %v1644 = vmax.f32 %v1103, 0.0
  %v1645 = vmax.f32 %v1107, 0.0
  %v1646 = vmax.f32 %v1109, 0.0
  %v1647 = vmax.f32 %v1111, 0.0
  %v1648 = vmax.f32 %v1113, 0.0
  %v1649 = vmax.f32 %v1117, 0.0
  %v1650 = vmax.f32 %v1119, 0.0
  %v1651 = vmax.f32 %v1121, 0.0
  %v1652 = vmax.f32 %v1123, 0.0
  %v1653 = vmax.f32 %v1127, 0.0
  %v1654 = vmax.f32 %v1129, 0.0
  %v1655 = vmax.f32 %v1131, 0.0
  %v1656 = vmax.f32 %v1133, 0.0
  %v1657 = vmax.f32 %v1137, 0.0
  %v1658 = vmax.f32 %v1139, 0.0
  %v1659 = vmax.f32 %v1141, 0.0
  %v1660 = vmax.f32 %v1143, 0.0
  %v1661 = vmax.f32 %v1147, 0.0
  %v1662 = vmax.f32 %v1149, 0.0
  %v1663 = vmax.f32 %v1151, 0.0
  %v1664 = vmax.f32 %v1153, 0.0
  %v1665 = vmax.f32 %v1157, 0.0
  %v1666 = vmax.f32 %v1159, 0.0
  %v1667 = vmax.f32 %v1161, 0.0
  %v1668 = vmax.f32 %v1163, 0.0
  %v1669 = vmax.f32 %v1167, 0.0
  %v1670 = vmax.f32 %v1169, 0.0
  %v1671 = vmax.f32 %v1171, 0.0
  %v1672 = vmax.f32 %v1173, 0.0
  %v1673 = vmax.f32 %v1177, 0.0
  %v1674 = vmax.f32 %v1179, 0.0
  %v1675 = vmax.f32 %v1181, 0.0
  %v1676 = vmax.f32 %v1183, 0.0
  %v1677 = vmax.f32 %v1187, 0.0
  %v1678 = vmax.f32 %v1189, 0.0
  %v1679 = vmax.f32 %v1191, 0.0
  %v1680 = vmax.f32 %v1193, 0.0
  %v1681 = vmax.f32 %v1197, 0.0
  %v1682 = vmax.f32 %v1199, 0.0
  %v1683 = vmax.f32 %v1201, 0.0
  %v1684 = vmax.f32 %v1203, 0.0
  %v1685 = vmax.f32 %v1207, 0.0
  %v1686 = vmax.f32 %v1209, 0.0
  %v1687 = vmax.f32 %v1211, 0.0
  %v1688 = vmax.f32 %v1213, 0.0
  %v1689 = vmax.f32 %v1217, 0.0
  %v1690 = vmax.f32 %v1219, 0.0
  %v1691 = vmax.f32 %v1221, 0.0
  %v1692 = vmax.f32 %v1223, 0.0
  %v1693 = vmax.f32 %v1227, 0.0
  %v1694 = vmax.f32 %v1229, 0.0
  %v1695 = vmax.f32 %v1231, 0.0
  %v1696 = vmax.f32 %v1233, 0.0
  %v1697 = vmax.f32 %v1237, 0.0
  %v1698 = vmax.f32 %v1239, 0.0
  %v1699 = vmax.f32 %v1241, 0.0
  %v1700 = vmax.f32 %v1243, 0.0
  %v1701 = vmax.f32 %v1247, 0.0
  %v1702 = vmax.f32 %v1249, 0.0
  %v1703 = vmax.f32 %v1251, 0.0
  %v1704 = vmax.f32 %v1253, 0.0
  %v1705 = vmax.f32 %v1257, 0.0
  %v1706 = vmax.f32 %v1259, 0.0
  %v1707 = vmax.f32 %v1261, 0.0
  %v1708 = vmax.f32 %v1263, 0.0
  %v1709 = vmax.f32 %v1267, 0.0
  %v1710 = vmax.f32 %v1269, 0.0
  %v1711 = vmax.f32 %v1271, 0.0
  %v1712 = vmax.f32 %v1273, 0.0
  %v1713 = vmax.f32 %v1277, 0.0
  %v1714 = vmax.f32 %v1279, 0.0
  %v1715 = vmax.f32 %v1281, 0.0
  %v1716 = vmax.f32 %v1283, 0.0
  %v1717 = vmax.f32 %v1287, 0.0
  %v1718 = vmax.f32 %v1289, 0.0
  %v1719 = vmax.f32 %v1291, 0.0
  %v1720 = vmax.f32 %v1293, 0.0
  %v1721 = vmax.f32 %v1297, 0.0
  %v1722 = vmax.f32 %v1299, 0.0
  %v1723 = vmax.f32 %v1301, 0.0
  %v1724 = vmax.f32 %v1303, 0.0
  %v1725 = vmax.f32 %v1307, 0.0
  %v1726 = vmax.f32 %v1309, 0.0
  %v1727 = vmax.f32 %v1311, 0.0
  %v1728 = vmax.f32 %v1313, 0.0
  %v1729 = vmax.f32 %v1317, 0.0
  %v1730 = vmax.f32 %v1319, 0.0
  %v1731 = vmax.f32 %v1321, 0.0
  %v1732 = vmax.f32 %v1323, 0.0
  %v1733 = vmax.f32 %v1327, 0.0
  %v1734 = vmax.f32 %v1329, 0.0
  %v1735 = vmax.f32 %v1331, 0.0
  %v1736 = vmax.f32 %v1333, 0.0
  %v1737 = vmax.f32 %v1337, 0.0
  %v1738 = vmax.f32 %v1339, 0.0
  %v1739 = vmax.f32 %v1341, 0.0
  %v1740 = vmax.f32 %v1343, 0.0
  %v1741 = vmax.f32 %v1347, 0.0
  %v1742 = vmax.f32 %v1349, 0.0
  %v1743 = vmax.f32 %v1351, 0.0
  %v1744 = vmax.f32 %v1353, 0.0
  %v1745 = vmax.f32 %v1357, 0.0
  %v1746 = vmax.f32 %v1359, 0.0
  %v1747 = vmax.f32 %v1361, 0.0
  %v1748 = vmax.f32 %v1363, 0.0
  %v1749 = vmax.f32 %v1367, 0.0
  %v1750 = vmax.f32 %v1369, 0.0
  %v1751 = vmax.f32 %v1371, 0.0
  %v1752 = vmax.f32 %v1373, 0.0
  %v1753 = vmax.f32 %v1377, 0.0
  %v1754 = vmax.f32 %v1379, 0.0
  %v1755 = vmax.f32 %v1381, 0.0
  %v1756 = vmax.f32 %v1383, 0.0
  %v1757 = vmax.f32 %v1387, 0.0
  %v1758 = vmax.f32 %v1389, 0.0
  %v1759 = vmax.f32 %v1391, 0.0
  %v1760 = vmax.f32 %v1393, 0.0
  %v1761 = vmax.f32 %v1397, 0.0
  %v1762 = vmax.f32 %v1399, 0.0
  %v1763 = vmax.f32 %v1401, 0.0
  %v1764 = vmax.f32 %v1403, 0.0
  %v1765 = vmax.f32 %v1407, 0.0
  %v1766 = vmax.f32 %v1409, 0.0
  %v1767 = vmax.f32 %v1411, 0.0
  %v1768 = vmax.f32 %v1413, 0.0
  %v1769 = vmax.f32 %v1417, 0.0
  %v1770 = vmax.f32 %v1419, 0.0
  %v1771 = vmax.f32 %v1421, 0.0
  %v1772 = vmax.f32 %v1423, 0.0
  %v1773 = vmax.f32 %v1427, 0.0
  %v1774 = vmax.f32 %v1429, 0.0
  %v1775 = vmax.f32 %v1431, 0.0
  %v1776 = vmax.f32 %v1433, 0.0
  %v1777 = vmax.f32 %v1437, 0.0
  %v1778 = vmax.f32 %v1439, 0.0
  %v1779 = vmax.f32 %v1441, 0.0
  %v1780 = vmax.f32 %v1443, 0.0
  %v1781 = vmax.f32 %v1447, 0.0
  %v1782 = vmax.f32 %v1449, 0.0
  %v1783 = vmax.f32 %v1451, 0.0
  %v1784 = vmax.f32 %v1453, 0.0
  %v1785 = vmax.f32 %v1457, 0.0
  %v1786 = vmax.f32 %v1459, 0.0
  %v1787 = vmax.f32 %v1461, 0.0
  %v1788 = vmax.f32 %v1463, 0.0
  %v1789 = vmax.f32 %v1467, 0.0
  %v1790 = vmax.f32 %v1469, 0.0
  %v1791 = vmax.f32 %v1471, 0.0
  %v1792 = vmax.f32 %v1473, 0.0
  %v1793 = vmax.f32 %v1477, 0.0
  %v1794 = vmax.f32 %v1479, 0.0
  %v1795 = vmax.f32 %v1481, 0.0
  %v1796 = vmax.f32 %v1483, 0.0
  %v1797 = vmax.f32 %v1487, 0.0
  %v1798 = vmax.f32 %v1489, 0.0
  %v1799 = vmax.f32 %v1491, 0.0
  %v1800 = vmax.f32 %v1493, 0.0
  %v1801 = vmax.f32 %v1497, 0.0
  %v1802 = vmax.f32 %v1499, 0.0
  %v1803 = vmax.f32 %v1501, 0.0
  %v1804 = vmax.f32 %v1503, 0.0
  %v1805 = vmax.f32 %v1507, 0.0
  %v1806 = vmax.f32 %v1509, 0.0
  %v1807 = vmax.f32 %v1511, 0.0
  %v1808 = vmax.f32 %v1513, 0.0
  %v1809 = vmax.f32 %v1517, 0.0
  %v1810 = vmax.f32 %v1519, 0.0
  %v1811 = vmax.f32 %v1521, 0.0
  %v1812 = vmax.f32 %v1523, 0.0
  %v1813 = vmax.f32 %v1525, %v1526
  %v1814 = vmax.f32 %v1527, %v1528
  %v1815 = vmax.f32 %v1529, %v1530
  %v1816 = vmax.f32 %v1531, %v1532
  %v1817 = vmax.f32 %v1533, %v1534
  %v1818 = vmax.f32 %v1535, %v1536
  %v1819 = vmax.f32 %v1537, %v1538
  %v1820 = vmax.f32 %v1539, %v1540
  %v1821 = vmax.f32 %v1541, %v1542
  %v1822 = vmax.f32 %v1543, %v1544
  %v1823 = vmax.f32 %v1545, %v1546
  %v1824 = vmax.f32 %v1547, %v1548
  %v1825 = vmax.f32 %v1549, %v1550
  %v1826 = vmax.f32 %v1551, %v1552
  %v1827 = vmax.f32 %v1553, %v1554
  %v1828 = vmax.f32 %v1555, %v1556
  %v1829 = vmax.f32 %v1557, %v1558
  %v1830 = vmax.f32 %v1559, %v1560
  %v1831 = vmax.f32 %v1561, %v1562
  %v1832 = vmax.f32 %v1563, %v1564
  %v1833 = vmax.f32 %v1565, %v1566
  %v1834 = vmax.f32 %v1567, %v1568
  %v1835 = vmax.f32 %v1569, %v1570
  %v1836 = vmax.f32 %v1571, %v1572
  %v1837 = vmax.f32 %v1573, %v1574
  %v1838 = vmax.f32 %v1575, %v1576
  %v1839 = vmax.f32 %v1577, %v1578
  %v1840 = vmax.f32 %v1579, %v1580
  %v1841 = vmax.f32 %v1581, %v1582
  %v1842 = vmax.f32 %v1583, %v1584
  %v1843 = vmax.f32 %v1585, %v1586
  %v1844 = vmax.f32 %v1587, %v1588
  %v1845 = vmax.f32 %v1589, %v1590
  %v1846 = vmax.f32 %v1591, %v1592
  %v1847 = vmax.f32 %v1593, %v1594
  %v1848 = vmax.f32 %v1595, %v1596
  %v1849 = vmax.f32 %v1597, %v1598
  %v1850 = vmax.f32 %v1599, %v1600
  %v1851 = vmax.f32 %v1601, %v1602
  %v1852 = vmax.f32 %v1603, %v1604
  %v1853 = vmax.f32 %v1605, %v1606
  %v1854 = vmax.f32 %v1607, %v1608
  %v1855 = vmax.f32 %v1609, %v1610
  %v1856 = vmax.f32 %v1611, %v1612
  %v1857 = vmax.f32 %v1613, %v1614
  %v1858 = vmax.f32 %v1615, %v1616
  %v1859 = vmax.f32 %v1617, %v1618
  %v1860 = vmax.f32 %v1619, %v1620
  %v1861 = vmax.f32 %v1621, %v1622
  %v1862 = vmax.f32 %v1623, %v1624
  %v1863 = vmax.f32 %v1625, %v1626
  %v1864 = vmax.f32 %v1627, %v1628
  %v1865 = vmax.f32 %v1629, %v1630
  %v1866 = vmax.f32 %v1631, %v1632
  %v1867 = vmax.f32 %v1633, %v1634
  %v1868 = vmax.f32 %v1635, %v1636
  %v1869 = vmax.f32 %v1637, %v1638
  %v1870 = vmax.f32 %v1639, %v1640
  %v1871 = vmax.f32 %v1641, %v1642
  %v1872 = vmax.f32 %v1643, %v1644
  %v1873 = vmax.f32 %v1645, %v1646
  %v1874 = vmax.f32 %v1647, %v1648
  %v1875 = vmax.f32 %v1649, %v1650
  %v1876 = vmax.f32 %v1651, %v1652
  %v1877 = vmax.f32 %v1653, %v1654
  %v1878 = vmax.f32 %v1655, %v1656
  %v1879 = vmax.f32 %v1657, %v1658
  %v1880 = vmax.f32 %v1659, %v1660
  %v1881 = vmax.f32 %v1661, %v1662
  %v1882 = vmax.f32 %v1663, %v1664
  %v1883 = vmax.f32 %v1665, %v1666
  %v1884 = vmax.f32 %v1667, %v1668
  %v1885 = vmax.f32 %v1669, %v1670
  %v1886 = vmax.f32 %v1671, %v1672
  %v1887 = vmax.f32 %v1673, %v1674
  %v1888 = vmax.f32 %v1675, %v1676
  %v1889 = vmax.f32 %v1677, %v1678
  %v1890 = vmax.f32 %v1679, %v1680
  %v1891 = vmax.f32 %v1681, %v1682
  %v1892 = vmax.f32 %v1683, %v1684
  %v1893 = vmax.f32 %v1685, %v1686
  %v1894 = vmax.f32 %v1687, %v1688
  %v1895 = vmax.f32 %v1689, %v1690
  %v1896 = vmax.f32 %v1691, %v1692
  %v1897 = vmax.f32 %v1693, %v1694
  %v1898 = vmax.f32 %v1695, %v1696
  %v1899 = vmax.f32 %v1697, %v1698
  %v1900 = vmax.f32 %v1699, %v1700
  %v1901 = vmax.f32 %v1701, %v1702
  %v1902 = vmax.f32 %v1703, %v1704
  %v1903 = vmax.f32 %v1705, %v1706
  %v1904 = vmax.f32 %v1707, %v1708
  %v1905 = vmax.f32 %v1709, %v1710
  %v1906 = vmax.f32 %v1711, %v1712
  %v1907 = vmax.f32 %v1713, %v1714
  %v1908 = vmax.f32 %v1715, %v1716
  %v1909 = vmax.f32 %v1717, %v1718
  %v1910 = vmax.f32 %v1719, %v1720
  %v1911 = vmax.f32 %v1721, %v1722
  %v1912 = vmax.f32 %v1723, %v1724
  %v1913 = vmax.f32 %v1725, %v1726
  %v1914 = vmax.f32 %v1727, %v1728
  %v1915 = vmax.f32 %v1729, %v1730
  %v1916 = vmax.f32 %v1731, %v1732
  %v1917 = vmax.f32 %v1733, %v1734
  %v1918 = vmax.f32 %v1735, %v1736
  %v1919 = vmax.f32 %v1737, %v1738
  %v1920 = vmax.f32 %v1739, %v1740
  %v1921 = vmax.f32 %v1741, %v1742
  %v1922 = vmax.f32 %v1743, %v1744
  %v1923 = vmax.f32 %v1745, %v1746
  %v1924 = vmax.f32 %v1747, %v1748
  %v1925 = vmax.f32 %v1749, %v1750
  %v1926 = vmax.f32 %v1751, %v1752
  %v1927 = vmax.f32 %v1753, %v1754
  %v1928 = vmax.f32 %v1755, %v1756
  %v1929 = vmax.f32 %v1757, %v1758
  %v1930 = vmax.f32 %v1759, %v1760
  %v1931 = vmax.f32 %v1761, %v1762
  %v1932 = vmax.f32 %v1763, %v1764
  %v1933 = vmax.f32 %v1765, %v1766
  %v1934 = vmax.f32 %v1767, %v1768
  %v1935 = vmax.f32 %v1769, %v1770
  %v1936 = vmax.f32 %v1771, %v1772
  %v1937 = vmax.f32 %v1773, %v1774
  %v1938 = vmax.f32 %v1775, %v1776
  %v1939 = vmax.f32 %v1777, %v1778
  %v1940 = vmax.f32 %v1779, %v1780
  %v1941 = vmax.f32 %v1781, %v1782
  %v1942 = vmax.f32 %v1783, %v1784
  %v1943 = vmax.f32 %v1785, %v1786
  %v1944 = vmax.f32 %v1787, %v1788
  %v1945 = vmax.f32 %v1789, %v1790
  %v1946 = vmax.f32 %v1791, %v1792
  %v1947 = vmax.f32 %v1793, %v1794
  %v1948 = vmax.f32 %v1795, %v1796
  %v1949 = vmax.f32 %v1797, %v1798
  %v1950 = vmax.f32 %v1799, %v1800
  %v1951 = vmax.f32 %v1801, %v1802
  %v1952 = vmax.f32 %v1803, %v1804
  %v1953 = vmax.f32 %v1805, %v1806
  %v1954 = vmax.f32 %v1807, %v1808
  %v1955 = vmax.f32 %v1809, %v1810
  %v1956 = vmax.f32 %v1811, %v1812
  %1957 = vst [vmem:[#allocation2] sm:$0x1] 0.0
  %1958 = vst [vmem:[#allocation2 + $0x98] sm:$0x1] 0.0
  %1959 = vst [vmem:[#allocation2 + $0x130] sm:$0x1] 0.0
  %1960 = vst [vmem:[#allocation2 + $0x1c8] sm:$0x1] 0.0
  %1961 = vst [vmem:[#allocation2 + $0x260] sm:$0x1] 0.0
  %1962 = vst [vmem:[#allocation2 + $0x2f8] sm:$0x1] 0.0
  %1963 = vst [vmem:[#allocation2 + $0x390] sm:$0x1] 0.0
  %1964 = vst [vmem:[#allocation2 + $0x428] sm:$0x1] 0.0
  %1965 = vst [vmem:[#allocation2 + $0x8d] sm:$0x1f] 0.0
  %1966 = vst [vmem:[#allocation2 + $0x125] sm:$0x1f] 0.0
  %1967 = vst [vmem:[#allocation2 + $0x1bd] sm:$0x1f] 0.0
  %1968 = vst [vmem:[#allocation2 + $0x255] sm:$0x1f] 0.0
  %1969 = vst [vmem:[#allocation2 + $0x2ed] sm:$0x1f] 0.0
  %1970 = vst [vmem:[#allocation2 + $0x385] sm:$0x1f] 0.0
  %1971 = vst [vmem:[#allocation2 + $0x41d] sm:$0x1f] 0.0
  %1972 = vst [vmem:[#allocation2 + $0x4b5] sm:$0x1f] 0.0
  %1973 = vst [vmem:[#allocation2 + $0x1] sm:$0xff] %v1813
  %1974 = vst [vmem:[#allocation2 + $0x9] sm:$0xff] %v1814
  %1975 = vst [vmem:[#allocation2 + $0x11] sm:$0xff] %v1815
  %1976 = vst [vmem:[#allocation2 + $0x19] sm:$0xff] %v1816
  %1977 = vst [vmem:[#allocation2 + $0x21] sm:$0xff] %v1817
  %1978 = vst [vmem:[#allocation2 + $0x29] sm:$0xff] %v1818
  %1979 = vst [vmem:[#allocation2 + $0x31] sm:$0xff] %v1819
  %1980 = vst [vmem:[#allocation2 + $0x39] sm:$0xff] %v1820
  %1981 = vst [vmem:[#allocation2 + $0x41] sm:$0xff] %v1821
  %1982 = vst [vmem:[#allocation2 + $0x49] sm:$0xff] %v1822
  %1983 = vst [vmem:[#allocation2 + $0x51] sm:$0xff] %v1823
  %1984 = vst [vmem:[#allocation2 + $0x59] sm:$0xff] %v1824
  %1985 = vst [vmem:[#allocation2 + $0x61] sm:$0xff] %v1825
  %1986 = vst [vmem:[#allocation2 + $0x69] sm:$0xff] %v1826
  %1987 = vst [vmem:[#allocation2 + $0x71] sm:$0xff] %v1827
  %1988 = vst [vmem:[#allocation2 + $0x79] sm:$0xff] %v1828
  %1989 = vst [vmem:[#allocation2 + $0x81] sm:$0xff] %v1829
  %1990 = vst [vmem:[#allocation2 + $0x89] sm:$0xf] %v1830
  %1991 = vst [vmem:[#allocation2 + $0x99] sm:$0xff] %v1831
  %1992 = vst [vmem:[#allocation2 + $0xa1] sm:$0xff] %v1832
  %1993 = vst [vmem:[#allocation2 + $0xa9] sm:$0xff] %v1833
  %1994 = vst [vmem:[#allocation2 + $0xb1] sm:$0xff] %v1834
  %1995 = vst [vmem:[#allocation2 + $0xb9] sm:$0xff] %v1835
  %1996 = vst [vmem:[#allocation2 + $0xc1] sm:$0xff] %v1836
  %1997 = vst [vmem:[#allocation2 + $0xc9] sm:$0xff] %v1837
  %1998 = vst [vmem:[#allocation2 + $0xd1] sm:$0xff] %v1838
  %1999 = vst [vmem:[#allocation2 + $0xd9] sm:$0xff] %v1839
  %2000 = vst [vmem:[#allocation2 + $0xe1] sm:$0xff] %v1840
  %2001 = vst [vmem:[#allocation2 + $0xe9] sm:$0xff] %v1841
  %2002 = vst [vmem:[#allocation2 + $0xf1] sm:$0xff] %v1842
  %2003 = vst [vmem:[#allocation2 + $0xf9] sm:$0xff] %v1843
  %2004 = vst [vmem:[#allocation2 + $0x101] sm:$0xff] %v1844
  %2005 = vst [vmem:[#allocation2 + $0x109] sm:$0xff] %v1845
  %2006 = vst [vmem:[#allocation2 + $0x111] sm:$0xff] %v1846
  %2007 = vst [vmem:[#allocation2 + $0x119] sm:$0xff] %v1847
  %2008 = vst [vmem:[#allocation2 + $0x121] sm:$0xf] %v1848
  %2009 = vst [vmem:[#allocation2 + $0x131] sm:$0xff] %v1849
  %2010 = vst [vmem:[#allocation2 + $0x139] sm:$0xff] %v1850
  %2011 = vst [vmem:[#allocation2 + $0x141] sm:$0xff] %v1851
  %2012 = vst [vmem:[#allocation2 + $0x149] sm:$0xff] %v1852
  %2013 = vst [vmem:[#allocation2 + $0x151] sm:$0xff] %v1853
  %2014 = vst [vmem:[#allocation2 + $0x159] sm:$0xff] %v1854
  %2015 = vst [vmem:[#allocation2 + $0x161] sm:$0xff] %v1855
  %2016 = vst [vmem:[#allocation2 + $0x169] sm:$0xff] %v1856
  %2017 = vst [vmem:[#allocation2 + $0x171] sm:$0xff] %v1857
  %2018 = vst [vmem:[#allocation2 + $0x179] sm:$0xff] %v1858
  %2019 = vst [vmem:[#allocation2 + $0x181] sm:$0xff] %v1859
  %2020 = vst [vmem:[#allocation2 + $0x189] sm:$0xff] %v1860
  %2021 = vst [vmem:[#allocation2 + $0x191] sm:$0xff] %v1861
  %2022 = vst [vmem:[#allocation2 + $0x199] sm:$0xff] %v1862
  %2023 = vst [vmem:[#allocation2 + $0x1a1] sm:$0xff] %v1863
  %2024 = vst [vmem:[#allocation2 + $0x1a9] sm:$0xff] %v1864
  %2025 = vst [vmem:[#allocation2 + $0x1b1] sm:$0xff] %v1865
  %2026 = vst [vmem:[#allocation2 + $0x1b9] sm:$0xf] %v1866
  %2027 = vst [vmem:[#allocation2 + $0x1c9] sm:$0xff] %v1867
  %2028 = vst [vmem:[#allocation2 + $0x1d1] sm:$0xff] %v1868
  %2029 = vst [vmem:[#allocation2 + $0x1d9] sm:$0xff] %v1869
  %2030 = vst [vmem:[#allocation2 + $0x1e1] sm:$0xff] %v1870
  %2031 = vst [vmem:[#allocation2 + $0x1e9] sm:$0xff] %v1871
  %2032 = vst [vmem:[#allocation2 + $0x1f1] sm:$0xff] %v1872
  %2033 = vst [vmem:[#allocation2 + $0x1f9] sm:$0xff] %v1873
  %2034 = vst [vmem:[#allocation2 + $0x201] sm:$0xff] %v1874
  %2035 = vst [vmem:[#allocation2 + $0x209] sm:$0xff] %v1875
  %2036 = vst [vmem:[#allocation2 + $0x211] sm:$0xff] %v1876
  %2037 = vst [vmem:[#allocation2 + $0x219] sm:$0xff] %v1877
  %2038 = vst [vmem:[#allocation2 + $0x221] sm:$0xff] %v1878
  %2039 = vst [vmem:[#allocation2 + $0x229] sm:$0xff] %v1879
  %2040 = vst [vmem:[#allocation2 + $0x231] sm:$0xff] %v1880
  %2041 = vst [vmem:[#allocation2 + $0x239] sm:$0xff] %v1881
  %2042 = vst [vmem:[#allocation2 + $0x241] sm:$0xff] %v1882
  %2043 = vst [vmem:[#allocation2 + $0x249] sm:$0xff] %v1883
  %2044 = vst [vmem:[#allocation2 + $0x251] sm:$0xf] %v1884
  %2045 = vst [vmem:[#allocation2 + $0x261] sm:$0xff] %v1885
  %2046 = vst [vmem:[#allocation2 + $0x269] sm:$0xff] %v1886
  %2047 = vst [vmem:[#allocation2 + $0x271] sm:$0xff] %v1887
  %2048 = vst [vmem:[#allocation2 + $0x279] sm:$0xff] %v1888
  %2049 = vst [vmem:[#allocation2 + $0x281] sm:$0xff] %v1889
  %2050 = vst [vmem:[#allocation2 + $0x289] sm:$0xff] %v1890
  %2051 = vst [vmem:[#allocation2 + $0x291] sm:$0xff] %v1891
  %2052 = vst [vmem:[#allocation2 + $0x299] sm:$0xff] %v1892
  %2053 = vst [vmem:[#allocation2 + $0x2a1] sm:$0xff] %v1893
  %2054 = vst [vmem:[#allocation2 + $0x2a9] sm:$0xff] %v1894
  %2055 = vst [vmem:[#allocation2 + $0x2b1] sm:$0xff] %v1895
  %2056 = vst [vmem:[#allocation2 + $0x2b9] sm:$0xff] %v1896
  %2057 = vst [vmem:[#allocation2 + $0x2c1] sm:$0xff] %v1897
  %2058 = vst [vmem:[#allocation2 + $0x2c9] sm:$0xff] %v1898
  %2059 = vst [vmem:[#allocation2 + $0x2d1] sm:$0xff] %v1899
  %2060 = vst [vmem:[#allocation2 + $0x2d9] sm:$0xff] %v1900
  %2061 = vst [vmem:[#allocation2 + $0x2e1] sm:$0xff] %v1901
  %2062 = vst [vmem:[#allocation2 + $0x2e9] sm:$0xf] %v1902
  %2063 = vst [vmem:[#allocation2 + $0x2f9] sm:$0xff] %v1903
  %2064 = vst [vmem:[#allocation2 + $0x301] sm:$0xff] %v1904
  %2065 = vst [vmem:[#allocation2 + $0x309] sm:$0xff] %v1905
  %2066 = vst [vmem:[#allocation2 + $0x311] sm:$0xff] %v1906
  %2067 = vst [vmem:[#allocation2 + $0x319] sm:$0xff] %v1907
  %2068 = vst [vmem:[#allocation2 + $0x321] sm:$0xff] %v1908
  %2069 = vst [vmem:[#allocation2 + $0x329] sm:$0xff] %v1909
  %2070 = vst [vmem:[#allocation2 + $0x331] sm:$0xff] %v1910
  %2071 = vst [vmem:[#allocation2 + $0x339] sm:$0xff] %v1911
  %2072 = vst [vmem:[#allocation2 + $0x341] sm:$0xff] %v1912
  %2073 = vst [vmem:[#allocation2 + $0x349] sm:$0xff] %v1913
  %2074 = vst [vmem:[#allocation2 + $0x351] sm:$0xff] %v1914
  %2075 = vst [vmem:[#allocation2 + $0x359] sm:$0xff] %v1915
  %2076 = vst [vmem:[#allocation2 + $0x361] sm:$0xff] %v1916
  %2077 = vst [vmem:[#allocation2 + $0x369] sm:$0xff] %v1917
  %2078 = vst [vmem:[#allocation2 + $0x371] sm:$0xff] %v1918
  %2079 = vst [vmem:[#allocation2 + $0x379] sm:$0xff] %v1919
  %2080 = vst [vmem:[#allocation2 + $0x381] sm:$0xf] %v1920
  %2081 = vst [vmem:[#allocation2 + $0x391] sm:$0xff] %v1921
  %2082 = vst [vmem:[#allocation2 + $0x399] sm:$0xff] %v1922
  %2083 = vst [vmem:[#allocation2 + $0x3a1] sm:$0xff] %v1923
  %2084 = vst [vmem:[#allocation2 + $0x3a9] sm:$0xff] %v1924
  %2085 = vst [vmem:[#allocation2 + $0x3b1] sm:$0xff] %v1925
  %2086 = vst [vmem:[#allocation2 + $0x3b9] sm:$0xff] %v1926
  %2087 = vst [vmem:[#allocation2 + $0x3c1] sm:$0xff] %v1927
  %2088 = vst [vmem:[#allocation2 + $0x3c9] sm:$0xff] %v1928
  %2089 = vst [vmem:[#allocation2 + $0x3d1] sm:$0xff] %v1929
  %2090 = vst [vmem:[#allocation2 + $0x3d9] sm:$0xff] %v1930
  %2091 = vst [vmem:[#allocation2 + $0x3e1] sm:$0xff] %v1931
  %2092 = vst [vmem:[#allocation2 + $0x3e9] sm:$0xff] %v1932
  %2093 = vst [vmem:[#allocation2 + $0x3f1] sm:$0xff] %v1933
  %2094 = vst [vmem:[#allocation2 + $0x3f9] sm:$0xff] %v1934
  %2095 = vst [vmem:[#allocation2 + $0x401] sm:$0xff] %v1935
  %2096 = vst [vmem:[#allocation2 + $0x409] sm:$0xff] %v1936
  %2097 = vst [vmem:[#allocation2 + $0x411] sm:$0xff] %v1937
  %2098 = vst [vmem:[#allocation2 + $0x419] sm:$0xf] %v1938
  %2099 = vst [vmem:[#allocation2 + $0x429] sm:$0xff] %v1939
  %2100 = vst [vmem:[#allocation2 + $0x431] sm:$0xff] %v1940
  %2101 = vst [vmem:[#allocation2 + $0x439] sm:$0xff] %v1941
  %2102 = vst [vmem:[#allocation2 + $0x441] sm:$0xff] %v1942
  %2103 = vst [vmem:[#allocation2 + $0x449] sm:$0xff] %v1943
  %2104 = vst [vmem:[#allocation2 + $0x451] sm:$0xff] %v1944
  %2105 = vst [vmem:[#allocation2 + $0x459] sm:$0xff] %v1945
  %2106 = vst [vmem:[#allocation2 + $0x461] sm:$0xff] %v1946
  %2107 = vst [vmem:[#allocation2 + $0x469] sm:$0xff] %v1947
  %2108 = vst [vmem:[#allocation2 + $0x471] sm:$0xff] %v1948
  %2109 = vst [vmem:[#allocation2 + $0x479] sm:$0xff] %v1949
  %2110 = vst [vmem:[#allocation2 + $0x481] sm:$0xff] %v1950
  %2111 = vst [vmem:[#allocation2 + $0x489] sm:$0xff] %v1951
  %2112 = vst [vmem:[#allocation2 + $0x491] sm:$0xff] %v1952
  %2113 = vst [vmem:[#allocation2 + $0x499] sm:$0xff] %v1953
  %2114 = vst [vmem:[#allocation2 + $0x4a1] sm:$0xff] %v1954
  %2115 = vst [vmem:[#allocation2 + $0x4a9] sm:$0xff] %v1955
  %2116 = vst [vmem:[#allocation2 + $0x4b1] sm:$0xf] %v1956
  %v2117 = vld [vmem:[#allocation2] sm:$0xff]
  %v2118 = vld [vmem:[#allocation2 + $0x8] sm:$0xff]
  %v2119 = vld [vmem:[#allocation2 + $0x10] sm:$0xff]
  %v2120 = vld [vmem:[#allocation2 + $0x18] sm:$0xff]
  %v2121 = vld [vmem:[#allocation2 + $0x20] sm:$0xff]
  %v2122 = vld [vmem:[#allocation2 + $0x28] sm:$0xff]
  %v2123 = vld [vmem:[#allocation2 + $0x30] sm:$0xff]
  %v2124 = vld [vmem:[#allocation2 + $0x38] sm:$0xff]
  %v2125 = vld [vmem:[#allocation2 + $0x40] sm:$0xff]
  %v2126 = vld [vmem:[#allocation2 + $0x48] sm:$0xff]
  %v2127 = vld [vmem:[#allocation2 + $0x50] sm:$0xff]
  %v2128 = vld [vmem:[#allocation2 + $0x58] sm:$0xff]
  %v2129 = vld [vmem:[#allocation2 + $0x60] sm:$0xff]
  %v2130 = vld [vmem:[#allocation2 + $0x68] sm:$0xff]
  %v2131 = vld [vmem:[#allocation2 + $0x70] sm:$0xff]
  %v2132 = vld [vmem:[#allocation2 + $0x78] sm:$0xff]
  %v2133 = vld [vmem:[#allocation2 + $0x80] sm:$0xff]
  %v2134 = vld [vmem:[#allocation2 + $0x88] sm:$0xff]
  %v2135 = vld [vmem:[#allocation2 + $0x98] sm:$0xff]
  %v2136 = vld [vmem:[#allocation2 + $0xa0] sm:$0xff]
  %v2137 = vld [vmem:[#allocation2 + $0xa8] sm:$0xff]
  %v2138 = vld [vmem:[#allocation2 + $0xb0] sm:$0xff]
  %v2139 = vld [vmem:[#allocation2 + $0xb8] sm:$0xff]
  %v2140 = vld [vmem:[#allocation2 + $0xc0] sm:$0xff]
  %v2141 = vld [vmem:[#allocation2 + $0xc8] sm:$0xff]
  %v2142 = vld [vmem:[#allocation2 + $0xd0] sm:$0xff]
  %v2143 = vld [vmem:[#allocation2 + $0xd8] sm:$0xff]
  %v2144 = vld [vmem:[#allocation2 + $0xe0] sm:$0xff]
  %v2145 = vld [vmem:[#allocation2 + $0xe8] sm:$0xff]
  %v2146 = vld [vmem:[#allocation2 + $0xf0] sm:$0xff]
  %v2147 = vld [vmem:[#allocation2 + $0xf8] sm:$0xff]
  %v2148 = vld [vmem:[#allocation2 + $0x100] sm:$0xff]
  %v2149 = vld [vmem:[#allocation2 + $0x108] sm:$0xff]
  %v2150 = vld [vmem:[#allocation2 + $0x110] sm:$0xff]
  %v2151 = vld [vmem:[#allocation2 + $0x118] sm:$0xff]
  %v2152 = vld [vmem:[#allocation2 + $0x120] sm:$0xff]
  %v2153 = vld [vmem:[#allocation2 + $0x130] sm:$0xff]
  %v2154 = vld [vmem:[#allocation2 + $0x138] sm:$0xff]
  %v2155 = vld [vmem:[#allocation2 + $0x140] sm:$0xff]
  %v2156 = vld [vmem:[#allocation2 + $0x148] sm:$0xff]
  %v2157 = vld [vmem:[#allocation2 + $0x150] sm:$0xff]
  %v2158 = vld [vmem:[#allocation2 + $0x158] sm:$0xff]
  %v2159 = vld [vmem:[#allocation2 + $0x160] sm:$0xff]
  %v2160 = vld [vmem:[#allocation2 + $0x168] sm:$0xff]
  %v2161 = vld [vmem:[#allocation2 + $0x170] sm:$0xff]
  %v2162 = vld [vmem:[#allocation2 + $0x178] sm:$0xff]
  %v2163 = vld [vmem:[#allocation2 + $0x180] sm:$0xff]
  %v2164 = vld [vmem:[#allocation2 + $0x188] sm:$0xff]
  %v2165 = vld [vmem:[#allocation2 + $0x190] sm:$0xff]
  %v2166 = vld [vmem:[#allocation2 + $0x198] sm:$0xff]
  %v2167 = vld [vmem:[#allocation2 + $0x1a0] sm:$0xff]
  %v2168 = vld [vmem:[#allocation2 + $0x1a8] sm:$0xff]
  %v2169 = vld [vmem:[#allocation2 + $0x1b0] sm:$0xff]
  %v2170 = vld [vmem:[#allocation2 + $0x1b8] sm:$0xff]
  %v2171 = vld [vmem:[#allocation2 + $0x1c8] sm:$0xff]
  %v2172 = vld [vmem:[#allocation2 + $0x1d0] sm:$0xff]
  %v2173 = vld [vmem:[#allocation2 + $0x1d8] sm:$0xff]
  %v2174 = vld [vmem:[#allocation2 + $0x1e0] sm:$0xff]
  %v2175 = vld [vmem:[#allocation2 + $0x1e8] sm:$0xff]
  %v2176 = vld [vmem:[#allocation2 + $0x1f0] sm:$0xff]
  %v2177 = vld [vmem:[#allocation2 + $0x1f8] sm:$0xff]
  %v2178 = vld [vmem:[#allocation2 + $0x200] sm:$0xff]
  %v2179 = vld [vmem:[#allocation2 + $0x208] sm:$0xff]
  %v2180 = vld [vmem:[#allocation2 + $0x210] sm:$0xff]
  %v2181 = vld [vmem:[#allocation2 + $0x218] sm:$0xff]
  %v2182 = vld [vmem:[#allocation2 + $0x220] sm:$0xff]
  %v2183 = vld [vmem:[#allocation2 + $0x228] sm:$0xff]
  %v2184 = vld [vmem:[#allocation2 + $0x230] sm:$0xff]
  %v2185 = vld [vmem:[#allocation2 + $0x238] sm:$0xff]
  %v2186 = vld [vmem:[#allocation2 + $0x240] sm:$0xff]
  %v2187 = vld [vmem:[#allocation2 + $0x248] sm:$0xff]
  %v2188 = vld [vmem:[#allocation2 + $0x250] sm:$0xff]
  %v2189 = vld [vmem:[#allocation2 + $0x260] sm:$0xff]
  %v2190 = vld [vmem:[#allocation2 + $0x268] sm:$0xff]
  %v2191 = vld [vmem:[#allocation2 + $0x270] sm:$0xff]
  %v2192 = vld [vmem:[#allocation2 + $0x278] sm:$0xff]
  %v2193 = vld [vmem:[#allocation2 + $0x280] sm:$0xff]
  %v2194 = vld [vmem:[#allocation2 + $0x288] sm:$0xff]
  %v2195 = vld [vmem:[#allocation2 + $0x290] sm:$0xff]
  %v2196 = vld [vmem:[#allocation2 + $0x298] sm:$0xff]
  %v2197 = vld [vmem:[#allocation2 + $0x2a0] sm:$0xff]
  %v2198 = vld [vmem:[#allocation2 + $0x2a8] sm:$0xff]
  %v2199 = vld [vmem:[#allocation2 + $0x2b0] sm:$0xff]
  %v2200 = vld [vmem:[#allocation2 + $0x2b8] sm:$0xff]
  %v2201 = vld [vmem:[#allocation2 + $0x2c0] sm:$0xff]
  %v2202 = vld [vmem:[#allocation2 + $0x2c8] sm:$0xff]
  %v2203 = vld [vmem:[#allocation2 + $0x2d0] sm:$0xff]
  %v2204 = vld [vmem:[#allocation2 + $0x2d8] sm:$0xff]
  %v2205 = vld [vmem:[#allocation2 + $0x2e0] sm:$0xff]
  %v2206 = vld [vmem:[#allocation2 + $0x2e8] sm:$0xff]
  %v2207 = vld [vmem:[#allocation2 + $0x2f8] sm:$0xff]
  %v2208 = vld [vmem:[#allocation2 + $0x300] sm:$0xff]
  %v2209 = vld [vmem:[#allocation2 + $0x308] sm:$0xff]
  %v2210 = vld [vmem:[#allocation2 + $0x310] sm:$0xff]
  %v2211 = vld [vmem:[#allocation2 + $0x318] sm:$0xff]
  %v2212 = vld [vmem:[#allocation2 + $0x320] sm:$0xff]
  %v2213 = vld [vmem:[#allocation2 + $0x328] sm:$0xff]
  %v2214 = vld [vmem:[#allocation2 + $0x330] sm:$0xff]
  %v2215 = vld [vmem:[#allocation2 + $0x338] sm:$0xff]
  %v2216 = vld [vmem:[#allocation2 + $0x340] sm:$0xff]
  %v2217 = vld [vmem:[#allocation2 + $0x348] sm:$0xff]
  %v2218 = vld [vmem:[#allocation2 + $0x350] sm:$0xff]
  %v2219 = vld [vmem:[#allocation2 + $0x358] sm:$0xff]
  %v2220 = vld [vmem:[#allocation2 + $0x360] sm:$0xff]
  %v2221 = vld [vmem:[#allocation2 + $0x368] sm:$0xff]
  %v2222 = vld [vmem:[#allocation2 + $0x370] sm:$0xff]
  %v2223 = vld [vmem:[#allocation2 + $0x378] sm:$0xff]
  %v2224 = vld [vmem:[#allocation2 + $0x380] sm:$0xff]
  %v2225 = vld [vmem:[#allocation2 + $0x390] sm:$0xff]
  %v2226 = vld [vmem:[#allocation2 + $0x398] sm:$0xff]
  %v2227 = vld [vmem:[#allocation2 + $0x3a0] sm:$0xff]
  %v2228 = vld [vmem:[#allocation2 + $0x3a8] sm:$0xff]
  %v2229 = vld [vmem:[#allocation2 + $0x3b0] sm:$0xff]
  %v2230 = vld [vmem:[#allocation2 + $0x3b8] sm:$0xff]
  %v2231 = vld [vmem:[#allocation2 + $0x3c0] sm:$0xff]
  %v2232 = vld [vmem:[#allocation2 + $0x3c8] sm:$0xff]
  %v2233 = vld [vmem:[#allocation2 + $0x3d0] sm:$0xff]
  %v2234 = vld [vmem:[#allocation2 + $0x3d8] sm:$0xff]
  %v2235 = vld [vmem:[#allocation2 + $0x3e0] sm:$0xff]
  %v2236 = vld [vmem:[#allocation2 + $0x3e8] sm:$0xff]
  %v2237 = vld [vmem:[#allocation2 + $0x3f0] sm:$0xff]
  %v2238 = vld [vmem:[#allocation2 + $0x3f8] sm:$0xff]
  %v2239 = vld [vmem:[#allocation2 + $0x400] sm:$0xff]
  %v2240 = vld [vmem:[#allocation2 + $0x408] sm:$0xff]
  %v2241 = vld [vmem:[#allocation2 + $0x410] sm:$0xff]
  %v2242 = vld [vmem:[#allocation2 + $0x418] sm:$0xff]
  %v2243 = vld [vmem:[#allocation2 + $0x428] sm:$0xff]
  %v2244 = vld [vmem:[#allocation2 + $0x430] sm:$0xff]
  %v2245 = vld [vmem:[#allocation2 + $0x438] sm:$0xff]
  %v2246 = vld [vmem:[#allocation2 + $0x440] sm:$0xff]
  %v2247 = vld [vmem:[#allocation2 + $0x448] sm:$0xff]
  %v2248 = vld [vmem:[#allocation2 + $0x450] sm:$0xff]
  %v2249 = vld [vmem:[#allocation2 + $0x458] sm:$0xff]
  %v2250 = vld [vmem:[#allocation2 + $0x460] sm:$0xff]
  %v2251 = vld [vmem:[#allocation2 + $0x468] sm:$0xff]
  %v2252 = vld [vmem:[#allocation2 + $0x470] sm:$0xff]
  %v2253 = vld [vmem:[#allocation2 + $0x478] sm:$0xff]
  %v2254 = vld [vmem:[#allocation2 + $0x480] sm:$0xff]
  %v2255 = vld [vmem:[#allocation2 + $0x488] sm:$0xff]
  %v2256 = vld [vmem:[#allocation2 + $0x490] sm:$0xff]
  %v2257 = vld [vmem:[#allocation2 + $0x498] sm:$0xff]
  %v2258 = vld [vmem:[#allocation2 + $0x4a0] sm:$0xff]
  %v2259 = vld [vmem:[#allocation2 + $0x4a8] sm:$0xff]
  %v2260 = vld [vmem:[#allocation2 + $0x4b0] sm:$0xff]
  %v2261 = vpack.c.bf16 %v2118, %v2117
  %v2262 = vpack.c.bf16 %v2120, %v2119
  %v2263 = vpack.c.bf16 %v2122, %v2121
  %v2264 = vpack.c.bf16 %v2124, %v2123
  %v2265 = vpack.c.bf16 %v2126, %v2125
  %v2266 = vpack.c.bf16 %v2128, %v2127
  %v2267 = vpack.c.bf16 %v2130, %v2129
  %v2268 = vpack.c.bf16 %v2132, %v2131
  %v2269 = vpack.c.bf16 %v2134, %v2133
  %v2270 = vpack.c.bf16 %v2136, %v2135
  %v2271 = vpack.c.bf16 %v2138, %v2137
  %v2272 = vpack.c.bf16 %v2140, %v2139
  %v2273 = vpack.c.bf16 %v2142, %v2141
  %v2274 = vpack.c.bf16 %v2144, %v2143
  %v2275 = vpack.c.bf16 %v2146, %v2145
  %v2276 = vpack.c.bf16 %v2148, %v2147
  %v2277 = vpack.c.bf16 %v2150, %v2149
  %v2278 = vpack.c.bf16 %v2152, %v2151
  %v2279 = vpack.c.bf16 %v2154, %v2153
  %v2280 = vpack.c.bf16 %v2156, %v2155
  %v2281 = vpack.c.bf16 %v2158, %v2157
  %v2282 = vpack.c.bf16 %v2160, %v2159
  %v2283 = vpack.c.bf16 %v2162, %v2161
  %v2284 = vpack.c.bf16 %v2164, %v2163
  %v2285 = vpack.c.bf16 %v2166, %v2165
  %v2286 = vpack.c.bf16 %v2168, %v2167
  %v2287 = vpack.c.bf16 %v2170, %v2169
  %v2288 = vpack.c.bf16 %v2172, %v2171
  %v2289 = vpack.c.bf16 %v2174, %v2173
  %v2290 = vpack.c.bf16 %v2176, %v2175
  %v2291 = vpack.c.bf16 %v2178, %v2177
  %v2292 = vpack.c.bf16 %v2180, %v2179
  %v2293 = vpack.c.bf16 %v2182, %v2181
  %v2294 = vpack.c.bf16 %v2184, %v2183
  %v2295 = vpack.c.bf16 %v2186, %v2185
  %v2296 = vpack.c.bf16 %v2188, %v2187
  %v2297 = vpack.c.bf16 %v2190, %v2189
  %v2298 = vpack.c.bf16 %v2192, %v2191
  %v2299 = vpack.c.bf16 %v2194, %v2193
  %v2300 = vpack.c.bf16 %v2196, %v2195
  %v2301 = vpack.c.bf16 %v2198, %v2197
  %v2302 = vpack.c.bf16 %v2200, %v2199
  %v2303 = vpack.c.bf16 %v2202, %v2201
  %v2304 = vpack.c.bf16 %v2204, %v2203
  %v2305 = vpack.c.bf16 %v2206, %v2205
  %v2306 = vpack.c.bf16 %v2208, %v2207
  %v2307 = vpack.c.bf16 %v2210, %v2209
  %v2308 = vpack.c.bf16 %v2212, %v2211
  %v2309 = vpack.c.bf16 %v2214, %v2213
  %v2310 = vpack.c.bf16 %v2216, %v2215
  %v2311 = vpack.c.bf16 %v2218, %v2217
  %v2312 = vpack.c.bf16 %v2220, %v2219
  %v2313 = vpack.c.bf16 %v2222, %v2221
  %v2314 = vpack.c.bf16 %v2224, %v2223
  %v2315 = vpack.c.bf16 %v2226, %v2225
  %v2316 = vpack.c.bf16 %v2228, %v2227
  %v2317 = vpack.c.bf16 %v2230, %v2229
  %v2318 = vpack.c.bf16 %v2232, %v2231
  %v2319 = vpack.c.bf16 %v2234, %v2233
  %v2320 = vpack.c.bf16 %v2236, %v2235
  %v2321 = vpack.c.bf16 %v2238, %v2237
  %v2322 = vpack.c.bf16 %v2240, %v2239
  %v2323 = vpack.c.bf16 %v2242, %v2241
  %v2324 = vpack.c.bf16 %v2244, %v2243
  %v2325 = vpack.c.bf16 %v2246, %v2245
  %v2326 = vpack.c.bf16 %v2248, %v2247
  %v2327 = vpack.c.bf16 %v2250, %v2249
  %v2328 = vpack.c.bf16 %v2252, %v2251
  %v2329 = vpack.c.bf16 %v2254, %v2253
  %v2330 = vpack.c.bf16 %v2256, %v2255
  %v2331 = vpack.c.bf16 %v2258, %v2257
  %v2332 = vpack.c.bf16 %v2260, %v2259
  %v2333 = vld [vmem:[%s3] sm:$0xff]
  %v2334 = vld [vmem:[%s3 + $0x8] sm:$0xff]
  %v2335 = vld [vmem:[%s3 + $0x10] sm:$0xff]
  %v2336 = vld [vmem:[%s3 + $0x18] sm:$0xff]
  %v2337 = vld [vmem:[%s3 + $0x20] sm:$0xff]
  %v2338 = vld [vmem:[%s3 + $0x28] sm:$0xff]
  %v2339 = vld [vmem:[%s3 + $0x30] sm:$0xff]
  %v2340 = vld [vmem:[%s3 + $0x38] sm:$0xff]
  %v2341 = vld [vmem:[%s3 + $0x40] sm:$0xff]
  %v2342 = vld [vmem:[%s3 + $0x48] sm:$0xff]
  %v2343 = vld [vmem:[%s3 + $0x50] sm:$0xff]
  %v2344 = vld [vmem:[%s3 + $0x58] sm:$0xff]
  %v2345 = vld [vmem:[%s3 + $0x60] sm:$0xff]
  %v2346 = vld [vmem:[%s3 + $0x68] sm:$0xff]
  %v2347 = vld [vmem:[%s3 + $0x70] sm:$0xff]
  %v2348 = vld [vmem:[%s3 + $0x78] sm:$0xff]
  %v2349 = vld [vmem:[#allocation2 + $0x1] sm:$0xff]
  %v2350 = vld [vmem:[#allocation2 + $0x9] sm:$0xff]
  %v2351 = vld [vmem:[#allocation2 + $0x11] sm:$0xff]
  %v2352 = vld [vmem:[#allocation2 + $0x19] sm:$0xff]
  %v2353 = vld [vmem:[#allocation2 + $0x21] sm:$0xff]
  %v2354 = vld [vmem:[#allocation2 + $0x29] sm:$0xff]
  %v2355 = vld [vmem:[#allocation2 + $0x31] sm:$0xff]
  %v2356 = vld [vmem:[#allocation2 + $0x39] sm:$0xff]
  %v2357 = vld [vmem:[#allocation2 + $0x41] sm:$0xff]
  %v2358 = vld [vmem:[#allocation2 + $0x49] sm:$0xff]
  %v2359 = vld [vmem:[#allocation2 + $0x51] sm:$0xff]
  %v2360 = vld [vmem:[#allocation2 + $0x59] sm:$0xff]
  %v2361 = vld [vmem:[#allocation2 + $0x61] sm:$0xff]
  %v2362 = vld [vmem:[#allocation2 + $0x69] sm:$0xff]
  %v2363 = vld [vmem:[#allocation2 + $0x71] sm:$0xff]
  %v2364 = vld [vmem:[#allocation2 + $0x79] sm:$0xff]
  %v2365 = vld [vmem:[#allocation2 + $0x81] sm:$0xff]
  %v2366 = vld [vmem:[#allocation2 + $0x89] sm:$0xff]
  %v2367 = vld [vmem:[#allocation2 + $0x99] sm:$0xff]
  %v2368 = vld [vmem:[#allocation2 + $0xa1] sm:$0xff]
  %v2369 = vld [vmem:[#allocation2 + $0xa9] sm:$0xff]
  %v2370 = vld [vmem:[#allocation2 + $0xb1] sm:$0xff]
  %v2371 = vld [vmem:[#allocation2 + $0xb9] sm:$0xff]
  %v2372 = vld [vmem:[#allocation2 + $0xc1] sm:$0xff]
  %v2373 = vld [vmem:[#allocation2 + $0xc9] sm:$0xff]
  %v2374 = vld [vmem:[#allocation2 + $0xd1] sm:$0xff]
  %v2375 = vld [vmem:[#allocation2 + $0xd9] sm:$0xff]
  %v2376 = vld [vmem:[#allocation2 + $0xe1] sm:$0xff]
  %v2377 = vld [vmem:[#allocation2 + $0xe9] sm:$0xff]
  %v2378 = vld [vmem:[#allocation2 + $0xf1] sm:$0xff]
  %v2379 = vld [vmem:[#allocation2 + $0xf9] sm:$0xff]
  %v2380 = vld [vmem:[#allocation2 + $0x101] sm:$0xff]
  %v2381 = vld [vmem:[#allocation2 + $0x109] sm:$0xff]
  %v2382 = vld [vmem:[#allocation2 + $0x111] sm:$0xff]
  %v2383 = vld [vmem:[#allocation2 + $0x119] sm:$0xff]
  %v2384 = vld [vmem:[#allocation2 + $0x121] sm:$0xff]
  %v2385 = vld [vmem:[#allocation2 + $0x131] sm:$0xff]
  %v2386 = vld [vmem:[#allocation2 + $0x139] sm:$0xff]
  %v2387 = vld [vmem:[#allocation2 + $0x141] sm:$0xff]
  %v2388 = vld [vmem:[#allocation2 + $0x149] sm:$0xff]
  %v2389 = vld [vmem:[#allocation2 + $0x151] sm:$0xff]
  %v2390 = vld [vmem:[#allocation2 + $0x159] sm:$0xff]
  %v2391 = vld [vmem:[#allocation2 + $0x161] sm:$0xff]
  %v2392 = vld [vmem:[#allocation2 + $0x169] sm:$0xff]
  %v2393 = vld [vmem:[#allocation2 + $0x171] sm:$0xff]
  %v2394 = vld [vmem:[#allocation2 + $0x179] sm:$0xff]
  %v2395 = vld [vmem:[#allocation2 + $0x181] sm:$0xff]
  %v2396 = vld [vmem:[#allocation2 + $0x189] sm:$0xff]
  %v2397 = vld [vmem:[#allocation2 + $0x191] sm:$0xff]
  %v2398 = vld [vmem:[#allocation2 + $0x199] sm:$0xff]
  %v2399 = vld [vmem:[#allocation2 + $0x1a1] sm:$0xff]
  %v2400 = vld [vmem:[#allocation2 + $0x1a9] sm:$0xff]
  %v2401 = vld [vmem:[#allocation2 + $0x1b1] sm:$0xff]
  %v2402 = vld [vmem:[#allocation2 + $0x1b9] sm:$0xff]
  %v2403 = vld [vmem:[#allocation2 + $0x1c9] sm:$0xff]
  %v2404 = vld [vmem:[#allocation2 + $0x1d1] sm:$0xff]
  %v2405 = vld [vmem:[#allocation2 + $0x1d9] sm:$0xff]
  %v2406 = vld [vmem:[#allocation2 + $0x1e1] sm:$0xff]
  %v2407 = vld [vmem:[#allocation2 + $0x1e9] sm:$0xff]
  %v2408 = vld [vmem:[#allocation2 + $0x1f1] sm:$0xff]
  %v2409 = vld [vmem:[#allocation2 + $0x1f9] sm:$0xff]
  %v2410 = vld [vmem:[#allocation2 + $0x201] sm:$0xff]
  %v2411 = vld [vmem:[#allocation2 + $0x209] sm:$0xff]
  %v2412 = vld [vmem:[#allocation2 + $0x211] sm:$0xff]
  %v2413 = vld [vmem:[#allocation2 + $0x219] sm:$0xff]
  %v2414 = vld [vmem:[#allocation2 + $0x221] sm:$0xff]
  %v2415 = vld [vmem:[#allocation2 + $0x229] sm:$0xff]
  %v2416 = vld [vmem:[#allocation2 + $0x231] sm:$0xff]
  %v2417 = vld [vmem:[#allocation2 + $0x239] sm:$0xff]
  %v2418 = vld [vmem:[#allocation2 + $0x241] sm:$0xff]
  %v2419 = vld [vmem:[#allocation2 + $0x249] sm:$0xff]
  %v2420 = vld [vmem:[#allocation2 + $0x251] sm:$0xff]
  %v2421 = vld [vmem:[#allocation2 + $0x261] sm:$0xff]
  %v2422 = vld [vmem:[#allocation2 + $0x269] sm:$0xff]
  %v2423 = vld [vmem:[#allocation2 + $0x271] sm:$0xff]
  %v2424 = vld [vmem:[#allocation2 + $0x279] sm:$0xff]
  %v2425 = vld [vmem:[#allocation2 + $0x281] sm:$0xff]
  %v2426 = vld [vmem:[#allocation2 + $0x289] sm:$0xff]
  %v2427 = vld [vmem:[#allocation2 + $0x291] sm:$0xff]
  %v2428 = vld [vmem:[#allocation2 + $0x299] sm:$0xff]
  %v2429 = vld [vmem:[#allocation2 + $0x2a1] sm:$0xff]
  %v2430 = vld [vmem:[#allocation2 + $0x2a9] sm:$0xff]
  %v2431 = vld [vmem:[#allocation2 + $0x2b1] sm:$0xff]
  %v2432 = vld [vmem:[#allocation2 + $0x2b9] sm:$0xff]
  %v2433 = vld [vmem:[#allocation2 + $0x2c1] sm:$0xff]
  %v2434 = vld [vmem:[#allocation2 + $0x2c9] sm:$0xff]
  %v2435 = vld [vmem:[#allocation2 + $0x2d1] sm:$0xff]
  %v2436 = vld [vmem:[#allocation2 + $0x2d9] sm:$0xff]
  %v2437 = vld [vmem:[#allocation2 + $0x2e1] sm:$0xff]
  %v2438 = vld [vmem:[#allocation2 + $0x2e9] sm:$0xff]
  %v2439 = vld [vmem:[#allocation2 + $0x2f9] sm:$0xff]
  %v2440 = vld [vmem:[#allocation2 + $0x301] sm:$0xff]
  %v2441 = vld [vmem:[#allocation2 + $0x309] sm:$0xff]
  %v2442 = vld [vmem:[#allocation2 + $0x311] sm:$0xff]
  %v2443 = vld [vmem:[#allocation2 + $0x319] sm:$0xff]
  %v2444 = vld [vmem:[#allocation2 + $0x321] sm:$0xff]
  %v2445 = vld [vmem:[#allocation2 + $0x329] sm:$0xff]
  %v2446 = vld [vmem:[#allocation2 + $0x331] sm:$0xff]
  %v2447 = vld [vmem:[#allocation2 + $0x339] sm:$0xff]
  %v2448 = vld [vmem:[#allocation2 + $0x341] sm:$0xff]
  %v2449 = vld [vmem:[#allocation2 + $0x349] sm:$0xff]
  %v2450 = vld [vmem:[#allocation2 + $0x351] sm:$0xff]
  %v2451 = vld [vmem:[#allocation2 + $0x359] sm:$0xff]
  %v2452 = vld [vmem:[#allocation2 + $0x361] sm:$0xff]
  %v2453 = vld [vmem:[#allocation2 + $0x369] sm:$0xff]
  %v2454 = vld [vmem:[#allocation2 + $0x371] sm:$0xff]
  %v2455 = vld [vmem:[#allocation2 + $0x379] sm:$0xff]
  %v2456 = vld [vmem:[#allocation2 + $0x381] sm:$0xff]
  %v2457 = vld [vmem:[#allocation2 + $0x391] sm:$0xff]
  %v2458 = vld [vmem:[#allocation2 + $0x399] sm:$0xff]
  %v2459 = vld [vmem:[#allocation2 + $0x3a1] sm:$0xff]
  %v2460 = vld [vmem:[#allocation2 + $0x3a9] sm:$0xff]
  %v2461 = vld [vmem:[#allocation2 + $0x3b1] sm:$0xff]
  %v2462 = vld [vmem:[#allocation2 + $0x3b9] sm:$0xff]
  %v2463 = vld [vmem:[#allocation2 + $0x3c1] sm:$0xff]
  %v2464 = vld [vmem:[#allocation2 + $0x3c9] sm:$0xff]
  %v2465 = vld [vmem:[#allocation2 + $0x3d1] sm:$0xff]
  %v2466 = vld [vmem:[#allocation2 + $0x3d9] sm:$0xff]
  %v2467 = vld [vmem:[#allocation2 + $0x3e1] sm:$0xff]
  %v2468 = vld [vmem:[#allocation2 + $0x3e9] sm:$0xff]
  %v2469 = vld [vmem:[#allocation2 + $0x3f1] sm:$0xff]
  %v2470 = vld [vmem:[#allocation2 + $0x3f9] sm:$0xff]
  %v2471 = vld [vmem:[#allocation2 + $0x401] sm:$0xff]
  %v2472 = vld [vmem:[#allocation2 + $0x409] sm:$0xff]
  %v2473 = vld [vmem:[#allocation2 + $0x411] sm:$0xff]
  %v2474 = vld [vmem:[#allocation2 + $0x419] sm:$0xff]
  %v2475 = vld [vmem:[#allocation2 + $0x429] sm:$0xff]
  %v2476 = vld [vmem:[#allocation2 + $0x431] sm:$0xff]
  %v2477 = vld [vmem:[#allocation2 + $0x439] sm:$0xff]
  %v2478 = vld [vmem:[#allocation2 + $0x441] sm:$0xff]
  %v2479 = vld [vmem:[#allocation2 + $0x449] sm:$0xff]
  %v2480 = vld [vmem:[#allocation2 + $0x451] sm:$0xff]
  %v2481 = vld [vmem:[#allocation2 + $0x459] sm:$0xff]
  %v2482 = vld [vmem:[#allocation2 + $0x461] sm:$0xff]
  %v2483 = vld [vmem:[#allocation2 + $0x469] sm:$0xff]
  %v2484 = vld [vmem:[#allocation2 + $0x471] sm:$0xff]
  %v2485 = vld [vmem:[#allocation2 + $0x479] sm:$0xff]
  %v2486 = vld [vmem:[#allocation2 + $0x481] sm:$0xff]
  %v2487 = vld [vmem:[#allocation2 + $0x489] sm:$0xff]
  %v2488 = vld [vmem:[#allocation2 + $0x491] sm:$0xff]
  %v2489 = vld [vmem:[#allocation2 + $0x499] sm:$0xff]
  %v2490 = vld [vmem:[#allocation2 + $0x4a1] sm:$0xff]
  %v2491 = vld [vmem:[#allocation2 + $0x4a9] sm:$0xff]
  %v2492 = vld [vmem:[#allocation2 + $0x4b1] sm:$0xff]
  %v2493 = vpack.c.bf16 %v2350, %v2349
  %v2494 = vpack.c.bf16 %v2352, %v2351
  %v2495 = vpack.c.bf16 %v2354, %v2353
  %v2496 = vpack.c.bf16 %v2356, %v2355
  %v2497 = vpack.c.bf16 %v2358, %v2357
  %v2498 = vpack.c.bf16 %v2360, %v2359
  %v2499 = vpack.c.bf16 %v2362, %v2361
  %v2500 = vpack.c.bf16 %v2364, %v2363
  %v2501 = vpack.c.bf16 %v2366, %v2365
  %v2502 = vpack.c.bf16 %v2368, %v2367
  %v2503 = vpack.c.bf16 %v2370, %v2369
  %v2504 = vpack.c.bf16 %v2372, %v2371
  %v2505 = vpack.c.bf16 %v2374, %v2373
  %v2506 = vpack.c.bf16 %v2376, %v2375
  %v2507 = vpack.c.bf16 %v2378, %v2377
  %v2508 = vpack.c.bf16 %v2380, %v2379
  %v2509 = vpack.c.bf16 %v2382, %v2381
  %v2510 = vpack.c.bf16 %v2384, %v2383
  %v2511 = vpack.c.bf16 %v2386, %v2385
  %v2512 = vpack.c.bf16 %v2388, %v2387
  %v2513 = vpack.c.bf16 %v2390, %v2389
  %v2514 = vpack.c.bf16 %v2392, %v2391
  %v2515 = vpack.c.bf16 %v2394, %v2393
  %v2516 = vpack.c.bf16 %v2396, %v2395
  %v2517 = vpack.c.bf16 %v2398, %v2397
  %v2518 = vpack.c.bf16 %v2400, %v2399
  %v2519 = vpack.c.bf16 %v2402, %v2401
  %v2520 = vpack.c.bf16 %v2404, %v2403
  %v2521 = vpack.c.bf16 %v2406, %v2405
  %v2522 = vpack.c.bf16 %v2408, %v2407
  %v2523 = vpack.c.bf16 %v2410, %v2409
  %v2524 = vpack.c.bf16 %v2412, %v2411
  %v2525 = vpack.c.bf16 %v2414, %v2413
  %v2526 = vpack.c.bf16 %v2416, %v2415
  %v2527 = vpack.c.bf16 %v2418, %v2417
  %v2528 = vpack.c.bf16 %v2420, %v2419
  %v2529 = vpack.c.bf16 %v2422, %v2421
  %v2530 = vpack.c.bf16 %v2424, %v2423
  %v2531 = vpack.c.bf16 %v2426, %v2425
  %v2532 = vpack.c.bf16 %v2428, %v2427
  %v2533 = vpack.c.bf16 %v2430, %v2429
  %v2534 = vpack.c.bf16 %v2432, %v2431
  %v2535 = vpack.c.bf16 %v2434, %v2433
  %v2536 = vpack.c.bf16 %v2436, %v2435
  %v2537 = vpack.c.bf16 %v2438, %v2437
  %v2538 = vpack.c.bf16 %v2440, %v2439
  %v2539 = vpack.c.bf16 %v2442, %v2441
  %v2540 = vpack.c.bf16 %v2444, %v2443
  %v2541 = vpack.c.bf16 %v2446, %v2445
  %v2542 = vpack.c.bf16 %v2448, %v2447
  %v2543 = vpack.c.bf16 %v2450, %v2449
  %v2544 = vpack.c.bf16 %v2452, %v2451
  %v2545 = vpack.c.bf16 %v2454, %v2453
  %v2546 = vpack.c.bf16 %v2456, %v2455
  %v2547 = vpack.c.bf16 %v2458, %v2457
  %v2548 = vpack.c.bf16 %v2460, %v2459
  %v2549 = vpack.c.bf16 %v2462, %v2461
  %v2550 = vpack.c.bf16 %v2464, %v2463
  %v2551 = vpack.c.bf16 %v2466, %v2465
  %v2552 = vpack.c.bf16 %v2468, %v2467
  %v2553 = vpack.c.bf16 %v2470, %v2469
  %v2554 = vpack.c.bf16 %v2472, %v2471
  %v2555 = vpack.c.bf16 %v2474, %v2473
  %v2556 = vpack.c.bf16 %v2476, %v2475
  %v2557 = vpack.c.bf16 %v2478, %v2477
  %v2558 = vpack.c.bf16 %v2480, %v2479
  %v2559 = vpack.c.bf16 %v2482, %v2481
  %v2560 = vpack.c.bf16 %v2484, %v2483
  %v2561 = vpack.c.bf16 %v2486, %v2485
  %v2562 = vpack.c.bf16 %v2488, %v2487
  %v2563 = vpack.c.bf16 %v2490, %v2489
  %v2564 = vpack.c.bf16 %v2492, %v2491
  %v2565 = vld [vmem:[%s3 + $0x80] sm:$0xff]
  %v2566 = vld [vmem:[%s3 + $0x88] sm:$0xff]
  %v2567 = vld [vmem:[%s3 + $0x90] sm:$0xff]
  %v2568 = vld [vmem:[%s3 + $0x98] sm:$0xff]
  %v2569 = vld [vmem:[%s3 + $0xa0] sm:$0xff]
  %v2570 = vld [vmem:[%s3 + $0xa8] sm:$0xff]
  %v2571 = vld [vmem:[%s3 + $0xb0] sm:$0xff]
  %v2572 = vld [vmem:[%s3 + $0xb8] sm:$0xff]
  %v2573 = vld [vmem:[%s3 + $0xc0] sm:$0xff]
  %v2574 = vld [vmem:[%s3 + $0xc8] sm:$0xff]
  %v2575 = vld [vmem:[%s3 + $0xd0] sm:$0xff]
  %v2576 = vld [vmem:[%s3 + $0xd8] sm:$0xff]
  %v2577 = vld [vmem:[%s3 + $0xe0] sm:$0xff]
  %v2578 = vld [vmem:[%s3 + $0xe8] sm:$0xff]
  %v2579 = vld [vmem:[%s3 + $0xf0] sm:$0xff]
  %v2580 = vld [vmem:[%s3 + $0xf8] sm:$0xff]
  %v2597 = vunpack.c.l.b16 %v2565
  %v2598 = vunpack.c.h.b16 %v2565
  %v2599 = vunpack.c.l.b16 %v2566
  %v2600 = vunpack.c.h.b16 %v2566
  %v2601 = vunpack.c.l.b16 %v2567
  %v2602 = vunpack.c.h.b16 %v2567
  %v2603 = vunpack.c.l.b16 %v2568
  %v2604 = vunpack.c.h.b16 %v2568
  %v2605 = vunpack.c.l.b16 %v2569
  %v2606 = vunpack.c.h.b16 %v2569
  %v2607 = vunpack.c.l.b16 %v2570
  %v2608 = vunpack.c.h.b16 %v2570
  %v2609 = vunpack.c.l.b16 %v2571
  %v2610 = vunpack.c.h.b16 %v2571
  %v2611 = vunpack.c.l.b16 %v2572
  %v2612 = vunpack.c.h.b16 %v2572
  %v2613 = vunpack.c.l.b16 %v2573
  %v2614 = vunpack.c.h.b16 %v2573
  %v2615 = vunpack.c.l.b16 %v2574
  %v2616 = vunpack.c.h.b16 %v2574
  %v2617 = vunpack.c.l.b16 %v2575
  %v2618 = vunpack.c.h.b16 %v2575
  %v2619 = vunpack.c.l.b16 %v2576
  %v2620 = vunpack.c.h.b16 %v2576
  %v2621 = vunpack.c.l.b16 %v2577
  %v2622 = vunpack.c.h.b16 %v2577
  %v2623 = vunpack.c.l.b16 %v2578
  %v2624 = vunpack.c.h.b16 %v2578
  %v2625 = vunpack.c.l.b16 %v2579
  %v2626 = vunpack.c.h.b16 %v2579
  %v2627 = vunpack.c.l.b16 %v2580
  %v2628 = vunpack.c.h.b16 %v2580
  %v2629 = vpack.c.b16 %v2599, %v2597
  %v2630 = vpack.c.b16 %v2600, %v2598
  %v2631 = vpack.c.b16 %v2603, %v2601
  %v2632 = vpack.c.b16 %v2604, %v2602
  %v2633 = vpack.c.b16 %v2607, %v2605
  %v2634 = vpack.c.b16 %v2608, %v2606
  %v2635 = vpack.c.b16 %v2611, %v2609
  %v2636 = vpack.c.b16 %v2612, %v2610
  %v2637 = vpack.c.b16 %v2615, %v2613
  %v2638 = vpack.c.b16 %v2616, %v2614
  %v2639 = vpack.c.b16 %v2619, %v2617
  %v2640 = vpack.c.b16 %v2620, %v2618
  %v2641 = vpack.c.b16 %v2623, %v2621
  %v2642 = vpack.c.b16 %v2624, %v2622
  %v2643 = vpack.c.b16 %v2627, %v2625
  %v2644 = vpack.c.b16 %v2628, %v2626
  %2661 = vmatprep.subr.bf16.mxu0 %v2630
  %2662 = vmatpush1.bf16.msra.mxu0 %v2629
  %2663 = vmatprep.subr.bf16.mxu0 %v2632
  %2664 = vmatpush1.bf16.msra.mxu0 %v2631
  %2665 = vmatprep.subr.bf16.mxu0 %v2634
  %2666 = vmatpush1.bf16.msra.mxu0 %v2633
  %2667 = vmatprep.subr.bf16.mxu0 %v2636
  %2668 = vmatpush1.bf16.msra.mxu0 %v2635
  %2669 = vmatprep.subr.bf16.mxu0 %v2638
  %2670 = vmatpush1.bf16.msra.mxu0 %v2637
  %2671 = vmatprep.subr.bf16.mxu0 %v2640
  %2672 = vmatpush1.bf16.msra.mxu0 %v2639
  %2673 = vmatprep.subr.bf16.mxu0 %v2642
  %2674 = vmatpush1.bf16.msra.mxu0 %v2641
  %2675 = vmatprep.subr.bf16.mxu0 %v2644
  %2676 = vmatpush1.bf16.msra.mxu0 %v2643
  %2677 = vmatprep.subr.bf16.mxu0 0
  %2678 = vmatpush1.bf16.msra.mxu0 0
  %2679 = vmatprep.subr.bf16.mxu0 0
  %2680 = vmatpush1.bf16.msra.mxu0 0
  %2681 = vmatprep.subr.bf16.mxu0 0
  %2682 = vmatpush1.bf16.msra.mxu0 0
  %2683 = vmatprep.subr.bf16.mxu0 0
  %2684 = vmatpush1.bf16.msra.mxu0 0
  %2685 = vmatprep.subr.bf16.mxu0 0
  %2686 = vmatpush1.bf16.msra.mxu0 0
  %2687 = vmatprep.subr.bf16.mxu0 0
  %2688 = vmatpush1.bf16.msra.mxu0 0
  %2689 = vmatprep.subr.bf16.mxu0 0
  %2690 = vmatpush1.bf16.msra.mxu0 0
  %2691 = vmatprep.subr.bf16.mxu0 0
  %2692 = vmatpush1.bf16.msra.mxu0 0
  %2693 = vmatprep.mubr.bf16.mxu0 0
  %2694 = vmatmul.mubr.bf16.gmra.mrb[0].mxu0 %v2493
  %v2695 = vpop.f32.mrb[0].mxu0
  %v2696 = vadd.f32 0.0, %v2695
  %v2697 = vpop.f32.mrb[0].mxu0
  %v2698 = vadd.f32 0.0, %v2697
  %v2699 = vpop.f32.mrb[0].mxu0
  %v2700 = vadd.f32 0.0, %v2699
  %v2701 = vpop.f32.mrb[0].mxu0
  %v2702 = vadd.f32 0.0, %v2701
  %2703 = vmatprep.mubr.bf16.mxu0 0
  %2704 = vmatmul.mubr.bf16.gmra.mrb[0].mxu0 %v2494
  %v2705 = vpop.f32.mrb[0].mxu0
  %v2706 = vadd.f32 0.0, %v2705
  %v2707 = vpop.f32.mrb[0].mxu0
  %v2708 = vadd.f32 0.0, %v2707
  %v2709 = vpop.f32.mrb[0].mxu0
  %v2710 = vadd.f32 0.0, %v2709
  %v2711 = vpop.f32.mrb[0].mxu0
  %v2712 = vadd.f32 0.0, %v2711
  %2713 = vmatprep.mubr.bf16.mxu0 0
  %2714 = vmatmul.mubr.bf16.gmra.mrb[0].mxu0 %v2495
  %v2715 = vpop.f32.mrb[0].mxu0
  %v2716 = vadd.f32 0.0, %v2715
  %v2717 = vpop.f32.mrb[0].mxu0
  %v2718 = vadd.f32 0.0, %v2717
  %v2719 = vpop.f32.mrb[0].mxu0
  %v2720 = vadd.f32 0.0, %v2719
  %v2721 = vpop.f32.mrb[0].mxu0
  %v2722 = vadd.f32 0.0, %v2721
  %2723 = vmatprep.mubr.bf16.mxu0 0
  %2724 = vmatmul.mubr.bf16.gmra.mrb[0].mxu0 %v2496
  %v2725 = vpop.f32.mrb[0].mxu0
  %v2726 = vadd.f32 0.0, %v2725
  %v2727 = vpop.f32.mrb[0].mxu0
  %v2728 = vadd.f32 0.0, %v2727
  %v2729 = vpop.f32.mrb[0].mxu0
  %v2730 = vadd.f32 0.0, %v2729
  %v2731 = vpop.f32.mrb[0].mxu0
  %v2732 = vadd.f32 0.0, %v2731
  %2733 = vmatprep.mubr.bf16.mxu0 0
  %2734 = vmatmul.mubr.bf16.gmra.mrb[0].mxu0 %v2497
  %v2735 = vpop.f32.mrb[0].mxu0
  %v2736 = vadd.f32 0.0, %v2735
  %v2737 = vpop.f32.mrb[0].mxu0
  %v2738 = vadd.f32 0.0, %v2737
  %v2739 = vpop.f32.mrb[0].mxu0
  %v2740 = vadd.f32 0.0, %v2739
  %v2741 = vpop.f32.mrb[0].mxu0
  %v2742 = vadd.f32 0.0, %v2741
  %2743 = vmatprep.mubr.bf16.mxu0 0
  %2744 = vmatmul.mubr.bf16.gmra.mrb[0].mxu0 %v2498
  %v2745 = vpop.f32.mrb[0].mxu0
  %v2746 = vadd.f32 0.0, %v2745
  %v2747 = vpop.f32.mrb[0].mxu0
  %v2748 = vadd.f32 0.0, %v2747
  %v2749 = vpop.f32.mrb[0].mxu0
  %v2750 = vadd.f32 0.0, %v2749
  %v2751 = vpop.f32.mrb[0].mxu0
  %v2752 = vadd.f32 0.0, %v2751
  %2753 = vmatprep.mubr.bf16.mxu0 0
  %2754 = vmatmul.mubr.bf16.gmra.mrb[0].mxu0 %v2499
  %v2755 = vpop.f32.mrb[0].mxu0
  %v2756 = vadd.f32 0.0, %v2755
  %v2757 = vpop.f32.mrb[0].mxu0
  %v2758 = vadd.f32 0.0, %v2757
  %v2759 = vpop.f32.mrb[0].mxu0
  %v2760 = vadd.f32 0.0, %v2759
  %v2761 = vpop.f32.mrb[0].mxu0
  %v2762 = vadd.f32 0.0, %v2761
  %2763 = vmatprep.mubr.bf16.mxu0 0
  %2764 = vmatmul.mubr.bf16.gmra.mrb[0].mxu0 %v2500
  %v2765 = vpop.f32.mrb[0].mxu0
  %v2766 = vadd.f32 0.0, %v2765
  %v2767 = vpop.f32.mrb[0].mxu0
  %v2768 = vadd.f32 0.0, %v2767
  %v2769 = vpop.f32.mrb[0].mxu0
  %v2770 = vadd.f32 0.0, %v2769
  %v2771 = vpop.f32.mrb[0].mxu0
  %v2772 = vadd.f32 0.0, %v2771
  %2773 = vmatprep.mubr.bf16.mxu0 0
  %2774 = vmatmul.mubr.bf16.gmra.mrb[0].mxu0 %v2501
  %v2775 = vpop.f32.mrb[0].mxu0
  %v2776 = vadd.f32 0.0, %v2775
  %v2777 = vpop.f32.mrb[0].mxu0
  %v2778 = vadd.f32 0.0, %v2777
  %v2779 = vpop.f32.mrb[0].mxu0
  %v2780 = vadd.f32 0.0, %v2779
  %v2781 = vpop.f32.mrb[0].mxu0
  %v2782 = vadd.f32 0.0, %v2781
  %2783 = vmatprep.mubr.bf16.mxu0 0
  %2784 = vmatmul.mubr.bf16.gmra.mrb[0].mxu0 %v2502
  %v2785 = vpop.f32.mrb[0].mxu0
  %v2786 = vadd.f32 0.0, %v2785
  %v2787 = vpop.f32.mrb[0].mxu0
  %v2788 = vadd.f32 0.0, %v2787
  %v2789 = vpop.f32.mrb[0].mxu0
  %v2790 = vadd.f32 0.0, %v2789
  %v2791 = vpop.f32.mrb[0].mxu0
  %v2792 = vadd.f32 0.0, %v2791
  %2793 = vmatprep.mubr.bf16.mxu0 0
  %2794 = vmatmul.mubr.bf16.gmra.mrb[0].mxu0 %v2503
  %v2795 = vpop.f32.mrb[0].mxu0
  %v2796 = vadd.f32 0.0, %v2795
  %v2797 = vpop.f32.mrb[0].mxu0
  %v2798 = vadd.f32 0.0, %v2797
  %v2799 = vpop.f32.mrb[0].mxu0
  %v2800 = vadd.f32 0.0, %v2799
  %v2801 = vpop.f32.mrb[0].mxu0
  %v2802 = vadd.f32 0.0, %v2801
  %2803 = vmatprep.mubr.bf16.mxu0 0
  %2804 = vmatmul.mubr.bf16.gmra.mrb[0].mxu0 %v2504
  %v2805 = vpop.f32.mrb[0].mxu0
  %v2806 = vadd.f32 0.0, %v2805
  %v2807 = vpop.f32.mrb[0].mxu0
  %v2808 = vadd.f32 0.0, %v2807
  %v2809 = vpop.f32.mrb[0].mxu0
  %v2810 = vadd.f32 0.0, %v2809
  %v2811 = vpop.f32.mrb[0].mxu0
  %v2812 = vadd.f32 0.0, %v2811
  %2813 = vmatprep.mubr.bf16.mxu0 0
  %2814 = vmatmul.mubr.bf16.gmra.mrb[0].mxu0 %v2505
  %v2815 = vpop.f32.mrb[0].mxu0
  %v2816 = vadd.f32 0.0, %v2815
  %v2817 = vpop.f32.mrb[0].mxu0
  %v2818 = vadd.f32 0.0, %v2817
  %v2819 = vpop.f32.mrb[0].mxu0
  %v2820 = vadd.f32 0.0, %v2819
  %v2821 = vpop.f32.mrb[0].mxu0
  %v2822 = vadd.f32 0.0, %v2821
  %2823 = vmatprep.mubr.bf16.mxu0 0
  %2824 = vmatmul.mubr.bf16.gmra.mrb[0].mxu0 %v2506
  %v2825 = vpop.f32.mrb[0].mxu0
  %v2826 = vadd.f32 0.0, %v2825
  %v2827 = vpop.f32.mrb[0].mxu0
  %v2828 = vadd.f32 0.0, %v2827
  %v2829 = vpop.f32.mrb[0].mxu0
  %v2830 = vadd.f32 0.0, %v2829
  %v2831 = vpop.f32.mrb[0].mxu0
  %v2832 = vadd.f32 0.0, %v2831
  %2833 = vmatprep.mubr.bf16.mxu0 0
  %2834 = vmatmul.mubr.bf16.gmra.mrb[0].mxu0 %v2507
  %v2835 = vpop.f32.mrb[0].mxu0
  %v2836 = vadd.f32 0.0, %v2835
  %v2837 = vpop.f32.mrb[0].mxu0
  %v2838 = vadd.f32 0.0, %v2837
  %v2839 = vpop.f32.mrb[0].mxu0
  %v2840 = vadd.f32 0.0, %v2839
  %v2841 = vpop.f32.mrb[0].mxu0
  %v2842 = vadd.f32 0.0, %v2841
  %2843 = vmatprep.mubr.bf16.mxu0 0
  %2844 = vmatmul.mubr.bf16.gmra.mrb[0].mxu0 %v2508
  %v2845 = vpop.f32.mrb[0].mxu0
  %v2846 = vadd.f32 0.0, %v2845
  %v2847 = vpop.f32.mrb[0].mxu0
  %v2848 = vadd.f32 0.0, %v2847
  %v2849 = vpop.f32.mrb[0].mxu0
  %v2850 = vadd.f32 0.0, %v2849
  %v2851 = vpop.f32.mrb[0].mxu0
  %v2852 = vadd.f32 0.0, %v2851
  %2853 = vmatprep.mubr.bf16.mxu0 0
  %2854 = vmatmul.mubr.bf16.gmra.mrb[0].mxu0 %v2509
  %v2855 = vpop.f32.mrb[0].mxu0
  %v2856 = vadd.f32 0.0, %v2855
  %v2857 = vpop.f32.mrb[0].mxu0
  %v2858 = vadd.f32 0.0, %v2857
  %v2859 = vpop.f32.mrb[0].mxu0
  %v2860 = vadd.f32 0.0, %v2859
  %v2861 = vpop.f32.mrb[0].mxu0
  %v2862 = vadd.f32 0.0, %v2861
  %2863 = vmatprep.mubr.bf16.mxu0 0
  %2864 = vmatmul.mubr.bf16.gmra.mrb[0].mxu0 %v2510
  %v2865 = vpop.f32.mrb[0].mxu0
  %v2866 = vadd.f32 0.0, %v2865
  %v2867 = vpop.f32.mrb[0].mxu0
  %v2868 = vadd.f32 0.0, %v2867
  %v2869 = vpop.f32.mrb[0].mxu0
  %v2870 = vadd.f32 0.0, %v2869
  %v2871 = vpop.f32.mrb[0].mxu0
  %v2872 = vadd.f32 0.0, %v2871
  %2873 = vmatprep.mubr.bf16.mxu0 0
  %2874 = vmatmul.mubr.bf16.gmra.mrb[0].mxu0 %v2511
  %v2875 = vpop.f32.mrb[0].mxu0
  %v2876 = vadd.f32 0.0, %v2875
  %v2877 = vpop.f32.mrb[0].mxu0
  %v2878 = vadd.f32 0.0, %v2877
  %v2879 = vpop.f32.mrb[0].mxu0
  %v2880 = vadd.f32 0.0, %v2879
  %v2881 = vpop.f32.mrb[0].mxu0
  %v2882 = vadd.f32 0.0, %v2881
  %2883 = vmatprep.mubr.bf16.mxu0 0
  %2884 = vmatmul.mubr.bf16.gmra.mrb[0].mxu0 %v2512
  %v2885 = vpop.f32.mrb[0].mxu0
  %v2886 = vadd.f32 0.0, %v2885
  %v2887 = vpop.f32.mrb[0].mxu0
  %v2888 = vadd.f32 0.0, %v2887
  %v2889 = vpop.f32.mrb[0].mxu0
  %v2890 = vadd.f32 0.0, %v2889
  %v2891 = vpop.f32.mrb[0].mxu0
  %v2892 = vadd.f32 0.0, %v2891
  %2893 = vmatprep.mubr.bf16.mxu0 0
  %2894 = vmatmul.mubr.bf16.gmra.mrb[0].mxu0 %v2513
  %v2895 = vpop.f32.mrb[0].mxu0
  %v2896 = vadd.f32 0.0, %v2895
  %v2897 = vpop.f32.mrb[0].mxu0
  %v2898 = vadd.f32 0.0, %v2897
  %v2899 = vpop.f32.mrb[0].mxu0
  %v2900 = vadd.f32 0.0, %v2899
  %v2901 = vpop.f32.mrb[0].mxu0
  %v2902 = vadd.f32 0.0, %v2901
  %2903 = vmatprep.mubr.bf16.mxu0 0
  %2904 = vmatmul.mubr.bf16.gmra.mrb[0].mxu0 %v2514
  %v2905 = vpop.f32.mrb[0].mxu0
  %v2906 = vadd.f32 0.0, %v2905
  %v2907 = vpop.f32.mrb[0].mxu0
  %v2908 = vadd.f32 0.0, %v2907
  %v2909 = vpop.f32.mrb[0].mxu0
  %v2910 = vadd.f32 0.0, %v2909
  %v2911 = vpop.f32.mrb[0].mxu0
  %v2912 = vadd.f32 0.0, %v2911
  %2913 = vmatprep.mubr.bf16.mxu0 0
  %2914 = vmatmul.mubr.bf16.gmra.mrb[0].mxu0 %v2515
  %v2915 = vpop.f32.mrb[0].mxu0
  %v2916 = vadd.f32 0.0, %v2915
  %v2917 = vpop.f32.mrb[0].mxu0
  %v2918 = vadd.f32 0.0, %v2917
  %v2919 = vpop.f32.mrb[0].mxu0
  %v2920 = vadd.f32 0.0, %v2919
  %v2921 = vpop.f32.mrb[0].mxu0
  %v2922 = vadd.f32 0.0, %v2921
  %2923 = vmatprep.mubr.bf16.mxu0 0
  %2924 = vmatmul.mubr.bf16.gmra.mrb[0].mxu0 %v2516
  %v2925 = vpop.f32.mrb[0].mxu0
  %v2926 = vadd.f32 0.0, %v2925
  %v2927 = vpop.f32.mrb[0].mxu0
  %v2928 = vadd.f32 0.0, %v2927
  %v2929 = vpop.f32.mrb[0].mxu0
  %v2930 = vadd.f32 0.0, %v2929
  %v2931 = vpop.f32.mrb[0].mxu0
  %v2932 = vadd.f32 0.0, %v2931
  %2933 = vmatprep.mubr.bf16.mxu0 0
  %2934 = vmatmul.mubr.bf16.gmra.mrb[0].mxu0 %v2517
  %v2935 = vpop.f32.mrb[0].mxu0
  %v2936 = vadd.f32 0.0, %v2935
  %v2937 = vpop.f32.mrb[0].mxu0
  %v2938 = vadd.f32 0.0, %v2937
  %v2939 = vpop.f32.mrb[0].mxu0
  %v2940 = vadd.f32 0.0, %v2939
  %v2941 = vpop.f32.mrb[0].mxu0
  %v2942 = vadd.f32 0.0, %v2941
  %2943 = vmatprep.mubr.bf16.mxu0 0
  %2944 = vmatmul.mubr.bf16.gmra.mrb[0].mxu0 %v2518
  %v2945 = vpop.f32.mrb[0].mxu0
  %v2946 = vadd.f32 0.0, %v2945
  %v2947 = vpop.f32.mrb[0].mxu0
  %v2948 = vadd.f32 0.0, %v2947
  %v2949 = vpop.f32.mrb[0].mxu0
  %v2950 = vadd.f32 0.0, %v2949
  %v2951 = vpop.f32.mrb[0].mxu0
  %v2952 = vadd.f32 0.0, %v2951
  %2953 = vmatprep.mubr.bf16.mxu0 0
  %2954 = vmatmul.mubr.bf16.gmra.mrb[0].mxu0 %v2519
  %v2955 = vpop.f32.mrb[0].mxu0
  %v2956 = vadd.f32 0.0, %v2955
  %v2957 = vpop.f32.mrb[0].mxu0
  %v2958 = vadd.f32 0.0, %v2957
  %v2959 = vpop.f32.mrb[0].mxu0
  %v2960 = vadd.f32 0.0, %v2959
  %v2961 = vpop.f32.mrb[0].mxu0
  %v2962 = vadd.f32 0.0, %v2961
  %2963 = vmatprep.mubr.bf16.mxu0 0
  %2964 = vmatmul.mubr.bf16.gmra.mrb[0].mxu0 %v2520
  %v2965 = vpop.f32.mrb[0].mxu0
  %v2966 = vadd.f32 0.0, %v2965
  %v2967 = vpop.f32.mrb[0].mxu0
  %v2968 = vadd.f32 0.0, %v2967
  %v2969 = vpop.f32.mrb[0].mxu0
  %v2970 = vadd.f32 0.0, %v2969
  %v2971 = vpop.f32.mrb[0].mxu0
  %v2972 = vadd.f32 0.0, %v2971
  %2973 = vmatprep.mubr.bf16.mxu0 0
  %2974 = vmatmul.mubr.bf16.gmra.mrb[0].mxu0 %v2521
  %v2975 = vpop.f32.mrb[0].mxu0
  %v2976 = vadd.f32 0.0, %v2975
  %v2977 = vpop.f32.mrb[0].mxu0
  %v2978 = vadd.f32 0.0, %v2977
  %v2979 = vpop.f32.mrb[0].mxu0
  %v2980 = vadd.f32 0.0, %v2979
  %v2981 = vpop.f32.mrb[0].mxu0
  %v2982 = vadd.f32 0.0, %v2981
  %2983 = vmatprep.mubr.bf16.mxu0 0
  %2984 = vmatmul.mubr.bf16.gmra.mrb[0].mxu0 %v2522
  %v2985 = vpop.f32.mrb[0].mxu0
  %v2986 = vadd.f32 0.0, %v2985
  %v2987 = vpop.f32.mrb[0].mxu0
  %v2988 = vadd.f32 0.0, %v2987
  %v2989 = vpop.f32.mrb[0].mxu0
  %v2990 = vadd.f32 0.0, %v2989
  %v2991 = vpop.f32.mrb[0].mxu0
  %v2992 = vadd.f32 0.0, %v2991
  %2993 = vmatprep.mubr.bf16.mxu0 0
  %2994 = vmatmul.mubr.bf16.gmra.mrb[0].mxu0 %v2523
  %v2995 = vpop.f32.mrb[0].mxu0
  %v2996 = vadd.f32 0.0, %v2995
  %v2997 = vpop.f32.mrb[0].mxu0
  %v2998 = vadd.f32 0.0, %v2997
  %v2999 = vpop.f32.mrb[0].mxu0
  %v3000 = vadd.f32 0.0, %v2999
  %v3001 = vpop.f32.mrb[0].mxu0
  %v3002 = vadd.f32 0.0, %v3001
  %3003 = vmatprep.mubr.bf16.mxu0 0
  %3004 = vmatmul.mubr.bf16.gmra.mrb[0].mxu0 %v2524
  %v3005 = vpop.f32.mrb[0].mxu0
  %v3006 = vadd.f32 0.0, %v3005
  %v3007 = vpop.f32.mrb[0].mxu0
  %v3008 = vadd.f32 0.0, %v3007
  %v3009 = vpop.f32.mrb[0].mxu0
  %v3010 = vadd.f32 0.0, %v3009
  %v3011 = vpop.f32.mrb[0].mxu0
  %v3012 = vadd.f32 0.0, %v3011
  %3013 = vmatprep.mubr.bf16.mxu0 0
  %3014 = vmatmul.mubr.bf16.gmra.mrb[0].mxu0 %v2525
  %v3015 = vpop.f32.mrb[0].mxu0
  %v3016 = vadd.f32 0.0, %v3015
  %v3017 = vpop.f32.mrb[0].mxu0
  %v3018 = vadd.f32 0.0, %v3017
  %v3019 = vpop.f32.mrb[0].mxu0
  %v3020 = vadd.f32 0.0, %v3019
  %v3021 = vpop.f32.mrb[0].mxu0
  %v3022 = vadd.f32 0.0, %v3021
  %3023 = vmatprep.mubr.bf16.mxu0 0
  %3024 = vmatmul.mubr.bf16.gmra.mrb[0].mxu0 %v2526
  %v3025 = vpop.f32.mrb[0].mxu0
  %v3026 = vadd.f32 0.0, %v3025
  %v3027 = vpop.f32.mrb[0].mxu0
  %v3028 = vadd.f32 0.0, %v3027
  %v3029 = vpop.f32.mrb[0].mxu0
  %v3030 = vadd.f32 0.0, %v3029
  %v3031 = vpop.f32.mrb[0].mxu0
  %v3032 = vadd.f32 0.0, %v3031
  %3033 = vmatprep.mubr.bf16.mxu0 0
  %3034 = vmatmul.mubr.bf16.gmra.mrb[0].mxu0 %v2527
  %v3035 = vpop.f32.mrb[0].mxu0
  %v3036 = vadd.f32 0.0, %v3035
  %v3037 = vpop.f32.mrb[0].mxu0
  %v3038 = vadd.f32 0.0, %v3037
  %v3039 = vpop.f32.mrb[0].mxu0
  %v3040 = vadd.f32 0.0, %v3039
  %v3041 = vpop.f32.mrb[0].mxu0
  %v3042 = vadd.f32 0.0, %v3041
  %3043 = vmatprep.mubr.bf16.mxu0 0
  %3044 = vmatmul.mubr.bf16.gmra.mrb[0].mxu0 %v2528
  %v3045 = vpop.f32.mrb[0].mxu0
  %v3046 = vadd.f32 0.0, %v3045
  %v3047 = vpop.f32.mrb[0].mxu0
  %v3048 = vadd.f32 0.0, %v3047
  %v3049 = vpop.f32.mrb[0].mxu0
  %v3050 = vadd.f32 0.0, %v3049
  %v3051 = vpop.f32.mrb[0].mxu0
  %v3052 = vadd.f32 0.0, %v3051
  %3053 = vmatprep.mubr.bf16.mxu0 0
  %3054 = vmatmul.mubr.bf16.gmra.mrb[0].mxu0 %v2529
  %v3055 = vpop.f32.mrb[0].mxu0
  %v3056 = vadd.f32 0.0, %v3055
  %v3057 = vpop.f32.mrb[0].mxu0
  %v3058 = vadd.f32 0.0, %v3057
  %v3059 = vpop.f32.mrb[0].mxu0
  %v3060 = vadd.f32 0.0, %v3059
  %v3061 = vpop.f32.mrb[0].mxu0
  %v3062 = vadd.f32 0.0, %v3061
  %3063 = vmatprep.mubr.bf16.mxu0 0
  %3064 = vmatmul.mubr.bf16.gmra.mrb[0].mxu0 %v2530
  %v3065 = vpop.f32.mrb[0].mxu0
  %v3066 = vadd.f32 0.0, %v3065
  %v3067 = vpop.f32.mrb[0].mxu0
  %v3068 = vadd.f32 0.0, %v3067
  %v3069 = vpop.f32.mrb[0].mxu0
  %v3070 = vadd.f32 0.0, %v3069
  %v3071 = vpop.f32.mrb[0].mxu0
  %v3072 = vadd.f32 0.0, %v3071
  %3073 = vmatprep.mubr.bf16.mxu0 0
  %3074 = vmatmul.mubr.bf16.gmra.mrb[0].mxu0 %v2531
  %v3075 = vpop.f32.mrb[0].mxu0
  %v3076 = vadd.f32 0.0, %v3075
  %v3077 = vpop.f32.mrb[0].mxu0
  %v3078 = vadd.f32 0.0, %v3077
  %v3079 = vpop.f32.mrb[0].mxu0
  %v3080 = vadd.f32 0.0, %v3079
  %v3081 = vpop.f32.mrb[0].mxu0
  %v3082 = vadd.f32 0.0, %v3081
  %3083 = vmatprep.mubr.bf16.mxu0 0
  %3084 = vmatmul.mubr.bf16.gmra.mrb[0].mxu0 %v2532
  %v3085 = vpop.f32.mrb[0].mxu0
  %v3086 = vadd.f32 0.0, %v3085
  %v3087 = vpop.f32.mrb[0].mxu0
  %v3088 = vadd.f32 0.0, %v3087
  %v3089 = vpop.f32.mrb[0].mxu0
  %v3090 = vadd.f32 0.0, %v3089
  %v3091 = vpop.f32.mrb[0].mxu0
  %v3092 = vadd.f32 0.0, %v3091
  %3093 = vmatprep.mubr.bf16.mxu0 0
  %3094 = vmatmul.mubr.bf16.gmra.mrb[0].mxu0 %v2533
  %v3095 = vpop.f32.mrb[0].mxu0
  %v3096 = vadd.f32 0.0, %v3095
  %v3097 = vpop.f32.mrb[0].mxu0
  %v3098 = vadd.f32 0.0, %v3097
  %v3099 = vpop.f32.mrb[0].mxu0
  %v3100 = vadd.f32 0.0, %v3099
  %v3101 = vpop.f32.mrb[0].mxu0
  %v3102 = vadd.f32 0.0, %v3101
  %3103 = vmatprep.mubr.bf16.mxu0 0
  %3104 = vmatmul.mubr.bf16.gmra.mrb[0].mxu0 %v2534
  %v3105 = vpop.f32.mrb[0].mxu0
  %v3106 = vadd.f32 0.0, %v3105
  %v3107 = vpop.f32.mrb[0].mxu0
  %v3108 = vadd.f32 0.0, %v3107
  %v3109 = vpop.f32.mrb[0].mxu0
  %v3110 = vadd.f32 0.0, %v3109
  %v3111 = vpop.f32.mrb[0].mxu0
  %v3112 = vadd.f32 0.0, %v3111
  %3113 = vmatprep.mubr.bf16.mxu0 0
  %3114 = vmatmul.mubr.bf16.gmra.mrb[0].mxu0 %v2535
  %v3115 = vpop.f32.mrb[0].mxu0
  %v3116 = vadd.f32 0.0, %v3115
  %v3117 = vpop.f32.mrb[0].mxu0
  %v3118 = vadd.f32 0.0, %v3117
  %v3119 = vpop.f32.mrb[0].mxu0
  %v3120 = vadd.f32 0.0, %v3119
  %v3121 = vpop.f32.mrb[0].mxu0
  %v3122 = vadd.f32 0.0, %v3121
  %3123 = vmatprep.mubr.bf16.mxu0 0
  %3124 = vmatmul.mubr.bf16.gmra.mrb[0].mxu0 %v2536
  %v3125 = vpop.f32.mrb[0].mxu0
  %v3126 = vadd.f32 0.0, %v3125
  %v3127 = vpop.f32.mrb[0].mxu0
  %v3128 = vadd.f32 0.0, %v3127
  %v3129 = vpop.f32.mrb[0].mxu0
  %v3130 = vadd.f32 0.0, %v3129
  %v3131 = vpop.f32.mrb[0].mxu0
  %v3132 = vadd.f32 0.0, %v3131
  %3133 = vmatprep.mubr.bf16.mxu0 0
  %3134 = vmatmul.mubr.bf16.gmra.mrb[0].mxu0 %v2537
  %v3135 = vpop.f32.mrb[0].mxu0
  %v3136 = vadd.f32 0.0, %v3135
  %v3137 = vpop.f32.mrb[0].mxu0
  %v3138 = vadd.f32 0.0, %v3137
  %v3139 = vpop.f32.mrb[0].mxu0
  %v3140 = vadd.f32 0.0, %v3139
  %v3141 = vpop.f32.mrb[0].mxu0
  %v3142 = vadd.f32 0.0, %v3141
  %3143 = vmatprep.mubr.bf16.mxu0 0
  %3144 = vmatmul.mubr.bf16.gmra.mrb[0].mxu0 %v2538
  %v3145 = vpop.f32.mrb[0].mxu0
  %v3146 = vadd.f32 0.0, %v3145
  %v3147 = vpop.f32.mrb[0].mxu0
  %v3148 = vadd.f32 0.0, %v3147
  %v3149 = vpop.f32.mrb[0].mxu0
  %v3150 = vadd.f32 0.0, %v3149
  %v3151 = vpop.f32.mrb[0].mxu0
  %v3152 = vadd.f32 0.0, %v3151
  %3153 = vmatprep.mubr.bf16.mxu0 0
  %3154 = vmatmul.mubr.bf16.gmra.mrb[0].mxu0 %v2539
  %v3155 = vpop.f32.mrb[0].mxu0
  %v3156 = vadd.f32 0.0, %v3155
  %v3157 = vpop.f32.mrb[0].mxu0
  %v3158 = vadd.f32 0.0, %v3157
  %v3159 = vpop.f32.mrb[0].mxu0
  %v3160 = vadd.f32 0.0, %v3159
  %v3161 = vpop.f32.mrb[0].mxu0
  %v3162 = vadd.f32 0.0, %v3161
  %3163 = vmatprep.mubr.bf16.mxu0 0
  %3164 = vmatmul.mubr.bf16.gmra.mrb[0].mxu0 %v2540
  %v3165 = vpop.f32.mrb[0].mxu0
  %v3166 = vadd.f32 0.0, %v3165
  %v3167 = vpop.f32.mrb[0].mxu0
  %v3168 = vadd.f32 0.0, %v3167
  %v3169 = vpop.f32.mrb[0].mxu0
  %v3170 = vadd.f32 0.0, %v3169
  %v3171 = vpop.f32.mrb[0].mxu0
  %v3172 = vadd.f32 0.0, %v3171
  %3173 = vmatprep.mubr.bf16.mxu0 0
  %3174 = vmatmul.mubr.bf16.gmra.mrb[0].mxu0 %v2541
  %v3175 = vpop.f32.mrb[0].mxu0
  %v3176 = vadd.f32 0.0, %v3175
  %v3177 = vpop.f32.mrb[0].mxu0
  %v3178 = vadd.f32 0.0, %v3177
  %v3179 = vpop.f32.mrb[0].mxu0
  %v3180 = vadd.f32 0.0, %v3179
  %v3181 = vpop.f32.mrb[0].mxu0
  %v3182 = vadd.f32 0.0, %v3181
  %3183 = vmatprep.mubr.bf16.mxu0 0
  %3184 = vmatmul.mubr.bf16.gmra.mrb[0].mxu0 %v2542
  %v3185 = vpop.f32.mrb[0].mxu0
  %v3186 = vadd.f32 0.0, %v3185
  %v3187 = vpop.f32.mrb[0].mxu0
  %v3188 = vadd.f32 0.0, %v3187
  %v3189 = vpop.f32.mrb[0].mxu0
  %v3190 = vadd.f32 0.0, %v3189
  %v3191 = vpop.f32.mrb[0].mxu0
  %v3192 = vadd.f32 0.0, %v3191
  %3193 = vmatprep.mubr.bf16.mxu0 0
  %3194 = vmatmul.mubr.bf16.gmra.mrb[0].mxu0 %v2543
  %v3195 = vpop.f32.mrb[0].mxu0
  %v3196 = vadd.f32 0.0, %v3195
  %v3197 = vpop.f32.mrb[0].mxu0
  %v3198 = vadd.f32 0.0, %v3197
  %v3199 = vpop.f32.mrb[0].mxu0
  %v3200 = vadd.f32 0.0, %v3199
  %v3201 = vpop.f32.mrb[0].mxu0
  %v3202 = vadd.f32 0.0, %v3201
  %3203 = vmatprep.mubr.bf16.mxu0 0
  %3204 = vmatmul.mubr.bf16.gmra.mrb[0].mxu0 %v2544
  %v3205 = vpop.f32.mrb[0].mxu0
  %v3206 = vadd.f32 0.0, %v3205
  %v3207 = vpop.f32.mrb[0].mxu0
  %v3208 = vadd.f32 0.0, %v3207
  %v3209 = vpop.f32.mrb[0].mxu0
  %v3210 = vadd.f32 0.0, %v3209
  %v3211 = vpop.f32.mrb[0].mxu0
  %v3212 = vadd.f32 0.0, %v3211
  %3213 = vmatprep.mubr.bf16.mxu0 0
  %3214 = vmatmul.mubr.bf16.gmra.mrb[0].mxu0 %v2545
  %v3215 = vpop.f32.mrb[0].mxu0
  %v3216 = vadd.f32 0.0, %v3215
  %v3217 = vpop.f32.mrb[0].mxu0
  %v3218 = vadd.f32 0.0, %v3217
  %v3219 = vpop.f32.mrb[0].mxu0
  %v3220 = vadd.f32 0.0, %v3219
  %v3221 = vpop.f32.mrb[0].mxu0
  %v3222 = vadd.f32 0.0, %v3221
  %3223 = vmatprep.mubr.bf16.mxu0 0
  %3224 = vmatmul.mubr.bf16.gmra.mrb[0].mxu0 %v2546
  %v3225 = vpop.f32.mrb[0].mxu0
  %v3226 = vadd.f32 0.0, %v3225
  %v3227 = vpop.f32.mrb[0].mxu0
  %v3228 = vadd.f32 0.0, %v3227
  %v3229 = vpop.f32.mrb[0].mxu0
  %v3230 = vadd.f32 0.0, %v3229
  %v3231 = vpop.f32.mrb[0].mxu0
  %v3232 = vadd.f32 0.0, %v3231
  %3233 = vmatprep.mubr.bf16.mxu0 0
  %3234 = vmatmul.mubr.bf16.gmra.mrb[0].mxu0 %v2547
  %v3235 = vpop.f32.mrb[0].mxu0
  %v3236 = vadd.f32 0.0, %v3235
  %v3237 = vpop.f32.mrb[0].mxu0
  %v3238 = vadd.f32 0.0, %v3237
  %v3239 = vpop.f32.mrb[0].mxu0
  %v3240 = vadd.f32 0.0, %v3239
  %v3241 = vpop.f32.mrb[0].mxu0
  %v3242 = vadd.f32 0.0, %v3241
  %3243 = vmatprep.mubr.bf16.mxu0 0
  %3244 = vmatmul.mubr.bf16.gmra.mrb[0].mxu0 %v2548
  %v3245 = vpop.f32.mrb[0].mxu0
  %v3246 = vadd.f32 0.0, %v3245
  %v3247 = vpop.f32.mrb[0].mxu0
  %v3248 = vadd.f32 0.0, %v3247
  %v3249 = vpop.f32.mrb[0].mxu0
  %v3250 = vadd.f32 0.0, %v3249
  %v3251 = vpop.f32.mrb[0].mxu0
  %v3252 = vadd.f32 0.0, %v3251
  %3253 = vmatprep.mubr.bf16.mxu0 0
  %3254 = vmatmul.mubr.bf16.gmra.mrb[0].mxu0 %v2549
  %v3255 = vpop.f32.mrb[0].mxu0
  %v3256 = vadd.f32 0.0, %v3255
  %v3257 = vpop.f32.mrb[0].mxu0
  %v3258 = vadd.f32 0.0, %v3257
  %v3259 = vpop.f32.mrb[0].mxu0
  %v3260 = vadd.f32 0.0, %v3259
  %v3261 = vpop.f32.mrb[0].mxu0
  %v3262 = vadd.f32 0.0, %v3261
  %3263 = vmatprep.mubr.bf16.mxu0 0
  %3264 = vmatmul.mubr.bf16.gmra.mrb[0].mxu0 %v2550
  %v3265 = vpop.f32.mrb[0].mxu0
  %v3266 = vadd.f32 0.0, %v3265
  %v3267 = vpop.f32.mrb[0].mxu0
  %v3268 = vadd.f32 0.0, %v3267
  %v3269 = vpop.f32.mrb[0].mxu0
  %v3270 = vadd.f32 0.0, %v3269
  %v3271 = vpop.f32.mrb[0].mxu0
  %v3272 = vadd.f32 0.0, %v3271
  %3273 = vmatprep.mubr.bf16.mxu0 0
  %3274 = vmatmul.mubr.bf16.gmra.mrb[0].mxu0 %v2551
  %v3275 = vpop.f32.mrb[0].mxu0
  %v3276 = vadd.f32 0.0, %v3275
  %v3277 = vpop.f32.mrb[0].mxu0
  %v3278 = vadd.f32 0.0, %v3277
  %v3279 = vpop.f32.mrb[0].mxu0
  %v3280 = vadd.f32 0.0, %v3279
  %v3281 = vpop.f32.mrb[0].mxu0
  %v3282 = vadd.f32 0.0, %v3281
  %3283 = vmatprep.mubr.bf16.mxu0 0
  %3284 = vmatmul.mubr.bf16.gmra.mrb[0].mxu0 %v2552
  %v3285 = vpop.f32.mrb[0].mxu0
  %v3286 = vadd.f32 0.0, %v3285
  %v3287 = vpop.f32.mrb[0].mxu0
  %v3288 = vadd.f32 0.0, %v3287
  %v3289 = vpop.f32.mrb[0].mxu0
  %v3290 = vadd.f32 0.0, %v3289
  %v3291 = vpop.f32.mrb[0].mxu0
  %v3292 = vadd.f32 0.0, %v3291
  %3293 = vmatprep.mubr.bf16.mxu0 0
  %3294 = vmatmul.mubr.bf16.gmra.mrb[0].mxu0 %v2553
  %v3295 = vpop.f32.mrb[0].mxu0
  %v3296 = vadd.f32 0.0, %v3295
  %v3297 = vpop.f32.mrb[0].mxu0
  %v3298 = vadd.f32 0.0, %v3297
  %v3299 = vpop.f32.mrb[0].mxu0
  %v3300 = vadd.f32 0.0, %v3299
  %v3301 = vpop.f32.mrb[0].mxu0
  %v3302 = vadd.f32 0.0, %v3301
  %3303 = vmatprep.mubr.bf16.mxu0 0
  %3304 = vmatmul.mubr.bf16.gmra.mrb[0].mxu0 %v2554
  %v3305 = vpop.f32.mrb[0].mxu0
  %v3306 = vadd.f32 0.0, %v3305
  %v3307 = vpop.f32.mrb[0].mxu0
  %v3308 = vadd.f32 0.0, %v3307
  %v3309 = vpop.f32.mrb[0].mxu0
  %v3310 = vadd.f32 0.0, %v3309
  %v3311 = vpop.f32.mrb[0].mxu0
  %v3312 = vadd.f32 0.0, %v3311
  %3313 = vmatprep.mubr.bf16.mxu0 0
  %3314 = vmatmul.mubr.bf16.gmra.mrb[0].mxu0 %v2555
  %v3315 = vpop.f32.mrb[0].mxu0
  %v3316 = vadd.f32 0.0, %v3315
  %v3317 = vpop.f32.mrb[0].mxu0
  %v3318 = vadd.f32 0.0, %v3317
  %v3319 = vpop.f32.mrb[0].mxu0
  %v3320 = vadd.f32 0.0, %v3319
  %v3321 = vpop.f32.mrb[0].mxu0
  %v3322 = vadd.f32 0.0, %v3321
  %3323 = vmatprep.mubr.bf16.mxu0 0
  %3324 = vmatmul.mubr.bf16.gmra.mrb[0].mxu0 %v2556
  %v3325 = vpop.f32.mrb[0].mxu0
  %v3326 = vadd.f32 0.0, %v3325
  %v3327 = vpop.f32.mrb[0].mxu0
  %v3328 = vadd.f32 0.0, %v3327
  %v3329 = vpop.f32.mrb[0].mxu0
  %v3330 = vadd.f32 0.0, %v3329
  %v3331 = vpop.f32.mrb[0].mxu0
  %v3332 = vadd.f32 0.0, %v3331
  %3333 = vmatprep.mubr.bf16.mxu0 0
  %3334 = vmatmul.mubr.bf16.gmra.mrb[0].mxu0 %v2557
  %v3335 = vpop.f32.mrb[0].mxu0
  %v3336 = vadd.f32 0.0, %v3335
  %v3337 = vpop.f32.mrb[0].mxu0
  %v3338 = vadd.f32 0.0, %v3337
  %v3339 = vpop.f32.mrb[0].mxu0
  %v3340 = vadd.f32 0.0, %v3339
  %v3341 = vpop.f32.mrb[0].mxu0
  %v3342 = vadd.f32 0.0, %v3341
  %3343 = vmatprep.mubr.bf16.mxu0 0
  %3344 = vmatmul.mubr.bf16.gmra.mrb[0].mxu0 %v2558
  %v3345 = vpop.f32.mrb[0].mxu0
  %v3346 = vadd.f32 0.0, %v3345
  %v3347 = vpop.f32.mrb[0].mxu0
  %v3348 = vadd.f32 0.0, %v3347
  %v3349 = vpop.f32.mrb[0].mxu0
  %v3350 = vadd.f32 0.0, %v3349
  %v3351 = vpop.f32.mrb[0].mxu0
  %v3352 = vadd.f32 0.0, %v3351
  %3353 = vmatprep.mubr.bf16.mxu0 0
  %3354 = vmatmul.mubr.bf16.gmra.mrb[0].mxu0 %v2559
  %v3355 = vpop.f32.mrb[0].mxu0
  %v3356 = vadd.f32 0.0, %v3355
  %v3357 = vpop.f32.mrb[0].mxu0
  %v3358 = vadd.f32 0.0, %v3357
  %v3359 = vpop.f32.mrb[0].mxu0
  %v3360 = vadd.f32 0.0, %v3359
  %v3361 = vpop.f32.mrb[0].mxu0
  %v3362 = vadd.f32 0.0, %v3361
  %3363 = vmatprep.mubr.bf16.mxu0 0
  %3364 = vmatmul.mubr.bf16.gmra.mrb[0].mxu0 %v2560
  %v3365 = vpop.f32.mrb[0].mxu0
  %v3366 = vadd.f32 0.0, %v3365
  %v3367 = vpop.f32.mrb[0].mxu0
  %v3368 = vadd.f32 0.0, %v3367
  %v3369 = vpop.f32.mrb[0].mxu0
  %v3370 = vadd.f32 0.0, %v3369
  %v3371 = vpop.f32.mrb[0].mxu0
  %v3372 = vadd.f32 0.0, %v3371
  %3373 = vmatprep.mubr.bf16.mxu0 0
  %3374 = vmatmul.mubr.bf16.gmra.mrb[0].mxu0 %v2561
  %v3375 = vpop.f32.mrb[0].mxu0
  %v3376 = vadd.f32 0.0, %v3375
  %v3377 = vpop.f32.mrb[0].mxu0
  %v3378 = vadd.f32 0.0, %v3377
  %v3379 = vpop.f32.mrb[0].mxu0
  %v3380 = vadd.f32 0.0, %v3379
  %v3381 = vpop.f32.mrb[0].mxu0
  %v3382 = vadd.f32 0.0, %v3381
  %3383 = vmatprep.mubr.bf16.mxu0 0
  %3384 = vmatmul.mubr.bf16.gmra.mrb[0].mxu0 %v2562
  %v3385 = vpop.f32.mrb[0].mxu0
  %v3386 = vadd.f32 0.0, %v3385
  %v3387 = vpop.f32.mrb[0].mxu0
  %v3388 = vadd.f32 0.0, %v3387
  %v3389 = vpop.f32.mrb[0].mxu0
  %v3390 = vadd.f32 0.0, %v3389
  %v3391 = vpop.f32.mrb[0].mxu0
  %v3392 = vadd.f32 0.0, %v3391
  %3393 = vmatprep.mubr.bf16.mxu0 0
  %3394 = vmatmul.mubr.bf16.gmra.mrb[0].mxu0 %v2563
  %v3395 = vpop.f32.mrb[0].mxu0
  %v3396 = vadd.f32 0.0, %v3395
  %v3397 = vpop.f32.mrb[0].mxu0
  %v3398 = vadd.f32 0.0, %v3397
  %v3399 = vpop.f32.mrb[0].mxu0
  %v3400 = vadd.f32 0.0, %v3399
  %v3401 = vpop.f32.mrb[0].mxu0
  %v3402 = vadd.f32 0.0, %v3401
  %3403 = vmatprep.mubr.bf16.mxu0 0
  %3404 = vmatmul.mubr.bf16.gmra.mrb[0].mxu0 %v2564
  %v3405 = vpop.f32.mrb[0].mxu0
  %v3406 = vadd.f32 0.0, %v3405
  %v3407 = vpop.f32.mrb[0].mxu0
  %v3408 = vadd.f32 0.0, %v3407
  %v3409 = vpop.f32.mrb[0].mxu0
  %v3410 = vadd.f32 0.0, %v3409
  %v3411 = vpop.f32.mrb[0].mxu0
  %v3412 = vadd.f32 0.0, %v3411
  %3413 = vdwg.mxu0
  %v3430 = vunpack.c.l.b16 %v2333
  %v3431 = vunpack.c.h.b16 %v2333
  %v3432 = vunpack.c.l.b16 %v2334
  %v3433 = vunpack.c.h.b16 %v2334
  %v3434 = vunpack.c.l.b16 %v2335
  %v3435 = vunpack.c.h.b16 %v2335
  %v3436 = vunpack.c.l.b16 %v2336
  %v3437 = vunpack.c.h.b16 %v2336
  %v3438 = vunpack.c.l.b16 %v2337
  %v3439 = vunpack.c.h.b16 %v2337
  %v3440 = vunpack.c.l.b16 %v2338
  %v3441 = vunpack.c.h.b16 %v2338
  %v3442 = vunpack.c.l.b16 %v2339
  %v3443 = vunpack.c.h.b16 %v2339
  %v3444 = vunpack.c.l.b16 %v2340
  %v3445 = vunpack.c.h.b16 %v2340
  %v3446 = vunpack.c.l.b16 %v2341
  %v3447 = vunpack.c.h.b16 %v2341
  %v3448 = vunpack.c.l.b16 %v2342
  %v3449 = vunpack.c.h.b16 %v2342
  %v3450 = vunpack.c.l.b16 %v2343
  %v3451 = vunpack.c.h.b16 %v2343
  %v3452 = vunpack.c.l.b16 %v2344
  %v3453 = vunpack.c.h.b16 %v2344
  %v3454 = vunpack.c.l.b16 %v2345
  %v3455 = vunpack.c.h.b16 %v2345
  %v3456 = vunpack.c.l.b16 %v2346
  %v3457 = vunpack.c.h.b16 %v2346
  %v3458 = vunpack.c.l.b16 %v2347
  %v3459 = vunpack.c.h.b16 %v2347
  %v3460 = vunpack.c.l.b16 %v2348
  %v3461 = vunpack.c.h.b16 %v2348
  %v3462 = vpack.c.b16 %v3432, %v3430
  %v3463 = vpack.c.b16 %v3433, %v3431
  %v3464 = vpack.c.b16 %v3436, %v3434
  %v3465 = vpack.c.b16 %v3437, %v3435
  %v3466 = vpack.c.b16 %v3440, %v3438
  %v3467 = vpack.c.b16 %v3441, %v3439
  %v3468 = vpack.c.b16 %v3444, %v3442
  %v3469 = vpack.c.b16 %v3445, %v3443
  %v3470 = vpack.c.b16 %v3448, %v3446
  %v3471 = vpack.c.b16 %v3449, %v3447
  %v3472 = vpack.c.b16 %v3452, %v3450
  %v3473 = vpack.c.b16 %v3453, %v3451
  %v3474 = vpack.c.b16 %v3456, %v3454
  %v3475 = vpack.c.b16 %v3457, %v3455
  %v3476 = vpack.c.b16 %v3460, %v3458
  %v3477 = vpack.c.b16 %v3461, %v3459
  %3494 = vmatprep.subr.bf16.mxu0 %v3463
  %3495 = vmatpush1.bf16.msra.mxu0 %v3462
  %3496 = vmatprep.subr.bf16.mxu0 %v3465
  %3497 = vmatpush1.bf16.msra.mxu0 %v3464
  %3498 = vmatprep.subr.bf16.mxu0 %v3467
  %3499 = vmatpush1.bf16.msra.mxu0 %v3466
  %3500 = vmatprep.subr.bf16.mxu0 %v3469
  %3501 = vmatpush1.bf16.msra.mxu0 %v3468
  %3502 = vmatprep.subr.bf16.mxu0 %v3471
  %3503 = vmatpush1.bf16.msra.mxu0 %v3470
  %3504 = vmatprep.subr.bf16.mxu0 %v3473
  %3505 = vmatpush1.bf16.msra.mxu0 %v3472
  %3506 = vmatprep.subr.bf16.mxu0 %v3475
  %3507 = vmatpush1.bf16.msra.mxu0 %v3474
  %3508 = vmatprep.subr.bf16.mxu0 %v3477
  %3509 = vmatpush1.bf16.msra.mxu0 %v3476
  %3510 = vmatprep.subr.bf16.mxu0 0
  %3511 = vmatpush1.bf16.msra.mxu0 0
  %3512 = vmatprep.subr.bf16.mxu0 0
  %3513 = vmatpush1.bf16.msra.mxu0 0
  %3514 = vmatprep.subr.bf16.mxu0 0
  %3515 = vmatpush1.bf16.msra.mxu0 0
  %3516 = vmatprep.subr.bf16.mxu0 0
  %3517 = vmatpush1.bf16.msra.mxu0 0
  %3518 = vmatprep.subr.bf16.mxu0 0
  %3519 = vmatpush1.bf16.msra.mxu0 0
  %3520 = vmatprep.subr.bf16.mxu0 0
  %3521 = vmatpush1.bf16.msra.mxu0 0
  %3522 = vmatprep.subr.bf16.mxu0 0
  %3523 = vmatpush1.bf16.msra.mxu0 0
  %3524 = vmatprep.subr.bf16.mxu0 0
  %3525 = vmatpush1.bf16.msra.mxu0 0
  %3526 = vmatprep.mubr.bf16.mxu0 0
  %3527 = vmatmul.mubr.bf16.gmra.mrb[0].mxu0 %v2261
  %v3528 = vpop.f32.mrb[0].mxu0
  %v3529 = vadd.f32 %v2696, %v3528
  %v3530 = vpop.f32.mrb[0].mxu0
  %v3531 = vadd.f32 %v2698, %v3530
  %v3532 = vpop.f32.mrb[0].mxu0
  %v3533 = vadd.f32 %v2700, %v3532
  %v3534 = vpop.f32.mrb[0].mxu0
  %v3535 = vadd.f32 %v2702, %v3534
  %3536 = vmatprep.mubr.bf16.mxu0 0
  %3537 = vmatmul.mubr.bf16.gmra.mrb[0].mxu0 %v2262
  %v3538 = vpop.f32.mrb[0].mxu0
  %v3539 = vadd.f32 %v2706, %v3538
  %v3540 = vpop.f32.mrb[0].mxu0
  %v3541 = vadd.f32 %v2708, %v3540
  %v3542 = vpop.f32.mrb[0].mxu0
  %v3543 = vadd.f32 %v2710, %v3542
  %v3544 = vpop.f32.mrb[0].mxu0
  %v3545 = vadd.f32 %v2712, %v3544
  %3546 = vmatprep.mubr.bf16.mxu0 0
  %3547 = vmatmul.mubr.bf16.gmra.mrb[0].mxu0 %v2263
  %v3548 = vpop.f32.mrb[0].mxu0
  %v3549 = vadd.f32 %v2716, %v3548
  %v3550 = vpop.f32.mrb[0].mxu0
  %v3551 = vadd.f32 %v2718, %v3550
  %v3552 = vpop.f32.mrb[0].mxu0
  %v3553 = vadd.f32 %v2720, %v3552
  %v3554 = vpop.f32.mrb[0].mxu0
  %v3555 = vadd.f32 %v2722, %v3554
  %3556 = vmatprep.mubr.bf16.mxu0 0
  %3557 = vmatmul.mubr.bf16.gmra.mrb[0].mxu0 %v2264
  %v3558 = vpop.f32.mrb[0].mxu0
  %v3559 = vadd.f32 %v2726, %v3558
  %v3560 = vpop.f32.mrb[0].mxu0
  %v3561 = vadd.f32 %v2728, %v3560
  %v3562 = vpop.f32.mrb[0].mxu0
  %v3563 = vadd.f32 %v2730, %v3562
  %v3564 = vpop.f32.mrb[0].mxu0
  %v3565 = vadd.f32 %v2732, %v3564
  %3566 = vmatprep.mubr.bf16.mxu0 0
  %3567 = vmatmul.mubr.bf16.gmra.mrb[0].mxu0 %v2265
  %v3568 = vpop.f32.mrb[0].mxu0
  %v3569 = vadd.f32 %v2736, %v3568
  %v3570 = vpop.f32.mrb[0].mxu0
  %v3571 = vadd.f32 %v2738, %v3570
  %v3572 = vpop.f32.mrb[0].mxu0
  %v3573 = vadd.f32 %v2740, %v3572
  %v3574 = vpop.f32.mrb[0].mxu0
  %v3575 = vadd.f32 %v2742, %v3574
  %3576 = vmatprep.mubr.bf16.mxu0 0
  %3577 = vmatmul.mubr.bf16.gmra.mrb[0].mxu0 %v2266
  %v3578 = vpop.f32.mrb[0].mxu0
  %v3579 = vadd.f32 %v2746, %v3578
  %v3580 = vpop.f32.mrb[0].mxu0
  %v3581 = vadd.f32 %v2748, %v3580
  %v3582 = vpop.f32.mrb[0].mxu0
  %v3583 = vadd.f32 %v2750, %v3582
  %v3584 = vpop.f32.mrb[0].mxu0
  %v3585 = vadd.f32 %v2752, %v3584
  %3586 = vmatprep.mubr.bf16.mxu0 0
  %3587 = vmatmul.mubr.bf16.gmra.mrb[0].mxu0 %v2267
  %v3588 = vpop.f32.mrb[0].mxu0
  %v3589 = vadd.f32 %v2756, %v3588
  %v3590 = vpop.f32.mrb[0].mxu0
  %v3591 = vadd.f32 %v2758, %v3590
  %v3592 = vpop.f32.mrb[0].mxu0
  %v3593 = vadd.f32 %v2760, %v3592
  %v3594 = vpop.f32.mrb[0].mxu0
  %v3595 = vadd.f32 %v2762, %v3594
  %3596 = vmatprep.mubr.bf16.mxu0 0
  %3597 = vmatmul.mubr.bf16.gmra.mrb[0].mxu0 %v2268
  %v3598 = vpop.f32.mrb[0].mxu0
  %v3599 = vadd.f32 %v2766, %v3598
  %v3600 = vpop.f32.mrb[0].mxu0
  %v3601 = vadd.f32 %v2768, %v3600
  %v3602 = vpop.f32.mrb[0].mxu0
  %v3603 = vadd.f32 %v2770, %v3602
  %v3604 = vpop.f32.mrb[0].mxu0
  %v3605 = vadd.f32 %v2772, %v3604
  %3606 = vmatprep.mubr.bf16.mxu0 0
  %3607 = vmatmul.mubr.bf16.gmra.mrb[0].mxu0 %v2269
  %v3608 = vpop.f32.mrb[0].mxu0
  %v3609 = vadd.f32 %v2776, %v3608
  %v3610 = vpop.f32.mrb[0].mxu0
  %v3611 = vadd.f32 %v2778, %v3610
  %v3612 = vpop.f32.mrb[0].mxu0
  %v3613 = vadd.f32 %v2780, %v3612
  %v3614 = vpop.f32.mrb[0].mxu0
  %v3615 = vadd.f32 %v2782, %v3614
  %3616 = vmatprep.mubr.bf16.mxu0 0
  %3617 = vmatmul.mubr.bf16.gmra.mrb[0].mxu0 %v2270
  %v3618 = vpop.f32.mrb[0].mxu0
  %v3619 = vadd.f32 %v2786, %v3618
  %v3620 = vpop.f32.mrb[0].mxu0
  %v3621 = vadd.f32 %v2788, %v3620
  %v3622 = vpop.f32.mrb[0].mxu0
  %v3623 = vadd.f32 %v2790, %v3622
  %v3624 = vpop.f32.mrb[0].mxu0
  %v3625 = vadd.f32 %v2792, %v3624
  %3626 = vmatprep.mubr.bf16.mxu0 0
  %3627 = vmatmul.mubr.bf16.gmra.mrb[0].mxu0 %v2271
  %v3628 = vpop.f32.mrb[0].mxu0
  %v3629 = vadd.f32 %v2796, %v3628
  %v3630 = vpop.f32.mrb[0].mxu0
  %v3631 = vadd.f32 %v2798, %v3630
  %v3632 = vpop.f32.mrb[0].mxu0
  %v3633 = vadd.f32 %v2800, %v3632
  %v3634 = vpop.f32.mrb[0].mxu0
  %v3635 = vadd.f32 %v2802, %v3634
  %3636 = vmatprep.mubr.bf16.mxu0 0
  %3637 = vmatmul.mubr.bf16.gmra.mrb[0].mxu0 %v2272
  %v3638 = vpop.f32.mrb[0].mxu0
  %v3639 = vadd.f32 %v2806, %v3638
  %v3640 = vpop.f32.mrb[0].mxu0
  %v3641 = vadd.f32 %v2808, %v3640
  %v3642 = vpop.f32.mrb[0].mxu0
  %v3643 = vadd.f32 %v2810, %v3642
  %v3644 = vpop.f32.mrb[0].mxu0
  %v3645 = vadd.f32 %v2812, %v3644
  %3646 = vmatprep.mubr.bf16.mxu0 0
  %3647 = vmatmul.mubr.bf16.gmra.mrb[0].mxu0 %v2273
  %v3648 = vpop.f32.mrb[0].mxu0
  %v3649 = vadd.f32 %v2816, %v3648
  %v3650 = vpop.f32.mrb[0].mxu0
  %v3651 = vadd.f32 %v2818, %v3650
  %v3652 = vpop.f32.mrb[0].mxu0
  %v3653 = vadd.f32 %v2820, %v3652
  %v3654 = vpop.f32.mrb[0].mxu0
  %v3655 = vadd.f32 %v2822, %v3654
  %3656 = vmatprep.mubr.bf16.mxu0 0
  %3657 = vmatmul.mubr.bf16.gmra.mrb[0].mxu0 %v2274
  %v3658 = vpop.f32.mrb[0].mxu0
  %v3659 = vadd.f32 %v2826, %v3658
  %v3660 = vpop.f32.mrb[0].mxu0
  %v3661 = vadd.f32 %v2828, %v3660
  %v3662 = vpop.f32.mrb[0].mxu0
  %v3663 = vadd.f32 %v2830, %v3662
  %v3664 = vpop.f32.mrb[0].mxu0
  %v3665 = vadd.f32 %v2832, %v3664
  %3666 = vmatprep.mubr.bf16.mxu0 0
  %3667 = vmatmul.mubr.bf16.gmra.mrb[0].mxu0 %v2275
  %v3668 = vpop.f32.mrb[0].mxu0
  %v3669 = vadd.f32 %v2836, %v3668
  %v3670 = vpop.f32.mrb[0].mxu0
  %v3671 = vadd.f32 %v2838, %v3670
  %v3672 = vpop.f32.mrb[0].mxu0
  %v3673 = vadd.f32 %v2840, %v3672
  %v3674 = vpop.f32.mrb[0].mxu0
  %v3675 = vadd.f32 %v2842, %v3674
  %3676 = vmatprep.mubr.bf16.mxu0 0
  %3677 = vmatmul.mubr.bf16.gmra.mrb[0].mxu0 %v2276
  %v3678 = vpop.f32.mrb[0].mxu0
  %v3679 = vadd.f32 %v2846, %v3678
  %v3680 = vpop.f32.mrb[0].mxu0
  %v3681 = vadd.f32 %v2848, %v3680
  %v3682 = vpop.f32.mrb[0].mxu0
  %v3683 = vadd.f32 %v2850, %v3682
  %v3684 = vpop.f32.mrb[0].mxu0
  %v3685 = vadd.f32 %v2852, %v3684
  %3686 = vmatprep.mubr.bf16.mxu0 0
  %3687 = vmatmul.mubr.bf16.gmra.mrb[0].mxu0 %v2277
  %v3688 = vpop.f32.mrb[0].mxu0
  %v3689 = vadd.f32 %v2856, %v3688
  %v3690 = vpop.f32.mrb[0].mxu0
  %v3691 = vadd.f32 %v2858, %v3690
  %v3692 = vpop.f32.mrb[0].mxu0
  %v3693 = vadd.f32 %v2860, %v3692
  %v3694 = vpop.f32.mrb[0].mxu0
  %v3695 = vadd.f32 %v2862, %v3694
  %3696 = vmatprep.mubr.bf16.mxu0 0
  %3697 = vmatmul.mubr.bf16.gmra.mrb[0].mxu0 %v2278
  %v3698 = vpop.f32.mrb[0].mxu0
  %v3699 = vadd.f32 %v2866, %v3698
  %v3700 = vpop.f32.mrb[0].mxu0
  %v3701 = vadd.f32 %v2868, %v3700
  %v3702 = vpop.f32.mrb[0].mxu0
  %v3703 = vadd.f32 %v2870, %v3702
  %v3704 = vpop.f32.mrb[0].mxu0
  %v3705 = vadd.f32 %v2872, %v3704
  %3706 = vmatprep.mubr.bf16.mxu0 0
  %3707 = vmatmul.mubr.bf16.gmra.mrb[0].mxu0 %v2279
  %v3708 = vpop.f32.mrb[0].mxu0
  %v3709 = vadd.f32 %v2876, %v3708
  %v3710 = vpop.f32.mrb[0].mxu0
  %v3711 = vadd.f32 %v2878, %v3710
  %v3712 = vpop.f32.mrb[0].mxu0
  %v3713 = vadd.f32 %v2880, %v3712
  %v3714 = vpop.f32.mrb[0].mxu0
  %v3715 = vadd.f32 %v2882, %v3714
  %3716 = vmatprep.mubr.bf16.mxu0 0
  %3717 = vmatmul.mubr.bf16.gmra.mrb[0].mxu0 %v2280
  %v3718 = vpop.f32.mrb[0].mxu0
  %v3719 = vadd.f32 %v2886, %v3718
  %v3720 = vpop.f32.mrb[0].mxu0
  %v3721 = vadd.f32 %v2888, %v3720
  %v3722 = vpop.f32.mrb[0].mxu0
  %v3723 = vadd.f32 %v2890, %v3722
  %v3724 = vpop.f32.mrb[0].mxu0
  %v3725 = vadd.f32 %v2892, %v3724
  %3726 = vmatprep.mubr.bf16.mxu0 0
  %3727 = vmatmul.mubr.bf16.gmra.mrb[0].mxu0 %v2281
  %v3728 = vpop.f32.mrb[0].mxu0
  %v3729 = vadd.f32 %v2896, %v3728
  %v3730 = vpop.f32.mrb[0].mxu0
  %v3731 = vadd.f32 %v2898, %v3730
  %v3732 = vpop.f32.mrb[0].mxu0
  %v3733 = vadd.f32 %v2900, %v3732
  %v3734 = vpop.f32.mrb[0].mxu0
  %v3735 = vadd.f32 %v2902, %v3734
  %3736 = vmatprep.mubr.bf16.mxu0 0
  %3737 = vmatmul.mubr.bf16.gmra.mrb[0].mxu0 %v2282
  %v3738 = vpop.f32.mrb[0].mxu0
  %v3739 = vadd.f32 %v2906, %v3738
  %v3740 = vpop.f32.mrb[0].mxu0
  %v3741 = vadd.f32 %v2908, %v3740
  %v3742 = vpop.f32.mrb[0].mxu0
  %v3743 = vadd.f32 %v2910, %v3742
  %v3744 = vpop.f32.mrb[0].mxu0
  %v3745 = vadd.f32 %v2912, %v3744
  %3746 = vmatprep.mubr.bf16.mxu0 0
  %3747 = vmatmul.mubr.bf16.gmra.mrb[0].mxu0 %v2283
  %v3748 = vpop.f32.mrb[0].mxu0
  %v3749 = vadd.f32 %v2916, %v3748
  %v3750 = vpop.f32.mrb[0].mxu0
  %v3751 = vadd.f32 %v2918, %v3750
  %v3752 = vpop.f32.mrb[0].mxu0
  %v3753 = vadd.f32 %v2920, %v3752
  %v3754 = vpop.f32.mrb[0].mxu0
  %v3755 = vadd.f32 %v2922, %v3754
  %3756 = vmatprep.mubr.bf16.mxu0 0
  %3757 = vmatmul.mubr.bf16.gmra.mrb[0].mxu0 %v2284
  %v3758 = vpop.f32.mrb[0].mxu0
  %v3759 = vadd.f32 %v2926, %v3758
  %v3760 = vpop.f32.mrb[0].mxu0
  %v3761 = vadd.f32 %v2928, %v3760
  %v3762 = vpop.f32.mrb[0].mxu0
  %v3763 = vadd.f32 %v2930, %v3762
  %v3764 = vpop.f32.mrb[0].mxu0
  %v3765 = vadd.f32 %v2932, %v3764
  %3766 = vmatprep.mubr.bf16.mxu0 0
  %3767 = vmatmul.mubr.bf16.gmra.mrb[0].mxu0 %v2285
  %v3768 = vpop.f32.mrb[0].mxu0
  %v3769 = vadd.f32 %v2936, %v3768
  %v3770 = vpop.f32.mrb[0].mxu0
  %v3771 = vadd.f32 %v2938, %v3770
  %v3772 = vpop.f32.mrb[0].mxu0
  %v3773 = vadd.f32 %v2940, %v3772
  %v3774 = vpop.f32.mrb[0].mxu0
  %v3775 = vadd.f32 %v2942, %v3774
  %3776 = vmatprep.mubr.bf16.mxu0 0
  %3777 = vmatmul.mubr.bf16.gmra.mrb[0].mxu0 %v2286
  %v3778 = vpop.f32.mrb[0].mxu0
  %v3779 = vadd.f32 %v2946, %v3778
  %v3780 = vpop.f32.mrb[0].mxu0
  %v3781 = vadd.f32 %v2948, %v3780
  %v3782 = vpop.f32.mrb[0].mxu0
  %v3783 = vadd.f32 %v2950, %v3782
  %v3784 = vpop.f32.mrb[0].mxu0
  %v3785 = vadd.f32 %v2952, %v3784
  %3786 = vmatprep.mubr.bf16.mxu0 0
  %3787 = vmatmul.mubr.bf16.gmra.mrb[0].mxu0 %v2287
  %v3788 = vpop.f32.mrb[0].mxu0
  %v3789 = vadd.f32 %v2956, %v3788
  %v3790 = vpop.f32.mrb[0].mxu0
  %v3791 = vadd.f32 %v2958, %v3790
  %v3792 = vpop.f32.mrb[0].mxu0
  %v3793 = vadd.f32 %v2960, %v3792
  %v3794 = vpop.f32.mrb[0].mxu0
  %v3795 = vadd.f32 %v2962, %v3794
  %3796 = vmatprep.mubr.bf16.mxu0 0
  %3797 = vmatmul.mubr.bf16.gmra.mrb[0].mxu0 %v2288
  %v3798 = vpop.f32.mrb[0].mxu0
  %v3799 = vadd.f32 %v2966, %v3798
  %v3800 = vpop.f32.mrb[0].mxu0
  %v3801 = vadd.f32 %v2968, %v3800
  %v3802 = vpop.f32.mrb[0].mxu0
  %v3803 = vadd.f32 %v2970, %v3802
  %v3804 = vpop.f32.mrb[0].mxu0
  %v3805 = vadd.f32 %v2972, %v3804
  %3806 = vmatprep.mubr.bf16.mxu0 0
  %3807 = vmatmul.mubr.bf16.gmra.mrb[0].mxu0 %v2289
  %v3808 = vpop.f32.mrb[0].mxu0
  %v3809 = vadd.f32 %v2976, %v3808
  %v3810 = vpop.f32.mrb[0].mxu0
  %v3811 = vadd.f32 %v2978, %v3810
  %v3812 = vpop.f32.mrb[0].mxu0
  %v3813 = vadd.f32 %v2980, %v3812
  %v3814 = vpop.f32.mrb[0].mxu0
  %v3815 = vadd.f32 %v2982, %v3814
  %3816 = vmatprep.mubr.bf16.mxu0 0
  %3817 = vmatmul.mubr.bf16.gmra.mrb[0].mxu0 %v2290
  %v3818 = vpop.f32.mrb[0].mxu0
  %v3819 = vadd.f32 %v2986, %v3818
  %v3820 = vpop.f32.mrb[0].mxu0
  %v3821 = vadd.f32 %v2988, %v3820
  %v3822 = vpop.f32.mrb[0].mxu0
  %v3823 = vadd.f32 %v2990, %v3822
  %v3824 = vpop.f32.mrb[0].mxu0
  %v3825 = vadd.f32 %v2992, %v3824
  %3826 = vmatprep.mubr.bf16.mxu0 0
  %3827 = vmatmul.mubr.bf16.gmra.mrb[0].mxu0 %v2291
  %v3828 = vpop.f32.mrb[0].mxu0
  %v3829 = vadd.f32 %v2996, %v3828
  %v3830 = vpop.f32.mrb[0].mxu0
  %v3831 = vadd.f32 %v2998, %v3830
  %v3832 = vpop.f32.mrb[0].mxu0
  %v3833 = vadd.f32 %v3000, %v3832
  %v3834 = vpop.f32.mrb[0].mxu0
  %v3835 = vadd.f32 %v3002, %v3834
  %3836 = vmatprep.mubr.bf16.mxu0 0
  %3837 = vmatmul.mubr.bf16.gmra.mrb[0].mxu0 %v2292
  %v3838 = vpop.f32.mrb[0].mxu0
  %v3839 = vadd.f32 %v3006, %v3838
  %v3840 = vpop.f32.mrb[0].mxu0
  %v3841 = vadd.f32 %v3008, %v3840
  %v3842 = vpop.f32.mrb[0].mxu0
  %v3843 = vadd.f32 %v3010, %v3842
  %v3844 = vpop.f32.mrb[0].mxu0
  %v3845 = vadd.f32 %v3012, %v3844
  %3846 = vmatprep.mubr.bf16.mxu0 0
  %3847 = vmatmul.mubr.bf16.gmra.mrb[0].mxu0 %v2293
  %v3848 = vpop.f32.mrb[0].mxu0
  %v3849 = vadd.f32 %v3016, %v3848
  %v3850 = vpop.f32.mrb[0].mxu0
  %v3851 = vadd.f32 %v3018, %v3850
  %v3852 = vpop.f32.mrb[0].mxu0
  %v3853 = vadd.f32 %v3020, %v3852
  %v3854 = vpop.f32.mrb[0].mxu0
  %v3855 = vadd.f32 %v3022, %v3854
  %3856 = vmatprep.mubr.bf16.mxu0 0
  %3857 = vmatmul.mubr.bf16.gmra.mrb[0].mxu0 %v2294
  %v3858 = vpop.f32.mrb[0].mxu0
  %v3859 = vadd.f32 %v3026, %v3858
  %v3860 = vpop.f32.mrb[0].mxu0
  %v3861 = vadd.f32 %v3028, %v3860
  %v3862 = vpop.f32.mrb[0].mxu0
  %v3863 = vadd.f32 %v3030, %v3862
  %v3864 = vpop.f32.mrb[0].mxu0
  %v3865 = vadd.f32 %v3032, %v3864
  %3866 = vmatprep.mubr.bf16.mxu0 0
  %3867 = vmatmul.mubr.bf16.gmra.mrb[0].mxu0 %v2295
  %v3868 = vpop.f32.mrb[0].mxu0
  %v3869 = vadd.f32 %v3036, %v3868
  %v3870 = vpop.f32.mrb[0].mxu0
  %v3871 = vadd.f32 %v3038, %v3870
  %v3872 = vpop.f32.mrb[0].mxu0
  %v3873 = vadd.f32 %v3040, %v3872
  %v3874 = vpop.f32.mrb[0].mxu0
  %v3875 = vadd.f32 %v3042, %v3874
  %3876 = vmatprep.mubr.bf16.mxu0 0
  %3877 = vmatmul.mubr.bf16.gmra.mrb[0].mxu0 %v2296
  %v3878 = vpop.f32.mrb[0].mxu0
  %v3879 = vadd.f32 %v3046, %v3878
  %v3880 = vpop.f32.mrb[0].mxu0
  %v3881 = vadd.f32 %v3048, %v3880
  %v3882 = vpop.f32.mrb[0].mxu0
  %v3883 = vadd.f32 %v3050, %v3882
  %v3884 = vpop.f32.mrb[0].mxu0
  %v3885 = vadd.f32 %v3052, %v3884
  %3886 = vmatprep.mubr.bf16.mxu0 0
  %3887 = vmatmul.mubr.bf16.gmra.mrb[0].mxu0 %v2297
  %v3888 = vpop.f32.mrb[0].mxu0
  %v3889 = vadd.f32 %v3056, %v3888
  %v3890 = vpop.f32.mrb[0].mxu0
  %v3891 = vadd.f32 %v3058, %v3890
  %v3892 = vpop.f32.mrb[0].mxu0
  %v3893 = vadd.f32 %v3060, %v3892
  %v3894 = vpop.f32.mrb[0].mxu0
  %v3895 = vadd.f32 %v3062, %v3894
  %3896 = vmatprep.mubr.bf16.mxu0 0
  %3897 = vmatmul.mubr.bf16.gmra.mrb[0].mxu0 %v2298
  %v3898 = vpop.f32.mrb[0].mxu0
  %v3899 = vadd.f32 %v3066, %v3898
  %v3900 = vpop.f32.mrb[0].mxu0
  %v3901 = vadd.f32 %v3068, %v3900
  %v3902 = vpop.f32.mrb[0].mxu0
  %v3903 = vadd.f32 %v3070, %v3902
  %v3904 = vpop.f32.mrb[0].mxu0
  %v3905 = vadd.f32 %v3072, %v3904
  %3906 = vmatprep.mubr.bf16.mxu0 0
  %3907 = vmatmul.mubr.bf16.gmra.mrb[0].mxu0 %v2299
  %v3908 = vpop.f32.mrb[0].mxu0
  %v3909 = vadd.f32 %v3076, %v3908
  %v3910 = vpop.f32.mrb[0].mxu0
  %v3911 = vadd.f32 %v3078, %v3910
  %v3912 = vpop.f32.mrb[0].mxu0
  %v3913 = vadd.f32 %v3080, %v3912
  %v3914 = vpop.f32.mrb[0].mxu0
  %v3915 = vadd.f32 %v3082, %v3914
  %3916 = vmatprep.mubr.bf16.mxu0 0
  %3917 = vmatmul.mubr.bf16.gmra.mrb[0].mxu0 %v2300
  %v3918 = vpop.f32.mrb[0].mxu0
  %v3919 = vadd.f32 %v3086, %v3918
  %v3920 = vpop.f32.mrb[0].mxu0
  %v3921 = vadd.f32 %v3088, %v3920
  %v3922 = vpop.f32.mrb[0].mxu0
  %v3923 = vadd.f32 %v3090, %v3922
  %v3924 = vpop.f32.mrb[0].mxu0
  %v3925 = vadd.f32 %v3092, %v3924
  %3926 = vmatprep.mubr.bf16.mxu0 0
  %3927 = vmatmul.mubr.bf16.gmra.mrb[0].mxu0 %v2301
  %v3928 = vpop.f32.mrb[0].mxu0
  %v3929 = vadd.f32 %v3096, %v3928
  %v3930 = vpop.f32.mrb[0].mxu0
  %v3931 = vadd.f32 %v3098, %v3930
  %v3932 = vpop.f32.mrb[0].mxu0
  %v3933 = vadd.f32 %v3100, %v3932
  %v3934 = vpop.f32.mrb[0].mxu0
  %v3935 = vadd.f32 %v3102, %v3934
  %3936 = vmatprep.mubr.bf16.mxu0 0
  %3937 = vmatmul.mubr.bf16.gmra.mrb[0].mxu0 %v2302
  %v3938 = vpop.f32.mrb[0].mxu0
  %v3939 = vadd.f32 %v3106, %v3938
  %v3940 = vpop.f32.mrb[0].mxu0
  %v3941 = vadd.f32 %v3108, %v3940
  %v3942 = vpop.f32.mrb[0].mxu0
  %v3943 = vadd.f32 %v3110, %v3942
  %v3944 = vpop.f32.mrb[0].mxu0
  %v3945 = vadd.f32 %v3112, %v3944
  %3946 = vmatprep.mubr.bf16.mxu0 0
  %3947 = vmatmul.mubr.bf16.gmra.mrb[0].mxu0 %v2303
  %v3948 = vpop.f32.mrb[0].mxu0
  %v3949 = vadd.f32 %v3116, %v3948
  %v3950 = vpop.f32.mrb[0].mxu0
  %v3951 = vadd.f32 %v3118, %v3950
  %v3952 = vpop.f32.mrb[0].mxu0
  %v3953 = vadd.f32 %v3120, %v3952
  %v3954 = vpop.f32.mrb[0].mxu0
  %v3955 = vadd.f32 %v3122, %v3954
  %3956 = vmatprep.mubr.bf16.mxu0 0
  %3957 = vmatmul.mubr.bf16.gmra.mrb[0].mxu0 %v2304
  %v3958 = vpop.f32.mrb[0].mxu0
  %v3959 = vadd.f32 %v3126, %v3958
  %v3960 = vpop.f32.mrb[0].mxu0
  %v3961 = vadd.f32 %v3128, %v3960
  %v3962 = vpop.f32.mrb[0].mxu0
  %v3963 = vadd.f32 %v3130, %v3962
  %v3964 = vpop.f32.mrb[0].mxu0
  %v3965 = vadd.f32 %v3132, %v3964
  %3966 = vmatprep.mubr.bf16.mxu0 0
  %3967 = vmatmul.mubr.bf16.gmra.mrb[0].mxu0 %v2305
  %v3968 = vpop.f32.mrb[0].mxu0
  %v3969 = vadd.f32 %v3136, %v3968
  %v3970 = vpop.f32.mrb[0].mxu0
  %v3971 = vadd.f32 %v3138, %v3970
  %v3972 = vpop.f32.mrb[0].mxu0
  %v3973 = vadd.f32 %v3140, %v3972
  %v3974 = vpop.f32.mrb[0].mxu0
  %v3975 = vadd.f32 %v3142, %v3974
  %3976 = vmatprep.mubr.bf16.mxu0 0
  %3977 = vmatmul.mubr.bf16.gmra.mrb[0].mxu0 %v2306
  %v3978 = vpop.f32.mrb[0].mxu0
  %v3979 = vadd.f32 %v3146, %v3978
  %v3980 = vpop.f32.mrb[0].mxu0
  %v3981 = vadd.f32 %v3148, %v3980
  %v3982 = vpop.f32.mrb[0].mxu0
  %v3983 = vadd.f32 %v3150, %v3982
  %v3984 = vpop.f32.mrb[0].mxu0
  %v3985 = vadd.f32 %v3152, %v3984
  %3986 = vmatprep.mubr.bf16.mxu0 0
  %3987 = vmatmul.mubr.bf16.gmra.mrb[0].mxu0 %v2307
  %v3988 = vpop.f32.mrb[0].mxu0
  %v3989 = vadd.f32 %v3156, %v3988
  %v3990 = vpop.f32.mrb[0].mxu0
  %v3991 = vadd.f32 %v3158, %v3990
  %v3992 = vpop.f32.mrb[0].mxu0
  %v3993 = vadd.f32 %v3160, %v3992
  %v3994 = vpop.f32.mrb[0].mxu0
  %v3995 = vadd.f32 %v3162, %v3994
  %3996 = vmatprep.mubr.bf16.mxu0 0
  %3997 = vmatmul.mubr.bf16.gmra.mrb[0].mxu0 %v2308
  %v3998 = vpop.f32.mrb[0].mxu0
  %v3999 = vadd.f32 %v3166, %v3998
  %v4000 = vpop.f32.mrb[0].mxu0
  %v4001 = vadd.f32 %v3168, %v4000
  %v4002 = vpop.f32.mrb[0].mxu0
  %v4003 = vadd.f32 %v3170, %v4002
  %v4004 = vpop.f32.mrb[0].mxu0
  %v4005 = vadd.f32 %v3172, %v4004
  %4006 = vmatprep.mubr.bf16.mxu0 0
  %4007 = vmatmul.mubr.bf16.gmra.mrb[0].mxu0 %v2309
  %v4008 = vpop.f32.mrb[0].mxu0
  %v4009 = vadd.f32 %v3176, %v4008
  %v4010 = vpop.f32.mrb[0].mxu0
  %v4011 = vadd.f32 %v3178, %v4010
  %v4012 = vpop.f32.mrb[0].mxu0
  %v4013 = vadd.f32 %v3180, %v4012
  %v4014 = vpop.f32.mrb[0].mxu0
  %v4015 = vadd.f32 %v3182, %v4014
  %4016 = vmatprep.mubr.bf16.mxu0 0
  %4017 = vmatmul.mubr.bf16.gmra.mrb[0].mxu0 %v2310
  %v4018 = vpop.f32.mrb[0].mxu0
  %v4019 = vadd.f32 %v3186, %v4018
  %v4020 = vpop.f32.mrb[0].mxu0
  %v4021 = vadd.f32 %v3188, %v4020
  %v4022 = vpop.f32.mrb[0].mxu0
  %v4023 = vadd.f32 %v3190, %v4022
  %v4024 = vpop.f32.mrb[0].mxu0
  %v4025 = vadd.f32 %v3192, %v4024
  %4026 = vmatprep.mubr.bf16.mxu0 0
  %4027 = vmatmul.mubr.bf16.gmra.mrb[0].mxu0 %v2311
  %v4028 = vpop.f32.mrb[0].mxu0
  %v4029 = vadd.f32 %v3196, %v4028
  %v4030 = vpop.f32.mrb[0].mxu0
  %v4031 = vadd.f32 %v3198, %v4030
  %v4032 = vpop.f32.mrb[0].mxu0
  %v4033 = vadd.f32 %v3200, %v4032
  %v4034 = vpop.f32.mrb[0].mxu0
  %v4035 = vadd.f32 %v3202, %v4034
  %4036 = vmatprep.mubr.bf16.mxu0 0
  %4037 = vmatmul.mubr.bf16.gmra.mrb[0].mxu0 %v2312
  %v4038 = vpop.f32.mrb[0].mxu0
  %v4039 = vadd.f32 %v3206, %v4038
  %v4040 = vpop.f32.mrb[0].mxu0
  %v4041 = vadd.f32 %v3208, %v4040
  %v4042 = vpop.f32.mrb[0].mxu0
  %v4043 = vadd.f32 %v3210, %v4042
  %v4044 = vpop.f32.mrb[0].mxu0
  %v4045 = vadd.f32 %v3212, %v4044
  %4046 = vmatprep.mubr.bf16.mxu0 0
  %4047 = vmatmul.mubr.bf16.gmra.mrb[0].mxu0 %v2313
  %v4048 = vpop.f32.mrb[0].mxu0
  %v4049 = vadd.f32 %v3216, %v4048
  %v4050 = vpop.f32.mrb[0].mxu0
  %v4051 = vadd.f32 %v3218, %v4050
  %v4052 = vpop.f32.mrb[0].mxu0
  %v4053 = vadd.f32 %v3220, %v4052
  %v4054 = vpop.f32.mrb[0].mxu0
  %v4055 = vadd.f32 %v3222, %v4054
  %4056 = vmatprep.mubr.bf16.mxu0 0
  %4057 = vmatmul.mubr.bf16.gmra.mrb[0].mxu0 %v2314
  %v4058 = vpop.f32.mrb[0].mxu0
  %v4059 = vadd.f32 %v3226, %v4058
  %v4060 = vpop.f32.mrb[0].mxu0
  %v4061 = vadd.f32 %v3228, %v4060
  %v4062 = vpop.f32.mrb[0].mxu0
  %v4063 = vadd.f32 %v3230, %v4062
  %v4064 = vpop.f32.mrb[0].mxu0
  %v4065 = vadd.f32 %v3232, %v4064
  %4066 = vmatprep.mubr.bf16.mxu0 0
  %4067 = vmatmul.mubr.bf16.gmra.mrb[0].mxu0 %v2315
  %v4068 = vpop.f32.mrb[0].mxu0
  %v4069 = vadd.f32 %v3236, %v4068
  %v4070 = vpop.f32.mrb[0].mxu0
  %v4071 = vadd.f32 %v3238, %v4070
  %v4072 = vpop.f32.mrb[0].mxu0
  %v4073 = vadd.f32 %v3240, %v4072
  %v4074 = vpop.f32.mrb[0].mxu0
  %v4075 = vadd.f32 %v3242, %v4074
  %4076 = vmatprep.mubr.bf16.mxu0 0
  %4077 = vmatmul.mubr.bf16.gmra.mrb[0].mxu0 %v2316
  %v4078 = vpop.f32.mrb[0].mxu0
  %v4079 = vadd.f32 %v3246, %v4078
  %v4080 = vpop.f32.mrb[0].mxu0
  %v4081 = vadd.f32 %v3248, %v4080
  %v4082 = vpop.f32.mrb[0].mxu0
  %v4083 = vadd.f32 %v3250, %v4082
  %v4084 = vpop.f32.mrb[0].mxu0
  %v4085 = vadd.f32 %v3252, %v4084
  %4086 = vmatprep.mubr.bf16.mxu0 0
  %4087 = vmatmul.mubr.bf16.gmra.mrb[0].mxu0 %v2317
  %v4088 = vpop.f32.mrb[0].mxu0
  %v4089 = vadd.f32 %v3256, %v4088
  %v4090 = vpop.f32.mrb[0].mxu0
  %v4091 = vadd.f32 %v3258, %v4090
  %v4092 = vpop.f32.mrb[0].mxu0
  %v4093 = vadd.f32 %v3260, %v4092
  %v4094 = vpop.f32.mrb[0].mxu0
  %v4095 = vadd.f32 %v3262, %v4094
  %4096 = vmatprep.mubr.bf16.mxu0 0
  %4097 = vmatmul.mubr.bf16.gmra.mrb[0].mxu0 %v2318
  %v4098 = vpop.f32.mrb[0].mxu0
  %v4099 = vadd.f32 %v3266, %v4098
  %v4100 = vpop.f32.mrb[0].mxu0
  %v4101 = vadd.f32 %v3268, %v4100
  %v4102 = vpop.f32.mrb[0].mxu0
  %v4103 = vadd.f32 %v3270, %v4102
  %v4104 = vpop.f32.mrb[0].mxu0
  %v4105 = vadd.f32 %v3272, %v4104
  %4106 = vmatprep.mubr.bf16.mxu0 0
  %4107 = vmatmul.mubr.bf16.gmra.mrb[0].mxu0 %v2319
  %v4108 = vpop.f32.mrb[0].mxu0
  %v4109 = vadd.f32 %v3276, %v4108
  %v4110 = vpop.f32.mrb[0].mxu0
  %v4111 = vadd.f32 %v3278, %v4110
  %v4112 = vpop.f32.mrb[0].mxu0
  %v4113 = vadd.f32 %v3280, %v4112
  %v4114 = vpop.f32.mrb[0].mxu0
  %v4115 = vadd.f32 %v3282, %v4114
  %4116 = vmatprep.mubr.bf16.mxu0 0
  %4117 = vmatmul.mubr.bf16.gmra.mrb[0].mxu0 %v2320
  %v4118 = vpop.f32.mrb[0].mxu0
  %v4119 = vadd.f32 %v3286, %v4118
  %v4120 = vpop.f32.mrb[0].mxu0
  %v4121 = vadd.f32 %v3288, %v4120
  %v4122 = vpop.f32.mrb[0].mxu0
  %v4123 = vadd.f32 %v3290, %v4122
  %v4124 = vpop.f32.mrb[0].mxu0
  %v4125 = vadd.f32 %v3292, %v4124
  %4126 = vmatprep.mubr.bf16.mxu0 0
  %4127 = vmatmul.mubr.bf16.gmra.mrb[0].mxu0 %v2321
  %v4128 = vpop.f32.mrb[0].mxu0
  %v4129 = vadd.f32 %v3296, %v4128
  %v4130 = vpop.f32.mrb[0].mxu0
  %v4131 = vadd.f32 %v3298, %v4130
  %v4132 = vpop.f32.mrb[0].mxu0
  %v4133 = vadd.f32 %v3300, %v4132
  %v4134 = vpop.f32.mrb[0].mxu0
  %v4135 = vadd.f32 %v3302, %v4134
  %4136 = vmatprep.mubr.bf16.mxu0 0
  %4137 = vmatmul.mubr.bf16.gmra.mrb[0].mxu0 %v2322
  %v4138 = vpop.f32.mrb[0].mxu0
  %v4139 = vadd.f32 %v3306, %v4138
  %v4140 = vpop.f32.mrb[0].mxu0
  %v4141 = vadd.f32 %v3308, %v4140
  %v4142 = vpop.f32.mrb[0].mxu0
  %v4143 = vadd.f32 %v3310, %v4142
  %v4144 = vpop.f32.mrb[0].mxu0
  %v4145 = vadd.f32 %v3312, %v4144
  %4146 = vmatprep.mubr.bf16.mxu0 0
  %4147 = vmatmul.mubr.bf16.gmra.mrb[0].mxu0 %v2323
  %v4148 = vpop.f32.mrb[0].mxu0
  %v4149 = vadd.f32 %v3316, %v4148
  %v4150 = vpop.f32.mrb[0].mxu0
  %v4151 = vadd.f32 %v3318, %v4150
  %v4152 = vpop.f32.mrb[0].mxu0
  %v4153 = vadd.f32 %v3320, %v4152
  %v4154 = vpop.f32.mrb[0].mxu0
  %v4155 = vadd.f32 %v3322, %v4154
  %4156 = vmatprep.mubr.bf16.mxu0 0
  %4157 = vmatmul.mubr.bf16.gmra.mrb[0].mxu0 %v2324
  %v4158 = vpop.f32.mrb[0].mxu0
  %v4159 = vadd.f32 %v3326, %v4158
  %v4160 = vpop.f32.mrb[0].mxu0
  %v4161 = vadd.f32 %v3328, %v4160
  %v4162 = vpop.f32.mrb[0].mxu0
  %v4163 = vadd.f32 %v3330, %v4162
  %v4164 = vpop.f32.mrb[0].mxu0
  %v4165 = vadd.f32 %v3332, %v4164
  %4166 = vmatprep.mubr.bf16.mxu0 0
  %4167 = vmatmul.mubr.bf16.gmra.mrb[0].mxu0 %v2325
  %v4168 = vpop.f32.mrb[0].mxu0
  %v4169 = vadd.f32 %v3336, %v4168
  %v4170 = vpop.f32.mrb[0].mxu0
  %v4171 = vadd.f32 %v3338, %v4170
  %v4172 = vpop.f32.mrb[0].mxu0
  %v4173 = vadd.f32 %v3340, %v4172
  %v4174 = vpop.f32.mrb[0].mxu0
  %v4175 = vadd.f32 %v3342, %v4174
  %4176 = vmatprep.mubr.bf16.mxu0 0
  %4177 = vmatmul.mubr.bf16.gmra.mrb[0].mxu0 %v2326
  %v4178 = vpop.f32.mrb[0].mxu0
  %v4179 = vadd.f32 %v3346, %v4178
  %v4180 = vpop.f32.mrb[0].mxu0
  %v4181 = vadd.f32 %v3348, %v4180
  %v4182 = vpop.f32.mrb[0].mxu0
  %v4183 = vadd.f32 %v3350, %v4182
  %v4184 = vpop.f32.mrb[0].mxu0
  %v4185 = vadd.f32 %v3352, %v4184
  %4186 = vmatprep.mubr.bf16.mxu0 0
  %4187 = vmatmul.mubr.bf16.gmra.mrb[0].mxu0 %v2327
  %v4188 = vpop.f32.mrb[0].mxu0
  %v4189 = vadd.f32 %v3356, %v4188
  %v4190 = vpop.f32.mrb[0].mxu0
  %v4191 = vadd.f32 %v3358, %v4190
  %v4192 = vpop.f32.mrb[0].mxu0
  %v4193 = vadd.f32 %v3360, %v4192
  %v4194 = vpop.f32.mrb[0].mxu0
  %v4195 = vadd.f32 %v3362, %v4194
  %4196 = vmatprep.mubr.bf16.mxu0 0
  %4197 = vmatmul.mubr.bf16.gmra.mrb[0].mxu0 %v2328
  %v4198 = vpop.f32.mrb[0].mxu0
  %v4199 = vadd.f32 %v3366, %v4198
  %v4200 = vpop.f32.mrb[0].mxu0
  %v4201 = vadd.f32 %v3368, %v4200
  %v4202 = vpop.f32.mrb[0].mxu0
  %v4203 = vadd.f32 %v3370, %v4202
  %v4204 = vpop.f32.mrb[0].mxu0
  %v4205 = vadd.f32 %v3372, %v4204
  %4206 = vmatprep.mubr.bf16.mxu0 0
  %4207 = vmatmul.mubr.bf16.gmra.mrb[0].mxu0 %v2329
  %v4208 = vpop.f32.mrb[0].mxu0
  %v4209 = vadd.f32 %v3376, %v4208
  %v4210 = vpop.f32.mrb[0].mxu0
  %v4211 = vadd.f32 %v3378, %v4210
  %v4212 = vpop.f32.mrb[0].mxu0
  %v4213 = vadd.f32 %v3380, %v4212
  %v4214 = vpop.f32.mrb[0].mxu0
  %v4215 = vadd.f32 %v3382, %v4214
  %4216 = vmatprep.mubr.bf16.mxu0 0
  %4217 = vmatmul.mubr.bf16.gmra.mrb[0].mxu0 %v2330
  %v4218 = vpop.f32.mrb[0].mxu0
  %v4219 = vadd.f32 %v3386, %v4218
  %v4220 = vpop.f32.mrb[0].mxu0
  %v4221 = vadd.f32 %v3388, %v4220
  %v4222 = vpop.f32.mrb[0].mxu0
  %v4223 = vadd.f32 %v3390, %v4222
  %v4224 = vpop.f32.mrb[0].mxu0
  %v4225 = vadd.f32 %v3392, %v4224
  %4226 = vmatprep.mubr.bf16.mxu0 0
  %4227 = vmatmul.mubr.bf16.gmra.mrb[0].mxu0 %v2331
  %v4228 = vpop.f32.mrb[0].mxu0
  %v4229 = vadd.f32 %v3396, %v4228
  %v4230 = vpop.f32.mrb[0].mxu0
  %v4231 = vadd.f32 %v3398, %v4230
  %v4232 = vpop.f32.mrb[0].mxu0
  %v4233 = vadd.f32 %v3400, %v4232
  %v4234 = vpop.f32.mrb[0].mxu0
  %v4235 = vadd.f32 %v3402, %v4234
  %4236 = vmatprep.mubr.bf16.mxu0 0
  %4237 = vmatmul.mubr.bf16.gmra.mrb[0].mxu0 %v2332
  %v4238 = vpop.f32.mrb[0].mxu0
  %v4239 = vadd.f32 %v3406, %v4238
  %v4240 = vpop.f32.mrb[0].mxu0
  %v4241 = vadd.f32 %v3408, %v4240
  %v4242 = vpop.f32.mrb[0].mxu0
  %v4243 = vadd.f32 %v3410, %v4242
  %v4244 = vpop.f32.mrb[0].mxu0
  %v4245 = vadd.f32 %v3412, %v4244
  %4246 = vdwg.mxu0
  %v4247 = vld [vmem:[#allocation2 + $0x2] sm:$0xff]
  %v4248 = vld [vmem:[#allocation2 + $0xa] sm:$0xff]
  %v4249 = vld [vmem:[#allocation2 + $0x12] sm:$0xff]
  %v4250 = vld [vmem:[#allocation2 + $0x1a] sm:$0xff]
  %v4251 = vld [vmem:[#allocation2 + $0x22] sm:$0xff]
  %v4252 = vld [vmem:[#allocation2 + $0x2a] sm:$0xff]
  %v4253 = vld [vmem:[#allocation2 + $0x32] sm:$0xff]
  %v4254 = vld [vmem:[#allocation2 + $0x3a] sm:$0xff]
  %v4255 = vld [vmem:[#allocation2 + $0x42] sm:$0xff]
  %v4256 = vld [vmem:[#allocation2 + $0x4a] sm:$0xff]
  %v4257 = vld [vmem:[#allocation2 + $0x52] sm:$0xff]
  %v4258 = vld [vmem:[#allocation2 + $0x5a] sm:$0xff]
  %v4259 = vld [vmem:[#allocation2 + $0x62] sm:$0xff]
  %v4260 = vld [vmem:[#allocation2 + $0x6a] sm:$0xff]
  %v4261 = vld [vmem:[#allocation2 + $0x72] sm:$0xff]
  %v4262 = vld [vmem:[#allocation2 + $0x7a] sm:$0xff]
  %v4263 = vld [vmem:[#allocation2 + $0x82] sm:$0xff]
  %v4264 = vld [vmem:[#allocation2 + $0x8a] sm:$0xff]
  %v4265 = vld [vmem:[#allocation2 + $0x9a] sm:$0xff]
  %v4266 = vld [vmem:[#allocation2 + $0xa2] sm:$0xff]
  %v4267 = vld [vmem:[#allocation2 + $0xaa] sm:$0xff]
  %v4268 = vld [vmem:[#allocation2 + $0xb2] sm:$0xff]
  %v4269 = vld [vmem:[#allocation2 + $0xba] sm:$0xff]
  %v4270 = vld [vmem:[#allocation2 + $0xc2] sm:$0xff]
  %v4271 = vld [vmem:[#allocation2 + $0xca] sm:$0xff]
  %v4272 = vld [vmem:[#allocation2 + $0xd2] sm:$0xff]
  %v4273 = vld [vmem:[#allocation2 + $0xda] sm:$0xff]
  %v4274 = vld [vmem:[#allocation2 + $0xe2] sm:$0xff]
  %v4275 = vld [vmem:[#allocation2 + $0xea] sm:$0xff]
  %v4276 = vld [vmem:[#allocation2 + $0xf2] sm:$0xff]
  %v4277 = vld [vmem:[#allocation2 + $0xfa] sm:$0xff]
  %v4278 = vld [vmem:[#allocation2 + $0x102] sm:$0xff]
  %v4279 = vld [vmem:[#allocation2 + $0x10a] sm:$0xff]
  %v4280 = vld [vmem:[#allocation2 + $0x112] sm:$0xff]
  %v4281 = vld [vmem:[#allocation2 + $0x11a] sm:$0xff]
  %v4282 = vld [vmem:[#allocation2 + $0x122] sm:$0xff]
  %v4283 = vld [vmem:[#allocation2 + $0x132] sm:$0xff]
  %v4284 = vld [vmem:[#allocation2 + $0x13a] sm:$0xff]
  %v4285 = vld [vmem:[#allocation2 + $0x142] sm:$0xff]
  %v4286 = vld [vmem:[#allocation2 + $0x14a] sm:$0xff]
  %v4287 = vld [vmem:[#allocation2 + $0x152] sm:$0xff]
  %v4288 = vld [vmem:[#allocation2 + $0x15a] sm:$0xff]
  %v4289 = vld [vmem:[#allocation2 + $0x162] sm:$0xff]
  %v4290 = vld [vmem:[#allocation2 + $0x16a] sm:$0xff]
  %v4291 = vld [vmem:[#allocation2 + $0x172] sm:$0xff]
  %v4292 = vld [vmem:[#allocation2 + $0x17a] sm:$0xff]
  %v4293 = vld [vmem:[#allocation2 + $0x182] sm:$0xff]
  %v4294 = vld [vmem:[#allocation2 + $0x18a] sm:$0xff]
  %v4295 = vld [vmem:[#allocation2 + $0x192] sm:$0xff]
  %v4296 = vld [vmem:[#allocation2 + $0x19a] sm:$0xff]
  %v4297 = vld [vmem:[#allocation2 + $0x1a2] sm:$0xff]
  %v4298 = vld [vmem:[#allocation2 + $0x1aa] sm:$0xff]
  %v4299 = vld [vmem:[#allocation2 + $0x1b2] sm:$0xff]
  %v4300 = vld [vmem:[#allocation2 + $0x1ba] sm:$0xff]
  %v4301 = vld [vmem:[#allocation2 + $0x1ca] sm:$0xff]
  %v4302 = vld [vmem:[#allocation2 + $0x1d2] sm:$0xff]
  %v4303 = vld [vmem:[#allocation2 + $0x1da] sm:$0xff]
  %v4304 = vld [vmem:[#allocation2 + $0x1e2] sm:$0xff]
  %v4305 = vld [vmem:[#allocation2 + $0x1ea] sm:$0xff]
  %v4306 = vld [vmem:[#allocation2 + $0x1f2] sm:$0xff]
  %v4307 = vld [vmem:[#allocation2 + $0x1fa] sm:$0xff]
  %v4308 = vld [vmem:[#allocation2 + $0x202] sm:$0xff]
  %v4309 = vld [vmem:[#allocation2 + $0x20a] sm:$0xff]
  %v4310 = vld [vmem:[#allocation2 + $0x212] sm:$0xff]
  %v4311 = vld [vmem:[#allocation2 + $0x21a] sm:$0xff]
  %v4312 = vld [vmem:[#allocation2 + $0x222] sm:$0xff]
  %v4313 = vld [vmem:[#allocation2 + $0x22a] sm:$0xff]
  %v4314 = vld [vmem:[#allocation2 + $0x232] sm:$0xff]
  %v4315 = vld [vmem:[#allocation2 + $0x23a] sm:$0xff]
  %v4316 = vld [vmem:[#allocation2 + $0x242] sm:$0xff]
  %v4317 = vld [vmem:[#allocation2 + $0x24a] sm:$0xff]
  %v4318 = vld [vmem:[#allocation2 + $0x252] sm:$0xff]
  %v4319 = vld [vmem:[#allocation2 + $0x262] sm:$0xff]
  %v4320 = vld [vmem:[#allocation2 + $0x26a] sm:$0xff]
  %v4321 = vld [vmem:[#allocation2 + $0x272] sm:$0xff]
  %v4322 = vld [vmem:[#allocation2 + $0x27a] sm:$0xff]
  %v4323 = vld [vmem:[#allocation2 + $0x282] sm:$0xff]
  %v4324 = vld [vmem:[#allocation2 + $0x28a] sm:$0xff]
  %v4325 = vld [vmem:[#allocation2 + $0x292] sm:$0xff]
  %v4326 = vld [vmem:[#allocation2 + $0x29a] sm:$0xff]
  %v4327 = vld [vmem:[#allocation2 + $0x2a2] sm:$0xff]
  %v4328 = vld [vmem:[#allocation2 + $0x2aa] sm:$0xff]
  %v4329 = vld [vmem:[#allocation2 + $0x2b2] sm:$0xff]
  %v4330 = vld [vmem:[#allocation2 + $0x2ba] sm:$0xff]
  %v4331 = vld [vmem:[#allocation2 + $0x2c2] sm:$0xff]
  %v4332 = vld [vmem:[#allocation2 + $0x2ca] sm:$0xff]
  %v4333 = vld [vmem:[#allocation2 + $0x2d2] sm:$0xff]
  %v4334 = vld [vmem:[#allocation2 + $0x2da] sm:$0xff]
  %v4335 = vld [vmem:[#allocation2 + $0x2e2] sm:$0xff]
  %v4336 = vld [vmem:[#allocation2 + $0x2ea] sm:$0xff]
  %v4337 = vld [vmem:[#allocation2 + $0x2fa] sm:$0xff]
  %v4338 = vld [vmem:[#allocation2 + $0x302] sm:$0xff]
  %v4339 = vld [vmem:[#allocation2 + $0x30a] sm:$0xff]
  %v4340 = vld [vmem:[#allocation2 + $0x312] sm:$0xff]
  %v4341 = vld [vmem:[#allocation2 + $0x31a] sm:$0xff]
  %v4342 = vld [vmem:[#allocation2 + $0x322] sm:$0xff]
  %v4343 = vld [vmem:[#allocation2 + $0x32a] sm:$0xff]
  %v4344 = vld [vmem:[#allocation2 + $0x332] sm:$0xff]
  %v4345 = vld [vmem:[#allocation2 + $0x33a] sm:$0xff]
  %v4346 = vld [vmem:[#allocation2 + $0x342] sm:$0xff]
  %v4347 = vld [vmem:[#allocation2 + $0x34a] sm:$0xff]
  %v4348 = vld [vmem:[#allocation2 + $0x352] sm:$0xff]
  %v4349 = vld [vmem:[#allocation2 + $0x35a] sm:$0xff]
  %v4350 = vld [vmem:[#allocation2 + $0x362] sm:$0xff]
  %v4351 = vld [vmem:[#allocation2 + $0x36a] sm:$0xff]
  %v4352 = vld [vmem:[#allocation2 + $0x372] sm:$0xff]
  %v4353 = vld [vmem:[#allocation2 + $0x37a] sm:$0xff]
  %v4354 = vld [vmem:[#allocation2 + $0x382] sm:$0xff]
  %v4355 = vld [vmem:[#allocation2 + $0x392] sm:$0xff]
  %v4356 = vld [vmem:[#allocation2 + $0x39a] sm:$0xff]
  %v4357 = vld [vmem:[#allocation2 + $0x3a2] sm:$0xff]
  %v4358 = vld [vmem:[#allocation2 + $0x3aa] sm:$0xff]
  %v4359 = vld [vmem:[#allocation2 + $0x3b2] sm:$0xff]
  %v4360 = vld [vmem:[#allocation2 + $0x3ba] sm:$0xff]
  %v4361 = vld [vmem:[#allocation2 + $0x3c2] sm:$0xff]
  %v4362 = vld [vmem:[#allocation2 + $0x3ca] sm:$0xff]
  %v4363 = vld [vmem:[#allocation2 + $0x3d2] sm:$0xff]
  %v4364 = vld [vmem:[#allocation2 + $0x3da] sm:$0xff]
  %v4365 = vld [vmem:[#allocation2 + $0x3e2] sm:$0xff]
  %v4366 = vld [vmem:[#allocation2 + $0x3ea] sm:$0xff]
  %v4367 = vld [vmem:[#allocation2 + $0x3f2] sm:$0xff]
  %v4368 = vld [vmem:[#allocation2 + $0x3fa] sm:$0xff]
  %v4369 = vld [vmem:[#allocation2 + $0x402] sm:$0xff]
  %v4370 = vld [vmem:[#allocation2 + $0x40a] sm:$0xff]
  %v4371 = vld [vmem:[#allocation2 + $0x412] sm:$0xff]
  %v4372 = vld [vmem:[#allocation2 + $0x41a] sm:$0xff]
  %v4373 = vld [vmem:[#allocation2 + $0x42a] sm:$0xff]
  %v4374 = vld [vmem:[#allocation2 + $0x432] sm:$0xff]
  %v4375 = vld [vmem:[#allocation2 + $0x43a] sm:$0xff]
  %v4376 = vld [vmem:[#allocation2 + $0x442] sm:$0xff]
  %v4377 = vld [vmem:[#allocation2 + $0x44a] sm:$0xff]
  %v4378 = vld [vmem:[#allocation2 + $0x452] sm:$0xff]
  %v4379 = vld [vmem:[#allocation2 + $0x45a] sm:$0xff]
  %v4380 = vld [vmem:[#allocation2 + $0x462] sm:$0xff]
  %v4381 = vld [vmem:[#allocation2 + $0x46a] sm:$0xff]
  %v4382 = vld [vmem:[#allocation2 + $0x472] sm:$0xff]
  %v4383 = vld [vmem:[#allocation2 + $0x47a] sm:$0xff]
  %v4384 = vld [vmem:[#allocation2 + $0x482] sm:$0xff]
  %v4385 = vld [vmem:[#allocation2 + $0x48a] sm:$0xff]
  %v4386 = vld [vmem:[#allocation2 + $0x492] sm:$0xff]
  %v4387 = vld [vmem:[#allocation2 + $0x49a] sm:$0xff]
  %v4388 = vld [vmem:[#allocation2 + $0x4a2] sm:$0xff]
  %v4389 = vld [vmem:[#allocation2 + $0x4aa] sm:$0xff]
  %v4390 = vld [vmem:[#allocation2 + $0x4b2] sm:$0xff]
  %v4391 = vpack.c.bf16 %v4248, %v4247
  %v4392 = vpack.c.bf16 %v4250, %v4249
  %v4393 = vpack.c.bf16 %v4252, %v4251
  %v4394 = vpack.c.bf16 %v4254, %v4253
  %v4395 = vpack.c.bf16 %v4256, %v4255
  %v4396 = vpack.c.bf16 %v4258, %v4257
  %v4397 = vpack.c.bf16 %v4260, %v4259
  %v4398 = vpack.c.bf16 %v4262, %v4261
  %v4399 = vpack.c.bf16 %v4264, %v4263
  %v4400 = vpack.c.bf16 %v4266, %v4265
  %v4401 = vpack.c.bf16 %v4268, %v4267
  %v4402 = vpack.c.bf16 %v4270, %v4269
  %v4403 = vpack.c.bf16 %v4272, %v4271
  %v4404 = vpack.c.bf16 %v4274, %v4273
  %v4405 = vpack.c.bf16 %v4276, %v4275
  %v4406 = vpack.c.bf16 %v4278, %v4277
  %v4407 = vpack.c.bf16 %v4280, %v4279
  %v4408 = vpack.c.bf16 %v4282, %v4281
  %v4409 = vpack.c.bf16 %v4284, %v4283
  %v4410 = vpack.c.bf16 %v4286, %v4285
  %v4411 = vpack.c.bf16 %v4288, %v4287
  %v4412 = vpack.c.bf16 %v4290, %v4289
  %v4413 = vpack.c.bf16 %v4292, %v4291
  %v4414 = vpack.c.bf16 %v4294, %v4293
  %v4415 = vpack.c.bf16 %v4296, %v4295
  %v4416 = vpack.c.bf16 %v4298, %v4297
  %v4417 = vpack.c.bf16 %v4300, %v4299
  %v4418 = vpack.c.bf16 %v4302, %v4301
  %v4419 = vpack.c.bf16 %v4304, %v4303
  %v4420 = vpack.c.bf16 %v4306, %v4305
  %v4421 = vpack.c.bf16 %v4308, %v4307
  %v4422 = vpack.c.bf16 %v4310, %v4309
  %v4423 = vpack.c.bf16 %v4312, %v4311
  %v4424 = vpack.c.bf16 %v4314, %v4313
  %v4425 = vpack.c.bf16 %v4316, %v4315
  %v4426 = vpack.c.bf16 %v4318, %v4317
  %v4427 = vpack.c.bf16 %v4320, %v4319
  %v4428 = vpack.c.bf16 %v4322, %v4321
  %v4429 = vpack.c.bf16 %v4324, %v4323
  %v4430 = vpack.c.bf16 %v4326, %v4325
  %v4431 = vpack.c.bf16 %v4328, %v4327
  %v4432 = vpack.c.bf16 %v4330, %v4329
  %v4433 = vpack.c.bf16 %v4332, %v4331
  %v4434 = vpack.c.bf16 %v4334, %v4333
  %v4435 = vpack.c.bf16 %v4336, %v4335
  %v4436 = vpack.c.bf16 %v4338, %v4337
  %v4437 = vpack.c.bf16 %v4340, %v4339
  %v4438 = vpack.c.bf16 %v4342, %v4341
  %v4439 = vpack.c.bf16 %v4344, %v4343
  %v4440 = vpack.c.bf16 %v4346, %v4345
  %v4441 = vpack.c.bf16 %v4348, %v4347
  %v4442 = vpack.c.bf16 %v4350, %v4349
  %v4443 = vpack.c.bf16 %v4352, %v4351
  %v4444 = vpack.c.bf16 %v4354, %v4353
  %v4445 = vpack.c.bf16 %v4356, %v4355
  %v4446 = vpack.c.bf16 %v4358, %v4357
  %v4447 = vpack.c.bf16 %v4360, %v4359
  %v4448 = vpack.c.bf16 %v4362, %v4361
  %v4449 = vpack.c.bf16 %v4364, %v4363
  %v4450 = vpack.c.bf16 %v4366, %v4365
  %v4451 = vpack.c.bf16 %v4368, %v4367
  %v4452 = vpack.c.bf16 %v4370, %v4369
  %v4453 = vpack.c.bf16 %v4372, %v4371
  %v4454 = vpack.c.bf16 %v4374, %v4373
  %v4455 = vpack.c.bf16 %v4376, %v4375
  %v4456 = vpack.c.bf16 %v4378, %v4377
  %v4457 = vpack.c.bf16 %v4380, %v4379
  %v4458 = vpack.c.bf16 %v4382, %v4381
  %v4459 = vpack.c.bf16 %v4384, %v4383
  %v4460 = vpack.c.bf16 %v4386, %v4385
  %v4461 = vpack.c.bf16 %v4388, %v4387
  %v4462 = vpack.c.bf16 %v4390, %v4389
  %v4463 = vld [vmem:[%s3 + $0x100] sm:$0xff]
  %v4464 = vld [vmem:[%s3 + $0x108] sm:$0xff]
  %v4465 = vld [vmem:[%s3 + $0x110] sm:$0xff]
  %v4466 = vld [vmem:[%s3 + $0x118] sm:$0xff]
  %v4467 = vld [vmem:[%s3 + $0x120] sm:$0xff]
  %v4468 = vld [vmem:[%s3 + $0x128] sm:$0xff]
  %v4469 = vld [vmem:[%s3 + $0x130] sm:$0xff]
  %v4470 = vld [vmem:[%s3 + $0x138] sm:$0xff]
  %v4471 = vld [vmem:[%s3 + $0x140] sm:$0xff]
  %v4472 = vld [vmem:[%s3 + $0x148] sm:$0xff]
  %v4473 = vld [vmem:[%s3 + $0x150] sm:$0xff]
  %v4474 = vld [vmem:[%s3 + $0x158] sm:$0xff]
  %v4475 = vld [vmem:[%s3 + $0x160] sm:$0xff]
  %v4476 = vld [vmem:[%s3 + $0x168] sm:$0xff]
  %v4477 = vld [vmem:[%s3 + $0x170] sm:$0xff]
  %v4478 = vld [vmem:[%s3 + $0x178] sm:$0xff]
  %v4495 = vunpack.c.l.b16 %v4463
  %v4496 = vunpack.c.h.b16 %v4463
  %v4497 = vunpack.c.l.b16 %v4464
  %v4498 = vunpack.c.h.b16 %v4464
  %v4499 = vunpack.c.l.b16 %v4465
  %v4500 = vunpack.c.h.b16 %v4465
  %v4501 = vunpack.c.l.b16 %v4466
  %v4502 = vunpack.c.h.b16 %v4466
  %v4503 = vunpack.c.l.b16 %v4467
  %v4504 = vunpack.c.h.b16 %v4467
  %v4505 = vunpack.c.l.b16 %v4468
  %v4506 = vunpack.c.h.b16 %v4468
  %v4507 = vunpack.c.l.b16 %v4469
  %v4508 = vunpack.c.h.b16 %v4469
  %v4509 = vunpack.c.l.b16 %v4470
  %v4510 = vunpack.c.h.b16 %v4470
  %v4511 = vunpack.c.l.b16 %v4471
  %v4512 = vunpack.c.h.b16 %v4471
  %v4513 = vunpack.c.l.b16 %v4472
  %v4514 = vunpack.c.h.b16 %v4472
  %v4515 = vunpack.c.l.b16 %v4473
  %v4516 = vunpack.c.h.b16 %v4473
  %v4517 = vunpack.c.l.b16 %v4474
  %v4518 = vunpack.c.h.b16 %v4474
  %v4519 = vunpack.c.l.b16 %v4475
  %v4520 = vunpack.c.h.b16 %v4475
  %v4521 = vunpack.c.l.b16 %v4476
  %v4522 = vunpack.c.h.b16 %v4476
  %v4523 = vunpack.c.l.b16 %v4477
  %v4524 = vunpack.c.h.b16 %v4477
  %v4525 = vunpack.c.l.b16 %v4478
  %v4526 = vunpack.c.h.b16 %v4478
  %v4527 = vpack.c.b16 %v4497, %v4495
  %v4528 = vpack.c.b16 %v4498, %v4496
  %v4529 = vpack.c.b16 %v4501, %v4499
  %v4530 = vpack.c.b16 %v4502, %v4500
  %v4531 = vpack.c.b16 %v4505, %v4503
  %v4532 = vpack.c.b16 %v4506, %v4504
  %v4533 = vpack.c.b16 %v4509, %v4507
  %v4534 = vpack.c.b16 %v4510, %v4508
  %v4535 = vpack.c.b16 %v4513, %v4511
  %v4536 = vpack.c.b16 %v4514, %v4512
  %v4537 = vpack.c.b16 %v4517, %v4515
  %v4538 = vpack.c.b16 %v4518, %v4516
  %v4539 = vpack.c.b16 %v4521, %v4519
  %v4540 = vpack.c.b16 %v4522, %v4520
  %v4541 = vpack.c.b16 %v4525, %v4523
  %v4542 = vpack.c.b16 %v4526, %v4524
  %4559 = vmatprep.subr.bf16.mxu0 %v4528
  %4560 = vmatpush1.bf16.msra.mxu0 %v4527
  %4561 = vmatprep.subr.bf16.mxu0 %v4530
  %4562 = vmatpush1.bf16.msra.mxu0 %v4529
  %4563 = vmatprep.subr.bf16.mxu0 %v4532
  %4564 = vmatpush1.bf16.msra.mxu0 %v4531
  %4565 = vmatprep.subr.bf16.mxu0 %v4534
  %4566 = vmatpush1.bf16.msra.mxu0 %v4533
  %4567 = vmatprep.subr.bf16.mxu0 %v4536
  %4568 = vmatpush1.bf16.msra.mxu0 %v4535
  %4569 = vmatprep.subr.bf16.mxu0 %v4538
  %4570 = vmatpush1.bf16.msra.mxu0 %v4537
  %4571 = vmatprep.subr.bf16.mxu0 %v4540
  %4572 = vmatpush1.bf16.msra.mxu0 %v4539
  %4573 = vmatprep.subr.bf16.mxu0 %v4542
  %4574 = vmatpush1.bf16.msra.mxu0 %v4541
  %4575 = vmatprep.subr.bf16.mxu0 0
  %4576 = vmatpush1.bf16.msra.mxu0 0
  %4577 = vmatprep.subr.bf16.mxu0 0
  %4578 = vmatpush1.bf16.msra.mxu0 0
  %4579 = vmatprep.subr.bf16.mxu0 0
  %4580 = vmatpush1.bf16.msra.mxu0 0
  %4581 = vmatprep.subr.bf16.mxu0 0
  %4582 = vmatpush1.bf16.msra.mxu0 0
  %4583 = vmatprep.subr.bf16.mxu0 0
  %4584 = vmatpush1.bf16.msra.mxu0 0
  %4585 = vmatprep.subr.bf16.mxu0 0
  %4586 = vmatpush1.bf16.msra.mxu0 0
  %4587 = vmatprep.subr.bf16.mxu0 0
  %4588 = vmatpush1.bf16.msra.mxu0 0
  %4589 = vmatprep.subr.bf16.mxu0 0
  %4590 = vmatpush1.bf16.msra.mxu0 0
  %4591 = vmatprep.mubr.bf16.mxu0 0
  %4592 = vmatmul.mubr.bf16.gmra.mrb[0].mxu0 %v4391
  %v4593 = vpop.f32.mrb[0].mxu0
  %v4594 = vadd.f32 0.0, %v4593
  %v4595 = vpop.f32.mrb[0].mxu0
  %v4596 = vadd.f32 0.0, %v4595
  %v4597 = vpop.f32.mrb[0].mxu0
  %v4598 = vadd.f32 0.0, %v4597
  %v4599 = vpop.f32.mrb[0].mxu0
  %v4600 = vadd.f32 0.0, %v4599
  %4601 = vmatprep.mubr.bf16.mxu0 0
  %4602 = vmatmul.mubr.bf16.gmra.mrb[0].mxu0 %v4392
  %v4603 = vpop.f32.mrb[0].mxu0
  %v4604 = vadd.f32 0.0, %v4603
  %v4605 = vpop.f32.mrb[0].mxu0
  %v4606 = vadd.f32 0.0, %v4605
  %v4607 = vpop.f32.mrb[0].mxu0
  %v4608 = vadd.f32 0.0, %v4607
  %v4609 = vpop.f32.mrb[0].mxu0
  %v4610 = vadd.f32 0.0, %v4609
  %4611 = vmatprep.mubr.bf16.mxu0 0
  %4612 = vmatmul.mubr.bf16.gmra.mrb[0].mxu0 %v4393
  %v4613 = vpop.f32.mrb[0].mxu0
  %v4614 = vadd.f32 0.0, %v4613
  %v4615 = vpop.f32.mrb[0].mxu0
  %v4616 = vadd.f32 0.0, %v4615
  %v4617 = vpop.f32.mrb[0].mxu0
  %v4618 = vadd.f32 0.0, %v4617
  %v4619 = vpop.f32.mrb[0].mxu0
  %v4620 = vadd.f32 0.0, %v4619
  %4621 = vmatprep.mubr.bf16.mxu0 0
  %4622 = vmatmul.mubr.bf16.gmra.mrb[0].mxu0 %v4394
  %v4623 = vpop.f32.mrb[0].mxu0
  %v4624 = vadd.f32 0.0, %v4623
  %v4625 = vpop.f32.mrb[0].mxu0
  %v4626 = vadd.f32 0.0, %v4625
  %v4627 = vpop.f32.mrb[0].mxu0
  %v4628 = vadd.f32 0.0, %v4627
  %v4629 = vpop.f32.mrb[0].mxu0
  %v4630 = vadd.f32 0.0, %v4629
  %4631 = vmatprep.mubr.bf16.mxu0 0
  %4632 = vmatmul.mubr.bf16.gmra.mrb[0].mxu0 %v4395
  %v4633 = vpop.f32.mrb[0].mxu0
  %v4634 = vadd.f32 0.0, %v4633
  %v4635 = vpop.f32.mrb[0].mxu0
  %v4636 = vadd.f32 0.0, %v4635
  %v4637 = vpop.f32.mrb[0].mxu0
  %v4638 = vadd.f32 0.0, %v4637
  %v4639 = vpop.f32.mrb[0].mxu0
  %v4640 = vadd.f32 0.0, %v4639
  %4641 = vmatprep.mubr.bf16.mxu0 0
  %4642 = vmatmul.mubr.bf16.gmra.mrb[0].mxu0 %v4396
  %v4643 = vpop.f32.mrb[0].mxu0
  %v4644 = vadd.f32 0.0, %v4643
  %v4645 = vpop.f32.mrb[0].mxu0
  %v4646 = vadd.f32 0.0, %v4645
  %v4647 = vpop.f32.mrb[0].mxu0
  %v4648 = vadd.f32 0.0, %v4647
  %v4649 = vpop.f32.mrb[0].mxu0
  %v4650 = vadd.f32 0.0, %v4649
  %4651 = vmatprep.mubr.bf16.mxu0 0
  %4652 = vmatmul.mubr.bf16.gmra.mrb[0].mxu0 %v4397
  %v4653 = vpop.f32.mrb[0].mxu0
  %v4654 = vadd.f32 0.0, %v4653
  %v4655 = vpop.f32.mrb[0].mxu0
  %v4656 = vadd.f32 0.0, %v4655
  %v4657 = vpop.f32.mrb[0].mxu0
  %v4658 = vadd.f32 0.0, %v4657
  %v4659 = vpop.f32.mrb[0].mxu0
  %v4660 = vadd.f32 0.0, %v4659
  %4661 = vmatprep.mubr.bf16.mxu0 0
  %4662 = vmatmul.mubr.bf16.gmra.mrb[0].mxu0 %v4398
  %v4663 = vpop.f32.mrb[0].mxu0
  %v4664 = vadd.f32 0.0, %v4663
  %v4665 = vpop.f32.mrb[0].mxu0
  %v4666 = vadd.f32 0.0, %v4665
  %v4667 = vpop.f32.mrb[0].mxu0
  %v4668 = vadd.f32 0.0, %v4667
  %v4669 = vpop.f32.mrb[0].mxu0
  %v4670 = vadd.f32 0.0, %v4669
  %4671 = vmatprep.mubr.bf16.mxu0 0
  %4672 = vmatmul.mubr.bf16.gmra.mrb[0].mxu0 %v4399
  %v4673 = vpop.f32.mrb[0].mxu0
  %v4674 = vadd.f32 0.0, %v4673
  %v4675 = vpop.f32.mrb[0].mxu0
  %v4676 = vadd.f32 0.0, %v4675
  %v4677 = vpop.f32.mrb[0].mxu0
  %v4678 = vadd.f32 0.0, %v4677
  %v4679 = vpop.f32.mrb[0].mxu0
  %v4680 = vadd.f32 0.0, %v4679
  %4681 = vmatprep.mubr.bf16.mxu0 0
  %4682 = vmatmul.mubr.bf16.gmra.mrb[0].mxu0 %v4400
  %v4683 = vpop.f32.mrb[0].mxu0
  %v4684 = vadd.f32 0.0, %v4683
  %v4685 = vpop.f32.mrb[0].mxu0
  %v4686 = vadd.f32 0.0, %v4685
  %v4687 = vpop.f32.mrb[0].mxu0
  %v4688 = vadd.f32 0.0, %v4687
  %v4689 = vpop.f32.mrb[0].mxu0
  %v4690 = vadd.f32 0.0, %v4689
  %4691 = vmatprep.mubr.bf16.mxu0 0
  %4692 = vmatmul.mubr.bf16.gmra.mrb[0].mxu0 %v4401
  %v4693 = vpop.f32.mrb[0].mxu0
  %v4694 = vadd.f32 0.0, %v4693
  %v4695 = vpop.f32.mrb[0].mxu0
  %v4696 = vadd.f32 0.0, %v4695
  %v4697 = vpop.f32.mrb[0].mxu0
  %v4698 = vadd.f32 0.0, %v4697
  %v4699 = vpop.f32.mrb[0].mxu0
  %v4700 = vadd.f32 0.0, %v4699
  %4701 = vmatprep.mubr.bf16.mxu0 0
  %4702 = vmatmul.mubr.bf16.gmra.mrb[0].mxu0 %v4402
  %v4703 = vpop.f32.mrb[0].mxu0
  %v4704 = vadd.f32 0.0, %v4703
  %v4705 = vpop.f32.mrb[0].mxu0
  %v4706 = vadd.f32 0.0, %v4705
  %v4707 = vpop.f32.mrb[0].mxu0
  %v4708 = vadd.f32 0.0, %v4707
  %v4709 = vpop.f32.mrb[0].mxu0
  %v4710 = vadd.f32 0.0, %v4709
  %4711 = vmatprep.mubr.bf16.mxu0 0
  %4712 = vmatmul.mubr.bf16.gmra.mrb[0].mxu0 %v4403
  %v4713 = vpop.f32.mrb[0].mxu0
  %v4714 = vadd.f32 0.0, %v4713
  %v4715 = vpop.f32.mrb[0].mxu0
  %v4716 = vadd.f32 0.0, %v4715
  %v4717 = vpop.f32.mrb[0].mxu0
  %v4718 = vadd.f32 0.0, %v4717
  %v4719 = vpop.f32.mrb[0].mxu0
  %v4720 = vadd.f32 0.0, %v4719
  %4721 = vmatprep.mubr.bf16.mxu0 0
  %4722 = vmatmul.mubr.bf16.gmra.mrb[0].mxu0 %v4404
  %v4723 = vpop.f32.mrb[0].mxu0
  %v4724 = vadd.f32 0.0, %v4723
  %v4725 = vpop.f32.mrb[0].mxu0
  %v4726 = vadd.f32 0.0, %v4725
  %v4727 = vpop.f32.mrb[0].mxu0
  %v4728 = vadd.f32 0.0, %v4727
  %v4729 = vpop.f32.mrb[0].mxu0
  %v4730 = vadd.f32 0.0, %v4729
  %4731 = vmatprep.mubr.bf16.mxu0 0
  %4732 = vmatmul.mubr.bf16.gmra.mrb[0].mxu0 %v4405
  %v4733 = vpop.f32.mrb[0].mxu0
  %v4734 = vadd.f32 0.0, %v4733
  %v4735 = vpop.f32.mrb[0].mxu0
  %v4736 = vadd.f32 0.0, %v4735
  %v4737 = vpop.f32.mrb[0].mxu0
  %v4738 = vadd.f32 0.0, %v4737
  %v4739 = vpop.f32.mrb[0].mxu0
  %v4740 = vadd.f32 0.0, %v4739
  %4741 = vmatprep.mubr.bf16.mxu0 0
  %4742 = vmatmul.mubr.bf16.gmra.mrb[0].mxu0 %v4406
  %v4743 = vpop.f32.mrb[0].mxu0
  %v4744 = vadd.f32 0.0, %v4743
  %v4745 = vpop.f32.mrb[0].mxu0
  %v4746 = vadd.f32 0.0, %v4745
  %v4747 = vpop.f32.mrb[0].mxu0
  %v4748 = vadd.f32 0.0, %v4747
  %v4749 = vpop.f32.mrb[0].mxu0
  %v4750 = vadd.f32 0.0, %v4749
  %4751 = vmatprep.mubr.bf16.mxu0 0
  %4752 = vmatmul.mubr.bf16.gmra.mrb[0].mxu0 %v4407
  %v4753 = vpop.f32.mrb[0].mxu0
  %v4754 = vadd.f32 0.0, %v4753
  %v4755 = vpop.f32.mrb[0].mxu0
  %v4756 = vadd.f32 0.0, %v4755
  %v4757 = vpop.f32.mrb[0].mxu0
  %v4758 = vadd.f32 0.0, %v4757
  %v4759 = vpop.f32.mrb[0].mxu0
  %v4760 = vadd.f32 0.0, %v4759
  %4761 = vmatprep.mubr.bf16.mxu0 0
  %4762 = vmatmul.mubr.bf16.gmra.mrb[0].mxu0 %v4408
  %v4763 = vpop.f32.mrb[0].mxu0
  %v4764 = vadd.f32 0.0, %v4763
  %v4765 = vpop.f32.mrb[0].mxu0
  %v4766 = vadd.f32 0.0, %v4765
  %v4767 = vpop.f32.mrb[0].mxu0
  %v4768 = vadd.f32 0.0, %v4767
  %v4769 = vpop.f32.mrb[0].mxu0
  %v4770 = vadd.f32 0.0, %v4769
  %4771 = vmatprep.mubr.bf16.mxu0 0
  %4772 = vmatmul.mubr.bf16.gmra.mrb[0].mxu0 %v4409
  %v4773 = vpop.f32.mrb[0].mxu0
  %v4774 = vadd.f32 0.0, %v4773
  %v4775 = vpop.f32.mrb[0].mxu0
  %v4776 = vadd.f32 0.0, %v4775
  %v4777 = vpop.f32.mrb[0].mxu0
  %v4778 = vadd.f32 0.0, %v4777
  %v4779 = vpop.f32.mrb[0].mxu0
  %v4780 = vadd.f32 0.0, %v4779
  %4781 = vmatprep.mubr.bf16.mxu0 0
  %4782 = vmatmul.mubr.bf16.gmra.mrb[0].mxu0 %v4410
  %v4783 = vpop.f32.mrb[0].mxu0
  %v4784 = vadd.f32 0.0, %v4783
  %v4785 = vpop.f32.mrb[0].mxu0
  %v4786 = vadd.f32 0.0, %v4785
  %v4787 = vpop.f32.mrb[0].mxu0
  %v4788 = vadd.f32 0.0, %v4787
  %v4789 = vpop.f32.mrb[0].mxu0
  %v4790 = vadd.f32 0.0, %v4789
  %4791 = vmatprep.mubr.bf16.mxu0 0
  %4792 = vmatmul.mubr.bf16.gmra.mrb[0].mxu0 %v4411
  %v4793 = vpop.f32.mrb[0].mxu0
  %v4794 = vadd.f32 0.0, %v4793
  %v4795 = vpop.f32.mrb[0].mxu0
  %v4796 = vadd.f32 0.0, %v4795
  %v4797 = vpop.f32.mrb[0].mxu0
  %v4798 = vadd.f32 0.0, %v4797
  %v4799 = vpop.f32.mrb[0].mxu0
  %v4800 = vadd.f32 0.0, %v4799
  %4801 = vmatprep.mubr.bf16.mxu0 0
  %4802 = vmatmul.mubr.bf16.gmra.mrb[0].mxu0 %v4412
  %v4803 = vpop.f32.mrb[0].mxu0
  %v4804 = vadd.f32 0.0, %v4803
  %v4805 = vpop.f32.mrb[0].mxu0
  %v4806 = vadd.f32 0.0, %v4805
  %v4807 = vpop.f32.mrb[0].mxu0
  %v4808 = vadd.f32 0.0, %v4807
  %v4809 = vpop.f32.mrb[0].mxu0
  %v4810 = vadd.f32 0.0, %v4809
  %4811 = vmatprep.mubr.bf16.mxu0 0
  %4812 = vmatmul.mubr.bf16.gmra.mrb[0].mxu0 %v4413
  %v4813 = vpop.f32.mrb[0].mxu0
  %v4814 = vadd.f32 0.0, %v4813
  %v4815 = vpop.f32.mrb[0].mxu0
  %v4816 = vadd.f32 0.0, %v4815
  %v4817 = vpop.f32.mrb[0].mxu0
  %v4818 = vadd.f32 0.0, %v4817
  %v4819 = vpop.f32.mrb[0].mxu0
  %v4820 = vadd.f32 0.0, %v4819
  %4821 = vmatprep.mubr.bf16.mxu0 0
  %4822 = vmatmul.mubr.bf16.gmra.mrb[0].mxu0 %v4414
  %v4823 = vpop.f32.mrb[0].mxu0
  %v4824 = vadd.f32 0.0, %v4823
  %v4825 = vpop.f32.mrb[0].mxu0
  %v4826 = vadd.f32 0.0, %v4825
  %v4827 = vpop.f32.mrb[0].mxu0
  %v4828 = vadd.f32 0.0, %v4827
  %v4829 = vpop.f32.mrb[0].mxu0
  %v4830 = vadd.f32 0.0, %v4829
  %4831 = vmatprep.mubr.bf16.mxu0 0
  %4832 = vmatmul.mubr.bf16.gmra.mrb[0].mxu0 %v4415
  %v4833 = vpop.f32.mrb[0].mxu0
  %v4834 = vadd.f32 0.0, %v4833
  %v4835 = vpop.f32.mrb[0].mxu0
  %v4836 = vadd.f32 0.0, %v4835
  %v4837 = vpop.f32.mrb[0].mxu0
  %v4838 = vadd.f32 0.0, %v4837
  %v4839 = vpop.f32.mrb[0].mxu0
  %v4840 = vadd.f32 0.0, %v4839
  %4841 = vmatprep.mubr.bf16.mxu0 0
  %4842 = vmatmul.mubr.bf16.gmra.mrb[0].mxu0 %v4416
  %v4843 = vpop.f32.mrb[0].mxu0
  %v4844 = vadd.f32 0.0, %v4843
  %v4845 = vpop.f32.mrb[0].mxu0
  %v4846 = vadd.f32 0.0, %v4845
  %v4847 = vpop.f32.mrb[0].mxu0
  %v4848 = vadd.f32 0.0, %v4847
  %v4849 = vpop.f32.mrb[0].mxu0
  %v4850 = vadd.f32 0.0, %v4849
  %4851 = vmatprep.mubr.bf16.mxu0 0
  %4852 = vmatmul.mubr.bf16.gmra.mrb[0].mxu0 %v4417
  %v4853 = vpop.f32.mrb[0].mxu0
  %v4854 = vadd.f32 0.0, %v4853
  %v4855 = vpop.f32.mrb[0].mxu0
  %v4856 = vadd.f32 0.0, %v4855
  %v4857 = vpop.f32.mrb[0].mxu0
  %v4858 = vadd.f32 0.0, %v4857
  %v4859 = vpop.f32.mrb[0].mxu0
  %v4860 = vadd.f32 0.0, %v4859
  %4861 = vmatprep.mubr.bf16.mxu0 0
  %4862 = vmatmul.mubr.bf16.gmra.mrb[0].mxu0 %v4418
  %v4863 = vpop.f32.mrb[0].mxu0
  %v4864 = vadd.f32 0.0, %v4863
  %v4865 = vpop.f32.mrb[0].mxu0
  %v4866 = vadd.f32 0.0, %v4865
  %v4867 = vpop.f32.mrb[0].mxu0
  %v4868 = vadd.f32 0.0, %v4867
  %v4869 = vpop.f32.mrb[0].mxu0
  %v4870 = vadd.f32 0.0, %v4869
  %4871 = vmatprep.mubr.bf16.mxu0 0
  %4872 = vmatmul.mubr.bf16.gmra.mrb[0].mxu0 %v4419
  %v4873 = vpop.f32.mrb[0].mxu0
  %v4874 = vadd.f32 0.0, %v4873
  %v4875 = vpop.f32.mrb[0].mxu0
  %v4876 = vadd.f32 0.0, %v4875
  %v4877 = vpop.f32.mrb[0].mxu0
  %v4878 = vadd.f32 0.0, %v4877
  %v4879 = vpop.f32.mrb[0].mxu0
  %v4880 = vadd.f32 0.0, %v4879
  %4881 = vmatprep.mubr.bf16.mxu0 0
  %4882 = vmatmul.mubr.bf16.gmra.mrb[0].mxu0 %v4420
  %v4883 = vpop.f32.mrb[0].mxu0
  %v4884 = vadd.f32 0.0, %v4883
  %v4885 = vpop.f32.mrb[0].mxu0
  %v4886 = vadd.f32 0.0, %v4885
  %v4887 = vpop.f32.mrb[0].mxu0
  %v4888 = vadd.f32 0.0, %v4887
  %v4889 = vpop.f32.mrb[0].mxu0
  %v4890 = vadd.f32 0.0, %v4889
  %4891 = vmatprep.mubr.bf16.mxu0 0
  %4892 = vmatmul.mubr.bf16.gmra.mrb[0].mxu0 %v4421
  %v4893 = vpop.f32.mrb[0].mxu0
  %v4894 = vadd.f32 0.0, %v4893
  %v4895 = vpop.f32.mrb[0].mxu0
  %v4896 = vadd.f32 0.0, %v4895
  %v4897 = vpop.f32.mrb[0].mxu0
  %v4898 = vadd.f32 0.0, %v4897
  %v4899 = vpop.f32.mrb[0].mxu0
  %v4900 = vadd.f32 0.0, %v4899
  %4901 = vmatprep.mubr.bf16.mxu0 0
  %4902 = vmatmul.mubr.bf16.gmra.mrb[0].mxu0 %v4422
  %v4903 = vpop.f32.mrb[0].mxu0
  %v4904 = vadd.f32 0.0, %v4903
  %v4905 = vpop.f32.mrb[0].mxu0
  %v4906 = vadd.f32 0.0, %v4905
  %v4907 = vpop.f32.mrb[0].mxu0
  %v4908 = vadd.f32 0.0, %v4907
  %v4909 = vpop.f32.mrb[0].mxu0
  %v4910 = vadd.f32 0.0, %v4909
  %4911 = vmatprep.mubr.bf16.mxu0 0
  %4912 = vmatmul.mubr.bf16.gmra.mrb[0].mxu0 %v4423
  %v4913 = vpop.f32.mrb[0].mxu0
  %v4914 = vadd.f32 0.0, %v4913
  %v4915 = vpop.f32.mrb[0].mxu0
  %v4916 = vadd.f32 0.0, %v4915
  %v4917 = vpop.f32.mrb[0].mxu0
  %v4918 = vadd.f32 0.0, %v4917
  %v4919 = vpop.f32.mrb[0].mxu0
  %v4920 = vadd.f32 0.0, %v4919
  %4921 = vmatprep.mubr.bf16.mxu0 0
  %4922 = vmatmul.mubr.bf16.gmra.mrb[0].mxu0 %v4424
  %v4923 = vpop.f32.mrb[0].mxu0
  %v4924 = vadd.f32 0.0, %v4923
  %v4925 = vpop.f32.mrb[0].mxu0
  %v4926 = vadd.f32 0.0, %v4925
  %v4927 = vpop.f32.mrb[0].mxu0
  %v4928 = vadd.f32 0.0, %v4927
  %v4929 = vpop.f32.mrb[0].mxu0
  %v4930 = vadd.f32 0.0, %v4929
  %4931 = vmatprep.mubr.bf16.mxu0 0
  %4932 = vmatmul.mubr.bf16.gmra.mrb[0].mxu0 %v4425
  %v4933 = vpop.f32.mrb[0].mxu0
  %v4934 = vadd.f32 0.0, %v4933
  %v4935 = vpop.f32.mrb[0].mxu0
  %v4936 = vadd.f32 0.0, %v4935
  %v4937 = vpop.f32.mrb[0].mxu0
  %v4938 = vadd.f32 0.0, %v4937
  %v4939 = vpop.f32.mrb[0].mxu0
  %v4940 = vadd.f32 0.0, %v4939
  %4941 = vmatprep.mubr.bf16.mxu0 0
  %4942 = vmatmul.mubr.bf16.gmra.mrb[0].mxu0 %v4426
  %v4943 = vpop.f32.mrb[0].mxu0
  %v4944 = vadd.f32 0.0, %v4943
  %v4945 = vpop.f32.mrb[0].mxu0
  %v4946 = vadd.f32 0.0, %v4945
  %v4947 = vpop.f32.mrb[0].mxu0
  %v4948 = vadd.f32 0.0, %v4947
  %v4949 = vpop.f32.mrb[0].mxu0
  %v4950 = vadd.f32 0.0, %v4949
  %4951 = vmatprep.mubr.bf16.mxu0 0
  %4952 = vmatmul.mubr.bf16.gmra.mrb[0].mxu0 %v4427
  %v4953 = vpop.f32.mrb[0].mxu0
  %v4954 = vadd.f32 0.0, %v4953
  %v4955 = vpop.f32.mrb[0].mxu0
  %v4956 = vadd.f32 0.0, %v4955
  %v4957 = vpop.f32.mrb[0].mxu0
  %v4958 = vadd.f32 0.0, %v4957
  %v4959 = vpop.f32.mrb[0].mxu0
  %v4960 = vadd.f32 0.0, %v4959
  %4961 = vmatprep.mubr.bf16.mxu0 0
  %4962 = vmatmul.mubr.bf16.gmra.mrb[0].mxu0 %v4428
  %v4963 = vpop.f32.mrb[0].mxu0
  %v4964 = vadd.f32 0.0, %v4963
  %v4965 = vpop.f32.mrb[0].mxu0
  %v4966 = vadd.f32 0.0, %v4965
  %v4967 = vpop.f32.mrb[0].mxu0
  %v4968 = vadd.f32 0.0, %v4967
  %v4969 = vpop.f32.mrb[0].mxu0
  %v4970 = vadd.f32 0.0, %v4969
  %4971 = vmatprep.mubr.bf16.mxu0 0
  %4972 = vmatmul.mubr.bf16.gmra.mrb[0].mxu0 %v4429
  %v4973 = vpop.f32.mrb[0].mxu0
  %v4974 = vadd.f32 0.0, %v4973
  %v4975 = vpop.f32.mrb[0].mxu0
  %v4976 = vadd.f32 0.0, %v4975
  %v4977 = vpop.f32.mrb[0].mxu0
  %v4978 = vadd.f32 0.0, %v4977
  %v4979 = vpop.f32.mrb[0].mxu0
  %v4980 = vadd.f32 0.0, %v4979
  %4981 = vmatprep.mubr.bf16.mxu0 0
  %4982 = vmatmul.mubr.bf16.gmra.mrb[0].mxu0 %v4430
  %v4983 = vpop.f32.mrb[0].mxu0
  %v4984 = vadd.f32 0.0, %v4983
  %v4985 = vpop.f32.mrb[0].mxu0
  %v4986 = vadd.f32 0.0, %v4985
  %v4987 = vpop.f32.mrb[0].mxu0
  %v4988 = vadd.f32 0.0, %v4987
  %v4989 = vpop.f32.mrb[0].mxu0
  %v4990 = vadd.f32 0.0, %v4989
  %4991 = vmatprep.mubr.bf16.mxu0 0
  %4992 = vmatmul.mubr.bf16.gmra.mrb[0].mxu0 %v4431
  %v4993 = vpop.f32.mrb[0].mxu0
  %v4994 = vadd.f32 0.0, %v4993
  %v4995 = vpop.f32.mrb[0].mxu0
  %v4996 = vadd.f32 0.0, %v4995
  %v4997 = vpop.f32.mrb[0].mxu0
  %v4998 = vadd.f32 0.0, %v4997
  %v4999 = vpop.f32.mrb[0].mxu0
  %v5000 = vadd.f32 0.0, %v4999
  %5001 = vmatprep.mubr.bf16.mxu0 0
  %5002 = vmatmul.mubr.bf16.gmra.mrb[0].mxu0 %v4432
  %v5003 = vpop.f32.mrb[0].mxu0
  %v5004 = vadd.f32 0.0, %v5003
  %v5005 = vpop.f32.mrb[0].mxu0
  %v5006 = vadd.f32 0.0, %v5005
  %v5007 = vpop.f32.mrb[0].mxu0
  %v5008 = vadd.f32 0.0, %v5007
  %v5009 = vpop.f32.mrb[0].mxu0
  %v5010 = vadd.f32 0.0, %v5009
  %5011 = vmatprep.mubr.bf16.mxu0 0
  %5012 = vmatmul.mubr.bf16.gmra.mrb[0].mxu0 %v4433
  %v5013 = vpop.f32.mrb[0].mxu0
  %v5014 = vadd.f32 0.0, %v5013
  %v5015 = vpop.f32.mrb[0].mxu0
  %v5016 = vadd.f32 0.0, %v5015
  %v5017 = vpop.f32.mrb[0].mxu0
  %v5018 = vadd.f32 0.0, %v5017
  %v5019 = vpop.f32.mrb[0].mxu0
  %v5020 = vadd.f32 0.0, %v5019
  %5021 = vmatprep.mubr.bf16.mxu0 0
  %5022 = vmatmul.mubr.bf16.gmra.mrb[0].mxu0 %v4434
  %v5023 = vpop.f32.mrb[0].mxu0
  %v5024 = vadd.f32 0.0, %v5023
  %v5025 = vpop.f32.mrb[0].mxu0
  %v5026 = vadd.f32 0.0, %v5025
  %v5027 = vpop.f32.mrb[0].mxu0
  %v5028 = vadd.f32 0.0, %v5027
  %v5029 = vpop.f32.mrb[0].mxu0
  %v5030 = vadd.f32 0.0, %v5029
  %5031 = vmatprep.mubr.bf16.mxu0 0
  %5032 = vmatmul.mubr.bf16.gmra.mrb[0].mxu0 %v4435
  %v5033 = vpop.f32.mrb[0].mxu0
  %v5034 = vadd.f32 0.0, %v5033
  %v5035 = vpop.f32.mrb[0].mxu0
  %v5036 = vadd.f32 0.0, %v5035
  %v5037 = vpop.f32.mrb[0].mxu0
  %v5038 = vadd.f32 0.0, %v5037
  %v5039 = vpop.f32.mrb[0].mxu0
  %v5040 = vadd.f32 0.0, %v5039
  %5041 = vmatprep.mubr.bf16.mxu0 0
  %5042 = vmatmul.mubr.bf16.gmra.mrb[0].mxu0 %v4436
  %v5043 = vpop.f32.mrb[0].mxu0
  %v5044 = vadd.f32 0.0, %v5043
  %v5045 = vpop.f32.mrb[0].mxu0
  %v5046 = vadd.f32 0.0, %v5045
  %v5047 = vpop.f32.mrb[0].mxu0
  %v5048 = vadd.f32 0.0, %v5047
  %v5049 = vpop.f32.mrb[0].mxu0
  %v5050 = vadd.f32 0.0, %v5049
  %5051 = vmatprep.mubr.bf16.mxu0 0
  %5052 = vmatmul.mubr.bf16.gmra.mrb[0].mxu0 %v4437
  %v5053 = vpop.f32.mrb[0].mxu0
  %v5054 = vadd.f32 0.0, %v5053
  %v5055 = vpop.f32.mrb[0].mxu0
  %v5056 = vadd.f32 0.0, %v5055
  %v5057 = vpop.f32.mrb[0].mxu0
  %v5058 = vadd.f32 0.0, %v5057
  %v5059 = vpop.f32.mrb[0].mxu0
  %v5060 = vadd.f32 0.0, %v5059
  %5061 = vmatprep.mubr.bf16.mxu0 0
  %5062 = vmatmul.mubr.bf16.gmra.mrb[0].mxu0 %v4438
  %v5063 = vpop.f32.mrb[0].mxu0
  %v5064 = vadd.f32 0.0, %v5063
  %v5065 = vpop.f32.mrb[0].mxu0
  %v5066 = vadd.f32 0.0, %v5065
  %v5067 = vpop.f32.mrb[0].mxu0
  %v5068 = vadd.f32 0.0, %v5067
  %v5069 = vpop.f32.mrb[0].mxu0
  %v5070 = vadd.f32 0.0, %v5069
  %5071 = vmatprep.mubr.bf16.mxu0 0
  %5072 = vmatmul.mubr.bf16.gmra.mrb[0].mxu0 %v4439
  %v5073 = vpop.f32.mrb[0].mxu0
  %v5074 = vadd.f32 0.0, %v5073
  %v5075 = vpop.f32.mrb[0].mxu0
  %v5076 = vadd.f32 0.0, %v5075
  %v5077 = vpop.f32.mrb[0].mxu0
  %v5078 = vadd.f32 0.0, %v5077
  %v5079 = vpop.f32.mrb[0].mxu0
  %v5080 = vadd.f32 0.0, %v5079
  %5081 = vmatprep.mubr.bf16.mxu0 0
  %5082 = vmatmul.mubr.bf16.gmra.mrb[0].mxu0 %v4440
  %v5083 = vpop.f32.mrb[0].mxu0
  %v5084 = vadd.f32 0.0, %v5083
  %v5085 = vpop.f32.mrb[0].mxu0
  %v5086 = vadd.f32 0.0, %v5085
  %v5087 = vpop.f32.mrb[0].mxu0
  %v5088 = vadd.f32 0.0, %v5087
  %v5089 = vpop.f32.mrb[0].mxu0
  %v5090 = vadd.f32 0.0, %v5089
  %5091 = vmatprep.mubr.bf16.mxu0 0
  %5092 = vmatmul.mubr.bf16.gmra.mrb[0].mxu0 %v4441
  %v5093 = vpop.f32.mrb[0].mxu0
  %v5094 = vadd.f32 0.0, %v5093
  %v5095 = vpop.f32.mrb[0].mxu0
  %v5096 = vadd.f32 0.0, %v5095
  %v5097 = vpop.f32.mrb[0].mxu0
  %v5098 = vadd.f32 0.0, %v5097
  %v5099 = vpop.f32.mrb[0].mxu0
  %v5100 = vadd.f32 0.0, %v5099
  %5101 = vmatprep.mubr.bf16.mxu0 0
  %5102 = vmatmul.mubr.bf16.gmra.mrb[0].mxu0 %v4442
  %v5103 = vpop.f32.mrb[0].mxu0
  %v5104 = vadd.f32 0.0, %v5103
  %v5105 = vpop.f32.mrb[0].mxu0
  %v5106 = vadd.f32 0.0, %v5105
  %v5107 = vpop.f32.mrb[0].mxu0
  %v5108 = vadd.f32 0.0, %v5107
  %v5109 = vpop.f32.mrb[0].mxu0
  %v5110 = vadd.f32 0.0, %v5109
  %5111 = vmatprep.mubr.bf16.mxu0 0
  %5112 = vmatmul.mubr.bf16.gmra.mrb[0].mxu0 %v4443
  %v5113 = vpop.f32.mrb[0].mxu0
  %v5114 = vadd.f32 0.0, %v5113
  %v5115 = vpop.f32.mrb[0].mxu0
  %v5116 = vadd.f32 0.0, %v5115
  %v5117 = vpop.f32.mrb[0].mxu0
  %v5118 = vadd.f32 0.0, %v5117
  %v5119 = vpop.f32.mrb[0].mxu0
  %v5120 = vadd.f32 0.0, %v5119
  %5121 = vmatprep.mubr.bf16.mxu0 0
  %5122 = vmatmul.mubr.bf16.gmra.mrb[0].mxu0 %v4444
  %v5123 = vpop.f32.mrb[0].mxu0
  %v5124 = vadd.f32 0.0, %v5123
  %v5125 = vpop.f32.mrb[0].mxu0
  %v5126 = vadd.f32 0.0, %v5125
  %v5127 = vpop.f32.mrb[0].mxu0
  %v5128 = vadd.f32 0.0, %v5127
  %v5129 = vpop.f32.mrb[0].mxu0
  %v5130 = vadd.f32 0.0, %v5129
  %5131 = vmatprep.mubr.bf16.mxu0 0
  %5132 = vmatmul.mubr.bf16.gmra.mrb[0].mxu0 %v4445
  %v5133 = vpop.f32.mrb[0].mxu0
  %v5134 = vadd.f32 0.0, %v5133
  %v5135 = vpop.f32.mrb[0].mxu0
  %v5136 = vadd.f32 0.0, %v5135
  %v5137 = vpop.f32.mrb[0].mxu0
  %v5138 = vadd.f32 0.0, %v5137
  %v5139 = vpop.f32.mrb[0].mxu0
  %v5140 = vadd.f32 0.0, %v5139
  %5141 = vmatprep.mubr.bf16.mxu0 0
  %5142 = vmatmul.mubr.bf16.gmra.mrb[0].mxu0 %v4446
  %v5143 = vpop.f32.mrb[0].mxu0
  %v5144 = vadd.f32 0.0, %v5143
  %v5145 = vpop.f32.mrb[0].mxu0
  %v5146 = vadd.f32 0.0, %v5145
  %v5147 = vpop.f32.mrb[0].mxu0
  %v5148 = vadd.f32 0.0, %v5147
  %v5149 = vpop.f32.mrb[0].mxu0
  %v5150 = vadd.f32 0.0, %v5149
  %5151 = vmatprep.mubr.bf16.mxu0 0
  %5152 = vmatmul.mubr.bf16.gmra.mrb[0].mxu0 %v4447
  %v5153 = vpop.f32.mrb[0].mxu0
  %v5154 = vadd.f32 0.0, %v5153
  %v5155 = vpop.f32.mrb[0].mxu0
  %v5156 = vadd.f32 0.0, %v5155
  %v5157 = vpop.f32.mrb[0].mxu0
  %v5158 = vadd.f32 0.0, %v5157
  %v5159 = vpop.f32.mrb[0].mxu0
  %v5160 = vadd.f32 0.0, %v5159
  %5161 = vmatprep.mubr.bf16.mxu0 0
  %5162 = vmatmul.mubr.bf16.gmra.mrb[0].mxu0 %v4448
  %v5163 = vpop.f32.mrb[0].mxu0
  %v5164 = vadd.f32 0.0, %v5163
  %v5165 = vpop.f32.mrb[0].mxu0
  %v5166 = vadd.f32 0.0, %v5165
  %v5167 = vpop.f32.mrb[0].mxu0
  %v5168 = vadd.f32 0.0, %v5167
  %v5169 = vpop.f32.mrb[0].mxu0
  %v5170 = vadd.f32 0.0, %v5169
  %5171 = vmatprep.mubr.bf16.mxu0 0
  %5172 = vmatmul.mubr.bf16.gmra.mrb[0].mxu0 %v4449
  %v5173 = vpop.f32.mrb[0].mxu0
  %v5174 = vadd.f32 0.0, %v5173
  %v5175 = vpop.f32.mrb[0].mxu0
  %v5176 = vadd.f32 0.0, %v5175
  %v5177 = vpop.f32.mrb[0].mxu0
  %v5178 = vadd.f32 0.0, %v5177
  %v5179 = vpop.f32.mrb[0].mxu0
  %v5180 = vadd.f32 0.0, %v5179
  %5181 = vmatprep.mubr.bf16.mxu0 0
  %5182 = vmatmul.mubr.bf16.gmra.mrb[0].mxu0 %v4450
  %v5183 = vpop.f32.mrb[0].mxu0
  %v5184 = vadd.f32 0.0, %v5183
  %v5185 = vpop.f32.mrb[0].mxu0
  %v5186 = vadd.f32 0.0, %v5185
  %v5187 = vpop.f32.mrb[0].mxu0
  %v5188 = vadd.f32 0.0, %v5187
  %v5189 = vpop.f32.mrb[0].mxu0
  %v5190 = vadd.f32 0.0, %v5189
  %5191 = vmatprep.mubr.bf16.mxu0 0
  %5192 = vmatmul.mubr.bf16.gmra.mrb[0].mxu0 %v4451
  %v5193 = vpop.f32.mrb[0].mxu0
  %v5194 = vadd.f32 0.0, %v5193
  %v5195 = vpop.f32.mrb[0].mxu0
  %v5196 = vadd.f32 0.0, %v5195
  %v5197 = vpop.f32.mrb[0].mxu0
  %v5198 = vadd.f32 0.0, %v5197
  %v5199 = vpop.f32.mrb[0].mxu0
  %v5200 = vadd.f32 0.0, %v5199
  %5201 = vmatprep.mubr.bf16.mxu0 0
  %5202 = vmatmul.mubr.bf16.gmra.mrb[0].mxu0 %v4452
  %v5203 = vpop.f32.mrb[0].mxu0
  %v5204 = vadd.f32 0.0, %v5203
  %v5205 = vpop.f32.mrb[0].mxu0
  %v5206 = vadd.f32 0.0, %v5205
  %v5207 = vpop.f32.mrb[0].mxu0
  %v5208 = vadd.f32 0.0, %v5207
  %v5209 = vpop.f32.mrb[0].mxu0
  %v5210 = vadd.f32 0.0, %v5209
  %5211 = vmatprep.mubr.bf16.mxu0 0
  %5212 = vmatmul.mubr.bf16.gmra.mrb[0].mxu0 %v4453
  %v5213 = vpop.f32.mrb[0].mxu0
  %v5214 = vadd.f32 0.0, %v5213
  %v5215 = vpop.f32.mrb[0].mxu0
  %v5216 = vadd.f32 0.0, %v5215
  %v5217 = vpop.f32.mrb[0].mxu0
  %v5218 = vadd.f32 0.0, %v5217
  %v5219 = vpop.f32.mrb[0].mxu0
  %v5220 = vadd.f32 0.0, %v5219
  %5221 = vmatprep.mubr.bf16.mxu0 0
  %5222 = vmatmul.mubr.bf16.gmra.mrb[0].mxu0 %v4454
  %v5223 = vpop.f32.mrb[0].mxu0
  %v5224 = vadd.f32 0.0, %v5223
  %v5225 = vpop.f32.mrb[0].mxu0
  %v5226 = vadd.f32 0.0, %v5225
  %v5227 = vpop.f32.mrb[0].mxu0
  %v5228 = vadd.f32 0.0, %v5227
  %v5229 = vpop.f32.mrb[0].mxu0
  %v5230 = vadd.f32 0.0, %v5229
  %5231 = vmatprep.mubr.bf16.mxu0 0
  %5232 = vmatmul.mubr.bf16.gmra.mrb[0].mxu0 %v4455
  %v5233 = vpop.f32.mrb[0].mxu0
  %v5234 = vadd.f32 0.0, %v5233
  %v5235 = vpop.f32.mrb[0].mxu0
  %v5236 = vadd.f32 0.0, %v5235
  %v5237 = vpop.f32.mrb[0].mxu0
  %v5238 = vadd.f32 0.0, %v5237
  %v5239 = vpop.f32.mrb[0].mxu0
  %v5240 = vadd.f32 0.0, %v5239
  %5241 = vmatprep.mubr.bf16.mxu0 0
  %5242 = vmatmul.mubr.bf16.gmra.mrb[0].mxu0 %v4456
  %v5243 = vpop.f32.mrb[0].mxu0
  %v5244 = vadd.f32 0.0, %v5243
  %v5245 = vpop.f32.mrb[0].mxu0
  %v5246 = vadd.f32 0.0, %v5245
  %v5247 = vpop.f32.mrb[0].mxu0
  %v5248 = vadd.f32 0.0, %v5247
  %v5249 = vpop.f32.mrb[0].mxu0
  %v5250 = vadd.f32 0.0, %v5249
  %5251 = vmatprep.mubr.bf16.mxu0 0
  %5252 = vmatmul.mubr.bf16.gmra.mrb[0].mxu0 %v4457
  %v5253 = vpop.f32.mrb[0].mxu0
  %v5254 = vadd.f32 0.0, %v5253
  %v5255 = vpop.f32.mrb[0].mxu0
  %v5256 = vadd.f32 0.0, %v5255
  %v5257 = vpop.f32.mrb[0].mxu0
  %v5258 = vadd.f32 0.0, %v5257
  %v5259 = vpop.f32.mrb[0].mxu0
  %v5260 = vadd.f32 0.0, %v5259
  %5261 = vmatprep.mubr.bf16.mxu0 0
  %5262 = vmatmul.mubr.bf16.gmra.mrb[0].mxu0 %v4458
  %v5263 = vpop.f32.mrb[0].mxu0
  %v5264 = vadd.f32 0.0, %v5263
  %v5265 = vpop.f32.mrb[0].mxu0
  %v5266 = vadd.f32 0.0, %v5265
  %v5267 = vpop.f32.mrb[0].mxu0
  %v5268 = vadd.f32 0.0, %v5267
  %v5269 = vpop.f32.mrb[0].mxu0
  %v5270 = vadd.f32 0.0, %v5269
  %5271 = vmatprep.mubr.bf16.mxu0 0
  %5272 = vmatmul.mubr.bf16.gmra.mrb[0].mxu0 %v4459
  %v5273 = vpop.f32.mrb[0].mxu0
  %v5274 = vadd.f32 0.0, %v5273
  %v5275 = vpop.f32.mrb[0].mxu0
  %v5276 = vadd.f32 0.0, %v5275
  %v5277 = vpop.f32.mrb[0].mxu0
  %v5278 = vadd.f32 0.0, %v5277
  %v5279 = vpop.f32.mrb[0].mxu0
  %v5280 = vadd.f32 0.0, %v5279
  %5281 = vmatprep.mubr.bf16.mxu0 0
  %5282 = vmatmul.mubr.bf16.gmra.mrb[0].mxu0 %v4460
  %v5283 = vpop.f32.mrb[0].mxu0
  %v5284 = vadd.f32 0.0, %v5283
  %v5285 = vpop.f32.mrb[0].mxu0
  %v5286 = vadd.f32 0.0, %v5285
  %v5287 = vpop.f32.mrb[0].mxu0
  %v5288 = vadd.f32 0.0, %v5287
  %v5289 = vpop.f32.mrb[0].mxu0
  %v5290 = vadd.f32 0.0, %v5289
  %5291 = vmatprep.mubr.bf16.mxu0 0
  %5292 = vmatmul.mubr.bf16.gmra.mrb[0].mxu0 %v4461
  %v5293 = vpop.f32.mrb[0].mxu0
  %v5294 = vadd.f32 0.0, %v5293
  %v5295 = vpop.f32.mrb[0].mxu0
  %v5296 = vadd.f32 0.0, %v5295
  %v5297 = vpop.f32.mrb[0].mxu0
  %v5298 = vadd.f32 0.0, %v5297
  %v5299 = vpop.f32.mrb[0].mxu0
  %v5300 = vadd.f32 0.0, %v5299
  %5301 = vmatprep.mubr.bf16.mxu0 0
  %5302 = vmatmul.mubr.bf16.gmra.mrb[0].mxu0 %v4462
  %v5303 = vpop.f32.mrb[0].mxu0
  %v5304 = vadd.f32 0.0, %v5303
  %v5305 = vpop.f32.mrb[0].mxu0
  %v5306 = vadd.f32 0.0, %v5305
  %v5307 = vpop.f32.mrb[0].mxu0
  %v5308 = vadd.f32 0.0, %v5307
  %v5309 = vpop.f32.mrb[0].mxu0
  %v5310 = vadd.f32 0.0, %v5309
  %5311 = vdwg.mxu0
  %v5312 = vadd.f32 %v3529, %v4594
  %v5313 = vadd.f32 %v3531, %v4596
  %v5314 = vadd.f32 %v3533, %v4598
  %v5315 = vadd.f32 %v3535, %v4600
  %v5316 = vadd.f32 %v3539, %v4604
  %v5317 = vadd.f32 %v3541, %v4606
  %v5318 = vadd.f32 %v3543, %v4608
  %v5319 = vadd.f32 %v3545, %v4610
  %v5320 = vadd.f32 %v3549, %v4614
  %v5321 = vadd.f32 %v3551, %v4616
  %v5322 = vadd.f32 %v3553, %v4618
  %v5323 = vadd.f32 %v3555, %v4620
  %v5324 = vadd.f32 %v3559, %v4624
  %v5325 = vadd.f32 %v3561, %v4626
  %v5326 = vadd.f32 %v3563, %v4628
  %v5327 = vadd.f32 %v3565, %v4630
  %v5328 = vadd.f32 %v3569, %v4634
  %v5329 = vadd.f32 %v3571, %v4636
  %v5330 = vadd.f32 %v3573, %v4638
  %v5331 = vadd.f32 %v3575, %v4640
  %v5332 = vadd.f32 %v3579, %v4644
  %v5333 = vadd.f32 %v3581, %v4646
  %v5334 = vadd.f32 %v3583, %v4648
  %v5335 = vadd.f32 %v3585, %v4650
  %v5336 = vadd.f32 %v3589, %v4654
  %v5337 = vadd.f32 %v3591, %v4656
  %v5338 = vadd.f32 %v3593, %v4658
  %v5339 = vadd.f32 %v3595, %v4660
  %v5340 = vadd.f32 %v3599, %v4664
  %v5341 = vadd.f32 %v3601, %v4666
  %v5342 = vadd.f32 %v3603, %v4668
  %v5343 = vadd.f32 %v3605, %v4670
  %v5344 = vadd.f32 %v3609, %v4674
  %v5345 = vadd.f32 %v3611, %v4676
  %v5346 = vadd.f32 %v3613, %v4678
  %v5347 = vadd.f32 %v3615, %v4680
  %v5348 = vadd.f32 %v3619, %v4684
  %v5349 = vadd.f32 %v3621, %v4686
  %v5350 = vadd.f32 %v3623, %v4688
  %v5351 = vadd.f32 %v3625, %v4690
  %v5352 = vadd.f32 %v3629, %v4694
  %v5353 = vadd.f32 %v3631, %v4696
  %v5354 = vadd.f32 %v3633, %v4698
  %v5355 = vadd.f32 %v3635, %v4700
  %v5356 = vadd.f32 %v3639, %v4704
  %v5357 = vadd.f32 %v3641, %v4706
  %v5358 = vadd.f32 %v3643, %v4708
  %v5359 = vadd.f32 %v3645, %v4710
  %v5360 = vadd.f32 %v3649, %v4714
  %v5361 = vadd.f32 %v3651, %v4716
  %v5362 = vadd.f32 %v3653, %v4718
  %v5363 = vadd.f32 %v3655, %v4720
  %v5364 = vadd.f32 %v3659, %v4724
  %v5365 = vadd.f32 %v3661, %v4726
  %v5366 = vadd.f32 %v3663, %v4728
  %v5367 = vadd.f32 %v3665, %v4730
  %v5368 = vadd.f32 %v3669, %v4734
  %v5369 = vadd.f32 %v3671, %v4736
  %v5370 = vadd.f32 %v3673, %v4738
  %v5371 = vadd.f32 %v3675, %v4740
  %v5372 = vadd.f32 %v3679, %v4744
  %v5373 = vadd.f32 %v3681, %v4746
  %v5374 = vadd.f32 %v3683, %v4748
  %v5375 = vadd.f32 %v3685, %v4750
  %v5376 = vadd.f32 %v3689, %v4754
  %v5377 = vadd.f32 %v3691, %v4756
  %v5378 = vadd.f32 %v3693, %v4758
  %v5379 = vadd.f32 %v3695, %v4760
  %v5380 = vadd.f32 %v3699, %v4764
  %v5381 = vadd.f32 %v3701, %v4766
  %v5382 = vadd.f32 %v3703, %v4768
  %v5383 = vadd.f32 %v3705, %v4770
  %v5384 = vadd.f32 %v3709, %v4774
  %v5385 = vadd.f32 %v3711, %v4776
  %v5386 = vadd.f32 %v3713, %v4778
  %v5387 = vadd.f32 %v3715, %v4780
  %v5388 = vadd.f32 %v3719, %v4784
  %v5389 = vadd.f32 %v3721, %v4786
  %v5390 = vadd.f32 %v3723, %v4788
  %v5391 = vadd.f32 %v3725, %v4790
  %v5392 = vadd.f32 %v3729, %v4794
  %v5393 = vadd.f32 %v3731, %v4796
  %v5394 = vadd.f32 %v3733, %v4798
  %v5395 = vadd.f32 %v3735, %v4800
  %v5396 = vadd.f32 %v3739, %v4804
  %v5397 = vadd.f32 %v3741, %v4806
  %v5398 = vadd.f32 %v3743, %v4808
  %v5399 = vadd.f32 %v3745, %v4810
  %v5400 = vadd.f32 %v3749, %v4814
  %v5401 = vadd.f32 %v3751, %v4816
  %v5402 = vadd.f32 %v3753, %v4818
  %v5403 = vadd.f32 %v3755, %v4820
  %v5404 = vadd.f32 %v3759, %v4824
  %v5405 = vadd.f32 %v3761, %v4826
  %v5406 = vadd.f32 %v3763, %v4828
  %v5407 = vadd.f32 %v3765, %v4830
  %v5408 = vadd.f32 %v3769, %v4834
  %v5409 = vadd.f32 %v3771, %v4836
  %v5410 = vadd.f32 %v3773, %v4838
  %v5411 = vadd.f32 %v3775, %v4840
  %v5412 = vadd.f32 %v3779, %v4844
  %v5413 = vadd.f32 %v3781, %v4846
  %v5414 = vadd.f32 %v3783, %v4848
  %v5415 = vadd.f32 %v3785, %v4850
  %v5416 = vadd.f32 %v3789, %v4854
  %v5417 = vadd.f32 %v3791, %v4856
  %v5418 = vadd.f32 %v3793, %v4858
  %v5419 = vadd.f32 %v3795, %v4860
  %v5420 = vadd.f32 %v3799, %v4864
  %v5421 = vadd.f32 %v3801, %v4866
  %v5422 = vadd.f32 %v3803, %v4868
  %v5423 = vadd.f32 %v3805, %v4870
  %v5424 = vadd.f32 %v3809, %v4874
  %v5425 = vadd.f32 %v3811, %v4876
  %v5426 = vadd.f32 %v3813, %v4878
  %v5427 = vadd.f32 %v3815, %v4880
  %v5428 = vadd.f32 %v3819, %v4884
  %v5429 = vadd.f32 %v3821, %v4886
  %v5430 = vadd.f32 %v3823, %v4888
  %v5431 = vadd.f32 %v3825, %v4890
  %v5432 = vadd.f32 %v3829, %v4894
  %v5433 = vadd.f32 %v3831, %v4896
  %v5434 = vadd.f32 %v3833, %v4898
  %v5435 = vadd.f32 %v3835, %v4900
  %v5436 = vadd.f32 %v3839, %v4904
  %v5437 = vadd.f32 %v3841, %v4906
  %v5438 = vadd.f32 %v3843, %v4908
  %v5439 = vadd.f32 %v3845, %v4910
  %v5440 = vadd.f32 %v3849, %v4914
  %v5441 = vadd.f32 %v3851, %v4916
  %v5442 = vadd.f32 %v3853, %v4918
  %v5443 = vadd.f32 %v3855, %v4920
  %v5444 = vadd.f32 %v3859, %v4924
  %v5445 = vadd.f32 %v3861, %v4926
  %v5446 = vadd.f32 %v3863, %v4928
  %v5447 = vadd.f32 %v3865, %v4930
  %v5448 = vadd.f32 %v3869, %v4934
  %v5449 = vadd.f32 %v3871, %v4936
  %v5450 = vadd.f32 %v3873, %v4938
  %v5451 = vadd.f32 %v3875, %v4940
  %v5452 = vadd.f32 %v3879, %v4944
  %v5453 = vadd.f32 %v3881, %v4946
  %v5454 = vadd.f32 %v3883, %v4948
  %v5455 = vadd.f32 %v3885, %v4950
  %v5456 = vadd.f32 %v3889, %v4954
  %v5457 = vadd.f32 %v3891, %v4956
  %v5458 = vadd.f32 %v3893, %v4958
  %v5459 = vadd.f32 %v3895, %v4960
  %v5460 = vadd.f32 %v3899, %v4964
  %v5461 = vadd.f32 %v3901, %v4966
  %v5462 = vadd.f32 %v3903, %v4968
  %v5463 = vadd.f32 %v3905, %v4970
  %v5464 = vadd.f32 %v3909, %v4974
  %v5465 = vadd.f32 %v3911, %v4976
  %v5466 = vadd.f32 %v3913, %v4978
  %v5467 = vadd.f32 %v3915, %v4980
  %v5468 = vadd.f32 %v3919, %v4984
  %v5469 = vadd.f32 %v3921, %v4986
  %v5470 = vadd.f32 %v3923, %v4988
  %v5471 = vadd.f32 %v3925, %v4990
  %v5472 = vadd.f32 %v3929, %v4994
  %v5473 = vadd.f32 %v3931, %v4996
  %v5474 = vadd.f32 %v3933, %v4998
  %v5475 = vadd.f32 %v3935, %v5000
  %v5476 = vadd.f32 %v3939, %v5004
  %v5477 = vadd.f32 %v3941, %v5006
  %v5478 = vadd.f32 %v3943, %v5008
  %v5479 = vadd.f32 %v3945, %v5010
  %v5480 = vadd.f32 %v3949, %v5014
  %v5481 = vadd.f32 %v3951, %v5016
  %v5482 = vadd.f32 %v3953, %v5018
  %v5483 = vadd.f32 %v3955, %v5020
  %v5484 = vadd.f32 %v3959, %v5024
  %v5485 = vadd.f32 %v3961, %v5026
  %v5486 = vadd.f32 %v3963, %v5028
  %v5487 = vadd.f32 %v3965, %v5030
  %v5488 = vadd.f32 %v3969, %v5034
  %v5489 = vadd.f32 %v3971, %v5036
  %v5490 = vadd.f32 %v3973, %v5038
  %v5491 = vadd.f32 %v3975, %v5040
  %v5492 = vadd.f32 %v3979, %v5044
  %v5493 = vadd.f32 %v3981, %v5046
  %v5494 = vadd.f32 %v3983, %v5048
  %v5495 = vadd.f32 %v3985, %v5050
  %v5496 = vadd.f32 %v3989, %v5054
  %v5497 = vadd.f32 %v3991, %v5056
  %v5498 = vadd.f32 %v3993, %v5058
  %v5499 = vadd.f32 %v3995, %v5060
  %v5500 = vadd.f32 %v3999, %v5064
  %v5501 = vadd.f32 %v4001, %v5066
  %v5502 = vadd.f32 %v4003, %v5068
  %v5503 = vadd.f32 %v4005, %v5070
  %v5504 = vadd.f32 %v4009, %v5074
  %v5505 = vadd.f32 %v4011, %v5076
  %v5506 = vadd.f32 %v4013, %v5078
  %v5507 = vadd.f32 %v4015, %v5080
  %v5508 = vadd.f32 %v4019, %v5084
  %v5509 = vadd.f32 %v4021, %v5086
  %v5510 = vadd.f32 %v4023, %v5088
  %v5511 = vadd.f32 %v4025, %v5090
  %v5512 = vadd.f32 %v4029, %v5094
  %v5513 = vadd.f32 %v4031, %v5096
  %v5514 = vadd.f32 %v4033, %v5098
  %v5515 = vadd.f32 %v4035, %v5100
  %v5516 = vadd.f32 %v4039, %v5104
  %v5517 = vadd.f32 %v4041, %v5106
  %v5518 = vadd.f32 %v4043, %v5108
  %v5519 = vadd.f32 %v4045, %v5110
  %v5520 = vadd.f32 %v4049, %v5114
  %v5521 = vadd.f32 %v4051, %v5116
  %v5522 = vadd.f32 %v4053, %v5118
  %v5523 = vadd.f32 %v4055, %v5120
  %v5524 = vadd.f32 %v4059, %v5124
  %v5525 = vadd.f32 %v4061, %v5126
  %v5526 = vadd.f32 %v4063, %v5128
  %v5527 = vadd.f32 %v4065, %v5130
  %v5528 = vadd.f32 %v4069, %v5134
  %v5529 = vadd.f32 %v4071, %v5136
  %v5530 = vadd.f32 %v4073, %v5138
  %v5531 = vadd.f32 %v4075, %v5140
  %v5532 = vadd.f32 %v4079, %v5144
  %v5533 = vadd.f32 %v4081, %v5146
  %v5534 = vadd.f32 %v4083, %v5148
  %v5535 = vadd.f32 %v4085, %v5150
  %v5536 = vadd.f32 %v4089, %v5154
  %v5537 = vadd.f32 %v4091, %v5156
  %v5538 = vadd.f32 %v4093, %v5158
  %v5539 = vadd.f32 %v4095, %v5160
  %v5540 = vadd.f32 %v4099, %v5164
  %v5541 = vadd.f32 %v4101, %v5166
  %v5542 = vadd.f32 %v4103, %v5168
  %v5543 = vadd.f32 %v4105, %v5170
  %v5544 = vadd.f32 %v4109, %v5174
  %v5545 = vadd.f32 %v4111, %v5176
  %v5546 = vadd.f32 %v4113, %v5178
  %v5547 = vadd.f32 %v4115, %v5180
  %v5548 = vadd.f32 %v4119, %v5184
  %v5549 = vadd.f32 %v4121, %v5186
  %v5550 = vadd.f32 %v4123, %v5188
  %v5551 = vadd.f32 %v4125, %v5190
  %v5552 = vadd.f32 %v4129, %v5194
  %v5553 = vadd.f32 %v4131, %v5196
  %v5554 = vadd.f32 %v4133, %v5198
  %v5555 = vadd.f32 %v4135, %v5200
  %v5556 = vadd.f32 %v4139, %v5204
  %v5557 = vadd.f32 %v4141, %v5206
  %v5558 = vadd.f32 %v4143, %v5208
  %v5559 = vadd.f32 %v4145, %v5210
  %v5560 = vadd.f32 %v4149, %v5214
  %v5561 = vadd.f32 %v4151, %v5216
  %v5562 = vadd.f32 %v4153, %v5218
  %v5563 = vadd.f32 %v4155, %v5220
  %v5564 = vadd.f32 %v4159, %v5224
  %v5565 = vadd.f32 %v4161, %v5226
  %v5566 = vadd.f32 %v4163, %v5228
  %v5567 = vadd.f32 %v4165, %v5230
  %v5568 = vadd.f32 %v4169, %v5234
  %v5569 = vadd.f32 %v4171, %v5236
  %v5570 = vadd.f32 %v4173, %v5238
  %v5571 = vadd.f32 %v4175, %v5240
  %v5572 = vadd.f32 %v4179, %v5244
  %v5573 = vadd.f32 %v4181, %v5246
  %v5574 = vadd.f32 %v4183, %v5248
  %v5575 = vadd.f32 %v4185, %v5250
  %v5576 = vadd.f32 %v4189, %v5254
  %v5577 = vadd.f32 %v4191, %v5256
  %v5578 = vadd.f32 %v4193, %v5258
  %v5579 = vadd.f32 %v4195, %v5260
  %v5580 = vadd.f32 %v4199, %v5264
  %v5581 = vadd.f32 %v4201, %v5266
  %v5582 = vadd.f32 %v4203, %v5268
  %v5583 = vadd.f32 %v4205, %v5270
  %v5584 = vadd.f32 %v4209, %v5274
  %v5585 = vadd.f32 %v4211, %v5276
  %v5586 = vadd.f32 %v4213, %v5278
  %v5587 = vadd.f32 %v4215, %v5280
  %v5588 = vadd.f32 %v4219, %v5284
  %v5589 = vadd.f32 %v4221, %v5286
  %v5590 = vadd.f32 %v4223, %v5288
  %v5591 = vadd.f32 %v4225, %v5290
  %v5592 = vadd.f32 %v4229, %v5294
  %v5593 = vadd.f32 %v4231, %v5296
  %v5594 = vadd.f32 %v4233, %v5298
  %v5595 = vadd.f32 %v4235, %v5300
  %v5596 = vadd.f32 %v4239, %v5304
  %v5597 = vadd.f32 %v4241, %v5306
  %v5598 = vadd.f32 %v4243, %v5308
  %v5599 = vadd.f32 %v4245, %v5310
  %v5600 = vld [vmem:[%s4] sm:$0x3]
  %v5602 = vlaneseq
  %v5603 = vshrl.u32 %v5602, 7
  %v5604 = vsub.s32 0, %v5603
  %v5605 = vrot.slane %v5600, %v5604
  %v5606 = vlaneseq
  %v5607 = vshrl.u32 %v5606, 7
  %v5608 = vsub.s32 1, %v5607
  %v5609 = vrot.slane %v5600, %v5608
  %v5612 = vadd.f32 %v5312, %v5605
  %v5613 = vadd.f32 %v5313, %v5609
  %v5614 = vadd.f32 %v5314, %v5605
  %v5615 = vadd.f32 %v5315, %v5609
  %v5616 = vadd.f32 %v5316, %v5605
  %v5617 = vadd.f32 %v5317, %v5609
  %v5618 = vadd.f32 %v5318, %v5605
  %v5619 = vadd.f32 %v5319, %v5609
  %v5620 = vadd.f32 %v5320, %v5605
  %v5621 = vadd.f32 %v5321, %v5609
  %v5622 = vadd.f32 %v5322, %v5605
  %v5623 = vadd.f32 %v5323, %v5609
  %v5624 = vadd.f32 %v5324, %v5605
  %v5625 = vadd.f32 %v5325, %v5609
  %v5626 = vadd.f32 %v5326, %v5605
  %v5627 = vadd.f32 %v5327, %v5609
  %v5628 = vadd.f32 %v5328, %v5605
  %v5629 = vadd.f32 %v5329, %v5609
  %v5630 = vadd.f32 %v5330, %v5605
  %v5631 = vadd.f32 %v5331, %v5609
  %v5632 = vadd.f32 %v5332, %v5605
  %v5633 = vadd.f32 %v5333, %v5609
  %v5634 = vadd.f32 %v5334, %v5605
  %v5635 = vadd.f32 %v5335, %v5609
  %v5636 = vadd.f32 %v5336, %v5605
  %v5637 = vadd.f32 %v5337, %v5609
  %v5638 = vadd.f32 %v5338, %v5605
  %v5639 = vadd.f32 %v5339, %v5609
  %v5640 = vadd.f32 %v5340, %v5605
  %v5641 = vadd.f32 %v5341, %v5609
  %v5642 = vadd.f32 %v5342, %v5605
  %v5643 = vadd.f32 %v5343, %v5609
  %v5644 = vadd.f32 %v5344, %v5605
  %v5645 = vadd.f32 %v5345, %v5609
  %v5646 = vadd.f32 %v5346, %v5605
  %v5647 = vadd.f32 %v5347, %v5609
  %v5648 = vadd.f32 %v5348, %v5605
  %v5649 = vadd.f32 %v5349, %v5609
  %v5650 = vadd.f32 %v5350, %v5605
  %v5651 = vadd.f32 %v5351, %v5609
  %v5652 = vadd.f32 %v5352, %v5605
  %v5653 = vadd.f32 %v5353, %v5609
  %v5654 = vadd.f32 %v5354, %v5605
  %v5655 = vadd.f32 %v5355, %v5609
  %v5656 = vadd.f32 %v5356, %v5605
  %v5657 = vadd.f32 %v5357, %v5609
  %v5658 = vadd.f32 %v5358, %v5605
  %v5659 = vadd.f32 %v5359, %v5609
  %v5660 = vadd.f32 %v5360, %v5605
  %v5661 = vadd.f32 %v5361, %v5609
  %v5662 = vadd.f32 %v5362, %v5605
  %v5663 = vadd.f32 %v5363, %v5609
  %v5664 = vadd.f32 %v5364, %v5605
  %v5665 = vadd.f32 %v5365, %v5609
  %v5666 = vadd.f32 %v5366, %v5605
  %v5667 = vadd.f32 %v5367, %v5609
  %v5668 = vadd.f32 %v5368, %v5605
  %v5669 = vadd.f32 %v5369, %v5609
  %v5670 = vadd.f32 %v5370, %v5605
  %v5671 = vadd.f32 %v5371, %v5609
  %v5672 = vadd.f32 %v5372, %v5605
  %v5673 = vadd.f32 %v5373, %v5609
  %v5674 = vadd.f32 %v5374, %v5605
  %v5675 = vadd.f32 %v5375, %v5609
  %v5676 = vadd.f32 %v5376, %v5605
  %v5677 = vadd.f32 %v5377, %v5609
  %v5678 = vadd.f32 %v5378, %v5605
  %v5679 = vadd.f32 %v5379, %v5609
  %v5680 = vadd.f32 %v5380, %v5605
  %v5681 = vadd.f32 %v5381, %v5609
  %v5682 = vadd.f32 %v5382, %v5605
  %v5683 = vadd.f32 %v5383, %v5609
  %v5684 = vadd.f32 %v5384, %v5605
  %v5685 = vadd.f32 %v5385, %v5609
  %v5686 = vadd.f32 %v5386, %v5605
  %v5687 = vadd.f32 %v5387, %v5609
  %v5688 = vadd.f32 %v5388, %v5605
  %v5689 = vadd.f32 %v5389, %v5609
  %v5690 = vadd.f32 %v5390, %v5605
  %v5691 = vadd.f32 %v5391, %v5609
  %v5692 = vadd.f32 %v5392, %v5605
  %v5693 = vadd.f32 %v5393, %v5609
  %v5694 = vadd.f32 %v5394, %v5605
  %v5695 = vadd.f32 %v5395, %v5609
  %v5696 = vadd.f32 %v5396, %v5605
  %v5697 = vadd.f32 %v5397, %v5609
  %v5698 = vadd.f32 %v5398, %v5605
  %v5699 = vadd.f32 %v5399, %v5609
  %v5700 = vadd.f32 %v5400, %v5605
  %v5701 = vadd.f32 %v5401, %v5609
  %v5702 = vadd.f32 %v5402, %v5605
  %v5703 = vadd.f32 %v5403, %v5609
  %v5704 = vadd.f32 %v5404, %v5605
  %v5705 = vadd.f32 %v5405, %v5609
  %v5706 = vadd.f32 %v5406, %v5605
  %v5707 = vadd.f32 %v5407, %v5609
  %v5708 = vadd.f32 %v5408, %v5605
  %v5709 = vadd.f32 %v5409, %v5609
  %v5710 = vadd.f32 %v5410, %v5605
  %v5711 = vadd.f32 %v5411, %v5609
  %v5712 = vadd.f32 %v5412, %v5605
  %v5713 = vadd.f32 %v5413, %v5609
  %v5714 = vadd.f32 %v5414, %v5605
  %v5715 = vadd.f32 %v5415, %v5609
  %v5716 = vadd.f32 %v5416, %v5605
  %v5717 = vadd.f32 %v5417, %v5609
  %v5718 = vadd.f32 %v5418, %v5605
  %v5719 = vadd.f32 %v5419, %v5609
  %v5720 = vadd.f32 %v5420, %v5605
  %v5721 = vadd.f32 %v5421, %v5609
  %v5722 = vadd.f32 %v5422, %v5605
  %v5723 = vadd.f32 %v5423, %v5609
  %v5724 = vadd.f32 %v5424, %v5605
  %v5725 = vadd.f32 %v5425, %v5609
  %v5726 = vadd.f32 %v5426, %v5605
  %v5727 = vadd.f32 %v5427, %v5609
  %v5728 = vadd.f32 %v5428, %v5605
  %v5729 = vadd.f32 %v5429, %v5609
  %v5730 = vadd.f32 %v5430, %v5605
  %v5731 = vadd.f32 %v5431, %v5609
  %v5732 = vadd.f32 %v5432, %v5605
  %v5733 = vadd.f32 %v5433, %v5609
  %v5734 = vadd.f32 %v5434, %v5605
  %v5735 = vadd.f32 %v5435, %v5609
  %v5736 = vadd.f32 %v5436, %v5605
  %v5737 = vadd.f32 %v5437, %v5609
  %v5738 = vadd.f32 %v5438, %v5605
  %v5739 = vadd.f32 %v5439, %v5609
  %v5740 = vadd.f32 %v5440, %v5605
  %v5741 = vadd.f32 %v5441, %v5609
  %v5742 = vadd.f32 %v5442, %v5605
  %v5743 = vadd.f32 %v5443, %v5609
  %v5744 = vadd.f32 %v5444, %v5605
  %v5745 = vadd.f32 %v5445, %v5609
  %v5746 = vadd.f32 %v5446, %v5605
  %v5747 = vadd.f32 %v5447, %v5609
  %v5748 = vadd.f32 %v5448, %v5605
  %v5749 = vadd.f32 %v5449, %v5609
  %v5750 = vadd.f32 %v5450, %v5605
  %v5751 = vadd.f32 %v5451, %v5609
  %v5752 = vadd.f32 %v5452, %v5605
  %v5753 = vadd.f32 %v5453, %v5609
  %v5754 = vadd.f32 %v5454, %v5605
  %v5755 = vadd.f32 %v5455, %v5609
  %v5756 = vadd.f32 %v5456, %v5605
  %v5757 = vadd.f32 %v5457, %v5609
  %v5758 = vadd.f32 %v5458, %v5605
  %v5759 = vadd.f32 %v5459, %v5609
  %v5760 = vadd.f32 %v5460, %v5605
  %v5761 = vadd.f32 %v5461, %v5609
  %v5762 = vadd.f32 %v5462, %v5605
  %v5763 = vadd.f32 %v5463, %v5609
  %v5764 = vadd.f32 %v5464, %v5605
  %v5765 = vadd.f32 %v5465, %v5609
  %v5766 = vadd.f32 %v5466, %v5605
  %v5767 = vadd.f32 %v5467, %v5609
  %v5768 = vadd.f32 %v5468, %v5605
  %v5769 = vadd.f32 %v5469, %v5609
  %v5770 = vadd.f32 %v5470, %v5605
  %v5771 = vadd.f32 %v5471, %v5609
  %v5772 = vadd.f32 %v5472, %v5605
  %v5773 = vadd.f32 %v5473, %v5609
  %v5774 = vadd.f32 %v5474, %v5605
  %v5775 = vadd.f32 %v5475, %v5609
  %v5776 = vadd.f32 %v5476, %v5605
  %v5777 = vadd.f32 %v5477, %v5609
  %v5778 = vadd.f32 %v5478, %v5605
  %v5779 = vadd.f32 %v5479, %v5609
  %v5780 = vadd.f32 %v5480, %v5605
  %v5781 = vadd.f32 %v5481, %v5609
  %v5782 = vadd.f32 %v5482, %v5605
  %v5783 = vadd.f32 %v5483, %v5609
  %v5784 = vadd.f32 %v5484, %v5605
  %v5785 = vadd.f32 %v5485, %v5609
  %v5786 = vadd.f32 %v5486, %v5605
  %v5787 = vadd.f32 %v5487, %v5609
  %v5788 = vadd.f32 %v5488, %v5605
  %v5789 = vadd.f32 %v5489, %v5609
  %v5790 = vadd.f32 %v5490, %v5605
  %v5791 = vadd.f32 %v5491, %v5609
  %v5792 = vadd.f32 %v5492, %v5605
  %v5793 = vadd.f32 %v5493, %v5609
  %v5794 = vadd.f32 %v5494, %v5605
  %v5795 = vadd.f32 %v5495, %v5609
  %v5796 = vadd.f32 %v5496, %v5605
  %v5797 = vadd.f32 %v5497, %v5609
  %v5798 = vadd.f32 %v5498, %v5605
  %v5799 = vadd.f32 %v5499, %v5609
  %v5800 = vadd.f32 %v5500, %v5605
  %v5801 = vadd.f32 %v5501, %v5609
  %v5802 = vadd.f32 %v5502, %v5605
  %v5803 = vadd.f32 %v5503, %v5609
  %v5804 = vadd.f32 %v5504, %v5605
  %v5805 = vadd.f32 %v5505, %v5609
  %v5806 = vadd.f32 %v5506, %v5605
  %v5807 = vadd.f32 %v5507, %v5609
  %v5808 = vadd.f32 %v5508, %v5605
  %v5809 = vadd.f32 %v5509, %v5609
  %v5810 = vadd.f32 %v5510, %v5605
  %v5811 = vadd.f32 %v5511, %v5609
  %v5812 = vadd.f32 %v5512, %v5605
  %v5813 = vadd.f32 %v5513, %v5609
  %v5814 = vadd.f32 %v5514, %v5605
  %v5815 = vadd.f32 %v5515, %v5609
  %v5816 = vadd.f32 %v5516, %v5605
  %v5817 = vadd.f32 %v5517, %v5609
  %v5818 = vadd.f32 %v5518, %v5605
  %v5819 = vadd.f32 %v5519, %v5609
  %v5820 = vadd.f32 %v5520, %v5605
  %v5821 = vadd.f32 %v5521, %v5609
  %v5822 = vadd.f32 %v5522, %v5605
  %v5823 = vadd.f32 %v5523, %v5609
  %v5824 = vadd.f32 %v5524, %v5605
  %v5825 = vadd.f32 %v5525, %v5609
  %v5826 = vadd.f32 %v5526, %v5605
  %v5827 = vadd.f32 %v5527, %v5609
  %v5828 = vadd.f32 %v5528, %v5605
  %v5829 = vadd.f32 %v5529, %v5609
  %v5830 = vadd.f32 %v5530, %v5605
  %v5831 = vadd.f32 %v5531, %v5609
  %v5832 = vadd.f32 %v5532, %v5605
  %v5833 = vadd.f32 %v5533, %v5609
  %v5834 = vadd.f32 %v5534, %v5605
  %v5835 = vadd.f32 %v5535, %v5609
  %v5836 = vadd.f32 %v5536, %v5605
  %v5837 = vadd.f32 %v5537, %v5609
  %v5838 = vadd.f32 %v5538, %v5605
  %v5839 = vadd.f32 %v5539, %v5609
  %v5840 = vadd.f32 %v5540, %v5605
  %v5841 = vadd.f32 %v5541, %v5609
  %v5842 = vadd.f32 %v5542, %v5605
  %v5843 = vadd.f32 %v5543, %v5609
  %v5844 = vadd.f32 %v5544, %v5605
  %v5845 = vadd.f32 %v5545, %v5609
  %v5846 = vadd.f32 %v5546, %v5605
  %v5847 = vadd.f32 %v5547, %v5609
  %v5848 = vadd.f32 %v5548, %v5605
  %v5849 = vadd.f32 %v5549, %v5609
  %v5850 = vadd.f32 %v5550, %v5605
  %v5851 = vadd.f32 %v5551, %v5609
  %v5852 = vadd.f32 %v5552, %v5605
  %v5853 = vadd.f32 %v5553, %v5609
  %v5854 = vadd.f32 %v5554, %v5605
  %v5855 = vadd.f32 %v5555, %v5609
  %v5856 = vadd.f32 %v5556, %v5605
  %v5857 = vadd.f32 %v5557, %v5609
  %v5858 = vadd.f32 %v5558, %v5605
  %v5859 = vadd.f32 %v5559, %v5609
  %v5860 = vadd.f32 %v5560, %v5605
  %v5861 = vadd.f32 %v5561, %v5609
  %v5862 = vadd.f32 %v5562, %v5605
  %v5863 = vadd.f32 %v5563, %v5609
  %v5864 = vadd.f32 %v5564, %v5605
  %v5865 = vadd.f32 %v5565, %v5609
  %v5866 = vadd.f32 %v5566, %v5605
  %v5867 = vadd.f32 %v5567, %v5609
  %v5868 = vadd.f32 %v5568, %v5605
  %v5869 = vadd.f32 %v5569, %v5609
  %v5870 = vadd.f32 %v5570, %v5605
  %v5871 = vadd.f32 %v5571, %v5609
  %v5872 = vadd.f32 %v5572, %v5605
  %v5873 = vadd.f32 %v5573, %v5609
  %v5874 = vadd.f32 %v5574, %v5605
  %v5875 = vadd.f32 %v5575, %v5609
  %v5876 = vadd.f32 %v5576, %v5605
  %v5877 = vadd.f32 %v5577, %v5609
  %v5878 = vadd.f32 %v5578, %v5605
  %v5879 = vadd.f32 %v5579, %v5609
  %v5880 = vadd.f32 %v5580, %v5605
  %v5881 = vadd.f32 %v5581, %v5609
  %v5882 = vadd.f32 %v5582, %v5605
  %v5883 = vadd.f32 %v5583, %v5609
  %v5884 = vadd.f32 %v5584, %v5605
  %v5885 = vadd.f32 %v5585, %v5609
  %v5886 = vadd.f32 %v5586, %v5605
  %v5887 = vadd.f32 %v5587, %v5609
  %v5888 = vadd.f32 %v5588, %v5605
  %v5889 = vadd.f32 %v5589, %v5609
  %v5890 = vadd.f32 %v5590, %v5605
  %v5891 = vadd.f32 %v5591, %v5609
  %v5892 = vadd.f32 %v5592, %v5605
  %v5893 = vadd.f32 %v5593, %v5609
  %v5894 = vadd.f32 %v5594, %v5605
  %v5895 = vadd.f32 %v5595, %v5609
  %v5896 = vadd.f32 %v5596, %v5605
  %v5897 = vadd.f32 %v5597, %v5609
  %v5898 = vadd.f32 %v5598, %v5605
  %v5899 = vadd.f32 %v5599, %v5609
  %v5900 = vmax.f32 %v5612, 0.0
  %v5901 = vmax.f32 %v5613, 0.0
  %v5902 = vmax.f32 %v5614, 0.0
  %v5903 = vmax.f32 %v5615, 0.0
  %v5904 = vmax.f32 %v5616, 0.0
  %v5905 = vmax.f32 %v5617, 0.0
  %v5906 = vmax.f32 %v5618, 0.0
  %v5907 = vmax.f32 %v5619, 0.0
  %v5908 = vmax.f32 %v5620, 0.0
  %v5909 = vmax.f32 %v5621, 0.0
  %v5910 = vmax.f32 %v5622, 0.0
  %v5911 = vmax.f32 %v5623, 0.0
  %v5912 = vmax.f32 %v5624, 0.0
  %v5913 = vmax.f32 %v5625, 0.0
  %v5914 = vmax.f32 %v5626, 0.0
  %v5915 = vmax.f32 %v5627, 0.0
  %v5916 = vmax.f32 %v5628, 0.0
  %v5917 = vmax.f32 %v5629, 0.0
  %v5918 = vmax.f32 %v5630, 0.0
  %v5919 = vmax.f32 %v5631, 0.0
  %v5920 = vmax.f32 %v5632, 0.0
  %v5921 = vmax.f32 %v5633, 0.0
  %v5922 = vmax.f32 %v5634, 0.0
  %v5923 = vmax.f32 %v5635, 0.0
  %v5924 = vmax.f32 %v5636, 0.0
  %v5925 = vmax.f32 %v5637, 0.0
  %v5926 = vmax.f32 %v5638, 0.0
  %v5927 = vmax.f32 %v5639, 0.0
  %v5928 = vmax.f32 %v5640, 0.0
  %v5929 = vmax.f32 %v5641, 0.0
  %v5930 = vmax.f32 %v5642, 0.0
  %v5931 = vmax.f32 %v5643, 0.0
  %v5932 = vmax.f32 %v5644, 0.0
  %v5933 = vmax.f32 %v5645, 0.0
  %v5934 = vmax.f32 %v5646, 0.0
  %v5935 = vmax.f32 %v5647, 0.0
  %v5936 = vmax.f32 %v5648, 0.0
  %v5937 = vmax.f32 %v5649, 0.0
  %v5938 = vmax.f32 %v5650, 0.0
  %v5939 = vmax.f32 %v5651, 0.0
  %v5940 = vmax.f32 %v5652, 0.0
  %v5941 = vmax.f32 %v5653, 0.0
  %v5942 = vmax.f32 %v5654, 0.0
  %v5943 = vmax.f32 %v5655, 0.0
  %v5944 = vmax.f32 %v5656, 0.0
  %v5945 = vmax.f32 %v5657, 0.0
  %v5946 = vmax.f32 %v5658, 0.0
  %v5947 = vmax.f32 %v5659, 0.0
  %v5948 = vmax.f32 %v5660, 0.0
  %v5949 = vmax.f32 %v5661, 0.0
  %v5950 = vmax.f32 %v5662, 0.0
  %v5951 = vmax.f32 %v5663, 0.0
  %v5952 = vmax.f32 %v5664, 0.0
  %v5953 = vmax.f32 %v5665, 0.0
  %v5954 = vmax.f32 %v5666, 0.0
  %v5955 = vmax.f32 %v5667, 0.0
  %v5956 = vmax.f32 %v5668, 0.0
  %v5957 = vmax.f32 %v5669, 0.0
  %v5958 = vmax.f32 %v5670, 0.0
  %v5959 = vmax.f32 %v5671, 0.0
  %v5960 = vmax.f32 %v5672, 0.0
  %v5961 = vmax.f32 %v5673, 0.0
  %v5962 = vmax.f32 %v5674, 0.0
  %v5963 = vmax.f32 %v5675, 0.0
  %v5964 = vmax.f32 %v5676, 0.0
  %v5965 = vmax.f32 %v5677, 0.0
  %v5966 = vmax.f32 %v5678, 0.0
  %v5967 = vmax.f32 %v5679, 0.0
  %v5968 = vmax.f32 %v5680, 0.0
  %v5969 = vmax.f32 %v5681, 0.0
  %v5970 = vmax.f32 %v5682, 0.0
  %v5971 = vmax.f32 %v5683, 0.0
  %v5972 = vmax.f32 %v5684, 0.0
  %v5973 = vmax.f32 %v5685, 0.0
  %v5974 = vmax.f32 %v5686, 0.0
  %v5975 = vmax.f32 %v5687, 0.0
  %v5976 = vmax.f32 %v5688, 0.0
  %v5977 = vmax.f32 %v5689, 0.0
  %v5978 = vmax.f32 %v5690, 0.0
  %v5979 = vmax.f32 %v5691, 0.0
  %v5980 = vmax.f32 %v5692, 0.0
  %v5981 = vmax.f32 %v5693, 0.0
  %v5982 = vmax.f32 %v5694, 0.0
  %v5983 = vmax.f32 %v5695, 0.0
  %v5984 = vmax.f32 %v5696, 0.0
  %v5985 = vmax.f32 %v5697, 0.0
  %v5986 = vmax.f32 %v5698, 0.0
  %v5987 = vmax.f32 %v5699, 0.0
  %v5988 = vmax.f32 %v5700, 0.0
  %v5989 = vmax.f32 %v5701, 0.0
  %v5990 = vmax.f32 %v5702, 0.0
  %v5991 = vmax.f32 %v5703, 0.0
  %v5992 = vmax.f32 %v5704, 0.0
  %v5993 = vmax.f32 %v5705, 0.0
  %v5994 = vmax.f32 %v5706, 0.0
  %v5995 = vmax.f32 %v5707, 0.0
  %v5996 = vmax.f32 %v5708, 0.0
  %v5997 = vmax.f32 %v5709, 0.0
  %v5998 = vmax.f32 %v5710, 0.0
  %v5999 = vmax.f32 %v5711, 0.0
  %v6000 = vmax.f32 %v5712, 0.0
  %v6001 = vmax.f32 %v5713, 0.0
  %v6002 = vmax.f32 %v5714, 0.0
  %v6003 = vmax.f32 %v5715, 0.0
  %v6004 = vmax.f32 %v5716, 0.0
  %v6005 = vmax.f32 %v5717, 0.0
  %v6006 = vmax.f32 %v5718, 0.0
  %v6007 = vmax.f32 %v5719, 0.0
  %v6008 = vmax.f32 %v5720, 0.0
  %v6009 = vmax.f32 %v5721, 0.0
  %v6010 = vmax.f32 %v5722, 0.0
  %v6011 = vmax.f32 %v5723, 0.0
  %v6012 = vmax.f32 %v5724, 0.0
  %v6013 = vmax.f32 %v5725, 0.0
  %v6014 = vmax.f32 %v5726, 0.0
  %v6015 = vmax.f32 %v5727, 0.0
  %v6016 = vmax.f32 %v5728, 0.0
  %v6017 = vmax.f32 %v5729, 0.0
  %v6018 = vmax.f32 %v5730, 0.0
  %v6019 = vmax.f32 %v5731, 0.0
  %v6020 = vmax.f32 %v5732, 0.0
  %v6021 = vmax.f32 %v5733, 0.0
  %v6022 = vmax.f32 %v5734, 0.0
  %v6023 = vmax.f32 %v5735, 0.0
  %v6024 = vmax.f32 %v5736, 0.0
  %v6025 = vmax.f32 %v5737, 0.0
  %v6026 = vmax.f32 %v5738, 0.0
  %v6027 = vmax.f32 %v5739, 0.0
  %v6028 = vmax.f32 %v5740, 0.0
  %v6029 = vmax.f32 %v5741, 0.0
  %v6030 = vmax.f32 %v5742, 0.0
  %v6031 = vmax.f32 %v5743, 0.0
  %v6032 = vmax.f32 %v5744, 0.0
  %v6033 = vmax.f32 %v5745, 0.0
  %v6034 = vmax.f32 %v5746, 0.0
  %v6035 = vmax.f32 %v5747, 0.0
  %v6036 = vmax.f32 %v5748, 0.0
  %v6037 = vmax.f32 %v5749, 0.0
  %v6038 = vmax.f32 %v5750, 0.0
  %v6039 = vmax.f32 %v5751, 0.0
  %v6040 = vmax.f32 %v5752, 0.0
  %v6041 = vmax.f32 %v5753, 0.0
  %v6042 = vmax.f32 %v5754, 0.0
  %v6043 = vmax.f32 %v5755, 0.0
  %v6044 = vmax.f32 %v5756, 0.0
  %v6045 = vmax.f32 %v5757, 0.0
  %v6046 = vmax.f32 %v5758, 0.0
  %v6047 = vmax.f32 %v5759, 0.0
  %v6048 = vmax.f32 %v5760, 0.0
  %v6049 = vmax.f32 %v5761, 0.0
  %v6050 = vmax.f32 %v5762, 0.0
  %v6051 = vmax.f32 %v5763, 0.0
  %v6052 = vmax.f32 %v5764, 0.0
  %v6053 = vmax.f32 %v5765, 0.0
  %v6054 = vmax.f32 %v5766, 0.0
  %v6055 = vmax.f32 %v5767, 0.0
  %v6056 = vmax.f32 %v5768, 0.0
  %v6057 = vmax.f32 %v5769, 0.0
  %v6058 = vmax.f32 %v5770, 0.0
  %v6059 = vmax.f32 %v5771, 0.0
  %v6060 = vmax.f32 %v5772, 0.0
  %v6061 = vmax.f32 %v5773, 0.0
  %v6062 = vmax.f32 %v5774, 0.0
  %v6063 = vmax.f32 %v5775, 0.0
  %v6064 = vmax.f32 %v5776, 0.0
  %v6065 = vmax.f32 %v5777, 0.0
  %v6066 = vmax.f32 %v5778, 0.0
  %v6067 = vmax.f32 %v5779, 0.0
  %v6068 = vmax.f32 %v5780, 0.0
  %v6069 = vmax.f32 %v5781, 0.0
  %v6070 = vmax.f32 %v5782, 0.0
  %v6071 = vmax.f32 %v5783, 0.0
  %v6072 = vmax.f32 %v5784, 0.0
  %v6073 = vmax.f32 %v5785, 0.0
  %v6074 = vmax.f32 %v5786, 0.0
  %v6075 = vmax.f32 %v5787, 0.0
  %v6076 = vmax.f32 %v5788, 0.0
  %v6077 = vmax.f32 %v5789, 0.0
  %v6078 = vmax.f32 %v5790, 0.0
  %v6079 = vmax.f32 %v5791, 0.0
  %v6080 = vmax.f32 %v5792, 0.0
  %v6081 = vmax.f32 %v5793, 0.0
  %v6082 = vmax.f32 %v5794, 0.0
  %v6083 = vmax.f32 %v5795, 0.0
  %v6084 = vmax.f32 %v5796, 0.0
  %v6085 = vmax.f32 %v5797, 0.0
  %v6086 = vmax.f32 %v5798, 0.0
  %v6087 = vmax.f32 %v5799, 0.0
  %v6088 = vmax.f32 %v5800, 0.0
  %v6089 = vmax.f32 %v5801, 0.0
  %v6090 = vmax.f32 %v5802, 0.0
  %v6091 = vmax.f32 %v5803, 0.0
  %v6092 = vmax.f32 %v5804, 0.0
  %v6093 = vmax.f32 %v5805, 0.0
  %v6094 = vmax.f32 %v5806, 0.0
  %v6095 = vmax.f32 %v5807, 0.0
  %v6096 = vmax.f32 %v5808, 0.0
  %v6097 = vmax.f32 %v5809, 0.0
  %v6098 = vmax.f32 %v5810, 0.0
  %v6099 = vmax.f32 %v5811, 0.0
  %v6100 = vmax.f32 %v5812, 0.0
  %v6101 = vmax.f32 %v5813, 0.0
  %v6102 = vmax.f32 %v5814, 0.0
  %v6103 = vmax.f32 %v5815, 0.0
  %v6104 = vmax.f32 %v5816, 0.0
  %v6105 = vmax.f32 %v5817, 0.0
  %v6106 = vmax.f32 %v5818, 0.0
  %v6107 = vmax.f32 %v5819, 0.0
  %v6108 = vmax.f32 %v5820, 0.0
  %v6109 = vmax.f32 %v5821, 0.0
  %v6110 = vmax.f32 %v5822, 0.0
  %v6111 = vmax.f32 %v5823, 0.0
  %v6112 = vmax.f32 %v5824, 0.0
  %v6113 = vmax.f32 %v5825, 0.0
  %v6114 = vmax.f32 %v5826, 0.0
  %v6115 = vmax.f32 %v5827, 0.0
  %v6116 = vmax.f32 %v5828, 0.0
  %v6117 = vmax.f32 %v5829, 0.0
  %v6118 = vmax.f32 %v5830, 0.0
  %v6119 = vmax.f32 %v5831, 0.0
  %v6120 = vmax.f32 %v5832, 0.0
  %v6121 = vmax.f32 %v5833, 0.0
  %v6122 = vmax.f32 %v5834, 0.0
  %v6123 = vmax.f32 %v5835, 0.0
  %v6124 = vmax.f32 %v5836, 0.0
  %v6125 = vmax.f32 %v5837, 0.0
  %v6126 = vmax.f32 %v5838, 0.0
  %v6127 = vmax.f32 %v5839, 0.0
  %v6128 = vmax.f32 %v5840, 0.0
  %v6129 = vmax.f32 %v5841, 0.0
  %v6130 = vmax.f32 %v5842, 0.0
  %v6131 = vmax.f32 %v5843, 0.0
  %v6132 = vmax.f32 %v5844, 0.0
  %v6133 = vmax.f32 %v5845, 0.0
  %v6134 = vmax.f32 %v5846, 0.0
  %v6135 = vmax.f32 %v5847, 0.0
  %v6136 = vmax.f32 %v5848, 0.0
  %v6137 = vmax.f32 %v5849, 0.0
  %v6138 = vmax.f32 %v5850, 0.0
  %v6139 = vmax.f32 %v5851, 0.0
  %v6140 = vmax.f32 %v5852, 0.0
  %v6141 = vmax.f32 %v5853, 0.0
  %v6142 = vmax.f32 %v5854, 0.0
  %v6143 = vmax.f32 %v5855, 0.0
  %v6144 = vmax.f32 %v5856, 0.0
  %v6145 = vmax.f32 %v5857, 0.0
  %v6146 = vmax.f32 %v5858, 0.0
  %v6147 = vmax.f32 %v5859, 0.0
  %v6148 = vmax.f32 %v5860, 0.0
  %v6149 = vmax.f32 %v5861, 0.0
  %v6150 = vmax.f32 %v5862, 0.0
  %v6151 = vmax.f32 %v5863, 0.0
  %v6152 = vmax.f32 %v5864, 0.0
  %v6153 = vmax.f32 %v5865, 0.0
  %v6154 = vmax.f32 %v5866, 0.0
  %v6155 = vmax.f32 %v5867, 0.0
  %v6156 = vmax.f32 %v5868, 0.0
  %v6157 = vmax.f32 %v5869, 0.0
  %v6158 = vmax.f32 %v5870, 0.0
  %v6159 = vmax.f32 %v5871, 0.0
  %v6160 = vmax.f32 %v5872, 0.0
  %v6161 = vmax.f32 %v5873, 0.0
  %v6162 = vmax.f32 %v5874, 0.0
  %v6163 = vmax.f32 %v5875, 0.0
  %v6164 = vmax.f32 %v5876, 0.0
  %v6165 = vmax.f32 %v5877, 0.0
  %v6166 = vmax.f32 %v5878, 0.0
  %v6167 = vmax.f32 %v5879, 0.0
  %v6168 = vmax.f32 %v5880, 0.0
  %v6169 = vmax.f32 %v5881, 0.0
  %v6170 = vmax.f32 %v5882, 0.0
  %v6171 = vmax.f32 %v5883, 0.0
  %v6172 = vmax.f32 %v5884, 0.0
  %v6173 = vmax.f32 %v5885, 0.0
  %v6174 = vmax.f32 %v5886, 0.0
  %v6175 = vmax.f32 %v5887, 0.0
  %v6176 = vmax.f32 %v5888, 0.0
  %v6177 = vmax.f32 %v5889, 0.0
  %v6178 = vmax.f32 %v5890, 0.0
  %v6179 = vmax.f32 %v5891, 0.0
  %v6180 = vmax.f32 %v5892, 0.0
  %v6181 = vmax.f32 %v5893, 0.0
  %v6182 = vmax.f32 %v5894, 0.0
  %v6183 = vmax.f32 %v5895, 0.0
  %v6184 = vmax.f32 %v5896, 0.0
  %v6185 = vmax.f32 %v5897, 0.0
  %v6186 = vmax.f32 %v5898, 0.0
  %v6187 = vmax.f32 %v5899, 0.0
  %v6188 = vadd.f32 %v5900, %v5901
  %v6189 = vadd.f32 %v5902, %v5903
  %v6190 = vadd.f32 %v5904, %v5905
  %v6191 = vadd.f32 %v5906, %v5907
  %v6192 = vadd.f32 %v5908, %v5909
  %v6193 = vadd.f32 %v5910, %v5911
  %v6194 = vadd.f32 %v5912, %v5913
  %v6195 = vadd.f32 %v5914, %v5915
  %v6196 = vadd.f32 %v5916, %v5917
  %v6197 = vadd.f32 %v5918, %v5919
  %v6198 = vadd.f32 %v5920, %v5921
  %v6199 = vadd.f32 %v5922, %v5923
  %v6200 = vadd.f32 %v5924, %v5925
  %v6201 = vadd.f32 %v5926, %v5927
  %v6202 = vadd.f32 %v5928, %v5929
  %v6203 = vadd.f32 %v5930, %v5931
  %v6204 = vadd.f32 %v5932, %v5933
  %v6205 = vadd.f32 %v5934, %v5935
  %v6206 = vadd.f32 %v5936, %v5937
  %v6207 = vadd.f32 %v5938, %v5939
  %v6208 = vadd.f32 %v5940, %v5941
  %v6209 = vadd.f32 %v5942, %v5943
  %v6210 = vadd.f32 %v5944, %v5945
  %v6211 = vadd.f32 %v5946, %v5947
  %v6212 = vadd.f32 %v5948, %v5949
  %v6213 = vadd.f32 %v5950, %v5951
  %v6214 = vadd.f32 %v5952, %v5953
  %v6215 = vadd.f32 %v5954, %v5955
  %v6216 = vadd.f32 %v5956, %v5957
  %v6217 = vadd.f32 %v5958, %v5959
  %v6218 = vadd.f32 %v5960, %v5961
  %v6219 = vadd.f32 %v5962, %v5963
  %v6220 = vadd.f32 %v5964, %v5965
  %v6221 = vadd.f32 %v5966, %v5967
  %v6222 = vadd.f32 %v5968, %v5969
  %v6223 = vadd.f32 %v5970, %v5971
  %v6224 = vadd.f32 %v5972, %v5973
  %v6225 = vadd.f32 %v5974, %v5975
  %v6226 = vadd.f32 %v5976, %v5977
  %v6227 = vadd.f32 %v5978, %v5979
  %v6228 = vadd.f32 %v5980, %v5981
  %v6229 = vadd.f32 %v5982, %v5983
  %v6230 = vadd.f32 %v5984, %v5985
  %v6231 = vadd.f32 %v5986, %v5987
  %v6232 = vadd.f32 %v5988, %v5989
  %v6233 = vadd.f32 %v5990, %v5991
  %v6234 = vadd.f32 %v5992, %v5993
  %v6235 = vadd.f32 %v5994, %v5995
  %v6236 = vadd.f32 %v5996, %v5997
  %v6237 = vadd.f32 %v5998, %v5999
  %v6238 = vadd.f32 %v6000, %v6001
  %v6239 = vadd.f32 %v6002, %v6003
  %v6240 = vadd.f32 %v6004, %v6005
  %v6241 = vadd.f32 %v6006, %v6007
  %v6242 = vadd.f32 %v6008, %v6009
  %v6243 = vadd.f32 %v6010, %v6011
  %v6244 = vadd.f32 %v6012, %v6013
  %v6245 = vadd.f32 %v6014, %v6015
  %v6246 = vadd.f32 %v6016, %v6017
  %v6247 = vadd.f32 %v6018, %v6019
  %v6248 = vadd.f32 %v6020, %v6021
  %v6249 = vadd.f32 %v6022, %v6023
  %v6250 = vadd.f32 %v6024, %v6025
  %v6251 = vadd.f32 %v6026, %v6027
  %v6252 = vadd.f32 %v6028, %v6029
  %v6253 = vadd.f32 %v6030, %v6031
  %v6254 = vadd.f32 %v6032, %v6033
  %v6255 = vadd.f32 %v6034, %v6035
  %v6256 = vadd.f32 %v6036, %v6037
  %v6257 = vadd.f32 %v6038, %v6039
  %v6258 = vadd.f32 %v6040, %v6041
  %v6259 = vadd.f32 %v6042, %v6043
  %v6260 = vadd.f32 %v6044, %v6045
  %v6261 = vadd.f32 %v6046, %v6047
  %v6262 = vadd.f32 %v6048, %v6049
  %v6263 = vadd.f32 %v6050, %v6051
  %v6264 = vadd.f32 %v6052, %v6053
  %v6265 = vadd.f32 %v6054, %v6055
  %v6266 = vadd.f32 %v6056, %v6057
  %v6267 = vadd.f32 %v6058, %v6059
  %v6268 = vadd.f32 %v6060, %v6061
  %v6269 = vadd.f32 %v6062, %v6063
  %v6270 = vadd.f32 %v6064, %v6065
  %v6271 = vadd.f32 %v6066, %v6067
  %v6272 = vadd.f32 %v6068, %v6069
  %v6273 = vadd.f32 %v6070, %v6071
  %v6274 = vadd.f32 %v6072, %v6073
  %v6275 = vadd.f32 %v6074, %v6075
  %v6276 = vadd.f32 %v6076, %v6077
  %v6277 = vadd.f32 %v6078, %v6079
  %v6278 = vadd.f32 %v6080, %v6081
  %v6279 = vadd.f32 %v6082, %v6083
  %v6280 = vadd.f32 %v6084, %v6085
  %v6281 = vadd.f32 %v6086, %v6087
  %v6282 = vadd.f32 %v6088, %v6089
  %v6283 = vadd.f32 %v6090, %v6091
  %v6284 = vadd.f32 %v6092, %v6093
  %v6285 = vadd.f32 %v6094, %v6095
  %v6286 = vadd.f32 %v6096, %v6097
  %v6287 = vadd.f32 %v6098, %v6099
  %v6288 = vadd.f32 %v6100, %v6101
  %v6289 = vadd.f32 %v6102, %v6103
  %v6290 = vadd.f32 %v6104, %v6105
  %v6291 = vadd.f32 %v6106, %v6107
  %v6292 = vadd.f32 %v6108, %v6109
  %v6293 = vadd.f32 %v6110, %v6111
  %v6294 = vadd.f32 %v6112, %v6113
  %v6295 = vadd.f32 %v6114, %v6115
  %v6296 = vadd.f32 %v6116, %v6117
  %v6297 = vadd.f32 %v6118, %v6119
  %v6298 = vadd.f32 %v6120, %v6121
  %v6299 = vadd.f32 %v6122, %v6123
  %v6300 = vadd.f32 %v6124, %v6125
  %v6301 = vadd.f32 %v6126, %v6127
  %v6302 = vadd.f32 %v6128, %v6129
  %v6303 = vadd.f32 %v6130, %v6131
  %v6304 = vadd.f32 %v6132, %v6133
  %v6305 = vadd.f32 %v6134, %v6135
  %v6306 = vadd.f32 %v6136, %v6137
  %v6307 = vadd.f32 %v6138, %v6139
  %v6308 = vadd.f32 %v6140, %v6141
  %v6309 = vadd.f32 %v6142, %v6143
  %v6310 = vadd.f32 %v6144, %v6145
  %v6311 = vadd.f32 %v6146, %v6147
  %v6312 = vadd.f32 %v6148, %v6149
  %v6313 = vadd.f32 %v6150, %v6151
  %v6314 = vadd.f32 %v6152, %v6153
  %v6315 = vadd.f32 %v6154, %v6155
  %v6316 = vadd.f32 %v6156, %v6157
  %v6317 = vadd.f32 %v6158, %v6159
  %v6318 = vadd.f32 %v6160, %v6161
  %v6319 = vadd.f32 %v6162, %v6163
  %v6320 = vadd.f32 %v6164, %v6165
  %v6321 = vadd.f32 %v6166, %v6167
  %v6322 = vadd.f32 %v6168, %v6169
  %v6323 = vadd.f32 %v6170, %v6171
  %v6324 = vadd.f32 %v6172, %v6173
  %v6325 = vadd.f32 %v6174, %v6175
  %v6326 = vadd.f32 %v6176, %v6177
  %v6327 = vadd.f32 %v6178, %v6179
  %v6328 = vadd.f32 %v6180, %v6181
  %v6329 = vadd.f32 %v6182, %v6183
  %v6330 = vadd.f32 %v6184, %v6185
  %v6331 = vadd.f32 %v6186, %v6187
  %v6332 = vld [vmem:[%s5] sm:$0xff]
  %v6333 = vld [vmem:[%s5 + $0x8] sm:$0xff]
  %v6334 = vld [vmem:[%s5 + $0x10] sm:$0xff]
  %v6335 = vld [vmem:[%s5 + $0x18] sm:$0xff]
  %v6336 = vld [vmem:[%s5 + $0x20] sm:$0xff]
  %v6337 = vld [vmem:[%s5 + $0x28] sm:$0xff]
  %v6338 = vld [vmem:[%s5 + $0x30] sm:$0xff]
  %v6339 = vld [vmem:[%s5 + $0x38] sm:$0xff]
  %v6340 = vld [vmem:[%s5 + $0x40] sm:$0xff]
  %v6341 = vld [vmem:[%s5 + $0x48] sm:$0xff]
  %v6342 = vld [vmem:[%s5 + $0x50] sm:$0xff]
  %v6343 = vld [vmem:[%s5 + $0x58] sm:$0xff]
  %v6344 = vld [vmem:[%s5 + $0x60] sm:$0xff]
  %v6345 = vld [vmem:[%s5 + $0x68] sm:$0xff]
  %v6346 = vld [vmem:[%s5 + $0x70] sm:$0xff]
  %v6347 = vld [vmem:[%s5 + $0x78] sm:$0xff]
  %v6348 = vld [vmem:[%s5 + $0x80] sm:$0xff]
  %v6349 = vld [vmem:[%s5 + $0x88] sm:$0xff]
  %v6350 = vmul.f32 %v6188, %v6332
  %v6351 = vmul.f32 %v6189, %v6333
  %v6352 = vmul.f32 %v6190, %v6334
  %v6353 = vmul.f32 %v6191, %v6335
  %v6354 = vmul.f32 %v6192, %v6336
  %v6355 = vmul.f32 %v6193, %v6337
  %v6356 = vmul.f32 %v6194, %v6338
  %v6357 = vmul.f32 %v6195, %v6339
  %v6358 = vmul.f32 %v6196, %v6340
  %v6359 = vmul.f32 %v6197, %v6341
  %v6360 = vmul.f32 %v6198, %v6342
  %v6361 = vmul.f32 %v6199, %v6343
  %v6362 = vmul.f32 %v6200, %v6344
  %v6363 = vmul.f32 %v6201, %v6345
  %v6364 = vmul.f32 %v6202, %v6346
  %v6365 = vmul.f32 %v6203, %v6347
  %v6366 = vmul.f32 %v6204, %v6348
  %v6367 = vmul.f32 %v6205, %v6349
  %v6368 = vmul.f32 %v6206, %v6332
  %v6369 = vmul.f32 %v6207, %v6333
  %v6370 = vmul.f32 %v6208, %v6334
  %v6371 = vmul.f32 %v6209, %v6335
  %v6372 = vmul.f32 %v6210, %v6336
  %v6373 = vmul.f32 %v6211, %v6337
  %v6374 = vmul.f32 %v6212, %v6338
  %v6375 = vmul.f32 %v6213, %v6339
  %v6376 = vmul.f32 %v6214, %v6340
  %v6377 = vmul.f32 %v6215, %v6341
  %v6378 = vmul.f32 %v6216, %v6342
  %v6379 = vmul.f32 %v6217, %v6343
  %v6380 = vmul.f32 %v6218, %v6344
  %v6381 = vmul.f32 %v6219, %v6345
  %v6382 = vmul.f32 %v6220, %v6346
  %v6383 = vmul.f32 %v6221, %v6347
  %v6384 = vmul.f32 %v6222, %v6348
  %v6385 = vmul.f32 %v6223, %v6349
  %v6386 = vmul.f32 %v6224, %v6332
  %v6387 = vmul.f32 %v6225, %v6333
  %v6388 = vmul.f32 %v6226, %v6334
  %v6389 = vmul.f32 %v6227, %v6335
  %v6390 = vmul.f32 %v6228, %v6336
  %v6391 = vmul.f32 %v6229, %v6337
  %v6392 = vmul.f32 %v6230, %v6338
  %v6393 = vmul.f32 %v6231, %v6339
  %v6394 = vmul.f32 %v6232, %v6340
  %v6395 = vmul.f32 %v6233, %v6341
  %v6396 = vmul.f32 %v6234, %v6342
  %v6397 = vmul.f32 %v6235, %v6343
  %v6398 = vmul.f32 %v6236, %v6344
  %v6399 = vmul.f32 %v6237, %v6345
  %v6400 = vmul.f32 %v6238, %v6346
  %v6401 = vmul.f32 %v6239, %v6347
  %v6402 = vmul.f32 %v6240, %v6348
  %v6403 = vmul.f32 %v6241, %v6349
  %v6404 = vmul.f32 %v6242, %v6332
  %v6405 = vmul.f32 %v6243, %v6333
  %v6406 = vmul.f32 %v6244, %v6334
  %v6407 = vmul.f32 %v6245, %v6335
  %v6408 = vmul.f32 %v6246, %v6336
  %v6409 = vmul.f32 %v6247, %v6337
  %v6410 = vmul.f32 %v6248, %v6338
  %v6411 = vmul.f32 %v6249, %v6339
  %v6412 = vmul.f32 %v6250, %v6340
  %v6413 = vmul.f32 %v6251, %v6341
  %v6414 = vmul.f32 %v6252, %v6342
  %v6415 = vmul.f32 %v6253, %v6343
  %v6416 = vmul.f32 %v6254, %v6344
  %v6417 = vmul.f32 %v6255, %v6345
  %v6418 = vmul.f32 %v6256, %v6346
  %v6419 = vmul.f32 %v6257, %v6347
  %v6420 = vmul.f32 %v6258, %v6348
  %v6421 = vmul.f32 %v6259, %v6349
  %v6422 = vmul.f32 %v6260, %v6332
  %v6423 = vmul.f32 %v6261, %v6333
  %v6424 = vmul.f32 %v6262, %v6334
  %v6425 = vmul.f32 %v6263, %v6335
  %v6426 = vmul.f32 %v6264, %v6336
  %v6427 = vmul.f32 %v6265, %v6337
  %v6428 = vmul.f32 %v6266, %v6338
  %v6429 = vmul.f32 %v6267, %v6339
  %v6430 = vmul.f32 %v6268, %v6340
  %v6431 = vmul.f32 %v6269, %v6341
  %v6432 = vmul.f32 %v6270, %v6342
  %v6433 = vmul.f32 %v6271, %v6343
  %v6434 = vmul.f32 %v6272, %v6344
  %v6435 = vmul.f32 %v6273, %v6345
  %v6436 = vmul.f32 %v6274, %v6346
  %v6437 = vmul.f32 %v6275, %v6347
  %v6438 = vmul.f32 %v6276, %v6348
  %v6439 = vmul.f32 %v6277, %v6349
  %v6440 = vmul.f32 %v6278, %v6332
  %v6441 = vmul.f32 %v6279, %v6333
  %v6442 = vmul.f32 %v6280, %v6334
  %v6443 = vmul.f32 %v6281, %v6335
  %v6444 = vmul.f32 %v6282, %v6336
  %v6445 = vmul.f32 %v6283, %v6337
  %v6446 = vmul.f32 %v6284, %v6338
  %v6447 = vmul.f32 %v6285, %v6339
  %v6448 = vmul.f32 %v6286, %v6340
  %v6449 = vmul.f32 %v6287, %v6341
  %v6450 = vmul.f32 %v6288, %v6342
  %v6451 = vmul.f32 %v6289, %v6343
  %v6452 = vmul.f32 %v6290, %v6344
  %v6453 = vmul.f32 %v6291, %v6345
  %v6454 = vmul.f32 %v6292, %v6346
  %v6455 = vmul.f32 %v6293, %v6347
  %v6456 = vmul.f32 %v6294, %v6348
  %v6457 = vmul.f32 %v6295, %v6349
  %v6458 = vmul.f32 %v6296, %v6332
  %v6459 = vmul.f32 %v6297, %v6333
  %v6460 = vmul.f32 %v6298, %v6334
  %v6461 = vmul.f32 %v6299, %v6335
  %v6462 = vmul.f32 %v6300, %v6336
  %v6463 = vmul.f32 %v6301, %v6337
  %v6464 = vmul.f32 %v6302, %v6338
  %v6465 = vmul.f32 %v6303, %v6339
  %v6466 = vmul.f32 %v6304, %v6340
  %v6467 = vmul.f32 %v6305, %v6341
  %v6468 = vmul.f32 %v6306, %v6342
  %v6469 = vmul.f32 %v6307, %v6343
  %v6470 = vmul.f32 %v6308, %v6344
  %v6471 = vmul.f32 %v6309, %v6345
  %v6472 = vmul.f32 %v6310, %v6346
  %v6473 = vmul.f32 %v6311, %v6347
  %v6474 = vmul.f32 %v6312, %v6348
  %v6475 = vmul.f32 %v6313, %v6349
  %v6476 = vmul.f32 %v6314, %v6332
  %v6477 = vmul.f32 %v6315, %v6333
  %v6478 = vmul.f32 %v6316, %v6334
  %v6479 = vmul.f32 %v6317, %v6335
  %v6480 = vmul.f32 %v6318, %v6336
  %v6481 = vmul.f32 %v6319, %v6337
  %v6482 = vmul.f32 %v6320, %v6338
  %v6483 = vmul.f32 %v6321, %v6339
  %v6484 = vmul.f32 %v6322, %v6340
  %v6485 = vmul.f32 %v6323, %v6341
  %v6486 = vmul.f32 %v6324, %v6342
  %v6487 = vmul.f32 %v6325, %v6343
  %v6488 = vmul.f32 %v6326, %v6344
  %v6489 = vmul.f32 %v6327, %v6345
  %v6490 = vmul.f32 %v6328, %v6346
  %v6491 = vmul.f32 %v6329, %v6347
  %v6492 = vmul.f32 %v6330, %v6348
  %v6493 = vmul.f32 %v6331, %v6349
  %v6494 = vadd.f32 %v6350, %v6351
  %v6495 = vadd.f32 %v6494, %v6352
  %v6496 = vadd.f32 %v6495, %v6353
  %v6497 = vadd.f32 %v6496, %v6354
  %v6498 = vadd.f32 %v6497, %v6355
  %v6499 = vadd.f32 %v6498, %v6356
  %v6500 = vadd.f32 %v6499, %v6357
  %v6501 = vadd.f32 %v6500, %v6358
  %v6502 = vadd.f32 %v6501, %v6359
  %v6503 = vadd.f32 %v6502, %v6360
  %v6504 = vadd.f32 %v6503, %v6361
  %v6505 = vadd.f32 %v6504, %v6362
  %v6506 = vadd.f32 %v6505, %v6363
  %v6507 = vadd.f32 %v6506, %v6364
  %v6508 = vadd.f32 %v6507, %v6365
  %v6509 = vadd.f32 %v6508, %v6366
  %v6510 = vadd.f32 %v6509, %v6367
  %v6511 = vrot.slane %v6510, 4
  %v6512 = vadd.f32 %v6510, %v6511
  %v6513 = vrot.slane %v6512, 2
  %v6514 = vadd.f32 %v6512, %v6513
  %v6515 = vrot.slane %v6514, 1
  %v6516 = vadd.f32 %v6514, %v6515
  %v6517 = vadd.f32 %v6368, %v6369
  %v6518 = vadd.f32 %v6517, %v6370
  %v6519 = vadd.f32 %v6518, %v6371
  %v6520 = vadd.f32 %v6519, %v6372
  %v6521 = vadd.f32 %v6520, %v6373
  %v6522 = vadd.f32 %v6521, %v6374
  %v6523 = vadd.f32 %v6522, %v6375
  %v6524 = vadd.f32 %v6523, %v6376
  %v6525 = vadd.f32 %v6524, %v6377
  %v6526 = vadd.f32 %v6525, %v6378
  %v6527 = vadd.f32 %v6526, %v6379
  %v6528 = vadd.f32 %v6527, %v6380
  %v6529 = vadd.f32 %v6528, %v6381
  %v6530 = vadd.f32 %v6529, %v6382
  %v6531 = vadd.f32 %v6530, %v6383
  %v6532 = vadd.f32 %v6531, %v6384
  %v6533 = vadd.f32 %v6532, %v6385
  %v6534 = vrot.slane %v6533, 4
  %v6535 = vadd.f32 %v6533, %v6534
  %v6536 = vrot.slane %v6535, 2
  %v6537 = vadd.f32 %v6535, %v6536
  %v6538 = vrot.slane %v6537, 1
  %v6539 = vadd.f32 %v6537, %v6538
  %v6540 = vadd.f32 %v6386, %v6387
  %v6541 = vadd.f32 %v6540, %v6388
  %v6542 = vadd.f32 %v6541, %v6389
  %v6543 = vadd.f32 %v6542, %v6390
  %v6544 = vadd.f32 %v6543, %v6391
  %v6545 = vadd.f32 %v6544, %v6392
  %v6546 = vadd.f32 %v6545, %v6393
  %v6547 = vadd.f32 %v6546, %v6394
  %v6548 = vadd.f32 %v6547, %v6395
  %v6549 = vadd.f32 %v6548, %v6396
  %v6550 = vadd.f32 %v6549, %v6397
  %v6551 = vadd.f32 %v6550, %v6398
  %v6552 = vadd.f32 %v6551, %v6399
  %v6553 = vadd.f32 %v6552, %v6400
  %v6554 = vadd.f32 %v6553, %v6401
  %v6555 = vadd.f32 %v6554, %v6402
  %v6556 = vadd.f32 %v6555, %v6403
  %v6557 = vrot.slane %v6556, 4
  %v6558 = vadd.f32 %v6556, %v6557
  %v6559 = vrot.slane %v6558, 2
  %v6560 = vadd.f32 %v6558, %v6559
  %v6561 = vrot.slane %v6560, 1
  %v6562 = vadd.f32 %v6560, %v6561
  %v6563 = vadd.f32 %v6404, %v6405
  %v6564 = vadd.f32 %v6563, %v6406
  %v6565 = vadd.f32 %v6564, %v6407
  %v6566 = vadd.f32 %v6565, %v6408
  %v6567 = vadd.f32 %v6566, %v6409
  %v6568 = vadd.f32 %v6567, %v6410
  %v6569 = vadd.f32 %v6568, %v6411
  %v6570 = vadd.f32 %v6569, %v6412
  %v6571 = vadd.f32 %v6570, %v6413
  %v6572 = vadd.f32 %v6571, %v6414
  %v6573 = vadd.f32 %v6572, %v6415
  %v6574 = vadd.f32 %v6573, %v6416
  %v6575 = vadd.f32 %v6574, %v6417
  %v6576 = vadd.f32 %v6575, %v6418
  %v6577 = vadd.f32 %v6576, %v6419
  %v6578 = vadd.f32 %v6577, %v6420
  %v6579 = vadd.f32 %v6578, %v6421
  %v6580 = vrot.slane %v6579, 4
  %v6581 = vadd.f32 %v6579, %v6580
  %v6582 = vrot.slane %v6581, 2
  %v6583 = vadd.f32 %v6581, %v6582
  %v6584 = vrot.slane %v6583, 1
  %v6585 = vadd.f32 %v6583, %v6584
  %v6586 = vadd.f32 %v6422, %v6423
  %v6587 = vadd.f32 %v6586, %v6424
  %v6588 = vadd.f32 %v6587, %v6425
  %v6589 = vadd.f32 %v6588, %v6426
  %v6590 = vadd.f32 %v6589, %v6427
  %v6591 = vadd.f32 %v6590, %v6428
  %v6592 = vadd.f32 %v6591, %v6429
  %v6593 = vadd.f32 %v6592, %v6430
  %v6594 = vadd.f32 %v6593, %v6431
  %v6595 = vadd.f32 %v6594, %v6432
  %v6596 = vadd.f32 %v6595, %v6433
  %v6597 = vadd.f32 %v6596, %v6434
  %v6598 = vadd.f32 %v6597, %v6435
  %v6599 = vadd.f32 %v6598, %v6436
  %v6600 = vadd.f32 %v6599, %v6437
  %v6601 = vadd.f32 %v6600, %v6438
  %v6602 = vadd.f32 %v6601, %v6439
  %v6603 = vrot.slane %v6602, 4
  %v6604 = vadd.f32 %v6602, %v6603
  %v6605 = vrot.slane %v6604, 2
  %v6606 = vadd.f32 %v6604, %v6605
  %v6607 = vrot.slane %v6606, 1
  %v6608 = vadd.f32 %v6606, %v6607
  %v6609 = vadd.f32 %v6440, %v6441
  %v6610 = vadd.f32 %v6609, %v6442
  %v6611 = vadd.f32 %v6610, %v6443
  %v6612 = vadd.f32 %v6611, %v6444
  %v6613 = vadd.f32 %v6612, %v6445
  %v6614 = vadd.f32 %v6613, %v6446
  %v6615 = vadd.f32 %v6614, %v6447
  %v6616 = vadd.f32 %v6615, %v6448
  %v6617 = vadd.f32 %v6616, %v6449
  %v6618 = vadd.f32 %v6617, %v6450
  %v6619 = vadd.f32 %v6618, %v6451
  %v6620 = vadd.f32 %v6619, %v6452
  %v6621 = vadd.f32 %v6620, %v6453
  %v6622 = vadd.f32 %v6621, %v6454
  %v6623 = vadd.f32 %v6622, %v6455
  %v6624 = vadd.f32 %v6623, %v6456
  %v6625 = vadd.f32 %v6624, %v6457
  %v6626 = vrot.slane %v6625, 4
  %v6627 = vadd.f32 %v6625, %v6626
  %v6628 = vrot.slane %v6627, 2
  %v6629 = vadd.f32 %v6627, %v6628
  %v6630 = vrot.slane %v6629, 1
  %v6631 = vadd.f32 %v6629, %v6630
  %v6632 = vadd.f32 %v6458, %v6459
  %v6633 = vadd.f32 %v6632, %v6460
  %v6634 = vadd.f32 %v6633, %v6461
  %v6635 = vadd.f32 %v6634, %v6462
  %v6636 = vadd.f32 %v6635, %v6463
  %v6637 = vadd.f32 %v6636, %v6464
  %v6638 = vadd.f32 %v6637, %v6465
  %v6639 = vadd.f32 %v6638, %v6466
  %v6640 = vadd.f32 %v6639, %v6467
  %v6641 = vadd.f32 %v6640, %v6468
  %v6642 = vadd.f32 %v6641, %v6469
  %v6643 = vadd.f32 %v6642, %v6470
  %v6644 = vadd.f32 %v6643, %v6471
  %v6645 = vadd.f32 %v6644, %v6472
  %v6646 = vadd.f32 %v6645, %v6473
  %v6647 = vadd.f32 %v6646, %v6474
  %v6648 = vadd.f32 %v6647, %v6475
  %v6649 = vrot.slane %v6648, 4
  %v6650 = vadd.f32 %v6648, %v6649
  %v6651 = vrot.slane %v6650, 2
  %v6652 = vadd.f32 %v6650, %v6651
  %v6653 = vrot.slane %v6652, 1
  %v6654 = vadd.f32 %v6652, %v6653
  %v6655 = vadd.f32 %v6476, %v6477
  %v6656 = vadd.f32 %v6655, %v6478
  %v6657 = vadd.f32 %v6656, %v6479
  %v6658 = vadd.f32 %v6657, %v6480
  %v6659 = vadd.f32 %v6658, %v6481
  %v6660 = vadd.f32 %v6659, %v6482
  %v6661 = vadd.f32 %v6660, %v6483
  %v6662 = vadd.f32 %v6661, %v6484
  %v6663 = vadd.f32 %v6662, %v6485
  %v6664 = vadd.f32 %v6663, %v6486
  %v6665 = vadd.f32 %v6664, %v6487
  %v6666 = vadd.f32 %v6665, %v6488
  %v6667 = vadd.f32 %v6666, %v6489
  %v6668 = vadd.f32 %v6667, %v6490
  %v6669 = vadd.f32 %v6668, %v6491
  %v6670 = vadd.f32 %v6669, %v6492
  %v6671 = vadd.f32 %v6670, %v6493
  %v6672 = vrot.slane %v6671, 4
  %v6673 = vadd.f32 %v6671, %v6672
  %v6674 = vrot.slane %v6673, 2
  %v6675 = vadd.f32 %v6673, %v6674
  %v6676 = vrot.slane %v6675, 1
  %v6677 = vadd.f32 %v6675, %v6676
  %vm6686 = vcmask 1041409
  %v6687 = vsel %vm6686, %v6539, %v6516
  %vm6688 = vcmask 1042434
  %v6689 = vsel %vm6688, %v6562, %v6687
  %vm6690 = vcmask 1043459
  %v6691 = vsel %vm6690, %v6585, %v6689
  %vm6692 = vcmask 1044484
  %v6693 = vsel %vm6692, %v6608, %v6691
  %vm6694 = vcmask 1045509
  %v6695 = vsel %vm6694, %v6631, %v6693
  %vm6696 = vcmask 1046534
  %v6697 = vsel %vm6696, %v6654, %v6695
  %vm6698 = vcmask 1047559
  %v6699 = vsel %vm6698, %v6677, %v6697
  %6701 = vadd.xlane.f32.xlu0 %v6699
  %v6702 = vpop.xlane.xlu0 %6701
  %s6703 = scalar_lea.vmem %s5, 144
  %v6704 = vld [vmem:[%s6703] sm:$0xff]
  %v6705 = vld [vmem:[%s6703 + $0x8] sm:$0xff]
  %v6706 = vld [vmem:[%s6703 + $0x10] sm:$0xff]
  %v6707 = vld [vmem:[%s6703 + $0x18] sm:$0xff]
  %v6708 = vld [vmem:[%s6703 + $0x20] sm:$0xff]
  %v6709 = vld [vmem:[%s6703 + $0x28] sm:$0xff]
  %v6710 = vld [vmem:[%s6703 + $0x30] sm:$0xff]
  %v6711 = vld [vmem:[%s6703 + $0x38] sm:$0xff]
  %v6712 = vld [vmem:[%s6703 + $0x40] sm:$0xff]
  %v6713 = vld [vmem:[%s6703 + $0x48] sm:$0xff]
  %v6714 = vld [vmem:[%s6703 + $0x50] sm:$0xff]
  %v6715 = vld [vmem:[%s6703 + $0x58] sm:$0xff]
  %v6716 = vld [vmem:[%s6703 + $0x60] sm:$0xff]
  %v6717 = vld [vmem:[%s6703 + $0x68] sm:$0xff]
  %v6718 = vld [vmem:[%s6703 + $0x70] sm:$0xff]
  %v6719 = vld [vmem:[%s6703 + $0x78] sm:$0xff]
  %v6720 = vld [vmem:[%s6703 + $0x80] sm:$0xff]
  %v6721 = vld [vmem:[%s6703 + $0x88] sm:$0xff]
  %v6722 = vmul.f32 %v6188, %v6704
  %v6723 = vmul.f32 %v6189, %v6705
  %v6724 = vmul.f32 %v6190, %v6706
  %v6725 = vmul.f32 %v6191, %v6707
  %v6726 = vmul.f32 %v6192, %v6708
  %v6727 = vmul.f32 %v6193, %v6709
  %v6728 = vmul.f32 %v6194, %v6710
  %v6729 = vmul.f32 %v6195, %v6711
  %v6730 = vmul.f32 %v6196, %v6712
  %v6731 = vmul.f32 %v6197, %v6713
  %v6732 = vmul.f32 %v6198, %v6714
  %v6733 = vmul.f32 %v6199, %v6715
  %v6734 = vmul.f32 %v6200, %v6716
  %v6735 = vmul.f32 %v6201, %v6717
  %v6736 = vmul.f32 %v6202, %v6718
  %v6737 = vmul.f32 %v6203, %v6719
  %v6738 = vmul.f32 %v6204, %v6720
  %v6739 = vmul.f32 %v6205, %v6721
  %v6740 = vmul.f32 %v6206, %v6704
  %v6741 = vmul.f32 %v6207, %v6705
  %v6742 = vmul.f32 %v6208, %v6706
  %v6743 = vmul.f32 %v6209, %v6707
  %v6744 = vmul.f32 %v6210, %v6708
  %v6745 = vmul.f32 %v6211, %v6709
  %v6746 = vmul.f32 %v6212, %v6710
  %v6747 = vmul.f32 %v6213, %v6711
  %v6748 = vmul.f32 %v6214, %v6712
  %v6749 = vmul.f32 %v6215, %v6713
  %v6750 = vmul.f32 %v6216, %v6714
  %v6751 = vmul.f32 %v6217, %v6715
  %v6752 = vmul.f32 %v6218, %v6716
  %v6753 = vmul.f32 %v6219, %v6717
  %v6754 = vmul.f32 %v6220, %v6718
  %v6755 = vmul.f32 %v6221, %v6719
  %v6756 = vmul.f32 %v6222, %v6720
  %v6757 = vmul.f32 %v6223, %v6721
  %v6758 = vmul.f32 %v6224, %v6704
  %v6759 = vmul.f32 %v6225, %v6705
  %v6760 = vmul.f32 %v6226, %v6706
  %v6761 = vmul.f32 %v6227, %v6707
  %v6762 = vmul.f32 %v6228, %v6708
  %v6763 = vmul.f32 %v6229, %v6709
  %v6764 = vmul.f32 %v6230, %v6710
  %v6765 = vmul.f32 %v6231, %v6711
  %v6766 = vmul.f32 %v6232, %v6712
  %v6767 = vmul.f32 %v6233, %v6713
  %v6768 = vmul.f32 %v6234, %v6714
  %v6769 = vmul.f32 %v6235, %v6715
  %v6770 = vmul.f32 %v6236, %v6716
  %v6771 = vmul.f32 %v6237, %v6717
  %v6772 = vmul.f32 %v6238, %v6718
  %v6773 = vmul.f32 %v6239, %v6719
  %v6774 = vmul.f32 %v6240, %v6720
  %v6775 = vmul.f32 %v6241, %v6721
  %v6776 = vmul.f32 %v6242, %v6704
  %v6777 = vmul.f32 %v6243, %v6705
  %v6778 = vmul.f32 %v6244, %v6706
  %v6779 = vmul.f32 %v6245, %v6707
  %v6780 = vmul.f32 %v6246, %v6708
  %v6781 = vmul.f32 %v6247, %v6709
  %v6782 = vmul.f32 %v6248, %v6710
  %v6783 = vmul.f32 %v6249, %v6711
  %v6784 = vmul.f32 %v6250, %v6712
  %v6785 = vmul.f32 %v6251, %v6713
  %v6786 = vmul.f32 %v6252, %v6714
  %v6787 = vmul.f32 %v6253, %v6715
  %v6788 = vmul.f32 %v6254, %v6716
  %v6789 = vmul.f32 %v6255, %v6717
  %v6790 = vmul.f32 %v6256, %v6718
  %v6791 = vmul.f32 %v6257, %v6719
  %v6792 = vmul.f32 %v6258, %v6720
  %v6793 = vmul.f32 %v6259, %v6721
  %v6794 = vmul.f32 %v6260, %v6704
  %v6795 = vmul.f32 %v6261, %v6705
  %v6796 = vmul.f32 %v6262, %v6706
  %v6797 = vmul.f32 %v6263, %v6707
  %v6798 = vmul.f32 %v6264, %v6708
  %v6799 = vmul.f32 %v6265, %v6709
  %v6800 = vmul.f32 %v6266, %v6710
  %v6801 = vmul.f32 %v6267, %v6711
  %v6802 = vmul.f32 %v6268, %v6712
  %v6803 = vmul.f32 %v6269, %v6713
  %v6804 = vmul.f32 %v6270, %v6714
  %v6805 = vmul.f32 %v6271, %v6715
  %v6806 = vmul.f32 %v6272, %v6716
  %v6807 = vmul.f32 %v6273, %v6717
  %v6808 = vmul.f32 %v6274, %v6718
  %v6809 = vmul.f32 %v6275, %v6719
  %v6810 = vmul.f32 %v6276, %v6720
  %v6811 = vmul.f32 %v6277, %v6721
  %v6812 = vmul.f32 %v6278, %v6704
  %v6813 = vmul.f32 %v6279, %v6705
  %v6814 = vmul.f32 %v6280, %v6706
  %v6815 = vmul.f32 %v6281, %v6707
  %v6816 = vmul.f32 %v6282, %v6708
  %v6817 = vmul.f32 %v6283, %v6709
  %v6818 = vmul.f32 %v6284, %v6710
  %v6819 = vmul.f32 %v6285, %v6711
  %v6820 = vmul.f32 %v6286, %v6712
  %v6821 = vmul.f32 %v6287, %v6713
  %v6822 = vmul.f32 %v6288, %v6714
  %v6823 = vmul.f32 %v6289, %v6715
  %v6824 = vmul.f32 %v6290, %v6716
  %v6825 = vmul.f32 %v6291, %v6717
  %v6826 = vmul.f32 %v6292, %v6718
  %v6827 = vmul.f32 %v6293, %v6719
  %v6828 = vmul.f32 %v6294, %v6720
  %v6829 = vmul.f32 %v6295, %v6721
  %v6830 = vmul.f32 %v6296, %v6704
  %v6831 = vmul.f32 %v6297, %v6705
  %v6832 = vmul.f32 %v6298, %v6706
  %v6833 = vmul.f32 %v6299, %v6707
  %v6834 = vmul.f32 %v6300, %v6708
  %v6835 = vmul.f32 %v6301, %v6709
  %v6836 = vmul.f32 %v6302, %v6710
  %v6837 = vmul.f32 %v6303, %v6711
  %v6838 = vmul.f32 %v6304, %v6712
  %v6839 = vmul.f32 %v6305, %v6713
  %v6840 = vmul.f32 %v6306, %v6714
  %v6841 = vmul.f32 %v6307, %v6715
  %v6842 = vmul.f32 %v6308, %v6716
  %v6843 = vmul.f32 %v6309, %v6717
  %v6844 = vmul.f32 %v6310, %v6718
  %v6845 = vmul.f32 %v6311, %v6719
  %v6846 = vmul.f32 %v6312, %v6720
  %v6847 = vmul.f32 %v6313, %v6721
  %v6848 = vmul.f32 %v6314, %v6704
  %v6849 = vmul.f32 %v6315, %v6705
  %v6850 = vmul.f32 %v6316, %v6706
  %v6851 = vmul.f32 %v6317, %v6707
  %v6852 = vmul.f32 %v6318, %v6708
  %v6853 = vmul.f32 %v6319, %v6709
  %v6854 = vmul.f32 %v6320, %v6710
  %v6855 = vmul.f32 %v6321, %v6711
  %v6856 = vmul.f32 %v6322, %v6712
  %v6857 = vmul.f32 %v6323, %v6713
  %v6858 = vmul.f32 %v6324, %v6714
  %v6859 = vmul.f32 %v6325, %v6715
  %v6860 = vmul.f32 %v6326, %v6716
  %v6861 = vmul.f32 %v6327, %v6717
  %v6862 = vmul.f32 %v6328, %v6718
  %v6863 = vmul.f32 %v6329, %v6719
  %v6864 = vmul.f32 %v6330, %v6720
  %v6865 = vmul.f32 %v6331, %v6721
  %v6866 = vadd.f32 %v6722, %v6723
  %v6867 = vadd.f32 %v6866, %v6724
  %v6868 = vadd.f32 %v6867, %v6725
  %v6869 = vadd.f32 %v6868, %v6726
  %v6870 = vadd.f32 %v6869, %v6727
  %v6871 = vadd.f32 %v6870, %v6728
  %v6872 = vadd.f32 %v6871, %v6729
  %v6873 = vadd.f32 %v6872, %v6730
  %v6874 = vadd.f32 %v6873, %v6731
  %v6875 = vadd.f32 %v6874, %v6732
  %v6876 = vadd.f32 %v6875, %v6733
  %v6877 = vadd.f32 %v6876, %v6734
  %v6878 = vadd.f32 %v6877, %v6735
  %v6879 = vadd.f32 %v6878, %v6736
  %v6880 = vadd.f32 %v6879, %v6737
  %v6881 = vadd.f32 %v6880, %v6738
  %v6882 = vadd.f32 %v6881, %v6739
  %v6883 = vrot.slane %v6882, 4
  %v6884 = vadd.f32 %v6882, %v6883
  %v6885 = vrot.slane %v6884, 2
  %v6886 = vadd.f32 %v6884, %v6885
  %v6887 = vrot.slane %v6886, 1
  %v6888 = vadd.f32 %v6886, %v6887
  %v6889 = vadd.f32 %v6740, %v6741
  %v6890 = vadd.f32 %v6889, %v6742
  %v6891 = vadd.f32 %v6890, %v6743
  %v6892 = vadd.f32 %v6891, %v6744
  %v6893 = vadd.f32 %v6892, %v6745
  %v6894 = vadd.f32 %v6893, %v6746
  %v6895 = vadd.f32 %v6894, %v6747
  %v6896 = vadd.f32 %v6895, %v6748
  %v6897 = vadd.f32 %v6896, %v6749
  %v6898 = vadd.f32 %v6897, %v6750
  %v6899 = vadd.f32 %v6898, %v6751
  %v6900 = vadd.f32 %v6899, %v6752
  %v6901 = vadd.f32 %v6900, %v6753
  %v6902 = vadd.f32 %v6901, %v6754
  %v6903 = vadd.f32 %v6902, %v6755
  %v6904 = vadd.f32 %v6903, %v6756
  %v6905 = vadd.f32 %v6904, %v6757
  %v6906 = vrot.slane %v6905, 4
  %v6907 = vadd.f32 %v6905, %v6906
  %v6908 = vrot.slane %v6907, 2
  %v6909 = vadd.f32 %v6907, %v6908
  %v6910 = vrot.slane %v6909, 1
  %v6911 = vadd.f32 %v6909, %v6910
  %v6912 = vadd.f32 %v6758, %v6759
  %v6913 = vadd.f32 %v6912, %v6760
  %v6914 = vadd.f32 %v6913, %v6761
  %v6915 = vadd.f32 %v6914, %v6762
  %v6916 = vadd.f32 %v6915, %v6763
  %v6917 = vadd.f32 %v6916, %v6764
  %v6918 = vadd.f32 %v6917, %v6765
  %v6919 = vadd.f32 %v6918, %v6766
  %v6920 = vadd.f32 %v6919, %v6767
  %v6921 = vadd.f32 %v6920, %v6768
  %v6922 = vadd.f32 %v6921, %v6769
  %v6923 = vadd.f32 %v6922, %v6770
  %v6924 = vadd.f32 %v6923, %v6771
  %v6925 = vadd.f32 %v6924, %v6772
  %v6926 = vadd.f32 %v6925, %v6773
  %v6927 = vadd.f32 %v6926, %v6774
  %v6928 = vadd.f32 %v6927, %v6775
  %v6929 = vrot.slane %v6928, 4
  %v6930 = vadd.f32 %v6928, %v6929
  %v6931 = vrot.slane %v6930, 2
  %v6932 = vadd.f32 %v6930, %v6931
  %v6933 = vrot.slane %v6932, 1
  %v6934 = vadd.f32 %v6932, %v6933
  %v6935 = vadd.f32 %v6776, %v6777
  %v6936 = vadd.f32 %v6935, %v6778
  %v6937 = vadd.f32 %v6936, %v6779
  %v6938 = vadd.f32 %v6937, %v6780
  %v6939 = vadd.f32 %v6938, %v6781
  %v6940 = vadd.f32 %v6939, %v6782
  %v6941 = vadd.f32 %v6940, %v6783
  %v6942 = vadd.f32 %v6941, %v6784
  %v6943 = vadd.f32 %v6942, %v6785
  %v6944 = vadd.f32 %v6943, %v6786
  %v6945 = vadd.f32 %v6944, %v6787
  %v6946 = vadd.f32 %v6945, %v6788
  %v6947 = vadd.f32 %v6946, %v6789
  %v6948 = vadd.f32 %v6947, %v6790
  %v6949 = vadd.f32 %v6948, %v6791
  %v6950 = vadd.f32 %v6949, %v6792
  %v6951 = vadd.f32 %v6950, %v6793
  %v6952 = vrot.slane %v6951, 4
  %v6953 = vadd.f32 %v6951, %v6952
  %v6954 = vrot.slane %v6953, 2
  %v6955 = vadd.f32 %v6953, %v6954
  %v6956 = vrot.slane %v6955, 1
  %v6957 = vadd.f32 %v6955, %v6956
  %v6958 = vadd.f32 %v6794, %v6795
  %v6959 = vadd.f32 %v6958, %v6796
  %v6960 = vadd.f32 %v6959, %v6797
  %v6961 = vadd.f32 %v6960, %v6798
  %v6962 = vadd.f32 %v6961, %v6799
  %v6963 = vadd.f32 %v6962, %v6800
  %v6964 = vadd.f32 %v6963, %v6801
  %v6965 = vadd.f32 %v6964, %v6802
  %v6966 = vadd.f32 %v6965, %v6803
  %v6967 = vadd.f32 %v6966, %v6804
  %v6968 = vadd.f32 %v6967, %v6805
  %v6969 = vadd.f32 %v6968, %v6806
  %v6970 = vadd.f32 %v6969, %v6807
  %v6971 = vadd.f32 %v6970, %v6808
  %v6972 = vadd.f32 %v6971, %v6809
  %v6973 = vadd.f32 %v6972, %v6810
  %v6974 = vadd.f32 %v6973, %v6811
  %v6975 = vrot.slane %v6974, 4
  %v6976 = vadd.f32 %v6974, %v6975
  %v6977 = vrot.slane %v6976, 2
  %v6978 = vadd.f32 %v6976, %v6977
  %v6979 = vrot.slane %v6978, 1
  %v6980 = vadd.f32 %v6978, %v6979
  %v6981 = vadd.f32 %v6812, %v6813
  %v6982 = vadd.f32 %v6981, %v6814
  %v6983 = vadd.f32 %v6982, %v6815
  %v6984 = vadd.f32 %v6983, %v6816
  %v6985 = vadd.f32 %v6984, %v6817
  %v6986 = vadd.f32 %v6985, %v6818
  %v6987 = vadd.f32 %v6986, %v6819
  %v6988 = vadd.f32 %v6987, %v6820
  %v6989 = vadd.f32 %v6988, %v6821
  %v6990 = vadd.f32 %v6989, %v6822
  %v6991 = vadd.f32 %v6990, %v6823
  %v6992 = vadd.f32 %v6991, %v6824
  %v6993 = vadd.f32 %v6992, %v6825
  %v6994 = vadd.f32 %v6993, %v6826
  %v6995 = vadd.f32 %v6994, %v6827
  %v6996 = vadd.f32 %v6995, %v6828
  %v6997 = vadd.f32 %v6996, %v6829
  %v6998 = vrot.slane %v6997, 4
  %v6999 = vadd.f32 %v6997, %v6998
  %v7000 = vrot.slane %v6999, 2
  %v7001 = vadd.f32 %v6999, %v7000
  %v7002 = vrot.slane %v7001, 1
  %v7003 = vadd.f32 %v7001, %v7002
  %v7004 = vadd.f32 %v6830, %v6831
  %v7005 = vadd.f32 %v7004, %v6832
  %v7006 = vadd.f32 %v7005, %v6833
  %v7007 = vadd.f32 %v7006, %v6834
  %v7008 = vadd.f32 %v7007, %v6835
  %v7009 = vadd.f32 %v7008, %v6836
  %v7010 = vadd.f32 %v7009, %v6837
  %v7011 = vadd.f32 %v7010, %v6838
  %v7012 = vadd.f32 %v7011, %v6839
  %v7013 = vadd.f32 %v7012, %v6840
  %v7014 = vadd.f32 %v7013, %v6841
  %v7015 = vadd.f32 %v7014, %v6842
  %v7016 = vadd.f32 %v7015, %v6843
  %v7017 = vadd.f32 %v7016, %v6844
  %v7018 = vadd.f32 %v7017, %v6845
  %v7019 = vadd.f32 %v7018, %v6846
  %v7020 = vadd.f32 %v7019, %v6847
  %v7021 = vrot.slane %v7020, 4
  %v7022 = vadd.f32 %v7020, %v7021
  %v7023 = vrot.slane %v7022, 2
  %v7024 = vadd.f32 %v7022, %v7023
  %v7025 = vrot.slane %v7024, 1
  %v7026 = vadd.f32 %v7024, %v7025
  %v7027 = vadd.f32 %v6848, %v6849
  %v7028 = vadd.f32 %v7027, %v6850
  %v7029 = vadd.f32 %v7028, %v6851
  %v7030 = vadd.f32 %v7029, %v6852
  %v7031 = vadd.f32 %v7030, %v6853
  %v7032 = vadd.f32 %v7031, %v6854
  %v7033 = vadd.f32 %v7032, %v6855
  %v7034 = vadd.f32 %v7033, %v6856
  %v7035 = vadd.f32 %v7034, %v6857
  %v7036 = vadd.f32 %v7035, %v6858
  %v7037 = vadd.f32 %v7036, %v6859
  %v7038 = vadd.f32 %v7037, %v6860
  %v7039 = vadd.f32 %v7038, %v6861
  %v7040 = vadd.f32 %v7039, %v6862
  %v7041 = vadd.f32 %v7040, %v6863
  %v7042 = vadd.f32 %v7041, %v6864
  %v7043 = vadd.f32 %v7042, %v6865
  %v7044 = vrot.slane %v7043, 4
  %v7045 = vadd.f32 %v7043, %v7044
  %v7046 = vrot.slane %v7045, 2
  %v7047 = vadd.f32 %v7045, %v7046
  %v7048 = vrot.slane %v7047, 1
  %v7049 = vadd.f32 %v7047, %v7048
  %v7058 = vsel %vm6686, %v6911, %v6888
  %v7059 = vsel %vm6688, %v6934, %v7058
  %v7060 = vsel %vm6690, %v6957, %v7059
  %v7061 = vsel %vm6692, %v6980, %v7060
  %v7062 = vsel %vm6694, %v7003, %v7061
  %v7063 = vsel %vm6696, %v7026, %v7062
  %v7064 = vsel %vm6698, %v7049, %v7063
  %7066 = vadd.xlane.f32.xlu0 %v7064
  %v7067 = vpop.xlane.xlu0 %7066
  %s7068 = scalar_lea.vmem %s5, 288
  %v7069 = vld [vmem:[%s7068] sm:$0xff]
  %v7070 = vld [vmem:[%s7068 + $0x8] sm:$0xff]
  %v7071 = vld [vmem:[%s7068 + $0x10] sm:$0xff]
  %v7072 = vld [vmem:[%s7068 + $0x18] sm:$0xff]
  %v7073 = vld [vmem:[%s7068 + $0x20] sm:$0xff]
  %v7074 = vld [vmem:[%s7068 + $0x28] sm:$0xff]
  %v7075 = vld [vmem:[%s7068 + $0x30] sm:$0xff]
  %v7076 = vld [vmem:[%s7068 + $0x38] sm:$0xff]
  %v7077 = vld [vmem:[%s7068 + $0x40] sm:$0xff]
  %v7078 = vld [vmem:[%s7068 + $0x48] sm:$0xff]
  %v7079 = vld [vmem:[%s7068 + $0x50] sm:$0xff]
  %v7080 = vld [vmem:[%s7068 + $0x58] sm:$0xff]
  %v7081 = vld [vmem:[%s7068 + $0x60] sm:$0xff]
  %v7082 = vld [vmem:[%s7068 + $0x68] sm:$0xff]
  %v7083 = vld [vmem:[%s7068 + $0x70] sm:$0xff]
  %v7084 = vld [vmem:[%s7068 + $0x78] sm:$0xff]
  %v7085 = vld [vmem:[%s7068 + $0x80] sm:$0xff]
  %v7086 = vld [vmem:[%s7068 + $0x88] sm:$0xff]
  %v7087 = vmul.f32 %v6188, %v7069
  %v7088 = vmul.f32 %v6189, %v7070
  %v7089 = vmul.f32 %v6190, %v7071
  %v7090 = vmul.f32 %v6191, %v7072
  %v7091 = vmul.f32 %v6192, %v7073
  %v7092 = vmul.f32 %v6193, %v7074
  %v7093 = vmul.f32 %v6194, %v7075
  %v7094 = vmul.f32 %v6195, %v7076
  %v7095 = vmul.f32 %v6196, %v7077
  %v7096 = vmul.f32 %v6197, %v7078
  %v7097 = vmul.f32 %v6198, %v7079
  %v7098 = vmul.f32 %v6199, %v7080
  %v7099 = vmul.f32 %v6200, %v7081
  %v7100 = vmul.f32 %v6201, %v7082
  %v7101 = vmul.f32 %v6202, %v7083
  %v7102 = vmul.f32 %v6203, %v7084
  %v7103 = vmul.f32 %v6204, %v7085
  %v7104 = vmul.f32 %v6205, %v7086
  %v7105 = vmul.f32 %v6206, %v7069
  %v7106 = vmul.f32 %v6207, %v7070
  %v7107 = vmul.f32 %v6208, %v7071
  %v7108 = vmul.f32 %v6209, %v7072
  %v7109 = vmul.f32 %v6210, %v7073
  %v7110 = vmul.f32 %v6211, %v7074
  %v7111 = vmul.f32 %v6212, %v7075
  %v7112 = vmul.f32 %v6213, %v7076
  %v7113 = vmul.f32 %v6214, %v7077
  %v7114 = vmul.f32 %v6215, %v7078
  %v7115 = vmul.f32 %v6216, %v7079
  %v7116 = vmul.f32 %v6217, %v7080
  %v7117 = vmul.f32 %v6218, %v7081
  %v7118 = vmul.f32 %v6219, %v7082
  %v7119 = vmul.f32 %v6220, %v7083
  %v7120 = vmul.f32 %v6221, %v7084
  %v7121 = vmul.f32 %v6222, %v7085
  %v7122 = vmul.f32 %v6223, %v7086
  %v7123 = vmul.f32 %v6224, %v7069
  %v7124 = vmul.f32 %v6225, %v7070
  %v7125 = vmul.f32 %v6226, %v7071
  %v7126 = vmul.f32 %v6227, %v7072
  %v7127 = vmul.f32 %v6228, %v7073
  %v7128 = vmul.f32 %v6229, %v7074
  %v7129 = vmul.f32 %v6230, %v7075
  %v7130 = vmul.f32 %v6231, %v7076
  %v7131 = vmul.f32 %v6232, %v7077
  %v7132 = vmul.f32 %v6233, %v7078
  %v7133 = vmul.f32 %v6234, %v7079
  %v7134 = vmul.f32 %v6235, %v7080
  %v7135 = vmul.f32 %v6236, %v7081
  %v7136 = vmul.f32 %v6237, %v7082
  %v7137 = vmul.f32 %v6238, %v7083
  %v7138 = vmul.f32 %v6239, %v7084
  %v7139 = vmul.f32 %v6240, %v7085
  %v7140 = vmul.f32 %v6241, %v7086
  %v7141 = vmul.f32 %v6242, %v7069
  %v7142 = vmul.f32 %v6243, %v7070
  %v7143 = vmul.f32 %v6244, %v7071
  %v7144 = vmul.f32 %v6245, %v7072
  %v7145 = vmul.f32 %v6246, %v7073
  %v7146 = vmul.f32 %v6247, %v7074
  %v7147 = vmul.f32 %v6248, %v7075
  %v7148 = vmul.f32 %v6249, %v7076
  %v7149 = vmul.f32 %v6250, %v7077
  %v7150 = vmul.f32 %v6251, %v7078
  %v7151 = vmul.f32 %v6252, %v7079
  %v7152 = vmul.f32 %v6253, %v7080
  %v7153 = vmul.f32 %v6254, %v7081
  %v7154 = vmul.f32 %v6255, %v7082
  %v7155 = vmul.f32 %v6256, %v7083
  %v7156 = vmul.f32 %v6257, %v7084
  %v7157 = vmul.f32 %v6258, %v7085
  %v7158 = vmul.f32 %v6259, %v7086
  %v7159 = vmul.f32 %v6260, %v7069
  %v7160 = vmul.f32 %v6261, %v7070
  %v7161 = vmul.f32 %v6262, %v7071
  %v7162 = vmul.f32 %v6263, %v7072
  %v7163 = vmul.f32 %v6264, %v7073
  %v7164 = vmul.f32 %v6265, %v7074
  %v7165 = vmul.f32 %v6266, %v7075
  %v7166 = vmul.f32 %v6267, %v7076
  %v7167 = vmul.f32 %v6268, %v7077
  %v7168 = vmul.f32 %v6269, %v7078
  %v7169 = vmul.f32 %v6270, %v7079
  %v7170 = vmul.f32 %v6271, %v7080
  %v7171 = vmul.f32 %v6272, %v7081
  %v7172 = vmul.f32 %v6273, %v7082
  %v7173 = vmul.f32 %v6274, %v7083
  %v7174 = vmul.f32 %v6275, %v7084
  %v7175 = vmul.f32 %v6276, %v7085
  %v7176 = vmul.f32 %v6277, %v7086
  %v7177 = vmul.f32 %v6278, %v7069
  %v7178 = vmul.f32 %v6279, %v7070
  %v7179 = vmul.f32 %v6280, %v7071
  %v7180 = vmul.f32 %v6281, %v7072
  %v7181 = vmul.f32 %v6282, %v7073
  %v7182 = vmul.f32 %v6283, %v7074
  %v7183 = vmul.f32 %v6284, %v7075
  %v7184 = vmul.f32 %v6285, %v7076
  %v7185 = vmul.f32 %v6286, %v7077
  %v7186 = vmul.f32 %v6287, %v7078
  %v7187 = vmul.f32 %v6288, %v7079
  %v7188 = vmul.f32 %v6289, %v7080
  %v7189 = vmul.f32 %v6290, %v7081
  %v7190 = vmul.f32 %v6291, %v7082
  %v7191 = vmul.f32 %v6292, %v7083
  %v7192 = vmul.f32 %v6293, %v7084
  %v7193 = vmul.f32 %v6294, %v7085
  %v7194 = vmul.f32 %v6295, %v7086
  %v7195 = vmul.f32 %v6296, %v7069
  %v7196 = vmul.f32 %v6297, %v7070
  %v7197 = vmul.f32 %v6298, %v7071
  %v7198 = vmul.f32 %v6299, %v7072
  %v7199 = vmul.f32 %v6300, %v7073
  %v7200 = vmul.f32 %v6301, %v7074
  %v7201 = vmul.f32 %v6302, %v7075
  %v7202 = vmul.f32 %v6303, %v7076
  %v7203 = vmul.f32 %v6304, %v7077
  %v7204 = vmul.f32 %v6305, %v7078
  %v7205 = vmul.f32 %v6306, %v7079
  %v7206 = vmul.f32 %v6307, %v7080
  %v7207 = vmul.f32 %v6308, %v7081
  %v7208 = vmul.f32 %v6309, %v7082
  %v7209 = vmul.f32 %v6310, %v7083
  %v7210 = vmul.f32 %v6311, %v7084
  %v7211 = vmul.f32 %v6312, %v7085
  %v7212 = vmul.f32 %v6313, %v7086
  %v7213 = vmul.f32 %v6314, %v7069
  %v7214 = vmul.f32 %v6315, %v7070
  %v7215 = vmul.f32 %v6316, %v7071
  %v7216 = vmul.f32 %v6317, %v7072
  %v7217 = vmul.f32 %v6318, %v7073
  %v7218 = vmul.f32 %v6319, %v7074
  %v7219 = vmul.f32 %v6320, %v7075
  %v7220 = vmul.f32 %v6321, %v7076
  %v7221 = vmul.f32 %v6322, %v7077
  %v7222 = vmul.f32 %v6323, %v7078
  %v7223 = vmul.f32 %v6324, %v7079
  %v7224 = vmul.f32 %v6325, %v7080
  %v7225 = vmul.f32 %v6326, %v7081
  %v7226 = vmul.f32 %v6327, %v7082
  %v7227 = vmul.f32 %v6328, %v7083
  %v7228 = vmul.f32 %v6329, %v7084
  %v7229 = vmul.f32 %v6330, %v7085
  %v7230 = vmul.f32 %v6331, %v7086
  %v7231 = vadd.f32 %v7087, %v7088
  %v7232 = vadd.f32 %v7231, %v7089
  %v7233 = vadd.f32 %v7232, %v7090
  %v7234 = vadd.f32 %v7233, %v7091
  %v7235 = vadd.f32 %v7234, %v7092
  %v7236 = vadd.f32 %v7235, %v7093
  %v7237 = vadd.f32 %v7236, %v7094
  %v7238 = vadd.f32 %v7237, %v7095
  %v7239 = vadd.f32 %v7238, %v7096
  %v7240 = vadd.f32 %v7239, %v7097
  %v7241 = vadd.f32 %v7240, %v7098
  %v7242 = vadd.f32 %v7241, %v7099
  %v7243 = vadd.f32 %v7242, %v7100
  %v7244 = vadd.f32 %v7243, %v7101
  %v7245 = vadd.f32 %v7244, %v7102
  %v7246 = vadd.f32 %v7245, %v7103
  %v7247 = vadd.f32 %v7246, %v7104
  %v7248 = vrot.slane %v7247, 4
  %v7249 = vadd.f32 %v7247, %v7248
  %v7250 = vrot.slane %v7249, 2
  %v7251 = vadd.f32 %v7249, %v7250
  %v7252 = vrot.slane %v7251, 1
  %v7253 = vadd.f32 %v7251, %v7252
  %v7254 = vadd.f32 %v7105, %v7106
  %v7255 = vadd.f32 %v7254, %v7107
  %v7256 = vadd.f32 %v7255, %v7108
  %v7257 = vadd.f32 %v7256, %v7109
  %v7258 = vadd.f32 %v7257, %v7110
  %v7259 = vadd.f32 %v7258, %v7111
  %v7260 = vadd.f32 %v7259, %v7112
  %v7261 = vadd.f32 %v7260, %v7113
  %v7262 = vadd.f32 %v7261, %v7114
  %v7263 = vadd.f32 %v7262, %v7115
  %v7264 = vadd.f32 %v7263, %v7116
  %v7265 = vadd.f32 %v7264, %v7117
  %v7266 = vadd.f32 %v7265, %v7118
  %v7267 = vadd.f32 %v7266, %v7119
  %v7268 = vadd.f32 %v7267, %v7120
  %v7269 = vadd.f32 %v7268, %v7121
  %v7270 = vadd.f32 %v7269, %v7122
  %v7271 = vrot.slane %v7270, 4
  %v7272 = vadd.f32 %v7270, %v7271
  %v7273 = vrot.slane %v7272, 2
  %v7274 = vadd.f32 %v7272, %v7273
  %v7275 = vrot.slane %v7274, 1
  %v7276 = vadd.f32 %v7274, %v7275
  %v7277 = vadd.f32 %v7123, %v7124
  %v7278 = vadd.f32 %v7277, %v7125
  %v7279 = vadd.f32 %v7278, %v7126
  %v7280 = vadd.f32 %v7279, %v7127
  %v7281 = vadd.f32 %v7280, %v7128
  %v7282 = vadd.f32 %v7281, %v7129
  %v7283 = vadd.f32 %v7282, %v7130
  %v7284 = vadd.f32 %v7283, %v7131
  %v7285 = vadd.f32 %v7284, %v7132
  %v7286 = vadd.f32 %v7285, %v7133
  %v7287 = vadd.f32 %v7286, %v7134
  %v7288 = vadd.f32 %v7287, %v7135
  %v7289 = vadd.f32 %v7288, %v7136
  %v7290 = vadd.f32 %v7289, %v7137
  %v7291 = vadd.f32 %v7290, %v7138
  %v7292 = vadd.f32 %v7291, %v7139
  %v7293 = vadd.f32 %v7292, %v7140
  %v7294 = vrot.slane %v7293, 4
  %v7295 = vadd.f32 %v7293, %v7294
  %v7296 = vrot.slane %v7295, 2
  %v7297 = vadd.f32 %v7295, %v7296
  %v7298 = vrot.slane %v7297, 1
  %v7299 = vadd.f32 %v7297, %v7298
  %v7300 = vadd.f32 %v7141, %v7142
  %v7301 = vadd.f32 %v7300, %v7143
  %v7302 = vadd.f32 %v7301, %v7144
  %v7303 = vadd.f32 %v7302, %v7145
  %v7304 = vadd.f32 %v7303, %v7146
  %v7305 = vadd.f32 %v7304, %v7147
  %v7306 = vadd.f32 %v7305, %v7148
  %v7307 = vadd.f32 %v7306, %v7149
  %v7308 = vadd.f32 %v7307, %v7150
  %v7309 = vadd.f32 %v7308, %v7151
  %v7310 = vadd.f32 %v7309, %v7152
  %v7311 = vadd.f32 %v7310, %v7153
  %v7312 = vadd.f32 %v7311, %v7154
  %v7313 = vadd.f32 %v7312, %v7155
  %v7314 = vadd.f32 %v7313, %v7156
  %v7315 = vadd.f32 %v7314, %v7157
  %v7316 = vadd.f32 %v7315, %v7158
  %v7317 = vrot.slane %v7316, 4
  %v7318 = vadd.f32 %v7316, %v7317
  %v7319 = vrot.slane %v7318, 2
  %v7320 = vadd.f32 %v7318, %v7319
  %v7321 = vrot.slane %v7320, 1
  %v7322 = vadd.f32 %v7320, %v7321
  %v7323 = vadd.f32 %v7159, %v7160
  %v7324 = vadd.f32 %v7323, %v7161
  %v7325 = vadd.f32 %v7324, %v7162
  %v7326 = vadd.f32 %v7325, %v7163
  %v7327 = vadd.f32 %v7326, %v7164
  %v7328 = vadd.f32 %v7327, %v7165
  %v7329 = vadd.f32 %v7328, %v7166
  %v7330 = vadd.f32 %v7329, %v7167
  %v7331 = vadd.f32 %v7330, %v7168
  %v7332 = vadd.f32 %v7331, %v7169
  %v7333 = vadd.f32 %v7332, %v7170
  %v7334 = vadd.f32 %v7333, %v7171
  %v7335 = vadd.f32 %v7334, %v7172
  %v7336 = vadd.f32 %v7335, %v7173
  %v7337 = vadd.f32 %v7336, %v7174
  %v7338 = vadd.f32 %v7337, %v7175
  %v7339 = vadd.f32 %v7338, %v7176
  %v7340 = vrot.slane %v7339, 4
  %v7341 = vadd.f32 %v7339, %v7340
  %v7342 = vrot.slane %v7341, 2
  %v7343 = vadd.f32 %v7341, %v7342
  %v7344 = vrot.slane %v7343, 1
  %v7345 = vadd.f32 %v7343, %v7344
  %v7346 = vadd.f32 %v7177, %v7178
  %v7347 = vadd.f32 %v7346, %v7179
  %v7348 = vadd.f32 %v7347, %v7180
  %v7349 = vadd.f32 %v7348, %v7181
  %v7350 = vadd.f32 %v7349, %v7182
  %v7351 = vadd.f32 %v7350, %v7183
  %v7352 = vadd.f32 %v7351, %v7184
  %v7353 = vadd.f32 %v7352, %v7185
  %v7354 = vadd.f32 %v7353, %v7186
  %v7355 = vadd.f32 %v7354, %v7187
  %v7356 = vadd.f32 %v7355, %v7188
  %v7357 = vadd.f32 %v7356, %v7189
  %v7358 = vadd.f32 %v7357, %v7190
  %v7359 = vadd.f32 %v7358, %v7191
  %v7360 = vadd.f32 %v7359, %v7192
  %v7361 = vadd.f32 %v7360, %v7193
  %v7362 = vadd.f32 %v7361, %v7194
  %v7363 = vrot.slane %v7362, 4
  %v7364 = vadd.f32 %v7362, %v7363
  %v7365 = vrot.slane %v7364, 2
  %v7366 = vadd.f32 %v7364, %v7365
  %v7367 = vrot.slane %v7366, 1
  %v7368 = vadd.f32 %v7366, %v7367
  %v7369 = vadd.f32 %v7195, %v7196
  %v7370 = vadd.f32 %v7369, %v7197
  %v7371 = vadd.f32 %v7370, %v7198
  %v7372 = vadd.f32 %v7371, %v7199
  %v7373 = vadd.f32 %v7372, %v7200
  %v7374 = vadd.f32 %v7373, %v7201
  %v7375 = vadd.f32 %v7374, %v7202
  %v7376 = vadd.f32 %v7375, %v7203
  %v7377 = vadd.f32 %v7376, %v7204
  %v7378 = vadd.f32 %v7377, %v7205
  %v7379 = vadd.f32 %v7378, %v7206
  %v7380 = vadd.f32 %v7379, %v7207
  %v7381 = vadd.f32 %v7380, %v7208
  %v7382 = vadd.f32 %v7381, %v7209
  %v7383 = vadd.f32 %v7382, %v7210
  %v7384 = vadd.f32 %v7383, %v7211
  %v7385 = vadd.f32 %v7384, %v7212
  %v7386 = vrot.slane %v7385, 4
  %v7387 = vadd.f32 %v7385, %v7386
  %v7388 = vrot.slane %v7387, 2
  %v7389 = vadd.f32 %v7387, %v7388
  %v7390 = vrot.slane %v7389, 1
  %v7391 = vadd.f32 %v7389, %v7390
  %v7392 = vadd.f32 %v7213, %v7214
  %v7393 = vadd.f32 %v7392, %v7215
  %v7394 = vadd.f32 %v7393, %v7216
  %v7395 = vadd.f32 %v7394, %v7217
  %v7396 = vadd.f32 %v7395, %v7218
  %v7397 = vadd.f32 %v7396, %v7219
  %v7398 = vadd.f32 %v7397, %v7220
  %v7399 = vadd.f32 %v7398, %v7221
  %v7400 = vadd.f32 %v7399, %v7222
  %v7401 = vadd.f32 %v7400, %v7223
  %v7402 = vadd.f32 %v7401, %v7224
  %v7403 = vadd.f32 %v7402, %v7225
  %v7404 = vadd.f32 %v7403, %v7226
  %v7405 = vadd.f32 %v7404, %v7227
  %v7406 = vadd.f32 %v7405, %v7228
  %v7407 = vadd.f32 %v7406, %v7229
  %v7408 = vadd.f32 %v7407, %v7230
  %v7409 = vrot.slane %v7408, 4
  %v7410 = vadd.f32 %v7408, %v7409
  %v7411 = vrot.slane %v7410, 2
  %v7412 = vadd.f32 %v7410, %v7411
  %v7413 = vrot.slane %v7412, 1
  %v7414 = vadd.f32 %v7412, %v7413
  %v7423 = vsel %vm6686, %v7276, %v7253
  %v7424 = vsel %vm6688, %v7299, %v7423
  %v7425 = vsel %vm6690, %v7322, %v7424
  %v7426 = vsel %vm6692, %v7345, %v7425
  %v7427 = vsel %vm6694, %v7368, %v7426
  %v7428 = vsel %vm6696, %v7391, %v7427
  %v7429 = vsel %vm6698, %v7414, %v7428
  %7431 = vadd.xlane.f32.xlu0 %v7429
  %v7432 = vpop.xlane.xlu0 %7431
  %s7433 = scalar_lea.vmem %s5, 432
  %v7434 = vld [vmem:[%s7433] sm:$0xff]
  %v7435 = vld [vmem:[%s7433 + $0x8] sm:$0xff]
  %v7436 = vld [vmem:[%s7433 + $0x10] sm:$0xff]
  %v7437 = vld [vmem:[%s7433 + $0x18] sm:$0xff]
  %v7438 = vld [vmem:[%s7433 + $0x20] sm:$0xff]
  %v7439 = vld [vmem:[%s7433 + $0x28] sm:$0xff]
  %v7440 = vld [vmem:[%s7433 + $0x30] sm:$0xff]
  %v7441 = vld [vmem:[%s7433 + $0x38] sm:$0xff]
  %v7442 = vld [vmem:[%s7433 + $0x40] sm:$0xff]
  %v7443 = vld [vmem:[%s7433 + $0x48] sm:$0xff]
  %v7444 = vld [vmem:[%s7433 + $0x50] sm:$0xff]
  %v7445 = vld [vmem:[%s7433 + $0x58] sm:$0xff]
  %v7446 = vld [vmem:[%s7433 + $0x60] sm:$0xff]
  %v7447 = vld [vmem:[%s7433 + $0x68] sm:$0xff]
  %v7448 = vld [vmem:[%s7433 + $0x70] sm:$0xff]
  %v7449 = vld [vmem:[%s7433 + $0x78] sm:$0xff]
  %v7450 = vld [vmem:[%s7433 + $0x80] sm:$0xff]
  %v7451 = vld [vmem:[%s7433 + $0x88] sm:$0xff]
  %v7452 = vmul.f32 %v6188, %v7434
  %v7453 = vmul.f32 %v6189, %v7435
  %v7454 = vmul.f32 %v6190, %v7436
  %v7455 = vmul.f32 %v6191, %v7437
  %v7456 = vmul.f32 %v6192, %v7438
  %v7457 = vmul.f32 %v6193, %v7439
  %v7458 = vmul.f32 %v6194, %v7440
  %v7459 = vmul.f32 %v6195, %v7441
  %v7460 = vmul.f32 %v6196, %v7442
  %v7461 = vmul.f32 %v6197, %v7443
  %v7462 = vmul.f32 %v6198, %v7444
  %v7463 = vmul.f32 %v6199, %v7445
  %v7464 = vmul.f32 %v6200, %v7446
  %v7465 = vmul.f32 %v6201, %v7447
  %v7466 = vmul.f32 %v6202, %v7448
  %v7467 = vmul.f32 %v6203, %v7449
  %v7468 = vmul.f32 %v6204, %v7450
  %v7469 = vmul.f32 %v6205, %v7451
  %v7470 = vmul.f32 %v6206, %v7434
  %v7471 = vmul.f32 %v6207, %v7435
  %v7472 = vmul.f32 %v6208, %v7436
  %v7473 = vmul.f32 %v6209, %v7437
  %v7474 = vmul.f32 %v6210, %v7438
  %v7475 = vmul.f32 %v6211, %v7439
  %v7476 = vmul.f32 %v6212, %v7440
  %v7477 = vmul.f32 %v6213, %v7441
  %v7478 = vmul.f32 %v6214, %v7442
  %v7479 = vmul.f32 %v6215, %v7443
  %v7480 = vmul.f32 %v6216, %v7444
  %v7481 = vmul.f32 %v6217, %v7445
  %v7482 = vmul.f32 %v6218, %v7446
  %v7483 = vmul.f32 %v6219, %v7447
  %v7484 = vmul.f32 %v6220, %v7448
  %v7485 = vmul.f32 %v6221, %v7449
  %v7486 = vmul.f32 %v6222, %v7450
  %v7487 = vmul.f32 %v6223, %v7451
  %v7488 = vmul.f32 %v6224, %v7434
  %v7489 = vmul.f32 %v6225, %v7435
  %v7490 = vmul.f32 %v6226, %v7436
  %v7491 = vmul.f32 %v6227, %v7437
  %v7492 = vmul.f32 %v6228, %v7438
  %v7493 = vmul.f32 %v6229, %v7439
  %v7494 = vmul.f32 %v6230, %v7440
  %v7495 = vmul.f32 %v6231, %v7441
  %v7496 = vmul.f32 %v6232, %v7442
  %v7497 = vmul.f32 %v6233, %v7443
  %v7498 = vmul.f32 %v6234, %v7444
  %v7499 = vmul.f32 %v6235, %v7445
  %v7500 = vmul.f32 %v6236, %v7446
  %v7501 = vmul.f32 %v6237, %v7447
  %v7502 = vmul.f32 %v6238, %v7448
  %v7503 = vmul.f32 %v6239, %v7449
  %v7504 = vmul.f32 %v6240, %v7450
  %v7505 = vmul.f32 %v6241, %v7451
  %v7506 = vmul.f32 %v6242, %v7434
  %v7507 = vmul.f32 %v6243, %v7435
  %v7508 = vmul.f32 %v6244, %v7436
  %v7509 = vmul.f32 %v6245, %v7437
  %v7510 = vmul.f32 %v6246, %v7438
  %v7511 = vmul.f32 %v6247, %v7439
  %v7512 = vmul.f32 %v6248, %v7440
  %v7513 = vmul.f32 %v6249, %v7441
  %v7514 = vmul.f32 %v6250, %v7442
  %v7515 = vmul.f32 %v6251, %v7443
  %v7516 = vmul.f32 %v6252, %v7444
  %v7517 = vmul.f32 %v6253, %v7445
  %v7518 = vmul.f32 %v6254, %v7446
  %v7519 = vmul.f32 %v6255, %v7447
  %v7520 = vmul.f32 %v6256, %v7448
  %v7521 = vmul.f32 %v6257, %v7449
  %v7522 = vmul.f32 %v6258, %v7450
  %v7523 = vmul.f32 %v6259, %v7451
  %v7524 = vmul.f32 %v6260, %v7434
  %v7525 = vmul.f32 %v6261, %v7435
  %v7526 = vmul.f32 %v6262, %v7436
  %v7527 = vmul.f32 %v6263, %v7437
  %v7528 = vmul.f32 %v6264, %v7438
  %v7529 = vmul.f32 %v6265, %v7439
  %v7530 = vmul.f32 %v6266, %v7440
  %v7531 = vmul.f32 %v6267, %v7441
  %v7532 = vmul.f32 %v6268, %v7442
  %v7533 = vmul.f32 %v6269, %v7443
  %v7534 = vmul.f32 %v6270, %v7444
  %v7535 = vmul.f32 %v6271, %v7445
  %v7536 = vmul.f32 %v6272, %v7446
  %v7537 = vmul.f32 %v6273, %v7447
  %v7538 = vmul.f32 %v6274, %v7448
  %v7539 = vmul.f32 %v6275, %v7449
  %v7540 = vmul.f32 %v6276, %v7450
  %v7541 = vmul.f32 %v6277, %v7451
  %v7542 = vmul.f32 %v6278, %v7434
  %v7543 = vmul.f32 %v6279, %v7435
  %v7544 = vmul.f32 %v6280, %v7436
  %v7545 = vmul.f32 %v6281, %v7437
  %v7546 = vmul.f32 %v6282, %v7438
  %v7547 = vmul.f32 %v6283, %v7439
  %v7548 = vmul.f32 %v6284, %v7440
  %v7549 = vmul.f32 %v6285, %v7441
  %v7550 = vmul.f32 %v6286, %v7442
  %v7551 = vmul.f32 %v6287, %v7443
  %v7552 = vmul.f32 %v6288, %v7444
  %v7553 = vmul.f32 %v6289, %v7445
  %v7554 = vmul.f32 %v6290, %v7446
  %v7555 = vmul.f32 %v6291, %v7447
  %v7556 = vmul.f32 %v6292, %v7448
  %v7557 = vmul.f32 %v6293, %v7449
  %v7558 = vmul.f32 %v6294, %v7450
  %v7559 = vmul.f32 %v6295, %v7451
  %v7560 = vmul.f32 %v6296, %v7434
  %v7561 = vmul.f32 %v6297, %v7435
  %v7562 = vmul.f32 %v6298, %v7436
  %v7563 = vmul.f32 %v6299, %v7437
  %v7564 = vmul.f32 %v6300, %v7438
  %v7565 = vmul.f32 %v6301, %v7439
  %v7566 = vmul.f32 %v6302, %v7440
  %v7567 = vmul.f32 %v6303, %v7441
  %v7568 = vmul.f32 %v6304, %v7442
  %v7569 = vmul.f32 %v6305, %v7443
  %v7570 = vmul.f32 %v6306, %v7444
  %v7571 = vmul.f32 %v6307, %v7445
  %v7572 = vmul.f32 %v6308, %v7446
  %v7573 = vmul.f32 %v6309, %v7447
  %v7574 = vmul.f32 %v6310, %v7448
  %v7575 = vmul.f32 %v6311, %v7449
  %v7576 = vmul.f32 %v6312, %v7450
  %v7577 = vmul.f32 %v6313, %v7451
  %v7578 = vmul.f32 %v6314, %v7434
  %v7579 = vmul.f32 %v6315, %v7435
  %v7580 = vmul.f32 %v6316, %v7436
  %v7581 = vmul.f32 %v6317, %v7437
  %v7582 = vmul.f32 %v6318, %v7438
  %v7583 = vmul.f32 %v6319, %v7439
  %v7584 = vmul.f32 %v6320, %v7440
  %v7585 = vmul.f32 %v6321, %v7441
  %v7586 = vmul.f32 %v6322, %v7442
  %v7587 = vmul.f32 %v6323, %v7443
  %v7588 = vmul.f32 %v6324, %v7444
  %v7589 = vmul.f32 %v6325, %v7445
  %v7590 = vmul.f32 %v6326, %v7446
  %v7591 = vmul.f32 %v6327, %v7447
  %v7592 = vmul.f32 %v6328, %v7448
  %v7593 = vmul.f32 %v6329, %v7449
  %v7594 = vmul.f32 %v6330, %v7450
  %v7595 = vmul.f32 %v6331, %v7451
  %v7596 = vadd.f32 %v7452, %v7453
  %v7597 = vadd.f32 %v7596, %v7454
  %v7598 = vadd.f32 %v7597, %v7455
  %v7599 = vadd.f32 %v7598, %v7456
  %v7600 = vadd.f32 %v7599, %v7457
  %v7601 = vadd.f32 %v7600, %v7458
  %v7602 = vadd.f32 %v7601, %v7459
  %v7603 = vadd.f32 %v7602, %v7460
  %v7604 = vadd.f32 %v7603, %v7461
  %v7605 = vadd.f32 %v7604, %v7462
  %v7606 = vadd.f32 %v7605, %v7463
  %v7607 = vadd.f32 %v7606, %v7464
  %v7608 = vadd.f32 %v7607, %v7465
  %v7609 = vadd.f32 %v7608, %v7466
  %v7610 = vadd.f32 %v7609, %v7467
  %v7611 = vadd.f32 %v7610, %v7468
  %v7612 = vadd.f32 %v7611, %v7469
  %v7613 = vrot.slane %v7612, 4
  %v7614 = vadd.f32 %v7612, %v7613
  %v7615 = vrot.slane %v7614, 2
  %v7616 = vadd.f32 %v7614, %v7615
  %v7617 = vrot.slane %v7616, 1
  %v7618 = vadd.f32 %v7616, %v7617
  %v7619 = vadd.f32 %v7470, %v7471
  %v7620 = vadd.f32 %v7619, %v7472
  %v7621 = vadd.f32 %v7620, %v7473
  %v7622 = vadd.f32 %v7621, %v7474
  %v7623 = vadd.f32 %v7622, %v7475
  %v7624 = vadd.f32 %v7623, %v7476
  %v7625 = vadd.f32 %v7624, %v7477
  %v7626 = vadd.f32 %v7625, %v7478
  %v7627 = vadd.f32 %v7626, %v7479
  %v7628 = vadd.f32 %v7627, %v7480
  %v7629 = vadd.f32 %v7628, %v7481
  %v7630 = vadd.f32 %v7629, %v7482
  %v7631 = vadd.f32 %v7630, %v7483
  %v7632 = vadd.f32 %v7631, %v7484
  %v7633 = vadd.f32 %v7632, %v7485
  %v7634 = vadd.f32 %v7633, %v7486
  %v7635 = vadd.f32 %v7634, %v7487
  %v7636 = vrot.slane %v7635, 4
  %v7637 = vadd.f32 %v7635, %v7636
  %v7638 = vrot.slane %v7637, 2
  %v7639 = vadd.f32 %v7637, %v7638
  %v7640 = vrot.slane %v7639, 1
  %v7641 = vadd.f32 %v7639, %v7640
  %v7642 = vadd.f32 %v7488, %v7489
  %v7643 = vadd.f32 %v7642, %v7490
  %v7644 = vadd.f32 %v7643, %v7491
  %v7645 = vadd.f32 %v7644, %v7492
  %v7646 = vadd.f32 %v7645, %v7493
  %v7647 = vadd.f32 %v7646, %v7494
  %v7648 = vadd.f32 %v7647, %v7495
  %v7649 = vadd.f32 %v7648, %v7496
  %v7650 = vadd.f32 %v7649, %v7497
  %v7651 = vadd.f32 %v7650, %v7498
  %v7652 = vadd.f32 %v7651, %v7499
  %v7653 = vadd.f32 %v7652, %v7500
  %v7654 = vadd.f32 %v7653, %v7501
  %v7655 = vadd.f32 %v7654, %v7502
  %v7656 = vadd.f32 %v7655, %v7503
  %v7657 = vadd.f32 %v7656, %v7504
  %v7658 = vadd.f32 %v7657, %v7505
  %v7659 = vrot.slane %v7658, 4
  %v7660 = vadd.f32 %v7658, %v7659
  %v7661 = vrot.slane %v7660, 2
  %v7662 = vadd.f32 %v7660, %v7661
  %v7663 = vrot.slane %v7662, 1
  %v7664 = vadd.f32 %v7662, %v7663
  %v7665 = vadd.f32 %v7506, %v7507
  %v7666 = vadd.f32 %v7665, %v7508
  %v7667 = vadd.f32 %v7666, %v7509
  %v7668 = vadd.f32 %v7667, %v7510
  %v7669 = vadd.f32 %v7668, %v7511
  %v7670 = vadd.f32 %v7669, %v7512
  %v7671 = vadd.f32 %v7670, %v7513
  %v7672 = vadd.f32 %v7671, %v7514
  %v7673 = vadd.f32 %v7672, %v7515
  %v7674 = vadd.f32 %v7673, %v7516
  %v7675 = vadd.f32 %v7674, %v7517
  %v7676 = vadd.f32 %v7675, %v7518
  %v7677 = vadd.f32 %v7676, %v7519
  %v7678 = vadd.f32 %v7677, %v7520
  %v7679 = vadd.f32 %v7678, %v7521
  %v7680 = vadd.f32 %v7679, %v7522
  %v7681 = vadd.f32 %v7680, %v7523
  %v7682 = vrot.slane %v7681, 4
  %v7683 = vadd.f32 %v7681, %v7682
  %v7684 = vrot.slane %v7683, 2
  %v7685 = vadd.f32 %v7683, %v7684
  %v7686 = vrot.slane %v7685, 1
  %v7687 = vadd.f32 %v7685, %v7686
  %v7688 = vadd.f32 %v7524, %v7525
  %v7689 = vadd.f32 %v7688, %v7526
  %v7690 = vadd.f32 %v7689, %v7527
  %v7691 = vadd.f32 %v7690, %v7528
  %v7692 = vadd.f32 %v7691, %v7529
  %v7693 = vadd.f32 %v7692, %v7530
  %v7694 = vadd.f32 %v7693, %v7531
  %v7695 = vadd.f32 %v7694, %v7532
  %v7696 = vadd.f32 %v7695, %v7533
  %v7697 = vadd.f32 %v7696, %v7534
  %v7698 = vadd.f32 %v7697, %v7535
  %v7699 = vadd.f32 %v7698, %v7536
  %v7700 = vadd.f32 %v7699, %v7537
  %v7701 = vadd.f32 %v7700, %v7538
  %v7702 = vadd.f32 %v7701, %v7539
  %v7703 = vadd.f32 %v7702, %v7540
  %v7704 = vadd.f32 %v7703, %v7541
  %v7705 = vrot.slane %v7704, 4
  %v7706 = vadd.f32 %v7704, %v7705
  %v7707 = vrot.slane %v7706, 2
  %v7708 = vadd.f32 %v7706, %v7707
  %v7709 = vrot.slane %v7708, 1
  %v7710 = vadd.f32 %v7708, %v7709
  %v7711 = vadd.f32 %v7542, %v7543
  %v7712 = vadd.f32 %v7711, %v7544
  %v7713 = vadd.f32 %v7712, %v7545
  %v7714 = vadd.f32 %v7713, %v7546
  %v7715 = vadd.f32 %v7714, %v7547
  %v7716 = vadd.f32 %v7715, %v7548
  %v7717 = vadd.f32 %v7716, %v7549
  %v7718 = vadd.f32 %v7717, %v7550
  %v7719 = vadd.f32 %v7718, %v7551
  %v7720 = vadd.f32 %v7719, %v7552
  %v7721 = vadd.f32 %v7720, %v7553
  %v7722 = vadd.f32 %v7721, %v7554
  %v7723 = vadd.f32 %v7722, %v7555
  %v7724 = vadd.f32 %v7723, %v7556
  %v7725 = vadd.f32 %v7724, %v7557
  %v7726 = vadd.f32 %v7725, %v7558
  %v7727 = vadd.f32 %v7726, %v7559
  %v7728 = vrot.slane %v7727, 4
  %v7729 = vadd.f32 %v7727, %v7728
  %v7730 = vrot.slane %v7729, 2
  %v7731 = vadd.f32 %v7729, %v7730
  %v7732 = vrot.slane %v7731, 1
  %v7733 = vadd.f32 %v7731, %v7732
  %v7734 = vadd.f32 %v7560, %v7561
  %v7735 = vadd.f32 %v7734, %v7562
  %v7736 = vadd.f32 %v7735, %v7563
  %v7737 = vadd.f32 %v7736, %v7564
  %v7738 = vadd.f32 %v7737, %v7565
  %v7739 = vadd.f32 %v7738, %v7566
  %v7740 = vadd.f32 %v7739, %v7567
  %v7741 = vadd.f32 %v7740, %v7568
  %v7742 = vadd.f32 %v7741, %v7569
  %v7743 = vadd.f32 %v7742, %v7570
  %v7744 = vadd.f32 %v7743, %v7571
  %v7745 = vadd.f32 %v7744, %v7572
  %v7746 = vadd.f32 %v7745, %v7573
  %v7747 = vadd.f32 %v7746, %v7574
  %v7748 = vadd.f32 %v7747, %v7575
  %v7749 = vadd.f32 %v7748, %v7576
  %v7750 = vadd.f32 %v7749, %v7577
  %v7751 = vrot.slane %v7750, 4
  %v7752 = vadd.f32 %v7750, %v7751
  %v7753 = vrot.slane %v7752, 2
  %v7754 = vadd.f32 %v7752, %v7753
  %v7755 = vrot.slane %v7754, 1
  %v7756 = vadd.f32 %v7754, %v7755
  %v7757 = vadd.f32 %v7578, %v7579
  %v7758 = vadd.f32 %v7757, %v7580
  %v7759 = vadd.f32 %v7758, %v7581
  %v7760 = vadd.f32 %v7759, %v7582
  %v7761 = vadd.f32 %v7760, %v7583
  %v7762 = vadd.f32 %v7761, %v7584
  %v7763 = vadd.f32 %v7762, %v7585
  %v7764 = vadd.f32 %v7763, %v7586
  %v7765 = vadd.f32 %v7764, %v7587
  %v7766 = vadd.f32 %v7765, %v7588
  %v7767 = vadd.f32 %v7766, %v7589
  %v7768 = vadd.f32 %v7767, %v7590
  %v7769 = vadd.f32 %v7768, %v7591
  %v7770 = vadd.f32 %v7769, %v7592
  %v7771 = vadd.f32 %v7770, %v7593
  %v7772 = vadd.f32 %v7771, %v7594
  %v7773 = vadd.f32 %v7772, %v7595
  %v7774 = vrot.slane %v7773, 4
  %v7775 = vadd.f32 %v7773, %v7774
  %v7776 = vrot.slane %v7775, 2
  %v7777 = vadd.f32 %v7775, %v7776
  %v7778 = vrot.slane %v7777, 1
  %v7779 = vadd.f32 %v7777, %v7778
  %v7788 = vsel %vm6686, %v7641, %v7618
  %v7789 = vsel %vm6688, %v7664, %v7788
  %v7790 = vsel %vm6690, %v7687, %v7789
  %v7791 = vsel %vm6692, %v7710, %v7790
  %v7792 = vsel %vm6694, %v7733, %v7791
  %v7793 = vsel %vm6696, %v7756, %v7792
  %v7794 = vsel %vm6698, %v7779, %v7793
  %7796 = vadd.xlane.f32.xlu0 %v7794
  %v7797 = vpop.xlane.xlu0 %7796
  %s7798 = scalar_lea.vmem %s5, 576
  %v7799 = vld [vmem:[%s7798] sm:$0xff]
  %v7800 = vld [vmem:[%s7798 + $0x8] sm:$0xff]
  %v7801 = vld [vmem:[%s7798 + $0x10] sm:$0xff]
  %v7802 = vld [vmem:[%s7798 + $0x18] sm:$0xff]
  %v7803 = vld [vmem:[%s7798 + $0x20] sm:$0xff]
  %v7804 = vld [vmem:[%s7798 + $0x28] sm:$0xff]
  %v7805 = vld [vmem:[%s7798 + $0x30] sm:$0xff]
  %v7806 = vld [vmem:[%s7798 + $0x38] sm:$0xff]
  %v7807 = vld [vmem:[%s7798 + $0x40] sm:$0xff]
  %v7808 = vld [vmem:[%s7798 + $0x48] sm:$0xff]
  %v7809 = vld [vmem:[%s7798 + $0x50] sm:$0xff]
  %v7810 = vld [vmem:[%s7798 + $0x58] sm:$0xff]
  %v7811 = vld [vmem:[%s7798 + $0x60] sm:$0xff]
  %v7812 = vld [vmem:[%s7798 + $0x68] sm:$0xff]
  %v7813 = vld [vmem:[%s7798 + $0x70] sm:$0xff]
  %v7814 = vld [vmem:[%s7798 + $0x78] sm:$0xff]
  %v7815 = vld [vmem:[%s7798 + $0x80] sm:$0xff]
  %v7816 = vld [vmem:[%s7798 + $0x88] sm:$0xff]
  %v7817 = vmul.f32 %v6188, %v7799
  %v7818 = vmul.f32 %v6189, %v7800
  %v7819 = vmul.f32 %v6190, %v7801
  %v7820 = vmul.f32 %v6191, %v7802
  %v7821 = vmul.f32 %v6192, %v7803
  %v7822 = vmul.f32 %v6193, %v7804
  %v7823 = vmul.f32 %v6194, %v7805
  %v7824 = vmul.f32 %v6195, %v7806
  %v7825 = vmul.f32 %v6196, %v7807
  %v7826 = vmul.f32 %v6197, %v7808
  %v7827 = vmul.f32 %v6198, %v7809
  %v7828 = vmul.f32 %v6199, %v7810
  %v7829 = vmul.f32 %v6200, %v7811
  %v7830 = vmul.f32 %v6201, %v7812
  %v7831 = vmul.f32 %v6202, %v7813
  %v7832 = vmul.f32 %v6203, %v7814
  %v7833 = vmul.f32 %v6204, %v7815
  %v7834 = vmul.f32 %v6205, %v7816
  %v7835 = vmul.f32 %v6206, %v7799
  %v7836 = vmul.f32 %v6207, %v7800
  %v7837 = vmul.f32 %v6208, %v7801
  %v7838 = vmul.f32 %v6209, %v7802
  %v7839 = vmul.f32 %v6210, %v7803
  %v7840 = vmul.f32 %v6211, %v7804
  %v7841 = vmul.f32 %v6212, %v7805
  %v7842 = vmul.f32 %v6213, %v7806
  %v7843 = vmul.f32 %v6214, %v7807
  %v7844 = vmul.f32 %v6215, %v7808
  %v7845 = vmul.f32 %v6216, %v7809
  %v7846 = vmul.f32 %v6217, %v7810
  %v7847 = vmul.f32 %v6218, %v7811
  %v7848 = vmul.f32 %v6219, %v7812
  %v7849 = vmul.f32 %v6220, %v7813
  %v7850 = vmul.f32 %v6221, %v7814
  %v7851 = vmul.f32 %v6222, %v7815
  %v7852 = vmul.f32 %v6223, %v7816
  %v7853 = vmul.f32 %v6224, %v7799
  %v7854 = vmul.f32 %v6225, %v7800
  %v7855 = vmul.f32 %v6226, %v7801
  %v7856 = vmul.f32 %v6227, %v7802
  %v7857 = vmul.f32 %v6228, %v7803
  %v7858 = vmul.f32 %v6229, %v7804
  %v7859 = vmul.f32 %v6230, %v7805
  %v7860 = vmul.f32 %v6231, %v7806
  %v7861 = vmul.f32 %v6232, %v7807
  %v7862 = vmul.f32 %v6233, %v7808
  %v7863 = vmul.f32 %v6234, %v7809
  %v7864 = vmul.f32 %v6235, %v7810
  %v7865 = vmul.f32 %v6236, %v7811
  %v7866 = vmul.f32 %v6237, %v7812
  %v7867 = vmul.f32 %v6238, %v7813
  %v7868 = vmul.f32 %v6239, %v7814
  %v7869 = vmul.f32 %v6240, %v7815
  %v7870 = vmul.f32 %v6241, %v7816
  %v7871 = vmul.f32 %v6242, %v7799
  %v7872 = vmul.f32 %v6243, %v7800
  %v7873 = vmul.f32 %v6244, %v7801
  %v7874 = vmul.f32 %v6245, %v7802
  %v7875 = vmul.f32 %v6246, %v7803
  %v7876 = vmul.f32 %v6247, %v7804
  %v7877 = vmul.f32 %v6248, %v7805
  %v7878 = vmul.f32 %v6249, %v7806
  %v7879 = vmul.f32 %v6250, %v7807
  %v7880 = vmul.f32 %v6251, %v7808
  %v7881 = vmul.f32 %v6252, %v7809
  %v7882 = vmul.f32 %v6253, %v7810
  %v7883 = vmul.f32 %v6254, %v7811
  %v7884 = vmul.f32 %v6255, %v7812
  %v7885 = vmul.f32 %v6256, %v7813
  %v7886 = vmul.f32 %v6257, %v7814
  %v7887 = vmul.f32 %v6258, %v7815
  %v7888 = vmul.f32 %v6259, %v7816
  %v7889 = vmul.f32 %v6260, %v7799
  %v7890 = vmul.f32 %v6261, %v7800
  %v7891 = vmul.f32 %v6262, %v7801
  %v7892 = vmul.f32 %v6263, %v7802
  %v7893 = vmul.f32 %v6264, %v7803
  %v7894 = vmul.f32 %v6265, %v7804
  %v7895 = vmul.f32 %v6266, %v7805
  %v7896 = vmul.f32 %v6267, %v7806
  %v7897 = vmul.f32 %v6268, %v7807
  %v7898 = vmul.f32 %v6269, %v7808
  %v7899 = vmul.f32 %v6270, %v7809
  %v7900 = vmul.f32 %v6271, %v7810
  %v7901 = vmul.f32 %v6272, %v7811
  %v7902 = vmul.f32 %v6273, %v7812
  %v7903 = vmul.f32 %v6274, %v7813
  %v7904 = vmul.f32 %v6275, %v7814
  %v7905 = vmul.f32 %v6276, %v7815
  %v7906 = vmul.f32 %v6277, %v7816
  %v7907 = vmul.f32 %v6278, %v7799
  %v7908 = vmul.f32 %v6279, %v7800
  %v7909 = vmul.f32 %v6280, %v7801
  %v7910 = vmul.f32 %v6281, %v7802
  %v7911 = vmul.f32 %v6282, %v7803
  %v7912 = vmul.f32 %v6283, %v7804
  %v7913 = vmul.f32 %v6284, %v7805
  %v7914 = vmul.f32 %v6285, %v7806
  %v7915 = vmul.f32 %v6286, %v7807
  %v7916 = vmul.f32 %v6287, %v7808
  %v7917 = vmul.f32 %v6288, %v7809
  %v7918 = vmul.f32 %v6289, %v7810
  %v7919 = vmul.f32 %v6290, %v7811
  %v7920 = vmul.f32 %v6291, %v7812
  %v7921 = vmul.f32 %v6292, %v7813
  %v7922 = vmul.f32 %v6293, %v7814
  %v7923 = vmul.f32 %v6294, %v7815
  %v7924 = vmul.f32 %v6295, %v7816
  %v7925 = vmul.f32 %v6296, %v7799
  %v7926 = vmul.f32 %v6297, %v7800
  %v7927 = vmul.f32 %v6298, %v7801
  %v7928 = vmul.f32 %v6299, %v7802
  %v7929 = vmul.f32 %v6300, %v7803
  %v7930 = vmul.f32 %v6301, %v7804
  %v7931 = vmul.f32 %v6302, %v7805
  %v7932 = vmul.f32 %v6303, %v7806
  %v7933 = vmul.f32 %v6304, %v7807
  %v7934 = vmul.f32 %v6305, %v7808
  %v7935 = vmul.f32 %v6306, %v7809
  %v7936 = vmul.f32 %v6307, %v7810
  %v7937 = vmul.f32 %v6308, %v7811
  %v7938 = vmul.f32 %v6309, %v7812
  %v7939 = vmul.f32 %v6310, %v7813
  %v7940 = vmul.f32 %v6311, %v7814
  %v7941 = vmul.f32 %v6312, %v7815
  %v7942 = vmul.f32 %v6313, %v7816
  %v7943 = vmul.f32 %v6314, %v7799
  %v7944 = vmul.f32 %v6315, %v7800
  %v7945 = vmul.f32 %v6316, %v7801
  %v7946 = vmul.f32 %v6317, %v7802
  %v7947 = vmul.f32 %v6318, %v7803
  %v7948 = vmul.f32 %v6319, %v7804
  %v7949 = vmul.f32 %v6320, %v7805
  %v7950 = vmul.f32 %v6321, %v7806
  %v7951 = vmul.f32 %v6322, %v7807
  %v7952 = vmul.f32 %v6323, %v7808
  %v7953 = vmul.f32 %v6324, %v7809
  %v7954 = vmul.f32 %v6325, %v7810
  %v7955 = vmul.f32 %v6326, %v7811
  %v7956 = vmul.f32 %v6327, %v7812
  %v7957 = vmul.f32 %v6328, %v7813
  %v7958 = vmul.f32 %v6329, %v7814
  %v7959 = vmul.f32 %v6330, %v7815
  %v7960 = vmul.f32 %v6331, %v7816
  %v7961 = vadd.f32 %v7817, %v7818
  %v7962 = vadd.f32 %v7961, %v7819
  %v7963 = vadd.f32 %v7962, %v7820
  %v7964 = vadd.f32 %v7963, %v7821
  %v7965 = vadd.f32 %v7964, %v7822
  %v7966 = vadd.f32 %v7965, %v7823
  %v7967 = vadd.f32 %v7966, %v7824
  %v7968 = vadd.f32 %v7967, %v7825
  %v7969 = vadd.f32 %v7968, %v7826
  %v7970 = vadd.f32 %v7969, %v7827
  %v7971 = vadd.f32 %v7970, %v7828
  %v7972 = vadd.f32 %v7971, %v7829
  %v7973 = vadd.f32 %v7972, %v7830
  %v7974 = vadd.f32 %v7973, %v7831
  %v7975 = vadd.f32 %v7974, %v7832
  %v7976 = vadd.f32 %v7975, %v7833
  %v7977 = vadd.f32 %v7976, %v7834
  %v7978 = vrot.slane %v7977, 4
  %v7979 = vadd.f32 %v7977, %v7978
  %v7980 = vrot.slane %v7979, 2
  %v7981 = vadd.f32 %v7979, %v7980
  %v7982 = vrot.slane %v7981, 1
  %v7983 = vadd.f32 %v7981, %v7982
  %v7984 = vadd.f32 %v7835, %v7836
  %v7985 = vadd.f32 %v7984, %v7837
  %v7986 = vadd.f32 %v7985, %v7838
  %v7987 = vadd.f32 %v7986, %v7839
  %v7988 = vadd.f32 %v7987, %v7840
  %v7989 = vadd.f32 %v7988, %v7841
  %v7990 = vadd.f32 %v7989, %v7842
  %v7991 = vadd.f32 %v7990, %v7843
  %v7992 = vadd.f32 %v7991, %v7844
  %v7993 = vadd.f32 %v7992, %v7845
  %v7994 = vadd.f32 %v7993, %v7846
  %v7995 = vadd.f32 %v7994, %v7847
  %v7996 = vadd.f32 %v7995, %v7848
  %v7997 = vadd.f32 %v7996, %v7849
  %v7998 = vadd.f32 %v7997, %v7850
  %v7999 = vadd.f32 %v7998, %v7851
  %v8000 = vadd.f32 %v7999, %v7852
  %v8001 = vrot.slane %v8000, 4
  %v8002 = vadd.f32 %v8000, %v8001
  %v8003 = vrot.slane %v8002, 2
  %v8004 = vadd.f32 %v8002, %v8003
  %v8005 = vrot.slane %v8004, 1
  %v8006 = vadd.f32 %v8004, %v8005
  %v8007 = vadd.f32 %v7853, %v7854
  %v8008 = vadd.f32 %v8007, %v7855
  %v8009 = vadd.f32 %v8008, %v7856
  %v8010 = vadd.f32 %v8009, %v7857
  %v8011 = vadd.f32 %v8010, %v7858
  %v8012 = vadd.f32 %v8011, %v7859
  %v8013 = vadd.f32 %v8012, %v7860
  %v8014 = vadd.f32 %v8013, %v7861
  %v8015 = vadd.f32 %v8014, %v7862
  %v8016 = vadd.f32 %v8015, %v7863
  %v8017 = vadd.f32 %v8016, %v7864
  %v8018 = vadd.f32 %v8017, %v7865
  %v8019 = vadd.f32 %v8018, %v7866
  %v8020 = vadd.f32 %v8019, %v7867
  %v8021 = vadd.f32 %v8020, %v7868
  %v8022 = vadd.f32 %v8021, %v7869
  %v8023 = vadd.f32 %v8022, %v7870
  %v8024 = vrot.slane %v8023, 4
  %v8025 = vadd.f32 %v8023, %v8024
  %v8026 = vrot.slane %v8025, 2
  %v8027 = vadd.f32 %v8025, %v8026
  %v8028 = vrot.slane %v8027, 1
  %v8029 = vadd.f32 %v8027, %v8028
  %v8030 = vadd.f32 %v7871, %v7872
  %v8031 = vadd.f32 %v8030, %v7873
  %v8032 = vadd.f32 %v8031, %v7874
  %v8033 = vadd.f32 %v8032, %v7875
  %v8034 = vadd.f32 %v8033, %v7876
  %v8035 = vadd.f32 %v8034, %v7877
  %v8036 = vadd.f32 %v8035, %v7878
  %v8037 = vadd.f32 %v8036, %v7879
  %v8038 = vadd.f32 %v8037, %v7880
  %v8039 = vadd.f32 %v8038, %v7881
  %v8040 = vadd.f32 %v8039, %v7882
  %v8041 = vadd.f32 %v8040, %v7883
  %v8042 = vadd.f32 %v8041, %v7884
  %v8043 = vadd.f32 %v8042, %v7885
  %v8044 = vadd.f32 %v8043, %v7886
  %v8045 = vadd.f32 %v8044, %v7887
  %v8046 = vadd.f32 %v8045, %v7888
  %v8047 = vrot.slane %v8046, 4
  %v8048 = vadd.f32 %v8046, %v8047
  %v8049 = vrot.slane %v8048, 2
  %v8050 = vadd.f32 %v8048, %v8049
  %v8051 = vrot.slane %v8050, 1
  %v8052 = vadd.f32 %v8050, %v8051
  %v8053 = vadd.f32 %v7889, %v7890
  %v8054 = vadd.f32 %v8053, %v7891
  %v8055 = vadd.f32 %v8054, %v7892
  %v8056 = vadd.f32 %v8055, %v7893
  %v8057 = vadd.f32 %v8056, %v7894
  %v8058 = vadd.f32 %v8057, %v7895
  %v8059 = vadd.f32 %v8058, %v7896
  %v8060 = vadd.f32 %v8059, %v7897
  %v8061 = vadd.f32 %v8060, %v7898
  %v8062 = vadd.f32 %v8061, %v7899
  %v8063 = vadd.f32 %v8062, %v7900
  %v8064 = vadd.f32 %v8063, %v7901
  %v8065 = vadd.f32 %v8064, %v7902
  %v8066 = vadd.f32 %v8065, %v7903
  %v8067 = vadd.f32 %v8066, %v7904
  %v8068 = vadd.f32 %v8067, %v7905
  %v8069 = vadd.f32 %v8068, %v7906
  %v8070 = vrot.slane %v8069, 4
  %v8071 = vadd.f32 %v8069, %v8070
  %v8072 = vrot.slane %v8071, 2
  %v8073 = vadd.f32 %v8071, %v8072
  %v8074 = vrot.slane %v8073, 1
  %v8075 = vadd.f32 %v8073, %v8074
  %v8076 = vadd.f32 %v7907, %v7908
  %v8077 = vadd.f32 %v8076, %v7909
  %v8078 = vadd.f32 %v8077, %v7910
  %v8079 = vadd.f32 %v8078, %v7911
  %v8080 = vadd.f32 %v8079, %v7912
  %v8081 = vadd.f32 %v8080, %v7913
  %v8082 = vadd.f32 %v8081, %v7914
  %v8083 = vadd.f32 %v8082, %v7915
  %v8084 = vadd.f32 %v8083, %v7916
  %v8085 = vadd.f32 %v8084, %v7917
  %v8086 = vadd.f32 %v8085, %v7918
  %v8087 = vadd.f32 %v8086, %v7919
  %v8088 = vadd.f32 %v8087, %v7920
  %v8089 = vadd.f32 %v8088, %v7921
  %v8090 = vadd.f32 %v8089, %v7922
  %v8091 = vadd.f32 %v8090, %v7923
  %v8092 = vadd.f32 %v8091, %v7924
  %v8093 = vrot.slane %v8092, 4
  %v8094 = vadd.f32 %v8092, %v8093
  %v8095 = vrot.slane %v8094, 2
  %v8096 = vadd.f32 %v8094, %v8095
  %v8097 = vrot.slane %v8096, 1
  %v8098 = vadd.f32 %v8096, %v8097
  %v8099 = vadd.f32 %v7925, %v7926
  %v8100 = vadd.f32 %v8099, %v7927
  %v8101 = vadd.f32 %v8100, %v7928
  %v8102 = vadd.f32 %v8101, %v7929
  %v8103 = vadd.f32 %v8102, %v7930
  %v8104 = vadd.f32 %v8103, %v7931
  %v8105 = vadd.f32 %v8104, %v7932
  %v8106 = vadd.f32 %v8105, %v7933
  %v8107 = vadd.f32 %v8106, %v7934
  %v8108 = vadd.f32 %v8107, %v7935
  %v8109 = vadd.f32 %v8108, %v7936
  %v8110 = vadd.f32 %v8109, %v7937
  %v8111 = vadd.f32 %v8110, %v7938
  %v8112 = vadd.f32 %v8111, %v7939
  %v8113 = vadd.f32 %v8112, %v7940
  %v8114 = vadd.f32 %v8113, %v7941
  %v8115 = vadd.f32 %v8114, %v7942
  %v8116 = vrot.slane %v8115, 4
  %v8117 = vadd.f32 %v8115, %v8116
  %v8118 = vrot.slane %v8117, 2
  %v8119 = vadd.f32 %v8117, %v8118
  %v8120 = vrot.slane %v8119, 1
  %v8121 = vadd.f32 %v8119, %v8120
  %v8122 = vadd.f32 %v7943, %v7944
  %v8123 = vadd.f32 %v8122, %v7945
  %v8124 = vadd.f32 %v8123, %v7946
  %v8125 = vadd.f32 %v8124, %v7947
  %v8126 = vadd.f32 %v8125, %v7948
  %v8127 = vadd.f32 %v8126, %v7949
  %v8128 = vadd.f32 %v8127, %v7950
  %v8129 = vadd.f32 %v8128, %v7951
  %v8130 = vadd.f32 %v8129, %v7952
  %v8131 = vadd.f32 %v8130, %v7953
  %v8132 = vadd.f32 %v8131, %v7954
  %v8133 = vadd.f32 %v8132, %v7955
  %v8134 = vadd.f32 %v8133, %v7956
  %v8135 = vadd.f32 %v8134, %v7957
  %v8136 = vadd.f32 %v8135, %v7958
  %v8137 = vadd.f32 %v8136, %v7959
  %v8138 = vadd.f32 %v8137, %v7960
  %v8139 = vrot.slane %v8138, 4
  %v8140 = vadd.f32 %v8138, %v8139
  %v8141 = vrot.slane %v8140, 2
  %v8142 = vadd.f32 %v8140, %v8141
  %v8143 = vrot.slane %v8142, 1
  %v8144 = vadd.f32 %v8142, %v8143
  %v8153 = vsel %vm6686, %v8006, %v7983
  %v8154 = vsel %vm6688, %v8029, %v8153
  %v8155 = vsel %vm6690, %v8052, %v8154
  %v8156 = vsel %vm6692, %v8075, %v8155
  %v8157 = vsel %vm6694, %v8098, %v8156
  %v8158 = vsel %vm6696, %v8121, %v8157
  %v8159 = vsel %vm6698, %v8144, %v8158
  %8161 = vadd.xlane.f32.xlu0 %v8159
  %v8162 = vpop.xlane.xlu0 %8161
  %s8163 = scalar_lea.vmem %s5, 720
  %v8164 = vld [vmem:[%s8163] sm:$0xff]
  %v8165 = vld [vmem:[%s8163 + $0x8] sm:$0xff]
  %v8166 = vld [vmem:[%s8163 + $0x10] sm:$0xff]
  %v8167 = vld [vmem:[%s8163 + $0x18] sm:$0xff]
  %v8168 = vld [vmem:[%s8163 + $0x20] sm:$0xff]
  %v8169 = vld [vmem:[%s8163 + $0x28] sm:$0xff]
  %v8170 = vld [vmem:[%s8163 + $0x30] sm:$0xff]
  %v8171 = vld [vmem:[%s8163 + $0x38] sm:$0xff]
  %v8172 = vld [vmem:[%s8163 + $0x40] sm:$0xff]
  %v8173 = vld [vmem:[%s8163 + $0x48] sm:$0xff]
  %v8174 = vld [vmem:[%s8163 + $0x50] sm:$0xff]
  %v8175 = vld [vmem:[%s8163 + $0x58] sm:$0xff]
  %v8176 = vld [vmem:[%s8163 + $0x60] sm:$0xff]
  %v8177 = vld [vmem:[%s8163 + $0x68] sm:$0xff]
  %v8178 = vld [vmem:[%s8163 + $0x70] sm:$0xff]
  %v8179 = vld [vmem:[%s8163 + $0x78] sm:$0xff]
  %v8180 = vld [vmem:[%s8163 + $0x80] sm:$0xff]
  %v8181 = vld [vmem:[%s8163 + $0x88] sm:$0xff]
  %v8182 = vmul.f32 %v6188, %v8164
  %v8183 = vmul.f32 %v6189, %v8165
  %v8184 = vmul.f32 %v6190, %v8166
  %v8185 = vmul.f32 %v6191, %v8167
  %v8186 = vmul.f32 %v6192, %v8168
  %v8187 = vmul.f32 %v6193, %v8169
  %v8188 = vmul.f32 %v6194, %v8170
  %v8189 = vmul.f32 %v6195, %v8171
  %v8190 = vmul.f32 %v6196, %v8172
  %v8191 = vmul.f32 %v6197, %v8173
  %v8192 = vmul.f32 %v6198, %v8174
  %v8193 = vmul.f32 %v6199, %v8175
  %v8194 = vmul.f32 %v6200, %v8176
  %v8195 = vmul.f32 %v6201, %v8177
  %v8196 = vmul.f32 %v6202, %v8178
  %v8197 = vmul.f32 %v6203, %v8179
  %v8198 = vmul.f32 %v6204, %v8180
  %v8199 = vmul.f32 %v6205, %v8181
  %v8200 = vmul.f32 %v6206, %v8164
  %v8201 = vmul.f32 %v6207, %v8165
  %v8202 = vmul.f32 %v6208, %v8166
  %v8203 = vmul.f32 %v6209, %v8167
  %v8204 = vmul.f32 %v6210, %v8168
  %v8205 = vmul.f32 %v6211, %v8169
  %v8206 = vmul.f32 %v6212, %v8170
  %v8207 = vmul.f32 %v6213, %v8171
  %v8208 = vmul.f32 %v6214, %v8172
  %v8209 = vmul.f32 %v6215, %v8173
  %v8210 = vmul.f32 %v6216, %v8174
  %v8211 = vmul.f32 %v6217, %v8175
  %v8212 = vmul.f32 %v6218, %v8176
  %v8213 = vmul.f32 %v6219, %v8177
  %v8214 = vmul.f32 %v6220, %v8178
  %v8215 = vmul.f32 %v6221, %v8179
  %v8216 = vmul.f32 %v6222, %v8180
  %v8217 = vmul.f32 %v6223, %v8181
  %v8218 = vmul.f32 %v6224, %v8164
  %v8219 = vmul.f32 %v6225, %v8165
  %v8220 = vmul.f32 %v6226, %v8166
  %v8221 = vmul.f32 %v6227, %v8167
  %v8222 = vmul.f32 %v6228, %v8168
  %v8223 = vmul.f32 %v6229, %v8169
  %v8224 = vmul.f32 %v6230, %v8170
  %v8225 = vmul.f32 %v6231, %v8171
  %v8226 = vmul.f32 %v6232, %v8172
  %v8227 = vmul.f32 %v6233, %v8173
  %v8228 = vmul.f32 %v6234, %v8174
  %v8229 = vmul.f32 %v6235, %v8175
  %v8230 = vmul.f32 %v6236, %v8176
  %v8231 = vmul.f32 %v6237, %v8177
  %v8232 = vmul.f32 %v6238, %v8178
  %v8233 = vmul.f32 %v6239, %v8179
  %v8234 = vmul.f32 %v6240, %v8180
  %v8235 = vmul.f32 %v6241, %v8181
  %v8236 = vmul.f32 %v6242, %v8164
  %v8237 = vmul.f32 %v6243, %v8165
  %v8238 = vmul.f32 %v6244, %v8166
  %v8239 = vmul.f32 %v6245, %v8167
  %v8240 = vmul.f32 %v6246, %v8168
  %v8241 = vmul.f32 %v6247, %v8169
  %v8242 = vmul.f32 %v6248, %v8170
  %v8243 = vmul.f32 %v6249, %v8171
  %v8244 = vmul.f32 %v6250, %v8172
  %v8245 = vmul.f32 %v6251, %v8173
  %v8246 = vmul.f32 %v6252, %v8174
  %v8247 = vmul.f32 %v6253, %v8175
  %v8248 = vmul.f32 %v6254, %v8176
  %v8249 = vmul.f32 %v6255, %v8177
  %v8250 = vmul.f32 %v6256, %v8178
  %v8251 = vmul.f32 %v6257, %v8179
  %v8252 = vmul.f32 %v6258, %v8180
  %v8253 = vmul.f32 %v6259, %v8181
  %v8254 = vmul.f32 %v6260, %v8164
  %v8255 = vmul.f32 %v6261, %v8165
  %v8256 = vmul.f32 %v6262, %v8166
  %v8257 = vmul.f32 %v6263, %v8167
  %v8258 = vmul.f32 %v6264, %v8168
  %v8259 = vmul.f32 %v6265, %v8169
  %v8260 = vmul.f32 %v6266, %v8170
  %v8261 = vmul.f32 %v6267, %v8171
  %v8262 = vmul.f32 %v6268, %v8172
  %v8263 = vmul.f32 %v6269, %v8173
  %v8264 = vmul.f32 %v6270, %v8174
  %v8265 = vmul.f32 %v6271, %v8175
  %v8266 = vmul.f32 %v6272, %v8176
  %v8267 = vmul.f32 %v6273, %v8177
  %v8268 = vmul.f32 %v6274, %v8178
  %v8269 = vmul.f32 %v6275, %v8179
  %v8270 = vmul.f32 %v6276, %v8180
  %v8271 = vmul.f32 %v6277, %v8181
  %v8272 = vmul.f32 %v6278, %v8164
  %v8273 = vmul.f32 %v6279, %v8165
  %v8274 = vmul.f32 %v6280, %v8166
  %v8275 = vmul.f32 %v6281, %v8167
  %v8276 = vmul.f32 %v6282, %v8168
  %v8277 = vmul.f32 %v6283, %v8169
  %v8278 = vmul.f32 %v6284, %v8170
  %v8279 = vmul.f32 %v6285, %v8171
  %v8280 = vmul.f32 %v6286, %v8172
  %v8281 = vmul.f32 %v6287, %v8173
  %v8282 = vmul.f32 %v6288, %v8174
  %v8283 = vmul.f32 %v6289, %v8175
  %v8284 = vmul.f32 %v6290, %v8176
  %v8285 = vmul.f32 %v6291, %v8177
  %v8286 = vmul.f32 %v6292, %v8178
  %v8287 = vmul.f32 %v6293, %v8179
  %v8288 = vmul.f32 %v6294, %v8180
  %v8289 = vmul.f32 %v6295, %v8181
  %v8290 = vmul.f32 %v6296, %v8164
  %v8291 = vmul.f32 %v6297, %v8165
  %v8292 = vmul.f32 %v6298, %v8166
  %v8293 = vmul.f32 %v6299, %v8167
  %v8294 = vmul.f32 %v6300, %v8168
  %v8295 = vmul.f32 %v6301, %v8169
  %v8296 = vmul.f32 %v6302, %v8170
  %v8297 = vmul.f32 %v6303, %v8171
  %v8298 = vmul.f32 %v6304, %v8172
  %v8299 = vmul.f32 %v6305, %v8173
  %v8300 = vmul.f32 %v6306, %v8174
  %v8301 = vmul.f32 %v6307, %v8175
  %v8302 = vmul.f32 %v6308, %v8176
  %v8303 = vmul.f32 %v6309, %v8177
  %v8304 = vmul.f32 %v6310, %v8178
  %v8305 = vmul.f32 %v6311, %v8179
  %v8306 = vmul.f32 %v6312, %v8180
  %v8307 = vmul.f32 %v6313, %v8181
  %v8308 = vmul.f32 %v6314, %v8164
  %v8309 = vmul.f32 %v6315, %v8165
  %v8310 = vmul.f32 %v6316, %v8166
  %v8311 = vmul.f32 %v6317, %v8167
  %v8312 = vmul.f32 %v6318, %v8168
  %v8313 = vmul.f32 %v6319, %v8169
  %v8314 = vmul.f32 %v6320, %v8170
  %v8315 = vmul.f32 %v6321, %v8171
  %v8316 = vmul.f32 %v6322, %v8172
  %v8317 = vmul.f32 %v6323, %v8173
  %v8318 = vmul.f32 %v6324, %v8174
  %v8319 = vmul.f32 %v6325, %v8175
  %v8320 = vmul.f32 %v6326, %v8176
  %v8321 = vmul.f32 %v6327, %v8177
  %v8322 = vmul.f32 %v6328, %v8178
  %v8323 = vmul.f32 %v6329, %v8179
  %v8324 = vmul.f32 %v6330, %v8180
  %v8325 = vmul.f32 %v6331, %v8181
  %v8326 = vadd.f32 %v8182, %v8183
  %v8327 = vadd.f32 %v8326, %v8184
  %v8328 = vadd.f32 %v8327, %v8185
  %v8329 = vadd.f32 %v8328, %v8186
  %v8330 = vadd.f32 %v8329, %v8187
  %v8331 = vadd.f32 %v8330, %v8188
  %v8332 = vadd.f32 %v8331, %v8189
  %v8333 = vadd.f32 %v8332, %v8190
  %v8334 = vadd.f32 %v8333, %v8191
  %v8335 = vadd.f32 %v8334, %v8192
  %v8336 = vadd.f32 %v8335, %v8193
  %v8337 = vadd.f32 %v8336, %v8194
  %v8338 = vadd.f32 %v8337, %v8195
  %v8339 = vadd.f32 %v8338, %v8196
  %v8340 = vadd.f32 %v8339, %v8197
  %v8341 = vadd.f32 %v8340, %v8198
  %v8342 = vadd.f32 %v8341, %v8199
  %v8343 = vrot.slane %v8342, 4
  %v8344 = vadd.f32 %v8342, %v8343
  %v8345 = vrot.slane %v8344, 2
  %v8346 = vadd.f32 %v8344, %v8345
  %v8347 = vrot.slane %v8346, 1
  %v8348 = vadd.f32 %v8346, %v8347
  %v8349 = vadd.f32 %v8200, %v8201
  %v8350 = vadd.f32 %v8349, %v8202
  %v8351 = vadd.f32 %v8350, %v8203
  %v8352 = vadd.f32 %v8351, %v8204
  %v8353 = vadd.f32 %v8352, %v8205
  %v8354 = vadd.f32 %v8353, %v8206
  %v8355 = vadd.f32 %v8354, %v8207
  %v8356 = vadd.f32 %v8355, %v8208
  %v8357 = vadd.f32 %v8356, %v8209
  %v8358 = vadd.f32 %v8357, %v8210
  %v8359 = vadd.f32 %v8358, %v8211
  %v8360 = vadd.f32 %v8359, %v8212
  %v8361 = vadd.f32 %v8360, %v8213
  %v8362 = vadd.f32 %v8361, %v8214
  %v8363 = vadd.f32 %v8362, %v8215
  %v8364 = vadd.f32 %v8363, %v8216
  %v8365 = vadd.f32 %v8364, %v8217
  %v8366 = vrot.slane %v8365, 4
  %v8367 = vadd.f32 %v8365, %v8366
  %v8368 = vrot.slane %v8367, 2
  %v8369 = vadd.f32 %v8367, %v8368
  %v8370 = vrot.slane %v8369, 1
  %v8371 = vadd.f32 %v8369, %v8370
  %v8372 = vadd.f32 %v8218, %v8219
  %v8373 = vadd.f32 %v8372, %v8220
  %v8374 = vadd.f32 %v8373, %v8221
  %v8375 = vadd.f32 %v8374, %v8222
  %v8376 = vadd.f32 %v8375, %v8223
  %v8377 = vadd.f32 %v8376, %v8224
  %v8378 = vadd.f32 %v8377, %v8225
  %v8379 = vadd.f32 %v8378, %v8226
  %v8380 = vadd.f32 %v8379, %v8227
  %v8381 = vadd.f32 %v8380, %v8228
  %v8382 = vadd.f32 %v8381, %v8229
  %v8383 = vadd.f32 %v8382, %v8230
  %v8384 = vadd.f32 %v8383, %v8231
  %v8385 = vadd.f32 %v8384, %v8232
  %v8386 = vadd.f32 %v8385, %v8233
  %v8387 = vadd.f32 %v8386, %v8234
  %v8388 = vadd.f32 %v8387, %v8235
  %v8389 = vrot.slane %v8388, 4
  %v8390 = vadd.f32 %v8388, %v8389
  %v8391 = vrot.slane %v8390, 2
  %v8392 = vadd.f32 %v8390, %v8391
  %v8393 = vrot.slane %v8392, 1
  %v8394 = vadd.f32 %v8392, %v8393
  %v8395 = vadd.f32 %v8236, %v8237
  %v8396 = vadd.f32 %v8395, %v8238
  %v8397 = vadd.f32 %v8396, %v8239
  %v8398 = vadd.f32 %v8397, %v8240
  %v8399 = vadd.f32 %v8398, %v8241
  %v8400 = vadd.f32 %v8399, %v8242
  %v8401 = vadd.f32 %v8400, %v8243
  %v8402 = vadd.f32 %v8401, %v8244
  %v8403 = vadd.f32 %v8402, %v8245
  %v8404 = vadd.f32 %v8403, %v8246
  %v8405 = vadd.f32 %v8404, %v8247
  %v8406 = vadd.f32 %v8405, %v8248
  %v8407 = vadd.f32 %v8406, %v8249
  %v8408 = vadd.f32 %v8407, %v8250
  %v8409 = vadd.f32 %v8408, %v8251
  %v8410 = vadd.f32 %v8409, %v8252
  %v8411 = vadd.f32 %v8410, %v8253
  %v8412 = vrot.slane %v8411, 4
  %v8413 = vadd.f32 %v8411, %v8412
  %v8414 = vrot.slane %v8413, 2
  %v8415 = vadd.f32 %v8413, %v8414
  %v8416 = vrot.slane %v8415, 1
  %v8417 = vadd.f32 %v8415, %v8416
  %v8418 = vadd.f32 %v8254, %v8255
  %v8419 = vadd.f32 %v8418, %v8256
  %v8420 = vadd.f32 %v8419, %v8257
  %v8421 = vadd.f32 %v8420, %v8258
  %v8422 = vadd.f32 %v8421, %v8259
  %v8423 = vadd.f32 %v8422, %v8260
  %v8424 = vadd.f32 %v8423, %v8261
  %v8425 = vadd.f32 %v8424, %v8262
  %v8426 = vadd.f32 %v8425, %v8263
  %v8427 = vadd.f32 %v8426, %v8264
  %v8428 = vadd.f32 %v8427, %v8265
  %v8429 = vadd.f32 %v8428, %v8266
  %v8430 = vadd.f32 %v8429, %v8267
  %v8431 = vadd.f32 %v8430, %v8268
  %v8432 = vadd.f32 %v8431, %v8269
  %v8433 = vadd.f32 %v8432, %v8270
  %v8434 = vadd.f32 %v8433, %v8271
  %v8435 = vrot.slane %v8434, 4
  %v8436 = vadd.f32 %v8434, %v8435
  %v8437 = vrot.slane %v8436, 2
  %v8438 = vadd.f32 %v8436, %v8437
  %v8439 = vrot.slane %v8438, 1
  %v8440 = vadd.f32 %v8438, %v8439
  %v8441 = vadd.f32 %v8272, %v8273
  %v8442 = vadd.f32 %v8441, %v8274
  %v8443 = vadd.f32 %v8442, %v8275
  %v8444 = vadd.f32 %v8443, %v8276
  %v8445 = vadd.f32 %v8444, %v8277
  %v8446 = vadd.f32 %v8445, %v8278
  %v8447 = vadd.f32 %v8446, %v8279
  %v8448 = vadd.f32 %v8447, %v8280
  %v8449 = vadd.f32 %v8448, %v8281
  %v8450 = vadd.f32 %v8449, %v8282
  %v8451 = vadd.f32 %v8450, %v8283
  %v8452 = vadd.f32 %v8451, %v8284
  %v8453 = vadd.f32 %v8452, %v8285
  %v8454 = vadd.f32 %v8453, %v8286
  %v8455 = vadd.f32 %v8454, %v8287
  %v8456 = vadd.f32 %v8455, %v8288
  %v8457 = vadd.f32 %v8456, %v8289
  %v8458 = vrot.slane %v8457, 4
  %v8459 = vadd.f32 %v8457, %v8458
  %v8460 = vrot.slane %v8459, 2
  %v8461 = vadd.f32 %v8459, %v8460
  %v8462 = vrot.slane %v8461, 1
  %v8463 = vadd.f32 %v8461, %v8462
  %v8464 = vadd.f32 %v8290, %v8291
  %v8465 = vadd.f32 %v8464, %v8292
  %v8466 = vadd.f32 %v8465, %v8293
  %v8467 = vadd.f32 %v8466, %v8294
  %v8468 = vadd.f32 %v8467, %v8295
  %v8469 = vadd.f32 %v8468, %v8296
  %v8470 = vadd.f32 %v8469, %v8297
  %v8471 = vadd.f32 %v8470, %v8298
  %v8472 = vadd.f32 %v8471, %v8299
  %v8473 = vadd.f32 %v8472, %v8300
  %v8474 = vadd.f32 %v8473, %v8301
  %v8475 = vadd.f32 %v8474, %v8302
  %v8476 = vadd.f32 %v8475, %v8303
  %v8477 = vadd.f32 %v8476, %v8304
  %v8478 = vadd.f32 %v8477, %v8305
  %v8479 = vadd.f32 %v8478, %v8306
  %v8480 = vadd.f32 %v8479, %v8307
  %v8481 = vrot.slane %v8480, 4
  %v8482 = vadd.f32 %v8480, %v8481
  %v8483 = vrot.slane %v8482, 2
  %v8484 = vadd.f32 %v8482, %v8483
  %v8485 = vrot.slane %v8484, 1
  %v8486 = vadd.f32 %v8484, %v8485
  %v8487 = vadd.f32 %v8308, %v8309
  %v8488 = vadd.f32 %v8487, %v8310
  %v8489 = vadd.f32 %v8488, %v8311
  %v8490 = vadd.f32 %v8489, %v8312
  %v8491 = vadd.f32 %v8490, %v8313
  %v8492 = vadd.f32 %v8491, %v8314
  %v8493 = vadd.f32 %v8492, %v8315
  %v8494 = vadd.f32 %v8493, %v8316
  %v8495 = vadd.f32 %v8494, %v8317
  %v8496 = vadd.f32 %v8495, %v8318
  %v8497 = vadd.f32 %v8496, %v8319
  %v8498 = vadd.f32 %v8497, %v8320
  %v8499 = vadd.f32 %v8498, %v8321
  %v8500 = vadd.f32 %v8499, %v8322
  %v8501 = vadd.f32 %v8500, %v8323
  %v8502 = vadd.f32 %v8501, %v8324
  %v8503 = vadd.f32 %v8502, %v8325
  %v8504 = vrot.slane %v8503, 4
  %v8505 = vadd.f32 %v8503, %v8504
  %v8506 = vrot.slane %v8505, 2
  %v8507 = vadd.f32 %v8505, %v8506
  %v8508 = vrot.slane %v8507, 1
  %v8509 = vadd.f32 %v8507, %v8508
  %v8518 = vsel %vm6686, %v8371, %v8348
  %v8519 = vsel %vm6688, %v8394, %v8518
  %v8520 = vsel %vm6690, %v8417, %v8519
  %v8521 = vsel %vm6692, %v8440, %v8520
  %v8522 = vsel %vm6694, %v8463, %v8521
  %v8523 = vsel %vm6696, %v8486, %v8522
  %v8524 = vsel %vm6698, %v8509, %v8523
  %8526 = vadd.xlane.f32.xlu0 %v8524
  %v8527 = vpop.xlane.xlu0 %8526
  %vm8528 = vcmask 7168
  %v8529 = vsel %vm8528, %v6702, %v7067
  %vm8530 = vcmask 15360
  %v8531 = vsel %vm8530, %v8529, %v7432
  %vm8532 = vcmask 23552
  %v8533 = vsel %vm8532, %v8531, %v7797
  %vm8534 = vcmask 31744
  %v8535 = vsel %vm8534, %v8533, %v8162
  %vm8536 = vcmask 39936
  %v8537 = vsel %vm8536, %v8535, %v8527
  %v8538 = vld [vmem:[%s6] sm:$0x1]
  %v8540 = vlaneseq
  %v8541 = vshrl.u32 %v8540, 7
  %v8542 = vsub.s32 0, %v8541
  %v8543 = vrot.slane %v8538, %v8542
  %v8545 = vadd.f32 %v8537, %v8543
  %vm8546 = vcmask 48128
  %8547 = vst.msk [vmem:[%s7] sm:$0xff] %vm8546, %v8545
  // Predicated region
  $region30: #{net_ucihar_forward.1} parent=0 // pred_check
    _
  $region31: #{net_ucihar_forward.1} parent=0 // pred_check_branch
    %8549 = sbr.rel (0) target = $region33
  $region32: #{net_ucihar_forward.1} parent=0 // pred_region
    _
  $region33: #{net_ucihar_forward.1} parent=0 // pred_fallthru
    _
  // Predicated region
  $region34: #{net_ucihar_forward.1} parent=0 // pred_check
    _
  $region35: #{net_ucihar_forward.1} parent=0 // pred_check_branch
    %8551 = sbr.rel (0) target = $region37
  $region36: #{net_ucihar_forward.1} parent=0 // pred_region
    _
  $region37: #{net_ucihar_forward.1} parent=0 // pred_fallthru
    _

</llo_original>
